<compile_context>
chip_gen: v7x
topology: tpu7x:2x2x1
jax: 0.10.0
libtpu: 0.0.40
codegen_flags: <defaults>
</compile_context>

<pallas_src>
import functools

import jax
import jax.numpy as jnp
from jax import lax
from jax.experimental import pallas as pl
from jax.experimental.pallas import tpu as pltpu


# ----------------------------------------------------------------------------
# tile selection helpers
# ----------------------------------------------------------------------------
def _round_up(x, m):
    return (x + m - 1) // m * m


def _pick_tile_m(m):
    """Returns (tm, Mp).  Avoids padding whenever possible."""
    if m < 8:
        return 8, 8                      # tiny fc-style rows: pad to one sublane tile
    if m <= 512:
        return m, m                      # full-dim block, no padding
    for t in (512, 256, 128):
        if m % t == 0:
            return t, m
    return 128, _round_up(m, 128)        # rare fallback


def _pick_tile_k(k):
    if k % 128 == 0:
        for t in (512, 256, 128):
            if k % t == 0:
                return t
    return k                             # small / irregular K -> full-dim block


def _pick_tile_n(npad):
    return 256 if npad % 256 == 0 else 128


_VMEM_LIMIT = 48 * 1024 * 1024           # safe on v5e/v6e (128 MiB) and v7x (64 MiB)


# ----------------------------------------------------------------------------
# fused matmul kernel: bf16 MXU, f32 accumulate, fused epilogue + BN stats
# ----------------------------------------------------------------------------
def _make_matmul_kernel(act, with_bias, with_stats):
    def kernel(*refs):
        pos = 0
        a_ref = refs[pos]; pos += 1
        b_ref = refs[pos]; pos += 1
        bias_ref = None
        if with_bias:
            bias_ref = refs[pos]; pos += 1
        o_ref = refs[pos]; pos += 1
        sum_ref = sq_ref = None
        if with_stats:
            sum_ref, sq_ref = refs[pos], refs[pos + 1]; pos += 2
        acc_ref = refs[pos]

        i = pl.program_id(1)             # grid = (j: out-cols, i: rows, k: reduction)
        k = pl.program_id(2)
        nk = pl.num_programs(2)

        @pl.when(k == 0)
        def _():
            acc_ref[...] = jnp.zeros_like(acc_ref)

        if with_stats:
            # stats outputs stay VMEM-resident across the whole (i, k) sweep of a j.
            @pl.when((k == 0) & (i == 0))
            def _():
                sum_ref[...] = jnp.zeros_like(sum_ref)
                sq_ref[...] = jnp.zeros_like(sq_ref)

        acc_ref[...] += jnp.dot(a_ref[...], b_ref[...],
                                preferred_element_type=jnp.float32)

        @pl.when(k == nk - 1)
        def _():
            acc = acc_ref[...]
            if with_stats:
                sum_ref[...] += jnp.sum(acc, axis=0, keepdims=True)
                sq_ref[...] += jnp.sum(acc * acc, axis=0, keepdims=True)
            y = acc
            if with_bias:
                y = y + bias_ref[...]
            if act == "relu":
                y = jnp.maximum(y, 0.0)
            elif act == "tanh":
                y = jnp.tanh(y)
            o_ref[...] = y.astype(o_ref.dtype)

    return kernel


def fused_matmul(a, b, *, bias=None, act=None, with_stats=False,
                 out_dtype=jnp.bfloat16):
    """act(a @ b + bias) with bf16 MXU inputs and f32 accumulation.

    a: (M, K), b: (K, N).  N is padded to a multiple of 128 so all stores are
    lane-dense; the caller slices the valid columns lazily.  When `with_stats`
    is set, also returns per-column sum / sum-of-squares of (a @ b) in f32
    (accumulated in VMEM-resident outputs) for a following BatchNorm.
    """
    M, K = a.shape
    K2, N = b.shape
    assert K == K2
    Np = max(128, _round_up(N, 128))
    tn = _pick_tile_n(Np)
    tm, Mp = _pick_tile_m(M)
    tk = _pick_tile_k(K)

    a = a.astype(jnp.bfloat16)
    if Mp != M:
        a = jnp.pad(a, ((0, Mp - M), (0, 0)))        # rare (only M < 8)
    b = b.astype(jnp.bfloat16)
    if Np != N:
        b = jnp.pad(b, ((0, 0), (0, Np - N)))        # small weight matrix only

    grid = (Np // tn, Mp // tm, K // tk)

    in_specs = [
        pl.BlockSpec((tm, tk), lambda j, i, k: (i, k)),
        pl.BlockSpec((tk, tn), lambda j, i, k: (k, j)),
    ]
    inputs = [a, b]
    if bias is not None:
        bias_p = jnp.zeros((1, Np), jnp.float32).at[0, :N].set(
            bias.astype(jnp.float32))
        in_specs.append(pl.BlockSpec((1, tn), lambda j, i, k: (0, j)))
        inputs.append(bias_p)

    out_shape = [jax.ShapeDtypeStruct((Mp, Np), out_dtype)]
    out_specs = [pl.BlockSpec((tm, tn), lambda j, i, k: (i, j))]
    if with_stats:
        out_shape += [jax.ShapeDtypeStruct((1, Np), jnp.float32)] * 2
        out_specs += [pl.BlockSpec((1, tn), lambda j, i, k: (0, j))] * 2

    kernel = _make_matmul_kernel(act, bias is not None, with_stats)
    # the row axis must stay "arbitrary" when per-column stats accumulate
    # across it; the output-column axis is always safe to parallelise.
    row_sem = "arbitrary" if with_stats else "parallel"

    out = pl.pallas_call(
        kernel,
        out_shape=tuple(out_shape),
        grid_spec=pltpu.PrefetchScalarGridSpec(
            num_scalar_prefetch=0,
            grid=grid,
            in_specs=in_specs,
            out_specs=tuple(out_specs),
            scratch_shapes=[pltpu.VMEM((tm, tn), jnp.float32)],
        ),
        compiler_params=pltpu.CompilerParams(
            dimension_semantics=("parallel", row_sem, "arbitrary"),
            vmem_limit_bytes=_VMEM_LIMIT,
        ),
    )(*inputs)

    if with_stats:
        rows, ssum, ssq = out
        return rows, ssum, ssq
    return out[0]


# ----------------------------------------------------------------------------
# tiled per-channel scale/shift (+ReLU) kernel: BatchNorm normalize epilogue
# ----------------------------------------------------------------------------
def _scale_shift_act_kernel(x_ref, s_ref, t_ref, o_ref, *, act):
    y = x_ref[...].astype(jnp.float32) * s_ref[...] + t_ref[...]
    if act == "relu":
        y = jnp.maximum(y, 0.0)
    o_ref[...] = y.astype(o_ref.dtype)


def scale_shift_act(x, scale, shift, *, act="relu", out_dtype=jnp.bfloat16):
    """x: (M, C) with C a multiple of 128; per-column y = act(x*scale + shift)."""
    M, C = x.shape
    tm, Mp = _pick_tile_m(M)
    assert Mp == M            # x always comes from fused_matmul (already padded)
    tn = _pick_tile_n(C)
    return pl.pallas_call(
        functools.partial(_scale_shift_act_kernel, act=act),
        out_shape=jax.ShapeDtypeStruct((M, C), out_dtype),
        grid_spec=pltpu.PrefetchScalarGridSpec(
            num_scalar_prefetch=0,
            grid=(M // tm, C // tn),
            in_specs=[
                pl.BlockSpec((tm, tn), lambda i, j: (i, j)),
                pl.BlockSpec((1, tn), lambda i, j: (0, j)),
                pl.BlockSpec((1, tn), lambda i, j: (0, j)),
            ],
            out_specs=pl.BlockSpec((tm, tn), lambda i, j: (i, j)),
        ),
        compiler_params=pltpu.CompilerParams(
            dimension_semantics=("parallel", "parallel"),
            vmem_limit_bytes=_VMEM_LIMIT,
        ),
    )(x, scale.reshape(1, C), shift.reshape(1, C))


def _bn_scale_shift(ssum, ssq, count, gamma, beta, eps=1e-5):
    """Training-mode BatchNorm: fold batch stats + affine into scale/shift."""
    npad = ssum.shape[1]
    mean = ssum[0] / count
    var = jnp.maximum(ssq[0] / count - mean * mean, 0.0)
    g = jnp.zeros((npad,), jnp.float32).at[:gamma.shape[0]].set(
        gamma.astype(jnp.float32))
    b = jnp.zeros((npad,), jnp.float32).at[:beta.shape[0]].set(
        beta.astype(jnp.float32))
    scale = g * lax.rsqrt(var + eps)
    shift = b - mean * scale
    return scale, shift


# ----------------------------------------------------------------------------
# Conv3d(k=4, s=2, p=1) + BN + ReLU   (channels-last activations)
# ----------------------------------------------------------------------------
def _im2col_s2k4(x_cl):
    """(N, D, H, W, C) -> (N*Do*Ho*Wo, 64*C), columns ordered (kd, kh, kw, c)."""
    N, D, H, W, C = x_cl.shape
    Do, Ho, Wo = D // 2, H // 2, W // 2
    xp = jnp.pad(x_cl, ((0, 0), (1, 1), (1, 1), (1, 1), (0, 0)))
    cols = []
    for kd in range(4):
        for kh in range(4):
            for kw in range(4):
                cols.append(xp[:, kd:kd + 2 * Do:2,
                               kh:kh + 2 * Ho:2,
                               kw:kw + 2 * Wo:2, :])
    A = jnp.concatenate(cols, axis=-1).reshape(N * Do * Ho * Wo, 64 * C)
    return A, (N, Do, Ho, Wo)


def conv3d_bn_relu(x_cl, w, gamma, beta):
    """PyTorch Conv3d(k=4,s=2,p=1,bias=False) + BatchNorm3d(train) + ReLU."""
    c_out = w.shape[0]
    A, (N, Do, Ho, Wo) = _im2col_s2k4(x_cl)
    B = w.transpose(2, 3, 4, 1, 0).reshape(-1, c_out)   # (64*Cin, Cout)
    rows, ssum, ssq = fused_matmul(A, B, with_stats=True, out_dtype=jnp.float32)
    M = A.shape[0]
    scale, shift = _bn_scale_shift(ssum, ssq, M, gamma, beta)
    y = scale_shift_act(rows, scale, shift, act="relu", out_dtype=jnp.bfloat16)
    return y[:M, :c_out].reshape(N, Do, Ho, Wo, c_out)


# ----------------------------------------------------------------------------
# ConvTranspose3d(k=4, s=2, p=1) via output-phase decomposition
# ----------------------------------------------------------------------------
def _deconv_phase_matrices(xp, w, rd, rh, rw, D, H, W):
    """One output-parity phase: a stride-1 2x2x2 conv on the (zero-padded) input."""
    c_in, c_out = w.shape[0], w.shape[1]
    a_cols, b_rows = [], []
    for td in range(2):
        for th in range(2):
            for tw in range(2):
                a_cols.append(xp[:, rd + td:rd + td + D,
                                  rh + th:rh + th + H,
                                  rw + tw:rw + tw + W, :])
                kd, kh, kw = 3 - rd - 2 * td, 3 - rh - 2 * th, 3 - rw - 2 * tw
                b_rows.append(w[:, :, kd, kh, kw])        # (Cin, Cout)
    A = jnp.concatenate(a_cols, axis=-1).reshape(-1, 8 * c_in)
    B = jnp.concatenate(b_rows, axis=0)                   # (8*Cin, Cout)
    return A, B


def deconv3d(x_cl, w, *, gamma=None, beta=None, final_tanh=False):
    """PyTorch ConvTranspose3d(k=4,s=2,p=1,bias=False) (+BN+ReLU) or (+Tanh)."""
    N, D, H, W, _ = x_cl.shape
    c_out = w.shape[1]
    M = N * D * H * W
    xp = jnp.pad(x_cl, ((0, 0), (1, 1), (1, 1), (1, 1), (0, 0)))

    phase_rows, ssum, ssq = [], None, None
    for rd in range(2):
        for rh in range(2):
            for rw in range(2):
                A, B = _deconv_phase_matrices(xp, w, rd, rh, rw, D, H, W)
                if final_tanh:
                    rows = fused_matmul(A, B, act="tanh", out_dtype=jnp.float32)
                else:
                    rows, s1, s2 = fused_matmul(A, B, with_stats=True,
                                                out_dtype=jnp.float32)
                    ssum = s1 if ssum is None else ssum + s1
                    ssq = s2 if ssq is None else ssq + s2
                phase_rows.append(rows)

    if final_tanh:
        phases = [r[:M, :c_out] for r in phase_rows]
    else:
        # BatchNorm stats are over the FULL output (all 8 phases).
        scale, shift = _bn_scale_shift(ssum, ssq, 8 * M, gamma, beta)
        phases = [scale_shift_act(r, scale, shift, act="relu",
                                  out_dtype=jnp.bfloat16)[:M, :c_out]
                  for r in phase_rows]

    P = jnp.stack(phases).reshape(2, 2, 2, N, D, H, W, c_out)
    out = P.transpose(3, 4, 0, 5, 1, 6, 2, 7).reshape(N, 2 * D, 2 * H, 2 * W, c_out)
    return out


def linear_relu(x, w_t, bias, *, out_dtype):
    """PyTorch nn.Linear + ReLU; weight stored pre-transposed as (in, out)."""
    return fused_matmul(x, w_t, bias=bias, act="relu", out_dtype=out_dtype)


# ----------------------------------------------------------------------------
# ThreeD_conv module
# ----------------------------------------------------------------------------
class ThreeDConvPallas:
    def __init__(self, key, n_channels, T, image_height, image_width, z_dim, ndf=64):
        self.ndf = ndf
        self.z_dim = z_dim
        self.T = T
        self.image_height = image_height
        self.image_width = image_width
        self.n_channels = n_channels
        self.conv_size_height = image_height // 16
        self.conv_size_width = image_width // 16
        self.flat = ndf * 8 * (T // 16) * self.conv_size_height * self.conv_size_width

        keys = iter(jax.random.split(key, 32))
        f32 = jnp.float32

        def w(shape, scale=0.05):
            return (scale * jax.random.normal(next(keys), shape)).astype(f32)

        def bn(c):
            g = (1.0 + 0.1 * jax.random.normal(next(keys), (c,))).astype(f32)
            b = (0.1 * jax.random.normal(next(keys), (c,))).astype(f32)
            return g, b

        nc = n_channels
        # encoder: Conv3d weights are (Cout, Cin, 4, 4, 4)
        self.enc_w = [w((ndf, nc, 4, 4, 4)),
                      w((ndf * 2, ndf, 4, 4, 4)),
                      w((ndf * 4, ndf * 2, 4, 4, 4)),
                      w((ndf * 8, ndf * 4, 4, 4, 4))]
        self.enc_bn = [bn(ndf), bn(ndf * 2), bn(ndf * 4), bn(ndf * 8)]
        # fc1 / fc2: weights stored pre-transposed as (in_features, out_features)
        self.fc1_wt = w((self.flat, z_dim))
        self.fc1_b = w((z_dim,))
        self.fc2_wt = w((z_dim, self.flat))
        self.fc2_b = w((self.flat,))
        # decoder: ConvTranspose3d weights are (Cin, Cout, 4, 4, 4)
        self.dec_w = [w((ndf * 8, ndf * 4, 4, 4, 4)),
                      w((ndf * 4, ndf * 2, 4, 4, 4)),
                      w((ndf * 2, ndf, 4, 4, 4)),
                      w((ndf, nc, 4, 4, 4))]
        self.dec_bn = [bn(ndf * 4), bn(ndf * 2), bn(ndf)]

    def encode(self, x_cl):
        for wi, (g, b) in zip(self.enc_w, self.enc_bn):
            x_cl = conv3d_bn_relu(x_cl, wi, g, b)
        return x_cl

    def forward(self, x, mode):
        bs = x.shape[0]
        # NCDHW -> channels-last (lane-dense), bf16 for the MXU
        x_cl = jnp.transpose(x, (0, 2, 3, 4, 1)).astype(jnp.bfloat16)
        feat = self.encode(x_cl)                       # (bs, T/16, h/16, w/16, 8*ndf)
        # flatten in PyTorch NCDHW order (semantics of feature.view(bs, -1))
        flat = jnp.transpose(feat, (0, 4, 1, 2, 3)).reshape(bs, -1)
        z_rows = linear_relu(flat, self.fc1_wt, self.fc1_b, out_dtype=jnp.float32)
        z = z_rows[:bs, :self.z_dim]
        if mode != "train":
            return z[None]                             # z.unsqueeze(0)

        h_rows = linear_relu(z.astype(jnp.bfloat16), self.fc2_wt, self.fc2_b,
                             out_dtype=jnp.bfloat16)
        h = h_rows[:bs, :self.flat].reshape(bs, self.ndf * 8, self.T // 16,
                                            self.conv_size_height,
                                            self.conv_size_width)
        h_cl = jnp.transpose(h, (0, 2, 3, 4, 1))       # channels-last
        for wi, (g, b) in zip(self.dec_w[:3], self.dec_bn):
            h_cl = deconv3d(h_cl, wi, gamma=g, beta=b)
        out_cl = deconv3d(h_cl, self.dec_w[3], final_tanh=True)
        out = jnp.transpose(out_cl, (0, 4, 1, 2, 3))   # back to NCDHW
        return out.reshape(bs, self.n_channels, self.T,
                           self.image_height, self.image_width).astype(jnp.float32)


# ----------------------------------------------------------------------------
if __name__ == "__main__":
    key = jax.random.PRNGKey(0)
    k_params, k_input = jax.random.split(key)

    # small config: n_channels=1, T=16, H=W=16, z_dim=32, ndf=8, batch=2
    batch, n_channels, T, H, W, z_dim, ndf = 2, 1, 16, 16, 16, 32, 8
    model = ThreeDConvPallas(k_params, n_channels, T, H, W, z_dim, ndf=ndf)

    x = jax.random.normal(k_input, (batch, n_channels, T, H, W), dtype=jnp.float32)

    fwd = jax.jit(model.forward, static_argnums=1)
    out_train = fwd(x, "train")
    z_eval = fwd(x, "eval")
    jax.block_until_ready(out_train)
    jax.block_until_ready(z_eval)

    assert out_train.shape == (batch, n_channels, T, H, W)
    assert z_eval.shape == (1, batch, z_dim)
    assert bool(jnp.all(jnp.isfinite(out_train))) and bool(jnp.all(jnp.isfinite(z_eval)))
    print("KERNEL_OK")
</pallas_src>

<mosaic_0001>
module attributes {stable_mosaic.version = 11 : i64} {
  func.func @kernel(%arg0: i32, %arg1: i32, %arg2: i32, %arg3: memref<512x64xbf16, #tpu.memory_space<vmem>>, %arg4: memref<64x128xbf16, #tpu.memory_space<vmem>>, %arg5: memref<512x128xf32, #tpu.memory_space<vmem>>, %arg6: memref<1x128xf32, #tpu.memory_space<vmem>>, %arg7: memref<1x128xf32, #tpu.memory_space<vmem>>, %arg8: memref<512x128xf32, #tpu.memory_space<vmem>>) attributes {dimension_semantics = [#tpu.dimension_semantics<parallel>, #tpu.dimension_semantics<arbitrary>, #tpu.dimension_semantics<arbitrary>], iteration_bounds = array<i64: 1, 2, 1>, scalar_prefetch = 0 : i64, scratch_operands = 1 : i64, tpu.core_type = #tpu.core_type<tc>, window_params = [{transform_indices = @transform_0, window_bounds = array<i64: 512, 64>}, {transform_indices = @transform_1, window_bounds = array<i64: 64, 128>}, {transform_indices = @transform_2, window_bounds = array<i64: 512, 128>}, {transform_indices = @transform_3, window_bounds = array<i64: 1, 128>}, {transform_indices = @transform_4, window_bounds = array<i64: 1, 128>}]} {
    %c0_i32 = arith.constant 0 : i32
    %0 = arith.cmpi eq, %arg2, %c0_i32 : i32
    %1 = arith.extui %0 : i1 to i32
    %c0_i32_0 = arith.constant 0 : i32
    %2 = arith.cmpi ne, %1, %c0_i32_0 : i32
    scf.if %2 {
      %cst_13 = arith.constant 0.000000e+00 : f32
      %17 = vector.broadcast %cst_13 : f32 to vector<512x128xf32>
      %c0_14 = arith.constant 0 : index
      %c0_15 = arith.constant 0 : index
      %18 = vector.load %arg8[%c0_14, %c0_15] : memref<512x128xf32, #tpu.memory_space<vmem>>, vector<512x128xf32>
      tpu.vector_store %arg8[%c0_14, %c0_15], %17 {strides = array<i32>} : memref<512x128xf32, #tpu.memory_space<vmem>>, vector<512x128xf32>,
    } else {
    }
    %c0_i32_1 = arith.constant 0 : i32
    %3 = arith.cmpi eq, %arg2, %c0_i32_1 : i32
    %c0_i32_2 = arith.constant 0 : i32
    %4 = arith.cmpi eq, %arg1, %c0_i32_2 : i32
    %5 = arith.andi %3, %4 : i1
    %6 = arith.extui %5 : i1 to i32
    %c0_i32_3 = arith.constant 0 : i32
    %7 = arith.cmpi ne, %6, %c0_i32_3 : i32
    scf.if %7 {
      %cst_13 = arith.constant 0.000000e+00 : f32
      %17 = vector.broadcast %cst_13 : f32 to vector<1x128xf32>
      %c0_14 = arith.constant 0 : index
      %c0_15 = arith.constant 0 : index
      %18 = vector.load %arg6[%c0_14, %c0_15] : memref<1x128xf32, #tpu.memory_space<vmem>>, vector<1x128xf32>
      tpu.vector_store %arg6[%c0_14, %c0_15], %17 {strides = array<i32>} : memref<1x128xf32, #tpu.memory_space<vmem>>, vector<1x128xf32>,
      %cst_16 = arith.constant 0.000000e+00 : f32
      %19 = vector.broadcast %cst_16 : f32 to vector<1x128xf32>
      %c0_17 = arith.constant 0 : index
      %c0_18 = arith.constant 0 : index
      %20 = vector.load %arg7[%c0_17, %c0_18] : memref<1x128xf32, #tpu.memory_space<vmem>>, vector<1x128xf32>
      tpu.vector_store %arg7[%c0_17, %c0_18], %19 {strides = array<i32>} : memref<1x128xf32, #tpu.memory_space<vmem>>, vector<1x128xf32>,
    } else {
    }
    %c0 = arith.constant 0 : index
    %c0_4 = arith.constant 0 : index
    %8 = vector.load %arg8[%c0, %c0_4] : memref<512x128xf32, #tpu.memory_space<vmem>>, vector<512x128xf32>
    %c0_5 = arith.constant 0 : index
    %c0_6 = arith.constant 0 : index
    %9 = vector.load %arg3[%c0_5, %c0_6] : memref<512x64xbf16, #tpu.memory_space<vmem>>, vector<512x64xbf16>
    %c0_7 = arith.constant 0 : index
    %c0_8 = arith.constant 0 : index
    %10 = vector.load %arg4[%c0_7, %c0_8] : memref<64x128xbf16, #tpu.memory_space<vmem>>, vector<64x128xbf16>
    %cst = arith.constant dense<0.000000e+00> : vector<512x128xf32>
    %11 = tpu.matmul %9, %10, %cst {dimension_numbers = #tpu.dot_dimension_numbers<[1], [0], [0], [1], [0, 0, 1, 1], [], []>} : vector<512x64xbf16>, vector<64x128xbf16>, vector<512x128xf32> -> vector<512x128xf32>
    %12 = arith.addf %8, %11 : vector<512x128xf32>
    %c0_9 = arith.constant 0 : index
    %c0_10 = arith.constant 0 : index
    %13 = vector.load %arg8[%c0_9, %c0_10] : memref<512x128xf32, #tpu.memory_space<vmem>>, vector<512x128xf32>
    tpu.vector_store %arg8[%c0_9, %c0_10], %12 {strides = array<i32>} : memref<512x128xf32, #tpu.memory_space<vmem>>, vector<512x128xf32>,
    %c0_i32_11 = arith.constant 0 : i32
    %14 = arith.cmpi eq, %arg2, %c0_i32_11 : i32
    %15 = arith.extui %14 : i1 to i32
    %c0_i32_12 = arith.constant 0 : i32
    %16 = arith.cmpi ne, %15, %c0_i32_12 : i32
    scf.if %16 {
      %c0_13 = arith.constant 0 : index
      %c0_14 = arith.constant 0 : index
      %17 = vector.load %arg8[%c0_13, %c0_14] : memref<512x128xf32, #tpu.memory_space<vmem>>, vector<512x128xf32>
      %c0_15 = arith.constant 0 : index
      %c0_16 = arith.constant 0 : index
      %18 = vector.load %arg6[%c0_15, %c0_16] : memref<1x128xf32, #tpu.memory_space<vmem>>, vector<1x128xf32>
      %cst_17 = arith.constant dense<0.000000e+00> : vector<128xf32>
      %19 = vector.multi_reduction <add>, %17, %cst_17 [0] : vector<512x128xf32> to vector<128xf32>
      %20 = vector.shape_cast %19 : vector<128xf32> to vector<1x128xf32>
      %21 = arith.addf %18, %20 : vector<1x128xf32>
      %c0_18 = arith.constant 0 : index
      %c0_19 = arith.constant 0 : index
      %22 = vector.load %arg6[%c0_18, %c0_19] : memref<1x128xf32, #tpu.memory_space<vmem>>, vector<1x128xf32>
      tpu.vector_store %arg6[%c0_18, %c0_19], %21 {strides = array<i32>} : memref<1x128xf32, #tpu.memory_space<vmem>>, vector<1x128xf32>,
      %c0_20 = arith.constant 0 : index
      %c0_21 = arith.constant 0 : index
      %23 = vector.load %arg7[%c0_20, %c0_21] : memref<1x128xf32, #tpu.memory_space<vmem>>, vector<1x128xf32>
      %24 = arith.mulf %17, %17 : vector<512x128xf32>
      %cst_22 = arith.constant dense<0.000000e+00> : vector<128xf32>
      %25 = vector.multi_reduction <add>, %24, %cst_22 [0] : vector<512x128xf32> to vector<128xf32>
      %26 = vector.shape_cast %25 : vector<128xf32> to vector<1x128xf32>
      %27 = arith.addf %23, %26 : vector<1x128xf32>
      %c0_23 = arith.constant 0 : index
      %c0_24 = arith.constant 0 : index
      %28 = vector.load %arg7[%c0_23, %c0_24] : memref<1x128xf32, #tpu.memory_space<vmem>>, vector<1x128xf32>
      tpu.vector_store %arg7[%c0_23, %c0_24], %27 {strides = array<i32>} : memref<1x128xf32, #tpu.memory_space<vmem>>, vector<1x128xf32>,
      %c0_25 = arith.constant 0 : index
      %c0_26 = arith.constant 0 : index
      %29 = vector.load %arg5[%c0_25, %c0_26] : memref<512x128xf32, #tpu.memory_space<vmem>>, vector<512x128xf32>
      tpu.vector_store %arg5[%c0_25, %c0_26], %17 {strides = array<i32>} : memref<512x128xf32, #tpu.memory_space<vmem>>, vector<512x128xf32>,
    } else {
    }
    return
  }
  func.func @transform_0(%arg0: i32, %arg1: i32, %arg2: i32) -> (i32, i32) {
    %c0_i32 = arith.constant 0 : i32
    return %arg1, %arg2 : i32, i32
  }
  func.func @transform_1(%arg0: i32, %arg1: i32, %arg2: i32) -> (i32, i32) {
    %c0_i32 = arith.constant 0 : i32
    return %arg2, %arg0 : i32, i32
  }
  func.func @transform_2(%arg0: i32, %arg1: i32, %arg2: i32) -> (i32, i32) {
    %c0_i32 = arith.constant 0 : i32
    return %arg1, %arg0 : i32, i32
  }
  func.func @transform_3(%arg0: i32, %arg1: i32, %arg2: i32) -> (i32, i32) {
    %c0_i32 = arith.constant 0 : i32
    %c0_i32_0 = arith.constant 0 : i32
    return %c0_i32, %arg0 : i32, i32
  }
  func.func @transform_4(%arg0: i32, %arg1: i32, %arg2: i32) -> (i32, i32) {
    %c0_i32 = arith.constant 0 : i32
    %c0_i32_0 = arith.constant 0 : i32
    return %c0_i32, %arg0 : i32, i32
  }
}

module attributes {stable_mosaic.version = 11 : i64} {
  func.func @_scale_shift_act_kernel(%arg0: i32, %arg1: i32, %arg2: memref<512x128xf32, #tpu.memory_space<vmem>>, %arg3: memref<1x128xf32, #tpu.memory_space<vmem>>, %arg4: memref<1x128xf32, #tpu.memory_space<vmem>>, %arg5: memref<512x128xbf16, #tpu.memory_space<vmem>>) attributes {dimension_semantics = [#tpu.dimension_semantics<parallel>, #tpu.dimension_semantics<parallel>], iteration_bounds = array<i64: 2, 1>, scalar_prefetch = 0 : i64, scratch_operands = 0 : i64, tpu.core_type = #tpu.core_type<tc>, window_params = [{transform_indices = @transform_0, window_bounds = array<i64: 512, 128>}, {transform_indices = @transform_1, window_bounds = array<i64: 1, 128>}, {transform_indices = @transform_2, window_bounds = array<i64: 1, 128>}, {transform_indices = @transform_3, window_bounds = array<i64: 512, 128>}]} {
    %c0 = arith.constant 0 : index
    %c0_0 = arith.constant 0 : index
    %0 = vector.load %arg2[%c0, %c0_0] : memref<512x128xf32, #tpu.memory_space<vmem>>, vector<512x128xf32>
    %c0_1 = arith.constant 0 : index
    %c0_2 = arith.constant 0 : index
    %1 = vector.load %arg3[%c0_1, %c0_2] : memref<1x128xf32, #tpu.memory_space<vmem>>, vector<1x128xf32>
    %2 = vector.broadcast %1 : vector<1x128xf32> to vector<512x128xf32>
    %3 = arith.mulf %0, %2 : vector<512x128xf32>
    %c0_3 = arith.constant 0 : index
    %c0_4 = arith.constant 0 : index
    %4 = vector.load %arg4[%c0_3, %c0_4] : memref<1x128xf32, #tpu.memory_space<vmem>>, vector<1x128xf32>
    %5 = vector.broadcast %4 : vector<1x128xf32> to vector<512x128xf32>
    %6 = arith.addf %3, %5 : vector<512x128xf32>
    %cst = arith.constant 0.000000e+00 : f32
    %7 = vector.broadcast %cst : f32 to vector<512x128xf32>
    %8 = arith.maximumf %6, %7 : vector<512x128xf32>
    %9 = arith.truncf %8 : vector<512x128xf32> to vector<512x128xbf16>
    %c0_5 = arith.constant 0 : index
    %c0_6 = arith.constant 0 : index
    %10 = vector.load %arg5[%c0_5, %c0_6] : memref<512x128xbf16, #tpu.memory_space<vmem>>, vector<512x128xbf16>
    tpu.vector_store %arg5[%c0_5, %c0_6], %9 {strides = array<i32>} : memref<512x128xbf16, #tpu.memory_space<vmem>>, vector<512x128xbf16>,
    return
  }
  func.func @transform_0(%arg0: i32, %arg1: i32) -> (i32, i32) {
    %c0_i32 = arith.constant 0 : i32
    return %arg0, %arg1 : i32, i32
  }
  func.func @transform_1(%arg0: i32, %arg1: i32) -> (i32, i32) {
    %c0_i32 = arith.constant 0 : i32
    %c0_i32_0 = arith.constant 0 : i32
    return %c0_i32, %arg1 : i32, i32
  }
  func.func @transform_2(%arg0: i32, %arg1: i32) -> (i32, i32) {
    %c0_i32 = arith.constant 0 : i32
    %c0_i32_0 = arith.constant 0 : i32
    return %c0_i32, %arg1 : i32, i32
  }
  func.func @transform_3(%arg0: i32, %arg1: i32) -> (i32, i32) {
    %c0_i32 = arith.constant 0 : i32
    return %arg0, %arg1 : i32, i32
  }
}

module attributes {stable_mosaic.version = 11 : i64} {
  func.func @_scale_shift_act_kernel(%arg0: i32, %arg1: i32, %arg2: memref<128x128xf32, #tpu.memory_space<vmem>>, %arg3: memref<1x128xf32, #tpu.memory_space<vmem>>, %arg4: memref<1x128xf32, #tpu.memory_space<vmem>>, %arg5: memref<128x128xbf16, #tpu.memory_space<vmem>>) attributes {dimension_semantics = [#tpu.dimension_semantics<parallel>, #tpu.dimension_semantics<parallel>], iteration_bounds = array<i64: 1, 1>, scalar_prefetch = 0 : i64, scratch_operands = 0 : i64, tpu.core_type = #tpu.core_type<tc>, window_params = [{transform_indices = @transform_0, window_bounds = array<i64: 128, 128>}, {transform_indices = @transform_1, window_bounds = array<i64: 1, 128>}, {transform_indices = @transform_2, window_bounds = array<i64: 1, 128>}, {transform_indices = @transform_3, window_bounds = array<i64: 128, 128>}]} {
    %c0 = arith.constant 0 : index
    %c0_0 = arith.constant 0 : index
    %0 = vector.load %arg2[%c0, %c0_0] : memref<128x128xf32, #tpu.memory_space<vmem>>, vector<128x128xf32>
    %c0_1 = arith.constant 0 : index
    %c0_2 = arith.constant 0 : index
    %1 = vector.load %arg3[%c0_1, %c0_2] : memref<1x128xf32, #tpu.memory_space<vmem>>, vector<1x128xf32>
    %2 = vector.broadcast %1 : vector<1x128xf32> to vector<128x128xf32>
    %3 = arith.mulf %0, %2 : vector<128x128xf32>
    %c0_3 = arith.constant 0 : index
    %c0_4 = arith.constant 0 : index
    %4 = vector.load %arg4[%c0_3, %c0_4] : memref<1x128xf32, #tpu.memory_space<vmem>>, vector<1x128xf32>
    %5 = vector.broadcast %4 : vector<1x128xf32> to vector<128x128xf32>
    %6 = arith.addf %3, %5 : vector<128x128xf32>
    %cst = arith.constant 0.000000e+00 : f32
    %7 = vector.broadcast %cst : f32 to vector<128x128xf32>
    %8 = arith.maximumf %6, %7 : vector<128x128xf32>
    %9 = arith.truncf %8 : vector<128x128xf32> to vector<128x128xbf16>
    %c0_5 = arith.constant 0 : index
    %c0_6 = arith.constant 0 : index
    %10 = vector.load %arg5[%c0_5, %c0_6] : memref<128x128xbf16, #tpu.memory_space<vmem>>, vector<128x128xbf16>
    tpu.vector_store %arg5[%c0_5, %c0_6], %9 {strides = array<i32>} : memref<128x128xbf16, #tpu.memory_space<vmem>>, vector<128x128xbf16>,
    return
  }
  func.func @transform_0(%arg0: i32, %arg1: i32) -> (i32, i32) {
    %c0_i32 = arith.constant 0 : i32
    return %arg0, %arg1 : i32, i32
  }
  func.func @transform_1(%arg0: i32, %arg1: i32) -> (i32, i32) {
    %c0_i32 = arith.constant 0 : i32
    %c0_i32_0 = arith.constant 0 : i32
    return %c0_i32, %arg1 : i32, i32
  }
  func.func @transform_2(%arg0: i32, %arg1: i32) -> (i32, i32) {
    %c0_i32 = arith.constant 0 : i32
    %c0_i32_0 = arith.constant 0 : i32
    return %c0_i32, %arg1 : i32, i32
  }
  func.func @transform_3(%arg0: i32, %arg1: i32) -> (i32, i32) {
    %c0_i32 = arith.constant 0 : i32
    return %arg0, %arg1 : i32, i32
  }
}

module attributes {stable_mosaic.version = 11 : i64} {
  func.func @kernel(%arg0: i32, %arg1: i32, %arg2: i32, %arg3: memref<128x512xbf16, #tpu.memory_space<vmem>>, %arg4: memref<512x128xbf16, #tpu.memory_space<vmem>>, %arg5: memref<128x128xf32, #tpu.memory_space<vmem>>, %arg6: memref<1x128xf32, #tpu.memory_space<vmem>>, %arg7: memref<1x128xf32, #tpu.memory_space<vmem>>, %arg8: memref<128x128xf32, #tpu.memory_space<vmem>>) attributes {dimension_semantics = [#tpu.dimension_semantics<parallel>, #tpu.dimension_semantics<arbitrary>, #tpu.dimension_semantics<arbitrary>], iteration_bounds = array<i64: 1, 1, 1>, scalar_prefetch = 0 : i64, scratch_operands = 1 : i64, tpu.core_type = #tpu.core_type<tc>, window_params = [{transform_indices = @transform_0, window_bounds = array<i64: 128, 512>}, {transform_indices = @transform_1, window_bounds = array<i64: 512, 128>}, {transform_indices = @transform_2, window_bounds = array<i64: 128, 128>}, {transform_indices = @transform_3, window_bounds = array<i64: 1, 128>}, {transform_indices = @transform_4, window_bounds = array<i64: 1, 128>}]} {
    %c0_i32 = arith.constant 0 : i32
    %0 = arith.cmpi eq, %arg2, %c0_i32 : i32
    %1 = arith.extui %0 : i1 to i32
    %c0_i32_0 = arith.constant 0 : i32
    %2 = arith.cmpi ne, %1, %c0_i32_0 : i32
    scf.if %2 {
      %cst_13 = arith.constant 0.000000e+00 : f32
      %17 = vector.broadcast %cst_13 : f32 to vector<128x128xf32>
      %c0_14 = arith.constant 0 : index
      %c0_15 = arith.constant 0 : index
      %18 = vector.load %arg8[%c0_14, %c0_15] : memref<128x128xf32, #tpu.memory_space<vmem>>, vector<128x128xf32>
      tpu.vector_store %arg8[%c0_14, %c0_15], %17 {strides = array<i32>} : memref<128x128xf32, #tpu.memory_space<vmem>>, vector<128x128xf32>,
    } else {
    }
    %c0_i32_1 = arith.constant 0 : i32
    %3 = arith.cmpi eq, %arg2, %c0_i32_1 : i32
    %c0_i32_2 = arith.constant 0 : i32
    %4 = arith.cmpi eq, %arg1, %c0_i32_2 : i32
    %5 = arith.andi %3, %4 : i1
    %6 = arith.extui %5 : i1 to i32
    %c0_i32_3 = arith.constant 0 : i32
    %7 = arith.cmpi ne, %6, %c0_i32_3 : i32
    scf.if %7 {
      %cst_13 = arith.constant 0.000000e+00 : f32
      %17 = vector.broadcast %cst_13 : f32 to vector<1x128xf32>
      %c0_14 = arith.constant 0 : index
      %c0_15 = arith.constant 0 : index
      %18 = vector.load %arg6[%c0_14, %c0_15] : memref<1x128xf32, #tpu.memory_space<vmem>>, vector<1x128xf32>
      tpu.vector_store %arg6[%c0_14, %c0_15], %17 {strides = array<i32>} : memref<1x128xf32, #tpu.memory_space<vmem>>, vector<1x128xf32>,
      %cst_16 = arith.constant 0.000000e+00 : f32
      %19 = vector.broadcast %cst_16 : f32 to vector<1x128xf32>
      %c0_17 = arith.constant 0 : index
      %c0_18 = arith.constant 0 : index
      %20 = vector.load %arg7[%c0_17, %c0_18] : memref<1x128xf32, #tpu.memory_space<vmem>>, vector<1x128xf32>
      tpu.vector_store %arg7[%c0_17, %c0_18], %19 {strides = array<i32>} : memref<1x128xf32, #tpu.memory_space<vmem>>, vector<1x128xf32>,
    } else {
    }
    %c0 = arith.constant 0 : index
    %c0_4 = arith.constant 0 : index
    %8 = vector.load %arg8[%c0, %c0_4] : memref<128x128xf32, #tpu.memory_space<vmem>>, vector<128x128xf32>
    %c0_5 = arith.constant 0 : index
    %c0_6 = arith.constant 0 : index
    %9 = vector.load %arg3[%c0_5, %c0_6] : memref<128x512xbf16, #tpu.memory_space<vmem>>, vector<128x512xbf16>
    %c0_7 = arith.constant 0 : index
    %c0_8 = arith.constant 0 : index
    %10 = vector.load %arg4[%c0_7, %c0_8] : memref<512x128xbf16, #tpu.memory_space<vmem>>, vector<512x128xbf16>
    %cst = arith.constant dense<0.000000e+00> : vector<128x128xf32>
    %11 = tpu.matmul %9, %10, %cst {dimension_numbers = #tpu.dot_dimension_numbers<[1], [0], [0], [1], [0, 0, 1, 1], [], []>} : vector<128x512xbf16>, vector<512x128xbf16>, vector<128x128xf32> -> vector<128x128xf32>
    %12 = arith.addf %8, %11 : vector<128x128xf32>
    %c0_9 = arith.constant 0 : index
    %c0_10 = arith.constant 0 : index
    %13 = vector.load %arg8[%c0_9, %c0_10] : memref<128x128xf32, #tpu.memory_space<vmem>>, vector<128x128xf32>
    tpu.vector_store %arg8[%c0_9, %c0_10], %12 {strides = array<i32>} : memref<128x128xf32, #tpu.memory_space<vmem>>, vector<128x128xf32>,
    %c0_i32_11 = arith.constant 0 : i32
    %14 = arith.cmpi eq, %arg2, %c0_i32_11 : i32
    %15 = arith.extui %14 : i1 to i32
    %c0_i32_12 = arith.constant 0 : i32
    %16 = arith.cmpi ne, %15, %c0_i32_12 : i32
    scf.if %16 {
      %c0_13 = arith.constant 0 : index
      %c0_14 = arith.constant 0 : index
      %17 = vector.load %arg8[%c0_13, %c0_14] : memref<128x128xf32, #tpu.memory_space<vmem>>, vector<128x128xf32>
      %c0_15 = arith.constant 0 : index
      %c0_16 = arith.constant 0 : index
      %18 = vector.load %arg6[%c0_15, %c0_16] : memref<1x128xf32, #tpu.memory_space<vmem>>, vector<1x128xf32>
      %cst_17 = arith.constant dense<0.000000e+00> : vector<128xf32>
      %19 = vector.multi_reduction <add>, %17, %cst_17 [0] : vector<128x128xf32> to vector<128xf32>
      %20 = vector.shape_cast %19 : vector<128xf32> to vector<1x128xf32>
      %21 = arith.addf %18, %20 : vector<1x128xf32>
      %c0_18 = arith.constant 0 : index
      %c0_19 = arith.constant 0 : index
      %22 = vector.load %arg6[%c0_18, %c0_19] : memref<1x128xf32, #tpu.memory_space<vmem>>, vector<1x128xf32>
      tpu.vector_store %arg6[%c0_18, %c0_19], %21 {strides = array<i32>} : memref<1x128xf32, #tpu.memory_space<vmem>>, vector<1x128xf32>,
      %c0_20 = arith.constant 0 : index
      %c0_21 = arith.constant 0 : index
      %23 = vector.load %arg7[%c0_20, %c0_21] : memref<1x128xf32, #tpu.memory_space<vmem>>, vector<1x128xf32>
      %24 = arith.mulf %17, %17 : vector<128x128xf32>
      %cst_22 = arith.constant dense<0.000000e+00> : vector<128xf32>
      %25 = vector.multi_reduction <add>, %24, %cst_22 [0] : vector<128x128xf32> to vector<128xf32>
      %26 = vector.shape_cast %25 : vector<128xf32> to vector<1x128xf32>
      %27 = arith.addf %23, %26 : vector<1x128xf32>
      %c0_23 = arith.constant 0 : index
      %c0_24 = arith.constant 0 : index
      %28 = vector.load %arg7[%c0_23, %c0_24] : memref<1x128xf32, #tpu.memory_space<vmem>>, vector<1x128xf32>
      tpu.vector_store %arg7[%c0_23, %c0_24], %27 {strides = array<i32>} : memref<1x128xf32, #tpu.memory_space<vmem>>, vector<1x128xf32>,
      %c0_25 = arith.constant 0 : index
      %c0_26 = arith.constant 0 : index
      %29 = vector.load %arg5[%c0_25, %c0_26] : memref<128x128xf32, #tpu.memory_space<vmem>>, vector<128x128xf32>
      tpu.vector_store %arg5[%c0_25, %c0_26], %17 {strides = array<i32>} : memref<128x128xf32, #tpu.memory_space<vmem>>, vector<128x128xf32>,
    } else {
    }
    return
  }
  func.func @transform_0(%arg0: i32, %arg1: i32, %arg2: i32) -> (i32, i32) {
    %c0_i32 = arith.constant 0 : i32
    return %arg1, %arg2 : i32, i32
  }
  func.func @transform_1(%arg0: i32, %arg1: i32, %arg2: i32) -> (i32, i32) {
    %c0_i32 = arith.constant 0 : i32
    return %arg2, %arg0 : i32, i32
  }
  func.func @transform_2(%arg0: i32, %arg1: i32, %arg2: i32) -> (i32, i32) {
    %c0_i32 = arith.constant 0 : i32
    return %arg1, %arg0 : i32, i32
  }
  func.func @transform_3(%arg0: i32, %arg1: i32, %arg2: i32) -> (i32, i32) {
    %c0_i32 = arith.constant 0 : i32
    %c0_i32_0 = arith.constant 0 : i32
    return %c0_i32, %arg0 : i32, i32
  }
  func.func @transform_4(%arg0: i32, %arg1: i32, %arg2: i32) -> (i32, i32) {
    %c0_i32 = arith.constant 0 : i32
    %c0_i32_0 = arith.constant 0 : i32
    return %c0_i32, %arg0 : i32, i32
  }
}

module attributes {stable_mosaic.version = 11 : i64} {
  func.func @_scale_shift_act_kernel(%arg0: i32, %arg1: i32, %arg2: memref<16x128xf32, #tpu.memory_space<vmem>>, %arg3: memref<1x128xf32, #tpu.memory_space<vmem>>, %arg4: memref<1x128xf32, #tpu.memory_space<vmem>>, %arg5: memref<16x128xbf16, #tpu.memory_space<vmem>>) attributes {dimension_semantics = [#tpu.dimension_semantics<parallel>, #tpu.dimension_semantics<parallel>], iteration_bounds = array<i64: 1, 1>, scalar_prefetch = 0 : i64, scratch_operands = 0 : i64, tpu.core_type = #tpu.core_type<tc>, window_params = [{transform_indices = @transform_0, window_bounds = array<i64: 16, 128>}, {transform_indices = @transform_1, window_bounds = array<i64: 1, 128>}, {transform_indices = @transform_2, window_bounds = array<i64: 1, 128>}, {transform_indices = @transform_3, window_bounds = array<i64: 16, 128>}]} {
    %c0 = arith.constant 0 : index
    %c0_0 = arith.constant 0 : index
    %0 = vector.load %arg2[%c0, %c0_0] : memref<16x128xf32, #tpu.memory_space<vmem>>, vector<16x128xf32>
    %c0_1 = arith.constant 0 : index
    %c0_2 = arith.constant 0 : index
    %1 = vector.load %arg3[%c0_1, %c0_2] : memref<1x128xf32, #tpu.memory_space<vmem>>, vector<1x128xf32>
    %2 = vector.broadcast %1 : vector<1x128xf32> to vector<16x128xf32>
    %3 = arith.mulf %0, %2 : vector<16x128xf32>
    %c0_3 = arith.constant 0 : index
    %c0_4 = arith.constant 0 : index
    %4 = vector.load %arg4[%c0_3, %c0_4] : memref<1x128xf32, #tpu.memory_space<vmem>>, vector<1x128xf32>
    %5 = vector.broadcast %4 : vector<1x128xf32> to vector<16x128xf32>
    %6 = arith.addf %3, %5 : vector<16x128xf32>
    %cst = arith.constant 0.000000e+00 : f32
    %7 = vector.broadcast %cst : f32 to vector<16x128xf32>
    %8 = arith.maximumf %6, %7 : vector<16x128xf32>
    %9 = arith.truncf %8 : vector<16x128xf32> to vector<16x128xbf16>
    %c0_5 = arith.constant 0 : index
    %c0_6 = arith.constant 0 : index
    %10 = vector.load %arg5[%c0_5, %c0_6] : memref<16x128xbf16, #tpu.memory_space<vmem>>, vector<16x128xbf16>
    tpu.vector_store %arg5[%c0_5, %c0_6], %9 {strides = array<i32>} : memref<16x128xbf16, #tpu.memory_space<vmem>>, vector<16x128xbf16>,
    return
  }
  func.func @transform_0(%arg0: i32, %arg1: i32) -> (i32, i32) {
    %c0_i32 = arith.constant 0 : i32
    return %arg0, %arg1 : i32, i32
  }
  func.func @transform_1(%arg0: i32, %arg1: i32) -> (i32, i32) {
    %c0_i32 = arith.constant 0 : i32
    %c0_i32_0 = arith.constant 0 : i32
    return %c0_i32, %arg1 : i32, i32
  }
  func.func @transform_2(%arg0: i32, %arg1: i32) -> (i32, i32) {
    %c0_i32 = arith.constant 0 : i32
    %c0_i32_0 = arith.constant 0 : i32
    return %c0_i32, %arg1 : i32, i32
  }
  func.func @transform_3(%arg0: i32, %arg1: i32) -> (i32, i32) {
    %c0_i32 = arith.constant 0 : i32
    return %arg0, %arg1 : i32, i32
  }
}

module attributes {stable_mosaic.version = 11 : i64} {
  func.func @kernel(%arg0: i32, %arg1: i32, %arg2: i32, %arg3: memref<8x64xbf16, #tpu.memory_space<vmem>>, %arg4: memref<64x128xbf16, #tpu.memory_space<vmem>>, %arg5: memref<1x128xf32, #tpu.memory_space<vmem>>, %arg6: memref<8x128xf32, #tpu.memory_space<vmem>>, %arg7: memref<8x128xf32, #tpu.memory_space<vmem>>) attributes {dimension_semantics = [#tpu.dimension_semantics<parallel>, #tpu.dimension_semantics<parallel>, #tpu.dimension_semantics<arbitrary>], iteration_bounds = array<i64: 1, 1, 1>, scalar_prefetch = 0 : i64, scratch_operands = 1 : i64, tpu.core_type = #tpu.core_type<tc>, window_params = [{transform_indices = @transform_0, window_bounds = array<i64: 8, 64>}, {transform_indices = @transform_1, window_bounds = array<i64: 64, 128>}, {transform_indices = @transform_2, window_bounds = array<i64: 1, 128>}, {transform_indices = @transform_3, window_bounds = array<i64: 8, 128>}]} {
    %c0_i32 = arith.constant 0 : i32
    %0 = arith.cmpi eq, %arg2, %c0_i32 : i32
    %1 = arith.extui %0 : i1 to i32
    %c0_i32_0 = arith.constant 0 : i32
    %2 = arith.cmpi ne, %1, %c0_i32_0 : i32
    scf.if %2 {
      %cst_10 = arith.constant 0.000000e+00 : f32
      %12 = vector.broadcast %cst_10 : f32 to vector<8x128xf32>
      %c0_11 = arith.constant 0 : index
      %c0_12 = arith.constant 0 : index
      %13 = vector.load %arg7[%c0_11, %c0_12] : memref<8x128xf32, #tpu.memory_space<vmem>>, vector<8x128xf32>
      tpu.vector_store %arg7[%c0_11, %c0_12], %12 {strides = array<i32>} : memref<8x128xf32, #tpu.memory_space<vmem>>, vector<8x128xf32>,
    } else {
    }
    %c0 = arith.constant 0 : index
    %c0_1 = arith.constant 0 : index
    %3 = vector.load %arg7[%c0, %c0_1] : memref<8x128xf32, #tpu.memory_space<vmem>>, vector<8x128xf32>
    %c0_2 = arith.constant 0 : index
    %c0_3 = arith.constant 0 : index
    %4 = vector.load %arg3[%c0_2, %c0_3] : memref<8x64xbf16, #tpu.memory_space<vmem>>, vector<8x64xbf16>
    %c0_4 = arith.constant 0 : index
    %c0_5 = arith.constant 0 : index
    %5 = vector.load %arg4[%c0_4, %c0_5] : memref<64x128xbf16, #tpu.memory_space<vmem>>, vector<64x128xbf16>
    %cst = arith.constant dense<0.000000e+00> : vector<8x128xf32>
    %6 = tpu.matmul %4, %5, %cst {dimension_numbers = #tpu.dot_dimension_numbers<[1], [0], [0], [1], [0, 0, 1, 1], [], []>} : vector<8x64xbf16>, vector<64x128xbf16>, vector<8x128xf32> -> vector<8x128xf32>
    %7 = arith.addf %3, %6 : vector<8x128xf32>
    %c0_6 = arith.constant 0 : index
    %c0_7 = arith.constant 0 : index
    %8 = vector.load %arg7[%c0_6, %c0_7] : memref<8x128xf32, #tpu.memory_space<vmem>>, vector<8x128xf32>
    tpu.vector_store %arg7[%c0_6, %c0_7], %7 {strides = array<i32>} : memref<8x128xf32, #tpu.memory_space<vmem>>, vector<8x128xf32>,
    %c0_i32_8 = arith.constant 0 : i32
    %9 = arith.cmpi eq, %arg2, %c0_i32_8 : i32
    %10 = arith.extui %9 : i1 to i32
    %c0_i32_9 = arith.constant 0 : i32
    %11 = arith.cmpi ne, %10, %c0_i32_9 : i32
    scf.if %11 {
      %c0_10 = arith.constant 0 : index
      %c0_11 = arith.constant 0 : index
      %12 = vector.load %arg7[%c0_10, %c0_11] : memref<8x128xf32, #tpu.memory_space<vmem>>, vector<8x128xf32>
      %c0_12 = arith.constant 0 : index
      %c0_13 = arith.constant 0 : index
      %13 = vector.load %arg5[%c0_12, %c0_13] : memref<1x128xf32, #tpu.memory_space<vmem>>, vector<1x128xf32>
      %14 = vector.broadcast %13 : vector<1x128xf32> to vector<8x128xf32>
      %15 = arith.addf %12, %14 : vector<8x128xf32>
      %cst_14 = arith.constant 0.000000e+00 : f32
      %16 = vector.broadcast %cst_14 : f32 to vector<8x128xf32>
      %17 = arith.maximumf %15, %16 : vector<8x128xf32>
      %c0_15 = arith.constant 0 : index
      %c0_16 = arith.constant 0 : index
      %18 = vector.load %arg6[%c0_15, %c0_16] : memref<8x128xf32, #tpu.memory_space<vmem>>, vector<8x128xf32>
      tpu.vector_store %arg6[%c0_15, %c0_16], %17 {strides = array<i32>} : memref<8x128xf32, #tpu.memory_space<vmem>>, vector<8x128xf32>,
    } else {
    }
    return
  }
  func.func @transform_0(%arg0: i32, %arg1: i32, %arg2: i32) -> (i32, i32) {
    %c0_i32 = arith.constant 0 : i32
    return %arg1, %arg2 : i32, i32
  }
  func.func @transform_1(%arg0: i32, %arg1: i32, %arg2: i32) -> (i32, i32) {
    %c0_i32 = arith.constant 0 : i32
    return %arg2, %arg0 : i32, i32
  }
  func.func @transform_2(%arg0: i32, %arg1: i32, %arg2: i32) -> (i32, i32) {
    %c0_i32 = arith.constant 0 : i32
    %c0_i32_0 = arith.constant 0 : i32
    return %c0_i32, %arg0 : i32, i32
  }
  func.func @transform_3(%arg0: i32, %arg1: i32, %arg2: i32) -> (i32, i32) {
    %c0_i32 = arith.constant 0 : i32
    return %arg1, %arg0 : i32, i32
  }
}

module attributes {stable_mosaic.version = 11 : i64} {
  func.func @kernel(%arg0: i32, %arg1: i32, %arg2: i32, %arg3: memref<16x512xbf16, #tpu.memory_space<vmem>>, %arg4: memref<512x128xbf16, #tpu.memory_space<vmem>>, %arg5: memref<16x128xf32, #tpu.memory_space<vmem>>, %arg6: memref<1x128xf32, #tpu.memory_space<vmem>>, %arg7: memref<1x128xf32, #tpu.memory_space<vmem>>, %arg8: memref<16x128xf32, #tpu.memory_space<vmem>>) attributes {dimension_semantics = [#tpu.dimension_semantics<parallel>, #tpu.dimension_semantics<arbitrary>, #tpu.dimension_semantics<arbitrary>], iteration_bounds = array<i64: 1, 1, 2>, scalar_prefetch = 0 : i64, scratch_operands = 1 : i64, tpu.core_type = #tpu.core_type<tc>, window_params = [{transform_indices = @transform_0, window_bounds = array<i64: 16, 512>}, {transform_indices = @transform_1, window_bounds = array<i64: 512, 128>}, {transform_indices = @transform_2, window_bounds = array<i64: 16, 128>}, {transform_indices = @transform_3, window_bounds = array<i64: 1, 128>}, {transform_indices = @transform_4, window_bounds = array<i64: 1, 128>}]} {
    %c0_i32 = arith.constant 0 : i32
    %0 = arith.cmpi eq, %arg2, %c0_i32 : i32
    %1 = arith.extui %0 : i1 to i32
    %c0_i32_0 = arith.constant 0 : i32
    %2 = arith.cmpi ne, %1, %c0_i32_0 : i32
    scf.if %2 {
      %cst_12 = arith.constant 0.000000e+00 : f32
      %17 = vector.broadcast %cst_12 : f32 to vector<16x128xf32>
      %c0_13 = arith.constant 0 : index
      %c0_14 = arith.constant 0 : index
      %18 = vector.load %arg8[%c0_13, %c0_14] : memref<16x128xf32, #tpu.memory_space<vmem>>, vector<16x128xf32>
      tpu.vector_store %arg8[%c0_13, %c0_14], %17 {strides = array<i32>} : memref<16x128xf32, #tpu.memory_space<vmem>>, vector<16x128xf32>,
    } else {
    }
    %c0_i32_1 = arith.constant 0 : i32
    %3 = arith.cmpi eq, %arg2, %c0_i32_1 : i32
    %c0_i32_2 = arith.constant 0 : i32
    %4 = arith.cmpi eq, %arg1, %c0_i32_2 : i32
    %5 = arith.andi %3, %4 : i1
    %6 = arith.extui %5 : i1 to i32
    %c0_i32_3 = arith.constant 0 : i32
    %7 = arith.cmpi ne, %6, %c0_i32_3 : i32
    scf.if %7 {
      %cst_12 = arith.constant 0.000000e+00 : f32
      %17 = vector.broadcast %cst_12 : f32 to vector<1x128xf32>
      %c0_13 = arith.constant 0 : index
      %c0_14 = arith.constant 0 : index
      %18 = vector.load %arg6[%c0_13, %c0_14] : memref<1x128xf32, #tpu.memory_space<vmem>>, vector<1x128xf32>
      tpu.vector_store %arg6[%c0_13, %c0_14], %17 {strides = array<i32>} : memref<1x128xf32, #tpu.memory_space<vmem>>, vector<1x128xf32>,
      %cst_15 = arith.constant 0.000000e+00 : f32
      %19 = vector.broadcast %cst_15 : f32 to vector<1x128xf32>
      %c0_16 = arith.constant 0 : index
      %c0_17 = arith.constant 0 : index
      %20 = vector.load %arg7[%c0_16, %c0_17] : memref<1x128xf32, #tpu.memory_space<vmem>>, vector<1x128xf32>
      tpu.vector_store %arg7[%c0_16, %c0_17], %19 {strides = array<i32>} : memref<1x128xf32, #tpu.memory_space<vmem>>, vector<1x128xf32>,
    } else {
    }
    %c0 = arith.constant 0 : index
    %c0_4 = arith.constant 0 : index
    %8 = vector.load %arg8[%c0, %c0_4] : memref<16x128xf32, #tpu.memory_space<vmem>>, vector<16x128xf32>
    %c0_5 = arith.constant 0 : index
    %c0_6 = arith.constant 0 : index
    %9 = vector.load %arg3[%c0_5, %c0_6] : memref<16x512xbf16, #tpu.memory_space<vmem>>, vector<16x512xbf16>
    %c0_7 = arith.constant 0 : index
    %c0_8 = arith.constant 0 : index
    %10 = vector.load %arg4[%c0_7, %c0_8] : memref<512x128xbf16, #tpu.memory_space<vmem>>, vector<512x128xbf16>
    %cst = arith.constant dense<0.000000e+00> : vector<16x128xf32>
    %11 = tpu.matmul %9, %10, %cst {dimension_numbers = #tpu.dot_dimension_numbers<[1], [0], [0], [1], [0, 0, 1, 1], [], []>} : vector<16x512xbf16>, vector<512x128xbf16>, vector<16x128xf32> -> vector<16x128xf32>
    %12 = arith.addf %8, %11 : vector<16x128xf32>
    %c0_9 = arith.constant 0 : index
    %c0_10 = arith.constant 0 : index
    %13 = vector.load %arg8[%c0_9, %c0_10] : memref<16x128xf32, #tpu.memory_space<vmem>>, vector<16x128xf32>
    tpu.vector_store %arg8[%c0_9, %c0_10], %12 {strides = array<i32>} : memref<16x128xf32, #tpu.memory_space<vmem>>, vector<16x128xf32>,
    %c1_i32 = arith.constant 1 : i32
    %14 = arith.cmpi eq, %arg2, %c1_i32 : i32
    %15 = arith.extui %14 : i1 to i32
    %c0_i32_11 = arith.constant 0 : i32
    %16 = arith.cmpi ne, %15, %c0_i32_11 : i32
    scf.if %16 {
      %c0_12 = arith.constant 0 : index
      %c0_13 = arith.constant 0 : index
      %17 = vector.load %arg8[%c0_12, %c0_13] : memref<16x128xf32, #tpu.memory_space<vmem>>, vector<16x128xf32>
      %c0_14 = arith.constant 0 : index
      %c0_15 = arith.constant 0 : index
      %18 = vector.load %arg6[%c0_14, %c0_15] : memref<1x128xf32, #tpu.memory_space<vmem>>, vector<1x128xf32>
      %cst_16 = arith.constant dense<0.000000e+00> : vector<128xf32>
      %19 = vector.multi_reduction <add>, %17, %cst_16 [0] : vector<16x128xf32> to vector<128xf32>
      %20 = vector.shape_cast %19 : vector<128xf32> to vector<1x128xf32>
      %21 = arith.addf %18, %20 : vector<1x128xf32>
      %c0_17 = arith.constant 0 : index
      %c0_18 = arith.constant 0 : index
      %22 = vector.load %arg6[%c0_17, %c0_18] : memref<1x128xf32, #tpu.memory_space<vmem>>, vector<1x128xf32>
      tpu.vector_store %arg6[%c0_17, %c0_18], %21 {strides = array<i32>} : memref<1x128xf32, #tpu.memory_space<vmem>>, vector<1x128xf32>,
      %c0_19 = arith.constant 0 : index
      %c0_20 = arith.constant 0 : index
      %23 = vector.load %arg7[%c0_19, %c0_20] : memref<1x128xf32, #tpu.memory_space<vmem>>, vector<1x128xf32>
      %24 = arith.mulf %17, %17 : vector<16x128xf32>
      %cst_21 = arith.constant dense<0.000000e+00> : vector<128xf32>
      %25 = vector.multi_reduction <add>, %24, %cst_21 [0] : vector<16x128xf32> to vector<128xf32>
      %26 = vector.shape_cast %25 : vector<128xf32> to vector<1x128xf32>
      %27 = arith.addf %23, %26 : vector<1x128xf32>
      %c0_22 = arith.constant 0 : index
      %c0_23 = arith.constant 0 : index
      %28 = vector.load %arg7[%c0_22, %c0_23] : memref<1x128xf32, #tpu.memory_space<vmem>>, vector<1x128xf32>
      tpu.vector_store %arg7[%c0_22, %c0_23], %27 {strides = array<i32>} : memref<1x128xf32, #tpu.memory_space<vmem>>, vector<1x128xf32>,
      %c0_24 = arith.constant 0 : index
      %c0_25 = arith.constant 0 : index
      %29 = vector.load %arg5[%c0_24, %c0_25] : memref<16x128xf32, #tpu.memory_space<vmem>>, vector<16x128xf32>
      tpu.vector_store %arg5[%c0_24, %c0_25], %17 {strides = array<i32>} : memref<16x128xf32, #tpu.memory_space<vmem>>, vector<16x128xf32>,
    } else {
    }
    return
  }
  func.func @transform_0(%arg0: i32, %arg1: i32, %arg2: i32) -> (i32, i32) {
    %c0_i32 = arith.constant 0 : i32
    return %arg1, %arg2 : i32, i32
  }
  func.func @transform_1(%arg0: i32, %arg1: i32, %arg2: i32) -> (i32, i32) {
    %c0_i32 = arith.constant 0 : i32
    return %arg2, %arg0 : i32, i32
  }
  func.func @transform_2(%arg0: i32, %arg1: i32, %arg2: i32) -> (i32, i32) {
    %c0_i32 = arith.constant 0 : i32
    return %arg1, %arg0 : i32, i32
  }
  func.func @transform_3(%arg0: i32, %arg1: i32, %arg2: i32) -> (i32, i32) {
    %c0_i32 = arith.constant 0 : i32
    %c0_i32_0 = arith.constant 0 : i32
    return %c0_i32, %arg0 : i32, i32
  }
  func.func @transform_4(%arg0: i32, %arg1: i32, %arg2: i32) -> (i32, i32) {
    %c0_i32 = arith.constant 0 : i32
    %c0_i32_0 = arith.constant 0 : i32
    return %c0_i32, %arg0 : i32, i32
  }
}

module attributes {stable_mosaic.version = 11 : i64} {
  func.func @kernel(%arg0: i32, %arg1: i32, %arg2: i32, %arg3: memref<8x512xbf16, #tpu.memory_space<vmem>>, %arg4: memref<512x128xbf16, #tpu.memory_space<vmem>>, %arg5: memref<8x128xf32, #tpu.memory_space<vmem>>, %arg6: memref<1x128xf32, #tpu.memory_space<vmem>>, %arg7: memref<1x128xf32, #tpu.memory_space<vmem>>, %arg8: memref<8x128xf32, #tpu.memory_space<vmem>>) attributes {dimension_semantics = [#tpu.dimension_semantics<parallel>, #tpu.dimension_semantics<arbitrary>, #tpu.dimension_semantics<arbitrary>], iteration_bounds = array<i64: 1, 1, 4>, scalar_prefetch = 0 : i64, scratch_operands = 1 : i64, tpu.core_type = #tpu.core_type<tc>, window_params = [{transform_indices = @transform_0, window_bounds = array<i64: 8, 512>}, {transform_indices = @transform_1, window_bounds = array<i64: 512, 128>}, {transform_indices = @transform_2, window_bounds = array<i64: 8, 128>}, {transform_indices = @transform_3, window_bounds = array<i64: 1, 128>}, {transform_indices = @transform_4, window_bounds = array<i64: 1, 128>}]} {
    %c0_i32 = arith.constant 0 : i32
    %0 = arith.cmpi eq, %arg2, %c0_i32 : i32
    %1 = arith.extui %0 : i1 to i32
    %c0_i32_0 = arith.constant 0 : i32
    %2 = arith.cmpi ne, %1, %c0_i32_0 : i32
    scf.if %2 {
      %cst_12 = arith.constant 0.000000e+00 : f32
      %17 = vector.broadcast %cst_12 : f32 to vector<8x128xf32>
      %c0_13 = arith.constant 0 : index
      %c0_14 = arith.constant 0 : index
      %18 = vector.load %arg8[%c0_13, %c0_14] : memref<8x128xf32, #tpu.memory_space<vmem>>, vector<8x128xf32>
      tpu.vector_store %arg8[%c0_13, %c0_14], %17 {strides = array<i32>} : memref<8x128xf32, #tpu.memory_space<vmem>>, vector<8x128xf32>,
    } else {
    }
    %c0_i32_1 = arith.constant 0 : i32
    %3 = arith.cmpi eq, %arg2, %c0_i32_1 : i32
    %c0_i32_2 = arith.constant 0 : i32
    %4 = arith.cmpi eq, %arg1, %c0_i32_2 : i32
    %5 = arith.andi %3, %4 : i1
    %6 = arith.extui %5 : i1 to i32
    %c0_i32_3 = arith.constant 0 : i32
    %7 = arith.cmpi ne, %6, %c0_i32_3 : i32
    scf.if %7 {
      %cst_12 = arith.constant 0.000000e+00 : f32
      %17 = vector.broadcast %cst_12 : f32 to vector<1x128xf32>
      %c0_13 = arith.constant 0 : index
      %c0_14 = arith.constant 0 : index
      %18 = vector.load %arg6[%c0_13, %c0_14] : memref<1x128xf32, #tpu.memory_space<vmem>>, vector<1x128xf32>
      tpu.vector_store %arg6[%c0_13, %c0_14], %17 {strides = array<i32>} : memref<1x128xf32, #tpu.memory_space<vmem>>, vector<1x128xf32>,
      %cst_15 = arith.constant 0.000000e+00 : f32
      %19 = vector.broadcast %cst_15 : f32 to vector<1x128xf32>
      %c0_16 = arith.constant 0 : index
      %c0_17 = arith.constant 0 : index
      %20 = vector.load %arg7[%c0_16, %c0_17] : memref<1x128xf32, #tpu.memory_space<vmem>>, vector<1x128xf32>
      tpu.vector_store %arg7[%c0_16, %c0_17], %19 {strides = array<i32>} : memref<1x128xf32, #tpu.memory_space<vmem>>, vector<1x128xf32>,
    } else {
    }
    %c0 = arith.constant 0 : index
    %c0_4 = arith.constant 0 : index
    %8 = vector.load %arg8[%c0, %c0_4] : memref<8x128xf32, #tpu.memory_space<vmem>>, vector<8x128xf32>
    %c0_5 = arith.constant 0 : index
    %c0_6 = arith.constant 0 : index
    %9 = vector.load %arg3[%c0_5, %c0_6] : memref<8x512xbf16, #tpu.memory_space<vmem>>, vector<8x512xbf16>
    %c0_7 = arith.constant 0 : index
    %c0_8 = arith.constant 0 : index
    %10 = vector.load %arg4[%c0_7, %c0_8] : memref<512x128xbf16, #tpu.memory_space<vmem>>, vector<512x128xbf16>
    %cst = arith.constant dense<0.000000e+00> : vector<8x128xf32>
    %11 = tpu.matmul %9, %10, %cst {dimension_numbers = #tpu.dot_dimension_numbers<[1], [0], [0], [1], [0, 0, 1, 1], [], []>} : vector<8x512xbf16>, vector<512x128xbf16>, vector<8x128xf32> -> vector<8x128xf32>
    %12 = arith.addf %8, %11 : vector<8x128xf32>
    %c0_9 = arith.constant 0 : index
    %c0_10 = arith.constant 0 : index
    %13 = vector.load %arg8[%c0_9, %c0_10] : memref<8x128xf32, #tpu.memory_space<vmem>>, vector<8x128xf32>
    tpu.vector_store %arg8[%c0_9, %c0_10], %12 {strides = array<i32>} : memref<8x128xf32, #tpu.memory_space<vmem>>, vector<8x128xf32>,
    %c3_i32 = arith.constant 3 : i32
    %14 = arith.cmpi eq, %arg2, %c3_i32 : i32
    %15 = arith.extui %14 : i1 to i32
    %c0_i32_11 = arith.constant 0 : i32
    %16 = arith.cmpi ne, %15, %c0_i32_11 : i32
    scf.if %16 {
      %c0_12 = arith.constant 0 : index
      %c0_13 = arith.constant 0 : index
      %17 = vector.load %arg8[%c0_12, %c0_13] : memref<8x128xf32, #tpu.memory_space<vmem>>, vector<8x128xf32>
      %c0_14 = arith.constant 0 : index
      %c0_15 = arith.constant 0 : index
      %18 = vector.load %arg6[%c0_14, %c0_15] : memref<1x128xf32, #tpu.memory_space<vmem>>, vector<1x128xf32>
      %cst_16 = arith.constant dense<0.000000e+00> : vector<128xf32>
      %19 = vector.multi_reduction <add>, %17, %cst_16 [0] : vector<8x128xf32> to vector<128xf32>
      %20 = vector.shape_cast %19 : vector<128xf32> to vector<1x128xf32>
      %21 = arith.addf %18, %20 : vector<1x128xf32>
      %c0_17 = arith.constant 0 : index
      %c0_18 = arith.constant 0 : index
      %22 = vector.load %arg6[%c0_17, %c0_18] : memref<1x128xf32, #tpu.memory_space<vmem>>, vector<1x128xf32>
      tpu.vector_store %arg6[%c0_17, %c0_18], %21 {strides = array<i32>} : memref<1x128xf32, #tpu.memory_space<vmem>>, vector<1x128xf32>,
      %c0_19 = arith.constant 0 : index
      %c0_20 = arith.constant 0 : index
      %23 = vector.load %arg7[%c0_19, %c0_20] : memref<1x128xf32, #tpu.memory_space<vmem>>, vector<1x128xf32>
      %24 = arith.mulf %17, %17 : vector<8x128xf32>
      %cst_21 = arith.constant dense<0.000000e+00> : vector<128xf32>
      %25 = vector.multi_reduction <add>, %24, %cst_21 [0] : vector<8x128xf32> to vector<128xf32>
      %26 = vector.shape_cast %25 : vector<128xf32> to vector<1x128xf32>
      %27 = arith.addf %23, %26 : vector<1x128xf32>
      %c0_22 = arith.constant 0 : index
      %c0_23 = arith.constant 0 : index
      %28 = vector.load %arg7[%c0_22, %c0_23] : memref<1x128xf32, #tpu.memory_space<vmem>>, vector<1x128xf32>
      tpu.vector_store %arg7[%c0_22, %c0_23], %27 {strides = array<i32>} : memref<1x128xf32, #tpu.memory_space<vmem>>, vector<1x128xf32>,
      %c0_24 = arith.constant 0 : index
      %c0_25 = arith.constant 0 : index
      %29 = vector.load %arg5[%c0_24, %c0_25] : memref<8x128xf32, #tpu.memory_space<vmem>>, vector<8x128xf32>
      tpu.vector_store %arg5[%c0_24, %c0_25], %17 {strides = array<i32>} : memref<8x128xf32, #tpu.memory_space<vmem>>, vector<8x128xf32>,
    } else {
    }
    return
  }
  func.func @transform_0(%arg0: i32, %arg1: i32, %arg2: i32) -> (i32, i32) {
    %c0_i32 = arith.constant 0 : i32
    return %arg1, %arg2 : i32, i32
  }
  func.func @transform_1(%arg0: i32, %arg1: i32, %arg2: i32) -> (i32, i32) {
    %c0_i32 = arith.constant 0 : i32
    return %arg2, %arg0 : i32, i32
  }
  func.func @transform_2(%arg0: i32, %arg1: i32, %arg2: i32) -> (i32, i32) {
    %c0_i32 = arith.constant 0 : i32
    return %arg1, %arg0 : i32, i32
  }
  func.func @transform_3(%arg0: i32, %arg1: i32, %arg2: i32) -> (i32, i32) {
    %c0_i32 = arith.constant 0 : i32
    %c0_i32_0 = arith.constant 0 : i32
    return %c0_i32, %arg0 : i32, i32
  }
  func.func @transform_4(%arg0: i32, %arg1: i32, %arg2: i32) -> (i32, i32) {
    %c0_i32 = arith.constant 0 : i32
    %c0_i32_0 = arith.constant 0 : i32
    return %c0_i32, %arg0 : i32, i32
  }
}

module attributes {stable_mosaic.version = 11 : i64} {
  func.func @_scale_shift_act_kernel(%arg0: i32, %arg1: i32, %arg2: memref<8x128xf32, #tpu.memory_space<vmem>>, %arg3: memref<1x128xf32, #tpu.memory_space<vmem>>, %arg4: memref<1x128xf32, #tpu.memory_space<vmem>>, %arg5: memref<8x128xbf16, #tpu.memory_space<vmem>>) attributes {dimension_semantics = [#tpu.dimension_semantics<parallel>, #tpu.dimension_semantics<parallel>], iteration_bounds = array<i64: 1, 1>, scalar_prefetch = 0 : i64, scratch_operands = 0 : i64, tpu.core_type = #tpu.core_type<tc>, window_params = [{transform_indices = @transform_0, window_bounds = array<i64: 8, 128>}, {transform_indices = @transform_1, window_bounds = array<i64: 1, 128>}, {transform_indices = @transform_2, window_bounds = array<i64: 1, 128>}, {transform_indices = @transform_3, window_bounds = array<i64: 8, 128>}]} {
    %c0 = arith.constant 0 : index
    %c0_0 = arith.constant 0 : index
    %0 = vector.load %arg2[%c0, %c0_0] : memref<8x128xf32, #tpu.memory_space<vmem>>, vector<8x128xf32>
    %c0_1 = arith.constant 0 : index
    %c0_2 = arith.constant 0 : index
    %1 = vector.load %arg3[%c0_1, %c0_2] : memref<1x128xf32, #tpu.memory_space<vmem>>, vector<1x128xf32>
    %2 = vector.broadcast %1 : vector<1x128xf32> to vector<8x128xf32>
    %3 = arith.mulf %0, %2 : vector<8x128xf32>
    %c0_3 = arith.constant 0 : index
    %c0_4 = arith.constant 0 : index
    %4 = vector.load %arg4[%c0_3, %c0_4] : memref<1x128xf32, #tpu.memory_space<vmem>>, vector<1x128xf32>
    %5 = vector.broadcast %4 : vector<1x128xf32> to vector<8x128xf32>
    %6 = arith.addf %3, %5 : vector<8x128xf32>
    %cst = arith.constant 0.000000e+00 : f32
    %7 = vector.broadcast %cst : f32 to vector<8x128xf32>
    %8 = arith.maximumf %6, %7 : vector<8x128xf32>
    %9 = arith.truncf %8 : vector<8x128xf32> to vector<8x128xbf16>
    %c0_5 = arith.constant 0 : index
    %c0_6 = arith.constant 0 : index
    %10 = vector.load %arg5[%c0_5, %c0_6] : memref<8x128xbf16, #tpu.memory_space<vmem>>, vector<8x128xbf16>
    tpu.vector_store %arg5[%c0_5, %c0_6], %9 {strides = array<i32>} : memref<8x128xbf16, #tpu.memory_space<vmem>>, vector<8x128xbf16>,
    return
  }
  func.func @transform_0(%arg0: i32, %arg1: i32) -> (i32, i32) {
    %c0_i32 = arith.constant 0 : i32
    return %arg0, %arg1 : i32, i32
  }
  func.func @transform_1(%arg0: i32, %arg1: i32) -> (i32, i32) {
    %c0_i32 = arith.constant 0 : i32
    %c0_i32_0 = arith.constant 0 : i32
    return %c0_i32, %arg1 : i32, i32
  }
  func.func @transform_2(%arg0: i32, %arg1: i32) -> (i32, i32) {
    %c0_i32 = arith.constant 0 : i32
    %c0_i32_0 = arith.constant 0 : i32
    return %c0_i32, %arg1 : i32, i32
  }
  func.func @transform_3(%arg0: i32, %arg1: i32) -> (i32, i32) {
    %c0_i32 = arith.constant 0 : i32
    return %arg0, %arg1 : i32, i32
  }
}

module attributes {stable_mosaic.version = 11 : i64} {
  func.func @kernel(%arg0: i32, %arg1: i32, %arg2: i32, %arg3: memref<8x32xbf16, #tpu.memory_space<vmem>>, %arg4: memref<32x128xbf16, #tpu.memory_space<vmem>>, %arg5: memref<1x128xf32, #tpu.memory_space<vmem>>, %arg6: memref<8x128xbf16, #tpu.memory_space<vmem>>, %arg7: memref<8x128xf32, #tpu.memory_space<vmem>>) attributes {dimension_semantics = [#tpu.dimension_semantics<parallel>, #tpu.dimension_semantics<parallel>, #tpu.dimension_semantics<arbitrary>], iteration_bounds = array<i64: 1, 1, 1>, scalar_prefetch = 0 : i64, scratch_operands = 1 : i64, tpu.core_type = #tpu.core_type<tc>, window_params = [{transform_indices = @transform_0, window_bounds = array<i64: 8, 32>}, {transform_indices = @transform_1, window_bounds = array<i64: 32, 128>}, {transform_indices = @transform_2, window_bounds = array<i64: 1, 128>}, {transform_indices = @transform_3, window_bounds = array<i64: 8, 128>}]} {
    %c0_i32 = arith.constant 0 : i32
    %0 = arith.cmpi eq, %arg2, %c0_i32 : i32
    %1 = arith.extui %0 : i1 to i32
    %c0_i32_0 = arith.constant 0 : i32
    %2 = arith.cmpi ne, %1, %c0_i32_0 : i32
    scf.if %2 {
      %cst_10 = arith.constant 0.000000e+00 : f32
      %12 = vector.broadcast %cst_10 : f32 to vector<8x128xf32>
      %c0_11 = arith.constant 0 : index
      %c0_12 = arith.constant 0 : index
      %13 = vector.load %arg7[%c0_11, %c0_12] : memref<8x128xf32, #tpu.memory_space<vmem>>, vector<8x128xf32>
      tpu.vector_store %arg7[%c0_11, %c0_12], %12 {strides = array<i32>} : memref<8x128xf32, #tpu.memory_space<vmem>>, vector<8x128xf32>,
    } else {
    }
    %c0 = arith.constant 0 : index
    %c0_1 = arith.constant 0 : index
    %3 = vector.load %arg7[%c0, %c0_1] : memref<8x128xf32, #tpu.memory_space<vmem>>, vector<8x128xf32>
    %c0_2 = arith.constant 0 : index
    %c0_3 = arith.constant 0 : index
    %4 = vector.load %arg3[%c0_2, %c0_3] : memref<8x32xbf16, #tpu.memory_space<vmem>>, vector<8x32xbf16>
    %c0_4 = arith.constant 0 : index
    %c0_5 = arith.constant 0 : index
    %5 = vector.load %arg4[%c0_4, %c0_5] : memref<32x128xbf16, #tpu.memory_space<vmem>>, vector<32x128xbf16>
    %cst = arith.constant dense<0.000000e+00> : vector<8x128xf32>
    %6 = tpu.matmul %4, %5, %cst {dimension_numbers = #tpu.dot_dimension_numbers<[1], [0], [0], [1], [0, 0, 1, 1], [], []>} : vector<8x32xbf16>, vector<32x128xbf16>, vector<8x128xf32> -> vector<8x128xf32>
    %7 = arith.addf %3, %6 : vector<8x128xf32>
    %c0_6 = arith.constant 0 : index
    %c0_7 = arith.constant 0 : index
    %8 = vector.load %arg7[%c0_6, %c0_7] : memref<8x128xf32, #tpu.memory_space<vmem>>, vector<8x128xf32>
    tpu.vector_store %arg7[%c0_6, %c0_7], %7 {strides = array<i32>} : memref<8x128xf32, #tpu.memory_space<vmem>>, vector<8x128xf32>,
    %c0_i32_8 = arith.constant 0 : i32
    %9 = arith.cmpi eq, %arg2, %c0_i32_8 : i32
    %10 = arith.extui %9 : i1 to i32
    %c0_i32_9 = arith.constant 0 : i32
    %11 = arith.cmpi ne, %10, %c0_i32_9 : i32
    scf.if %11 {
      %c0_10 = arith.constant 0 : index
      %c0_11 = arith.constant 0 : index
      %12 = vector.load %arg7[%c0_10, %c0_11] : memref<8x128xf32, #tpu.memory_space<vmem>>, vector<8x128xf32>
      %c0_12 = arith.constant 0 : index
      %c0_13 = arith.constant 0 : index
      %13 = vector.load %arg5[%c0_12, %c0_13] : memref<1x128xf32, #tpu.memory_space<vmem>>, vector<1x128xf32>
      %14 = vector.broadcast %13 : vector<1x128xf32> to vector<8x128xf32>
      %15 = arith.addf %12, %14 : vector<8x128xf32>
      %cst_14 = arith.constant 0.000000e+00 : f32
      %16 = vector.broadcast %cst_14 : f32 to vector<8x128xf32>
      %17 = arith.maximumf %15, %16 : vector<8x128xf32>
      %18 = arith.truncf %17 : vector<8x128xf32> to vector<8x128xbf16>
      %c0_15 = arith.constant 0 : index
      %c0_16 = arith.constant 0 : index
      %19 = vector.load %arg6[%c0_15, %c0_16] : memref<8x128xbf16, #tpu.memory_space<vmem>>, vector<8x128xbf16>
      tpu.vector_store %arg6[%c0_15, %c0_16], %18 {strides = array<i32>} : memref<8x128xbf16, #tpu.memory_space<vmem>>, vector<8x128xbf16>,
    } else {
    }
    return
  }
  func.func @transform_0(%arg0: i32, %arg1: i32, %arg2: i32) -> (i32, i32) {
    %c0_i32 = arith.constant 0 : i32
    return %arg1, %arg2 : i32, i32
  }
  func.func @transform_1(%arg0: i32, %arg1: i32, %arg2: i32) -> (i32, i32) {
    %c0_i32 = arith.constant 0 : i32
    return %arg2, %arg0 : i32, i32
  }
  func.func @transform_2(%arg0: i32, %arg1: i32, %arg2: i32) -> (i32, i32) {
    %c0_i32 = arith.constant 0 : i32
    %c0_i32_0 = arith.constant 0 : i32
    return %c0_i32, %arg0 : i32, i32
  }
  func.func @transform_3(%arg0: i32, %arg1: i32, %arg2: i32) -> (i32, i32) {
    %c0_i32 = arith.constant 0 : i32
    return %arg1, %arg0 : i32, i32
  }
}

module attributes {stable_mosaic.version = 11 : i64} {
  func.func @kernel(%arg0: i32, %arg1: i32, %arg2: i32, %arg3: memref<8x512xbf16, #tpu.memory_space<vmem>>, %arg4: memref<512x128xbf16, #tpu.memory_space<vmem>>, %arg5: memref<8x128xf32, #tpu.memory_space<vmem>>, %arg6: memref<1x128xf32, #tpu.memory_space<vmem>>, %arg7: memref<1x128xf32, #tpu.memory_space<vmem>>, %arg8: memref<8x128xf32, #tpu.memory_space<vmem>>) attributes {dimension_semantics = [#tpu.dimension_semantics<parallel>, #tpu.dimension_semantics<arbitrary>, #tpu.dimension_semantics<arbitrary>], iteration_bounds = array<i64: 1, 1, 1>, scalar_prefetch = 0 : i64, scratch_operands = 1 : i64, tpu.core_type = #tpu.core_type<tc>, window_params = [{transform_indices = @transform_0, window_bounds = array<i64: 8, 512>}, {transform_indices = @transform_1, window_bounds = array<i64: 512, 128>}, {transform_indices = @transform_2, window_bounds = array<i64: 8, 128>}, {transform_indices = @transform_3, window_bounds = array<i64: 1, 128>}, {transform_indices = @transform_4, window_bounds = array<i64: 1, 128>}]} {
    %c0_i32 = arith.constant 0 : i32
    %0 = arith.cmpi eq, %arg2, %c0_i32 : i32
    %1 = arith.extui %0 : i1 to i32
    %c0_i32_0 = arith.constant 0 : i32
    %2 = arith.cmpi ne, %1, %c0_i32_0 : i32
    scf.if %2 {
      %cst_13 = arith.constant 0.000000e+00 : f32
      %17 = vector.broadcast %cst_13 : f32 to vector<8x128xf32>
      %c0_14 = arith.constant 0 : index
      %c0_15 = arith.constant 0 : index
      %18 = vector.load %arg8[%c0_14, %c0_15] : memref<8x128xf32, #tpu.memory_space<vmem>>, vector<8x128xf32>
      tpu.vector_store %arg8[%c0_14, %c0_15], %17 {strides = array<i32>} : memref<8x128xf32, #tpu.memory_space<vmem>>, vector<8x128xf32>,
    } else {
    }
    %c0_i32_1 = arith.constant 0 : i32
    %3 = arith.cmpi eq, %arg2, %c0_i32_1 : i32
    %c0_i32_2 = arith.constant 0 : i32
    %4 = arith.cmpi eq, %arg1, %c0_i32_2 : i32
    %5 = arith.andi %3, %4 : i1
    %6 = arith.extui %5 : i1 to i32
    %c0_i32_3 = arith.constant 0 : i32
    %7 = arith.cmpi ne, %6, %c0_i32_3 : i32
    scf.if %7 {
      %cst_13 = arith.constant 0.000000e+00 : f32
      %17 = vector.broadcast %cst_13 : f32 to vector<1x128xf32>
      %c0_14 = arith.constant 0 : index
      %c0_15 = arith.constant 0 : index
      %18 = vector.load %arg6[%c0_14, %c0_15] : memref<1x128xf32, #tpu.memory_space<vmem>>, vector<1x128xf32>
      tpu.vector_store %arg6[%c0_14, %c0_15], %17 {strides = array<i32>} : memref<1x128xf32, #tpu.memory_space<vmem>>, vector<1x128xf32>,
      %cst_16 = arith.constant 0.000000e+00 : f32
      %19 = vector.broadcast %cst_16 : f32 to vector<1x128xf32>
      %c0_17 = arith.constant 0 : index
      %c0_18 = arith.constant 0 : index
      %20 = vector.load %arg7[%c0_17, %c0_18] : memref<1x128xf32, #tpu.memory_space<vmem>>, vector<1x128xf32>
      tpu.vector_store %arg7[%c0_17, %c0_18], %19 {strides = array<i32>} : memref<1x128xf32, #tpu.memory_space<vmem>>, vector<1x128xf32>,
    } else {
    }
    %c0 = arith.constant 0 : index
    %c0_4 = arith.constant 0 : index
    %8 = vector.load %arg8[%c0, %c0_4] : memref<8x128xf32, #tpu.memory_space<vmem>>, vector<8x128xf32>
    %c0_5 = arith.constant 0 : index
    %c0_6 = arith.constant 0 : index
    %9 = vector.load %arg3[%c0_5, %c0_6] : memref<8x512xbf16, #tpu.memory_space<vmem>>, vector<8x512xbf16>
    %c0_7 = arith.constant 0 : index
    %c0_8 = arith.constant 0 : index
    %10 = vector.load %arg4[%c0_7, %c0_8] : memref<512x128xbf16, #tpu.memory_space<vmem>>, vector<512x128xbf16>
    %cst = arith.constant dense<0.000000e+00> : vector<8x128xf32>
    %11 = tpu.matmul %9, %10, %cst {dimension_numbers = #tpu.dot_dimension_numbers<[1], [0], [0], [1], [0, 0, 1, 1], [], []>} : vector<8x512xbf16>, vector<512x128xbf16>, vector<8x128xf32> -> vector<8x128xf32>
    %12 = arith.addf %8, %11 : vector<8x128xf32>
    %c0_9 = arith.constant 0 : index
    %c0_10 = arith.constant 0 : index
    %13 = vector.load %arg8[%c0_9, %c0_10] : memref<8x128xf32, #tpu.memory_space<vmem>>, vector<8x128xf32>
    tpu.vector_store %arg8[%c0_9, %c0_10], %12 {strides = array<i32>} : memref<8x128xf32, #tpu.memory_space<vmem>>, vector<8x128xf32>,
    %c0_i32_11 = arith.constant 0 : i32
    %14 = arith.cmpi eq, %arg2, %c0_i32_11 : i32
    %15 = arith.extui %14 : i1 to i32
    %c0_i32_12 = arith.constant 0 : i32
    %16 = arith.cmpi ne, %15, %c0_i32_12 : i32
    scf.if %16 {
      %c0_13 = arith.constant 0 : index
      %c0_14 = arith.constant 0 : index
      %17 = vector.load %arg8[%c0_13, %c0_14] : memref<8x128xf32, #tpu.memory_space<vmem>>, vector<8x128xf32>
      %c0_15 = arith.constant 0 : index
      %c0_16 = arith.constant 0 : index
      %18 = vector.load %arg6[%c0_15, %c0_16] : memref<1x128xf32, #tpu.memory_space<vmem>>, vector<1x128xf32>
      %cst_17 = arith.constant dense<0.000000e+00> : vector<128xf32>
      %19 = vector.multi_reduction <add>, %17, %cst_17 [0] : vector<8x128xf32> to vector<128xf32>
      %20 = vector.shape_cast %19 : vector<128xf32> to vector<1x128xf32>
      %21 = arith.addf %18, %20 : vector<1x128xf32>
      %c0_18 = arith.constant 0 : index
      %c0_19 = arith.constant 0 : index
      %22 = vector.load %arg6[%c0_18, %c0_19] : memref<1x128xf32, #tpu.memory_space<vmem>>, vector<1x128xf32>
      tpu.vector_store %arg6[%c0_18, %c0_19], %21 {strides = array<i32>} : memref<1x128xf32, #tpu.memory_space<vmem>>, vector<1x128xf32>,
      %c0_20 = arith.constant 0 : index
      %c0_21 = arith.constant 0 : index
      %23 = vector.load %arg7[%c0_20, %c0_21] : memref<1x128xf32, #tpu.memory_space<vmem>>, vector<1x128xf32>
      %24 = arith.mulf %17, %17 : vector<8x128xf32>
      %cst_22 = arith.constant dense<0.000000e+00> : vector<128xf32>
      %25 = vector.multi_reduction <add>, %24, %cst_22 [0] : vector<8x128xf32> to vector<128xf32>
      %26 = vector.shape_cast %25 : vector<128xf32> to vector<1x128xf32>
      %27 = arith.addf %23, %26 : vector<1x128xf32>
      %c0_23 = arith.constant 0 : index
      %c0_24 = arith.constant 0 : index
      %28 = vector.load %arg7[%c0_23, %c0_24] : memref<1x128xf32, #tpu.memory_space<vmem>>, vector<1x128xf32>
      tpu.vector_store %arg7[%c0_23, %c0_24], %27 {strides = array<i32>} : memref<1x128xf32, #tpu.memory_space<vmem>>, vector<1x128xf32>,
      %c0_25 = arith.constant 0 : index
      %c0_26 = arith.constant 0 : index
      %29 = vector.load %arg5[%c0_25, %c0_26] : memref<8x128xf32, #tpu.memory_space<vmem>>, vector<8x128xf32>
      tpu.vector_store %arg5[%c0_25, %c0_26], %17 {strides = array<i32>} : memref<8x128xf32, #tpu.memory_space<vmem>>, vector<8x128xf32>,
    } else {
    }
    return
  }
  func.func @transform_0(%arg0: i32, %arg1: i32, %arg2: i32) -> (i32, i32) {
    %c0_i32 = arith.constant 0 : i32
    return %arg1, %arg2 : i32, i32
  }
  func.func @transform_1(%arg0: i32, %arg1: i32, %arg2: i32) -> (i32, i32) {
    %c0_i32 = arith.constant 0 : i32
    return %arg2, %arg0 : i32, i32
  }
  func.func @transform_2(%arg0: i32, %arg1: i32, %arg2: i32) -> (i32, i32) {
    %c0_i32 = arith.constant 0 : i32
    return %arg1, %arg0 : i32, i32
  }
  func.func @transform_3(%arg0: i32, %arg1: i32, %arg2: i32) -> (i32, i32) {
    %c0_i32 = arith.constant 0 : i32
    %c0_i32_0 = arith.constant 0 : i32
    return %c0_i32, %arg0 : i32, i32
  }
  func.func @transform_4(%arg0: i32, %arg1: i32, %arg2: i32) -> (i32, i32) {
    %c0_i32 = arith.constant 0 : i32
    %c0_i32_0 = arith.constant 0 : i32
    return %c0_i32, %arg0 : i32, i32
  }
}

module attributes {stable_mosaic.version = 11 : i64} {
  func.func @kernel(%arg0: i32, %arg1: i32, %arg2: i32, %arg3: memref<16x256xbf16, #tpu.memory_space<vmem>>, %arg4: memref<256x128xbf16, #tpu.memory_space<vmem>>, %arg5: memref<16x128xf32, #tpu.memory_space<vmem>>, %arg6: memref<1x128xf32, #tpu.memory_space<vmem>>, %arg7: memref<1x128xf32, #tpu.memory_space<vmem>>, %arg8: memref<16x128xf32, #tpu.memory_space<vmem>>) attributes {dimension_semantics = [#tpu.dimension_semantics<parallel>, #tpu.dimension_semantics<arbitrary>, #tpu.dimension_semantics<arbitrary>], iteration_bounds = array<i64: 1, 1, 1>, scalar_prefetch = 0 : i64, scratch_operands = 1 : i64, tpu.core_type = #tpu.core_type<tc>, window_params = [{transform_indices = @transform_0, window_bounds = array<i64: 16, 256>}, {transform_indices = @transform_1, window_bounds = array<i64: 256, 128>}, {transform_indices = @transform_2, window_bounds = array<i64: 16, 128>}, {transform_indices = @transform_3, window_bounds = array<i64: 1, 128>}, {transform_indices = @transform_4, window_bounds = array<i64: 1, 128>}]} {
    %c0_i32 = arith.constant 0 : i32
    %0 = arith.cmpi eq, %arg2, %c0_i32 : i32
    %1 = arith.extui %0 : i1 to i32
    %c0_i32_0 = arith.constant 0 : i32
    %2 = arith.cmpi ne, %1, %c0_i32_0 : i32
    scf.if %2 {
      %cst_13 = arith.constant 0.000000e+00 : f32
      %17 = vector.broadcast %cst_13 : f32 to vector<16x128xf32>
      %c0_14 = arith.constant 0 : index
      %c0_15 = arith.constant 0 : index
      %18 = vector.load %arg8[%c0_14, %c0_15] : memref<16x128xf32, #tpu.memory_space<vmem>>, vector<16x128xf32>
      tpu.vector_store %arg8[%c0_14, %c0_15], %17 {strides = array<i32>} : memref<16x128xf32, #tpu.memory_space<vmem>>, vector<16x128xf32>,
    } else {
    }
    %c0_i32_1 = arith.constant 0 : i32
    %3 = arith.cmpi eq, %arg2, %c0_i32_1 : i32
    %c0_i32_2 = arith.constant 0 : i32
    %4 = arith.cmpi eq, %arg1, %c0_i32_2 : i32
    %5 = arith.andi %3, %4 : i1
    %6 = arith.extui %5 : i1 to i32
    %c0_i32_3 = arith.constant 0 : i32
    %7 = arith.cmpi ne, %6, %c0_i32_3 : i32
    scf.if %7 {
      %cst_13 = arith.constant 0.000000e+00 : f32
      %17 = vector.broadcast %cst_13 : f32 to vector<1x128xf32>
      %c0_14 = arith.constant 0 : index
      %c0_15 = arith.constant 0 : index
      %18 = vector.load %arg6[%c0_14, %c0_15] : memref<1x128xf32, #tpu.memory_space<vmem>>, vector<1x128xf32>
      tpu.vector_store %arg6[%c0_14, %c0_15], %17 {strides = array<i32>} : memref<1x128xf32, #tpu.memory_space<vmem>>, vector<1x128xf32>,
      %cst_16 = arith.constant 0.000000e+00 : f32
      %19 = vector.broadcast %cst_16 : f32 to vector<1x128xf32>
      %c0_17 = arith.constant 0 : index
      %c0_18 = arith.constant 0 : index
      %20 = vector.load %arg7[%c0_17, %c0_18] : memref<1x128xf32, #tpu.memory_space<vmem>>, vector<1x128xf32>
      tpu.vector_store %arg7[%c0_17, %c0_18], %19 {strides = array<i32>} : memref<1x128xf32, #tpu.memory_space<vmem>>, vector<1x128xf32>,
    } else {
    }
    %c0 = arith.constant 0 : index
    %c0_4 = arith.constant 0 : index
    %8 = vector.load %arg8[%c0, %c0_4] : memref<16x128xf32, #tpu.memory_space<vmem>>, vector<16x128xf32>
    %c0_5 = arith.constant 0 : index
    %c0_6 = arith.constant 0 : index
    %9 = vector.load %arg3[%c0_5, %c0_6] : memref<16x256xbf16, #tpu.memory_space<vmem>>, vector<16x256xbf16>
    %c0_7 = arith.constant 0 : index
    %c0_8 = arith.constant 0 : index
    %10 = vector.load %arg4[%c0_7, %c0_8] : memref<256x128xbf16, #tpu.memory_space<vmem>>, vector<256x128xbf16>
    %cst = arith.constant dense<0.000000e+00> : vector<16x128xf32>
    %11 = tpu.matmul %9, %10, %cst {dimension_numbers = #tpu.dot_dimension_numbers<[1], [0], [0], [1], [0, 0, 1, 1], [], []>} : vector<16x256xbf16>, vector<256x128xbf16>, vector<16x128xf32> -> vector<16x128xf32>
    %12 = arith.addf %8, %11 : vector<16x128xf32>
    %c0_9 = arith.constant 0 : index
    %c0_10 = arith.constant 0 : index
    %13 = vector.load %arg8[%c0_9, %c0_10] : memref<16x128xf32, #tpu.memory_space<vmem>>, vector<16x128xf32>
    tpu.vector_store %arg8[%c0_9, %c0_10], %12 {strides = array<i32>} : memref<16x128xf32, #tpu.memory_space<vmem>>, vector<16x128xf32>,
    %c0_i32_11 = arith.constant 0 : i32
    %14 = arith.cmpi eq, %arg2, %c0_i32_11 : i32
    %15 = arith.extui %14 : i1 to i32
    %c0_i32_12 = arith.constant 0 : i32
    %16 = arith.cmpi ne, %15, %c0_i32_12 : i32
    scf.if %16 {
      %c0_13 = arith.constant 0 : index
      %c0_14 = arith.constant 0 : index
      %17 = vector.load %arg8[%c0_13, %c0_14] : memref<16x128xf32, #tpu.memory_space<vmem>>, vector<16x128xf32>
      %c0_15 = arith.constant 0 : index
      %c0_16 = arith.constant 0 : index
      %18 = vector.load %arg6[%c0_15, %c0_16] : memref<1x128xf32, #tpu.memory_space<vmem>>, vector<1x128xf32>
      %cst_17 = arith.constant dense<0.000000e+00> : vector<128xf32>
      %19 = vector.multi_reduction <add>, %17, %cst_17 [0] : vector<16x128xf32> to vector<128xf32>
      %20 = vector.shape_cast %19 : vector<128xf32> to vector<1x128xf32>
      %21 = arith.addf %18, %20 : vector<1x128xf32>
      %c0_18 = arith.constant 0 : index
      %c0_19 = arith.constant 0 : index
      %22 = vector.load %arg6[%c0_18, %c0_19] : memref<1x128xf32, #tpu.memory_space<vmem>>, vector<1x128xf32>
      tpu.vector_store %arg6[%c0_18, %c0_19], %21 {strides = array<i32>} : memref<1x128xf32, #tpu.memory_space<vmem>>, vector<1x128xf32>,
      %c0_20 = arith.constant 0 : index
      %c0_21 = arith.constant 0 : index
      %23 = vector.load %arg7[%c0_20, %c0_21] : memref<1x128xf32, #tpu.memory_space<vmem>>, vector<1x128xf32>
      %24 = arith.mulf %17, %17 : vector<16x128xf32>
      %cst_22 = arith.constant dense<0.000000e+00> : vector<128xf32>
      %25 = vector.multi_reduction <add>, %24, %cst_22 [0] : vector<16x128xf32> to vector<128xf32>
      %26 = vector.shape_cast %25 : vector<128xf32> to vector<1x128xf32>
      %27 = arith.addf %23, %26 : vector<1x128xf32>
      %c0_23 = arith.constant 0 : index
      %c0_24 = arith.constant 0 : index
      %28 = vector.load %arg7[%c0_23, %c0_24] : memref<1x128xf32, #tpu.memory_space<vmem>>, vector<1x128xf32>
      tpu.vector_store %arg7[%c0_23, %c0_24], %27 {strides = array<i32>} : memref<1x128xf32, #tpu.memory_space<vmem>>, vector<1x128xf32>,
      %c0_25 = arith.constant 0 : index
      %c0_26 = arith.constant 0 : index
      %29 = vector.load %arg5[%c0_25, %c0_26] : memref<16x128xf32, #tpu.memory_space<vmem>>, vector<16x128xf32>
      tpu.vector_store %arg5[%c0_25, %c0_26], %17 {strides = array<i32>} : memref<16x128xf32, #tpu.memory_space<vmem>>, vector<16x128xf32>,
    } else {
    }
    return
  }
  func.func @transform_0(%arg0: i32, %arg1: i32, %arg2: i32) -> (i32, i32) {
    %c0_i32 = arith.constant 0 : i32
    return %arg1, %arg2 : i32, i32
  }
  func.func @transform_1(%arg0: i32, %arg1: i32, %arg2: i32) -> (i32, i32) {
    %c0_i32 = arith.constant 0 : i32
    return %arg2, %arg0 : i32, i32
  }
  func.func @transform_2(%arg0: i32, %arg1: i32, %arg2: i32) -> (i32, i32) {
    %c0_i32 = arith.constant 0 : i32
    return %arg1, %arg0 : i32, i32
  }
  func.func @transform_3(%arg0: i32, %arg1: i32, %arg2: i32) -> (i32, i32) {
    %c0_i32 = arith.constant 0 : i32
    %c0_i32_0 = arith.constant 0 : i32
    return %c0_i32, %arg0 : i32, i32
  }
  func.func @transform_4(%arg0: i32, %arg1: i32, %arg2: i32) -> (i32, i32) {
    %c0_i32 = arith.constant 0 : i32
    %c0_i32_0 = arith.constant 0 : i32
    return %c0_i32, %arg0 : i32, i32
  }
}

module attributes {stable_mosaic.version = 11 : i64} {
  func.func @kernel(%arg0: i32, %arg1: i32, %arg2: i32, %arg3: memref<128x128xbf16, #tpu.memory_space<vmem>>, %arg4: memref<128x128xbf16, #tpu.memory_space<vmem>>, %arg5: memref<128x128xf32, #tpu.memory_space<vmem>>, %arg6: memref<1x128xf32, #tpu.memory_space<vmem>>, %arg7: memref<1x128xf32, #tpu.memory_space<vmem>>, %arg8: memref<128x128xf32, #tpu.memory_space<vmem>>) attributes {dimension_semantics = [#tpu.dimension_semantics<parallel>, #tpu.dimension_semantics<arbitrary>, #tpu.dimension_semantics<arbitrary>], iteration_bounds = array<i64: 1, 1, 1>, scalar_prefetch = 0 : i64, scratch_operands = 1 : i64, tpu.core_type = #tpu.core_type<tc>, window_params = [{transform_indices = @transform_0, window_bounds = array<i64: 128, 128>}, {transform_indices = @transform_1, window_bounds = array<i64: 128, 128>}, {transform_indices = @transform_2, window_bounds = array<i64: 128, 128>}, {transform_indices = @transform_3, window_bounds = array<i64: 1, 128>}, {transform_indices = @transform_4, window_bounds = array<i64: 1, 128>}]} {
    %c0_i32 = arith.constant 0 : i32
    %0 = arith.cmpi eq, %arg2, %c0_i32 : i32
    %1 = arith.extui %0 : i1 to i32
    %c0_i32_0 = arith.constant 0 : i32
    %2 = arith.cmpi ne, %1, %c0_i32_0 : i32
    scf.if %2 {
      %cst_13 = arith.constant 0.000000e+00 : f32
      %17 = vector.broadcast %cst_13 : f32 to vector<128x128xf32>
      %c0_14 = arith.constant 0 : index
      %c0_15 = arith.constant 0 : index
      %18 = vector.load %arg8[%c0_14, %c0_15] : memref<128x128xf32, #tpu.memory_space<vmem>>, vector<128x128xf32>
      tpu.vector_store %arg8[%c0_14, %c0_15], %17 {strides = array<i32>} : memref<128x128xf32, #tpu.memory_space<vmem>>, vector<128x128xf32>,
    } else {
    }
    %c0_i32_1 = arith.constant 0 : i32
    %3 = arith.cmpi eq, %arg2, %c0_i32_1 : i32
    %c0_i32_2 = arith.constant 0 : i32
    %4 = arith.cmpi eq, %arg1, %c0_i32_2 : i32
    %5 = arith.andi %3, %4 : i1
    %6 = arith.extui %5 : i1 to i32
    %c0_i32_3 = arith.constant 0 : i32
    %7 = arith.cmpi ne, %6, %c0_i32_3 : i32
    scf.if %7 {
      %cst_13 = arith.constant 0.000000e+00 : f32
      %17 = vector.broadcast %cst_13 : f32 to vector<1x128xf32>
      %c0_14 = arith.constant 0 : index
      %c0_15 = arith.constant 0 : index
      %18 = vector.load %arg6[%c0_14, %c0_15] : memref<1x128xf32, #tpu.memory_space<vmem>>, vector<1x128xf32>
      tpu.vector_store %arg6[%c0_14, %c0_15], %17 {strides = array<i32>} : memref<1x128xf32, #tpu.memory_space<vmem>>, vector<1x128xf32>,
      %cst_16 = arith.constant 0.000000e+00 : f32
      %19 = vector.broadcast %cst_16 : f32 to vector<1x128xf32>
      %c0_17 = arith.constant 0 : index
      %c0_18 = arith.constant 0 : index
      %20 = vector.load %arg7[%c0_17, %c0_18] : memref<1x128xf32, #tpu.memory_space<vmem>>, vector<1x128xf32>
      tpu.vector_store %arg7[%c0_17, %c0_18], %19 {strides = array<i32>} : memref<1x128xf32, #tpu.memory_space<vmem>>, vector<1x128xf32>,
    } else {
    }
    %c0 = arith.constant 0 : index
    %c0_4 = arith.constant 0 : index
    %8 = vector.load %arg8[%c0, %c0_4] : memref<128x128xf32, #tpu.memory_space<vmem>>, vector<128x128xf32>
    %c0_5 = arith.constant 0 : index
    %c0_6 = arith.constant 0 : index
    %9 = vector.load %arg3[%c0_5, %c0_6] : memref<128x128xbf16, #tpu.memory_space<vmem>>, vector<128x128xbf16>
    %c0_7 = arith.constant 0 : index
    %c0_8 = arith.constant 0 : index
    %10 = vector.load %arg4[%c0_7, %c0_8] : memref<128x128xbf16, #tpu.memory_space<vmem>>, vector<128x128xbf16>
    %cst = arith.constant dense<0.000000e+00> : vector<128x128xf32>
    %11 = tpu.matmul %9, %10, %cst {dimension_numbers = #tpu.dot_dimension_numbers<[1], [0], [0], [1], [0, 0, 1, 1], [], []>} : vector<128x128xbf16>, vector<128x128xbf16>, vector<128x128xf32> -> vector<128x128xf32>
    %12 = arith.addf %8, %11 : vector<128x128xf32>
    %c0_9 = arith.constant 0 : index
    %c0_10 = arith.constant 0 : index
    %13 = vector.load %arg8[%c0_9, %c0_10] : memref<128x128xf32, #tpu.memory_space<vmem>>, vector<128x128xf32>
    tpu.vector_store %arg8[%c0_9, %c0_10], %12 {strides = array<i32>} : memref<128x128xf32, #tpu.memory_space<vmem>>, vector<128x128xf32>,
    %c0_i32_11 = arith.constant 0 : i32
    %14 = arith.cmpi eq, %arg2, %c0_i32_11 : i32
    %15 = arith.extui %14 : i1 to i32
    %c0_i32_12 = arith.constant 0 : i32
    %16 = arith.cmpi ne, %15, %c0_i32_12 : i32
    scf.if %16 {
      %c0_13 = arith.constant 0 : index
      %c0_14 = arith.constant 0 : index
      %17 = vector.load %arg8[%c0_13, %c0_14] : memref<128x128xf32, #tpu.memory_space<vmem>>, vector<128x128xf32>
      %c0_15 = arith.constant 0 : index
      %c0_16 = arith.constant 0 : index
      %18 = vector.load %arg6[%c0_15, %c0_16] : memref<1x128xf32, #tpu.memory_space<vmem>>, vector<1x128xf32>
      %cst_17 = arith.constant dense<0.000000e+00> : vector<128xf32>
      %19 = vector.multi_reduction <add>, %17, %cst_17 [0] : vector<128x128xf32> to vector<128xf32>
      %20 = vector.shape_cast %19 : vector<128xf32> to vector<1x128xf32>
      %21 = arith.addf %18, %20 : vector<1x128xf32>
      %c0_18 = arith.constant 0 : index
      %c0_19 = arith.constant 0 : index
      %22 = vector.load %arg6[%c0_18, %c0_19] : memref<1x128xf32, #tpu.memory_space<vmem>>, vector<1x128xf32>
      tpu.vector_store %arg6[%c0_18, %c0_19], %21 {strides = array<i32>} : memref<1x128xf32, #tpu.memory_space<vmem>>, vector<1x128xf32>,
      %c0_20 = arith.constant 0 : index
      %c0_21 = arith.constant 0 : index
      %23 = vector.load %arg7[%c0_20, %c0_21] : memref<1x128xf32, #tpu.memory_space<vmem>>, vector<1x128xf32>
      %24 = arith.mulf %17, %17 : vector<128x128xf32>
      %cst_22 = arith.constant dense<0.000000e+00> : vector<128xf32>
      %25 = vector.multi_reduction <add>, %24, %cst_22 [0] : vector<128x128xf32> to vector<128xf32>
      %26 = vector.shape_cast %25 : vector<128xf32> to vector<1x128xf32>
      %27 = arith.addf %23, %26 : vector<1x128xf32>
      %c0_23 = arith.constant 0 : index
      %c0_24 = arith.constant 0 : index
      %28 = vector.load %arg7[%c0_23, %c0_24] : memref<1x128xf32, #tpu.memory_space<vmem>>, vector<1x128xf32>
      tpu.vector_store %arg7[%c0_23, %c0_24], %27 {strides = array<i32>} : memref<1x128xf32, #tpu.memory_space<vmem>>, vector<1x128xf32>,
      %c0_25 = arith.constant 0 : index
      %c0_26 = arith.constant 0 : index
      %29 = vector.load %arg5[%c0_25, %c0_26] : memref<128x128xf32, #tpu.memory_space<vmem>>, vector<128x128xf32>
      tpu.vector_store %arg5[%c0_25, %c0_26], %17 {strides = array<i32>} : memref<128x128xf32, #tpu.memory_space<vmem>>, vector<128x128xf32>,
    } else {
    }
    return
  }
  func.func @transform_0(%arg0: i32, %arg1: i32, %arg2: i32) -> (i32, i32) {
    %c0_i32 = arith.constant 0 : i32
    return %arg1, %arg2 : i32, i32
  }
  func.func @transform_1(%arg0: i32, %arg1: i32, %arg2: i32) -> (i32, i32) {
    %c0_i32 = arith.constant 0 : i32
    return %arg2, %arg0 : i32, i32
  }
  func.func @transform_2(%arg0: i32, %arg1: i32, %arg2: i32) -> (i32, i32) {
    %c0_i32 = arith.constant 0 : i32
    return %arg1, %arg0 : i32, i32
  }
  func.func @transform_3(%arg0: i32, %arg1: i32, %arg2: i32) -> (i32, i32) {
    %c0_i32 = arith.constant 0 : i32
    %c0_i32_0 = arith.constant 0 : i32
    return %c0_i32, %arg0 : i32, i32
  }
  func.func @transform_4(%arg0: i32, %arg1: i32, %arg2: i32) -> (i32, i32) {
    %c0_i32 = arith.constant 0 : i32
    %c0_i32_0 = arith.constant 0 : i32
    return %c0_i32, %arg0 : i32, i32
  }
}

module attributes {stable_mosaic.version = 11 : i64} {
  func.func @kernel(%arg0: i32, %arg1: i32, %arg2: i32, %arg3: memref<512x64xbf16, #tpu.memory_space<vmem>>, %arg4: memref<64x128xbf16, #tpu.memory_space<vmem>>, %arg5: memref<512x128xf32, #tpu.memory_space<vmem>>, %arg6: memref<512x128xf32, #tpu.memory_space<vmem>>) attributes {dimension_semantics = [#tpu.dimension_semantics<parallel>, #tpu.dimension_semantics<parallel>, #tpu.dimension_semantics<arbitrary>], iteration_bounds = array<i64: 1, 2, 1>, scalar_prefetch = 0 : i64, scratch_operands = 1 : i64, tpu.core_type = #tpu.core_type<tc>, window_params = [{transform_indices = @transform_0, window_bounds = array<i64: 512, 64>}, {transform_indices = @transform_1, window_bounds = array<i64: 64, 128>}, {transform_indices = @transform_2, window_bounds = array<i64: 512, 128>}]} {
    %c0_i32 = arith.constant 0 : i32
    %0 = arith.cmpi eq, %arg2, %c0_i32 : i32
    %1 = arith.extui %0 : i1 to i32
    %c0_i32_0 = arith.constant 0 : i32
    %2 = arith.cmpi ne, %1, %c0_i32_0 : i32
    scf.if %2 {
      %cst_10 = arith.constant 0.000000e+00 : f32
      %12 = vector.broadcast %cst_10 : f32 to vector<512x128xf32>
      %c0_11 = arith.constant 0 : index
      %c0_12 = arith.constant 0 : index
      %13 = vector.load %arg6[%c0_11, %c0_12] : memref<512x128xf32, #tpu.memory_space<vmem>>, vector<512x128xf32>
      tpu.vector_store %arg6[%c0_11, %c0_12], %12 {strides = array<i32>} : memref<512x128xf32, #tpu.memory_space<vmem>>, vector<512x128xf32>,
    } else {
    }
    %c0 = arith.constant 0 : index
    %c0_1 = arith.constant 0 : index
    %3 = vector.load %arg6[%c0, %c0_1] : memref<512x128xf32, #tpu.memory_space<vmem>>, vector<512x128xf32>
    %c0_2 = arith.constant 0 : index
    %c0_3 = arith.constant 0 : index
    %4 = vector.load %arg3[%c0_2, %c0_3] : memref<512x64xbf16, #tpu.memory_space<vmem>>, vector<512x64xbf16>
    %c0_4 = arith.constant 0 : index
    %c0_5 = arith.constant 0 : index
    %5 = vector.load %arg4[%c0_4, %c0_5] : memref<64x128xbf16, #tpu.memory_space<vmem>>, vector<64x128xbf16>
    %cst = arith.constant dense<0.000000e+00> : vector<512x128xf32>
    %6 = tpu.matmul %4, %5, %cst {dimension_numbers = #tpu.dot_dimension_numbers<[1], [0], [0], [1], [0, 0, 1, 1], [], []>} : vector<512x64xbf16>, vector<64x128xbf16>, vector<512x128xf32> -> vector<512x128xf32>
    %7 = arith.addf %3, %6 : vector<512x128xf32>
    %c0_6 = arith.constant 0 : index
    %c0_7 = arith.constant 0 : index
    %8 = vector.load %arg6[%c0_6, %c0_7] : memref<512x128xf32, #tpu.memory_space<vmem>>, vector<512x128xf32>
    tpu.vector_store %arg6[%c0_6, %c0_7], %7 {strides = array<i32>} : memref<512x128xf32, #tpu.memory_space<vmem>>, vector<512x128xf32>,
    %c0_i32_8 = arith.constant 0 : i32
    %9 = arith.cmpi eq, %arg2, %c0_i32_8 : i32
    %10 = arith.extui %9 : i1 to i32
    %c0_i32_9 = arith.constant 0 : i32
    %11 = arith.cmpi ne, %10, %c0_i32_9 : i32
    scf.if %11 {
      %c0_10 = arith.constant 0 : index
      %c0_11 = arith.constant 0 : index
      %12 = vector.load %arg6[%c0_10, %c0_11] : memref<512x128xf32, #tpu.memory_space<vmem>>, vector<512x128xf32>
      %13 = math.tanh %12 : vector<512x128xf32>
      %c0_12 = arith.constant 0 : index
      %c0_13 = arith.constant 0 : index
      %14 = vector.load %arg5[%c0_12, %c0_13] : memref<512x128xf32, #tpu.memory_space<vmem>>, vector<512x128xf32>
      tpu.vector_store %arg5[%c0_12, %c0_13], %13 {strides = array<i32>} : memref<512x128xf32, #tpu.memory_space<vmem>>, vector<512x128xf32>,
    } else {
    }
    return
  }
  func.func @transform_0(%arg0: i32, %arg1: i32, %arg2: i32) -> (i32, i32) {
    %c0_i32 = arith.constant 0 : i32
    return %arg1, %arg2 : i32, i32
  }
  func.func @transform_1(%arg0: i32, %arg1: i32, %arg2: i32) -> (i32, i32) {
    %c0_i32 = arith.constant 0 : i32
    return %arg2, %arg0 : i32, i32
  }
  func.func @transform_2(%arg0: i32, %arg1: i32, %arg2: i32) -> (i32, i32) {
    %c0_i32 = arith.constant 0 : i32
    return %arg1, %arg0 : i32, i32
  }
}

</mosaic_0001>

<llo_original>
// kernel: forward.67
$region0: #{forward.67}
  #allocation0 [shape = 'u32[]', space=smem, size = 0x4, offset = 0x4, fixed_abs, tag = 'smem constant byte address 0x4 - core index']
  #allocation1 [shape = 'u32[144,128]{1,0:T(1,128)}', space=vmem, size = 0x12000, scoped, tag = 'internal scratch']
  %s0 = inlined_call_operand.vmem [shape: f32[1024,128], index: 0, kind: input, shape index: {}]
  %s1 = inlined_call_operand.vmem [shape: f32[1,128], index: 1, kind: input, shape index: {}]
  %s2 = inlined_call_operand.vmem [shape: f32[1,128], index: 2, kind: input, shape index: {}]
  %s3 = inlined_call_operand.vmem [shape: bf16[1024,128], index: 3, kind: output, shape index: {}]
  %s4 = sld [smem:[#allocation0]]
  $region45: #{forward.67} parent=0
    _
  %s6 = ssub.s32 1, %s4
  %s7 = scalar_select 0, %s6, %s4
  loop: start=0, step=1, limit=4
  $region2: #{forward.67} parent=0 // loop_pre_header
    _
  $region3: #{forward.67} parent=0 // loop_header
    %s9 = sphi 0, %s13
    %p10 = scmp.ge.s32.totalorder %s9, 4
    %s16 = sphi 0, %s28
    %s17 = sphi 0, %s24
    %s18 = sphi 0, %s16
    %s19 = sphi 0, %s17
    %s20 = sphi 0, %s18
    %s21 = sphi 0, %s19
    %s33 = sphi 0, %s35
    %s36 = sphi 0, %s33
    %s37 = sphi 0, %s36
    %s53 = sphi 0, %s37
    %s59 = sphi 0, %s61
    %s62 = sphi 0, %s59
    %s63 = sphi 0, %s62
    %s79 = sphi 0, %s63
    %s85 = sphi 0, %s87
    %s88 = sphi 0, %s85
    %s89 = sphi 0, %s88
    %s105 = sphi 0, %s89
    %s113 = sphi 0, %s115
    %s116 = sphi 0, %s113
    %s117 = sphi 0, %s116
    %s133 = sphi 0, %s117
  $region4: #{forward.67} parent=0 // loop_header_branch
    %12 = sbr.rel (%p10) target = $region8
  $region5: #{forward.67} parent=0 // loop_body
    %s14 = ssub.s32 %s9, 1
    %s15 = ssub.s32 %s9, 2
    %s22 = sadd.s32 1, %s17
    %p23 = scmp.ge.s32.totalorder %s22, 1
    %s24 = scalar_select %p23, 0, %s22
    %s25 = sadd.s32 1, %s16
    %s26 = scalar_select %p23, %s25, %s16
    %p27 = scmp.ge.s32.totalorder %s26, 2
    %s28 = scalar_select %p27, 0, %s26
    %s29 = ssub.s32 %s16, %s28
    %s30 = ssub.s32 %s17, %s24
    %s31 = sor.u32 %s29, %s30
    %p32 = scmp.eq.s32.totalorder %s31, 0
    %s34 = sadd.s32 %s33, 1
    %s35 = scalar_select %p32, %s33, %s34
    %p38 = pneg %p32
    %p39 = scmp.eq.s32.totalorder %s9, 1
    %p40 = por %p38, %p39
    %p41 = scmp.ne.s32.totalorder %s33, %s36
    %p42 = scmp.eq.s32.totalorder %s9, 0
    %p43 = por %p41, %p42
    %p44 = scmp.ne.s32.totalorder %s33, %s36
    %p45 = scmp.eq.s32.totalorder %s14, 1
    %p46 = por %p44, %p45
    %p47 = scmp.ne.s32.totalorder %s36, %s37
    %p48 = scmp.eq.s32.totalorder %s14, 0
    %p49 = por %p47, %p48
    %p50 = scmp.ne.s32.totalorder %s36, %s37
    %p51 = scmp.eq.s32.totalorder %s15, 1
    %p52 = por %p50, %p51
    %p54 = scmp.ne.s32.totalorder %s37, %s53
    %p55 = scmp.eq.s32.totalorder %s15, 0
    %p56 = por %p54, %p55
    %s57 = ssub.s32 %s17, %s24
    %p58 = scmp.eq.s32.totalorder %s57, 0
    %s60 = sadd.s32 %s59, 1
    %s61 = scalar_select %p58, %s59, %s60
    %p64 = pneg %p58
    %p65 = scmp.eq.s32.totalorder %s9, 1
    %p66 = por %p64, %p65
    %p67 = scmp.ne.s32.totalorder %s59, %s62
    %p68 = scmp.eq.s32.totalorder %s9, 0
    %p69 = por %p67, %p68
    %p70 = scmp.ne.s32.totalorder %s59, %s62
    %p71 = scmp.eq.s32.totalorder %s14, 1
    %p72 = por %p70, %p71
    %p73 = scmp.ne.s32.totalorder %s62, %s63
    %p74 = scmp.eq.s32.totalorder %s14, 0
    %p75 = por %p73, %p74
    %p76 = scmp.ne.s32.totalorder %s62, %s63
    %p77 = scmp.eq.s32.totalorder %s15, 1
    %p78 = por %p76, %p77
    %p80 = scmp.ne.s32.totalorder %s63, %s79
    %p81 = scmp.eq.s32.totalorder %s15, 0
    %p82 = por %p80, %p81
    %s83 = ssub.s32 %s17, %s24
    %p84 = scmp.eq.s32.totalorder %s83, 0
    %s86 = sadd.s32 %s85, 1
    %s87 = scalar_select %p84, %s85, %s86
    %p90 = pneg %p84
    %p91 = scmp.eq.s32.totalorder %s9, 1
    %p92 = por %p90, %p91
    %p93 = scmp.ne.s32.totalorder %s85, %s88
    %p94 = scmp.eq.s32.totalorder %s9, 0
    %p95 = por %p93, %p94
    %p96 = scmp.ne.s32.totalorder %s85, %s88
    %p97 = scmp.eq.s32.totalorder %s14, 1
    %p98 = por %p96, %p97
    %p99 = scmp.ne.s32.totalorder %s88, %s89
    %p100 = scmp.eq.s32.totalorder %s14, 0
    %p101 = por %p99, %p100
    %p102 = scmp.ne.s32.totalorder %s88, %s89
    %p103 = scmp.eq.s32.totalorder %s15, 1
    %p104 = por %p102, %p103
    %p106 = scmp.ne.s32.totalorder %s89, %s105
    %p107 = scmp.eq.s32.totalorder %s15, 0
    %p108 = por %p106, %p107
    %s109 = ssub.s32 %s16, %s28
    %s110 = ssub.s32 %s17, %s24
    %s111 = sor.u32 %s109, %s110
    %p112 = scmp.eq.s32.totalorder %s111, 0
    %s114 = sadd.s32 %s113, 1
    %s115 = scalar_select %p112, %s113, %s114
    %p118 = pneg %p112
    %p119 = scmp.eq.s32.totalorder %s9, 1
    %p120 = por %p118, %p119
    %p121 = scmp.ne.s32.totalorder %s113, %s116
    %p122 = scmp.eq.s32.totalorder %s9, 0
    %p123 = por %p121, %p122
    %p124 = scmp.ne.s32.totalorder %s113, %s116
    %p125 = scmp.eq.s32.totalorder %s14, 1
    %p126 = por %p124, %p125
    %p127 = scmp.ne.s32.totalorder %s116, %s117
    %p128 = scmp.eq.s32.totalorder %s14, 0
    %p129 = por %p127, %p128
    %p130 = scmp.ne.s32.totalorder %s116, %s117
    %p131 = scmp.eq.s32.totalorder %s15, 1
    %p132 = por %p130, %p131
    %p134 = scmp.ne.s32.totalorder %s117, %s133
    %p135 = scmp.eq.s32.totalorder %s15, 0
    %p136 = por %p134, %p135
    %p137 = scmp.le.s32.totalorder 1, %s9
    %p138 = scmp.lt.s32.totalorder %s9, 3
    %p139 = pnand %p137, %p138
    %p140 = pneg %p139
    // Predicated region
    $region9: #{forward.67} parent=5 // pred_check
      _
    $region10: #{forward.67} parent=5 // pred_check_branch
      %142 = sbr.rel (%p139) target = $region12
    $region11: #{forward.67} parent=5 // pred_region
      %s143 = ssub.s32 %s9, 1
      // Predicated region
      $region13: #{forward.67} parent=11 // pred_check
        %p144 = pneg %p75
      $region14: #{forward.67} parent=11 // pred_check_branch
        %146 = sbr.rel (%p144) target = $region16
      $region15: #{forward.67} parent=11 // pred_region
        %p147 = scmp.lt.s32.totalorder %s19, 0
        %s148 = scalar_select %p147, %s19, 0
        %s149 = scalar_lea.vmem %s1, %s148
      $region16: #{forward.67} parent=11 // pred_fallthru
        _
      // Predicated region
      $region17: #{forward.67} parent=11 // pred_check
        %p150 = pneg %p101
      $region18: #{forward.67} parent=11 // pred_check_branch
        %152 = sbr.rel (%p150) target = $region20
      $region19: #{forward.67} parent=11 // pred_region
        %p153 = scmp.lt.s32.totalorder %s19, 0
        %s154 = scalar_select %p153, %s19, 0
        %s155 = scalar_lea.vmem %s2, %s154
      $region20: #{forward.67} parent=11 // pred_fallthru
        _
    $region12: #{forward.67} parent=5 // pred_fallthru
      _
    %p156 = scmp.lt.s32.totalorder %s9, 2
    // Predicated region
    $region21: #{forward.67} parent=5 // pred_check
      %p157 = pneg %p156
    $region22: #{forward.67} parent=5 // pred_check_branch
      %159 = sbr.rel (%p157) target = $region24
    $region23: #{forward.67} parent=5 // pred_region
      // Predicated region
      $region25: #{forward.67} parent=23 // pred_check
        %p160 = pneg %p43
      $region26: #{forward.67} parent=23 // pred_check_branch
        %162 = sbr.rel (%p160) target = $region28
      $region27: #{forward.67} parent=23 // pred_region
        %s163 = smul.u32 64, %s16
        %p164 = scmp.lt.s32.totalorder %s163, 127
        %s165 = scalar_select %p164, %s163, 127
        %p166 = scmp.lt.s32.totalorder %s17, 0
        %s167 = scalar_select %p166, %s17, 0
        %s168 = sadd.s32 %s167, %s165
        %s169 = smul.addr %s168, 8
        %s170 = scalar_lea.vmem %s0, %s169
        %s171 = smul.u32 64, %s16
      $region28: #{forward.67} parent=23 // pred_fallthru
        _
    $region24: #{forward.67} parent=5 // pred_fallthru
      _
    %p172 = scmp.le.s32.totalorder 1, %s9
    %p173 = scmp.lt.s32.totalorder %s9, 3
    %p174 = pnand %p172, %p173
    %p175 = pneg %p174
    // Predicated region
    $region29: #{forward.67} parent=5 // pred_check
      _
    $region30: #{forward.67} parent=5 // pred_check_branch
      %177 = sbr.rel (%p174) target = $region32
    $region31: #{forward.67} parent=5 // pred_region
      %s178 = ssub.s32 %s9, 1
      %s179 = smul.u32 64, %s18
      %p180 = scmp.lt.s32.totalorder %s179, 127
      %s181 = scalar_select %p180, %s179, 127
      %p182 = scmp.lt.s32.totalorder %s19, 0
      %s183 = scalar_select %p182, %s19, 0
      %s184 = sadd.s32 %s183, %s181
      %s185 = smul.addr %s184, 8
      %s186 = scalar_lea.vmem %s0, %s185
      %p187 = pneg %p49
      %p188 = pneg %p46
      %p189 = scmp.lt.s32.totalorder %s19, 0
      %s190 = scalar_select %p189, %s19, 0
      %s191 = scalar_lea.vmem %s1, %s190
      %p192 = pneg %p75
      %p193 = pneg %p72
      %p194 = scmp.lt.s32.totalorder %s19, 0
      %s195 = scalar_select %p194, %s19, 0
      %s196 = scalar_lea.vmem %s2, %s195
      %p197 = pneg %p101
      %p198 = pneg %p98
      %p199 = pneg %p129
      %p200 = pneg %p126
      %s201 = smul.u32 64, %s18
      %p202 = scmp.lt.s32.totalorder %s201, 127
      %s203 = scalar_select %p202, %s201, 127
      %p204 = scmp.lt.s32.totalorder %s19, 0
      %s205 = scalar_select %p204, %s19, 0
      %s206 = sadd.s32 %s205, %s203
      %s207 = smul.addr %s206, 4
      %s208 = scalar_lea.vmem %s3, %s207
      %s209 = smul.u32 64, %s18
      %p210 = scmp.lt.s32.totalorder %s209, 127
      %s211 = scalar_select %p210, %s209, 127
      %p212 = scmp.lt.s32.totalorder %s19, 0
      %s213 = scalar_select %p212, %s19, 0
      %s214 = sadd.s32 %s213, %s211
      %s215 = smul.addr %s214, 8
      %s216 = scalar_lea.vmem %s0, %s215
      %s217 = smul.u32 64, %s18
      %p218 = scmp.lt.s32.totalorder %s19, 0
      %s219 = scalar_select %p218, %s19, 0
      %s220 = scalar_lea.vmem %s1, %s219
      %p221 = scmp.lt.s32.totalorder %s19, 0
      %s222 = scalar_select %p221, %s19, 0
      %s223 = scalar_lea.vmem %s2, %s222
      %s224 = smul.u32 64, %s18
      %p225 = scmp.lt.s32.totalorder %s224, 127
      %s226 = scalar_select %p225, %s224, 127
      %p227 = scmp.lt.s32.totalorder %s19, 0
      %s228 = scalar_select %p227, %s19, 0
      %s229 = sadd.s32 %s228, %s226
      %s230 = smul.addr %s229, 4
      %s231 = scalar_lea.vmem %s3, %s230
      %s232 = smul.u32 64, %s18
      %v233 = vld [vmem:[%s216] sm:$0xff]
      %v234 = vld [vmem:[%s216 + $0x8] sm:$0xff]
      %v235 = vld [vmem:[%s216 + $0x10] sm:$0xff]
      %v236 = vld [vmem:[%s216 + $0x18] sm:$0xff]
      %v237 = vld [vmem:[%s216 + $0x20] sm:$0xff]
      %v238 = vld [vmem:[%s216 + $0x28] sm:$0xff]
      %v239 = vld [vmem:[%s216 + $0x30] sm:$0xff]
      %v240 = vld [vmem:[%s216 + $0x38] sm:$0xff]
      %v241 = vld [vmem:[%s216 + $0x40] sm:$0xff]
      %v242 = vld [vmem:[%s216 + $0x48] sm:$0xff]
      %v243 = vld [vmem:[%s216 + $0x50] sm:$0xff]
      %v244 = vld [vmem:[%s216 + $0x58] sm:$0xff]
      %v245 = vld [vmem:[%s216 + $0x60] sm:$0xff]
      %v246 = vld [vmem:[%s216 + $0x68] sm:$0xff]
      %v247 = vld [vmem:[%s216 + $0x70] sm:$0xff]
      %v248 = vld [vmem:[%s216 + $0x78] sm:$0xff]
      %v249 = vld [vmem:[%s216 + $0x80] sm:$0xff]
      %v250 = vld [vmem:[%s216 + $0x88] sm:$0xff]
      %v251 = vld [vmem:[%s216 + $0x90] sm:$0xff]
      %v252 = vld [vmem:[%s216 + $0x98] sm:$0xff]
      %v253 = vld [vmem:[%s216 + $0xa0] sm:$0xff]
      %v254 = vld [vmem:[%s216 + $0xa8] sm:$0xff]
      %v255 = vld [vmem:[%s216 + $0xb0] sm:$0xff]
      %v256 = vld [vmem:[%s216 + $0xb8] sm:$0xff]
      %v257 = vld [vmem:[%s216 + $0xc0] sm:$0xff]
      %v258 = vld [vmem:[%s216 + $0xc8] sm:$0xff]
      %v259 = vld [vmem:[%s216 + $0xd0] sm:$0xff]
      %v260 = vld [vmem:[%s216 + $0xd8] sm:$0xff]
      %v261 = vld [vmem:[%s216 + $0xe0] sm:$0xff]
      %v262 = vld [vmem:[%s216 + $0xe8] sm:$0xff]
      %v263 = vld [vmem:[%s216 + $0xf0] sm:$0xff]
      %v264 = vld [vmem:[%s216 + $0xf8] sm:$0xff]
      %v265 = vld [vmem:[%s216 + $0x100] sm:$0xff]
      %v266 = vld [vmem:[%s216 + $0x108] sm:$0xff]
      %v267 = vld [vmem:[%s216 + $0x110] sm:$0xff]
      %v268 = vld [vmem:[%s216 + $0x118] sm:$0xff]
      %v269 = vld [vmem:[%s216 + $0x120] sm:$0xff]
      %v270 = vld [vmem:[%s216 + $0x128] sm:$0xff]
      %v271 = vld [vmem:[%s216 + $0x130] sm:$0xff]
      %v272 = vld [vmem:[%s216 + $0x138] sm:$0xff]
      %v273 = vld [vmem:[%s216 + $0x140] sm:$0xff]
      %v274 = vld [vmem:[%s216 + $0x148] sm:$0xff]
      %v275 = vld [vmem:[%s216 + $0x150] sm:$0xff]
      %v276 = vld [vmem:[%s216 + $0x158] sm:$0xff]
      %v277 = vld [vmem:[%s216 + $0x160] sm:$0xff]
      %v278 = vld [vmem:[%s216 + $0x168] sm:$0xff]
      %v279 = vld [vmem:[%s216 + $0x170] sm:$0xff]
      %v280 = vld [vmem:[%s216 + $0x178] sm:$0xff]
      %v281 = vld [vmem:[%s216 + $0x180] sm:$0xff]
      %v282 = vld [vmem:[%s216 + $0x188] sm:$0xff]
      %v283 = vld [vmem:[%s216 + $0x190] sm:$0xff]
      %v284 = vld [vmem:[%s216 + $0x198] sm:$0xff]
      %v285 = vld [vmem:[%s216 + $0x1a0] sm:$0xff]
      %v286 = vld [vmem:[%s216 + $0x1a8] sm:$0xff]
      %v287 = vld [vmem:[%s216 + $0x1b0] sm:$0xff]
      %v288 = vld [vmem:[%s216 + $0x1b8] sm:$0xff]
      %v289 = vld [vmem:[%s216 + $0x1c0] sm:$0xff]
      %v290 = vld [vmem:[%s216 + $0x1c8] sm:$0xff]
      %v291 = vld [vmem:[%s216 + $0x1d0] sm:$0xff]
      %v292 = vld [vmem:[%s216 + $0x1d8] sm:$0xff]
      %v293 = vld [vmem:[%s216 + $0x1e0] sm:$0xff]
      %v294 = vld [vmem:[%s216 + $0x1e8] sm:$0xff]
      %v295 = vld [vmem:[%s216 + $0x1f0] sm:$0xff]
      %v296 = vld [vmem:[%s216 + $0x1f8] sm:$0xff]
      %v297 = vld [vmem:[%s220] sm:$0x1]
      %v299 = vlaneseq
      %v300 = vshrl.u32 %v299, 7
      %v301 = vsub.s32 0, %v300
      %v302 = vrot.slane %v297, %v301
      %v304 = vmul.f32 %v233, %v302
      %v305 = vmul.f32 %v234, %v302
      %v306 = vmul.f32 %v235, %v302
      %v307 = vmul.f32 %v236, %v302
      %v308 = vmul.f32 %v237, %v302
      %v309 = vmul.f32 %v238, %v302
      %v310 = vmul.f32 %v239, %v302
      %v311 = vmul.f32 %v240, %v302
      %v312 = vmul.f32 %v241, %v302
      %v313 = vmul.f32 %v242, %v302
      %v314 = vmul.f32 %v243, %v302
      %v315 = vmul.f32 %v244, %v302
      %v316 = vmul.f32 %v245, %v302
      %v317 = vmul.f32 %v246, %v302
      %v318 = vmul.f32 %v247, %v302
      %v319 = vmul.f32 %v248, %v302
      %v320 = vmul.f32 %v249, %v302
      %v321 = vmul.f32 %v250, %v302
      %v322 = vmul.f32 %v251, %v302
      %v323 = vmul.f32 %v252, %v302
      %v324 = vmul.f32 %v253, %v302
      %v325 = vmul.f32 %v254, %v302
      %v326 = vmul.f32 %v255, %v302
      %v327 = vmul.f32 %v256, %v302
      %v328 = vmul.f32 %v257, %v302
      %v329 = vmul.f32 %v258, %v302
      %v330 = vmul.f32 %v259, %v302
      %v331 = vmul.f32 %v260, %v302
      %v332 = vmul.f32 %v261, %v302
      %v333 = vmul.f32 %v262, %v302
      %v334 = vmul.f32 %v263, %v302
      %v335 = vmul.f32 %v264, %v302
      %v336 = vmul.f32 %v265, %v302
      %v337 = vmul.f32 %v266, %v302
      %v338 = vmul.f32 %v267, %v302
      %v339 = vmul.f32 %v268, %v302
      %v340 = vmul.f32 %v269, %v302
      %v341 = vmul.f32 %v270, %v302
      %v342 = vmul.f32 %v271, %v302
      %v343 = vmul.f32 %v272, %v302
      %v344 = vmul.f32 %v273, %v302
      %v345 = vmul.f32 %v274, %v302
      %v346 = vmul.f32 %v275, %v302
      %v347 = vmul.f32 %v276, %v302
      %v348 = vmul.f32 %v277, %v302
      %v349 = vmul.f32 %v278, %v302
      %v350 = vmul.f32 %v279, %v302
      %v351 = vmul.f32 %v280, %v302
      %v352 = vmul.f32 %v281, %v302
      %v353 = vmul.f32 %v282, %v302
      %v354 = vmul.f32 %v283, %v302
      %v355 = vmul.f32 %v284, %v302
      %v356 = vmul.f32 %v285, %v302
      %v357 = vmul.f32 %v286, %v302
      %v358 = vmul.f32 %v287, %v302
      %v359 = vmul.f32 %v288, %v302
      %v360 = vmul.f32 %v289, %v302
      %v361 = vmul.f32 %v290, %v302
      %v362 = vmul.f32 %v291, %v302
      %v363 = vmul.f32 %v292, %v302
      %v364 = vmul.f32 %v293, %v302
      %v365 = vmul.f32 %v294, %v302
      %v366 = vmul.f32 %v295, %v302
      %v367 = vmul.f32 %v296, %v302
      %v368 = vld [vmem:[%s223] sm:$0x1]
      %v370 = vlaneseq
      %v371 = vshrl.u32 %v370, 7
      %v372 = vsub.s32 0, %v371
      %v373 = vrot.slane %v368, %v372
      %v375 = vadd.f32 %v304, %v373
      %v376 = vadd.f32 %v305, %v373
      %v377 = vadd.f32 %v306, %v373
      %v378 = vadd.f32 %v307, %v373
      %v379 = vadd.f32 %v308, %v373
      %v380 = vadd.f32 %v309, %v373
      %v381 = vadd.f32 %v310, %v373
      %v382 = vadd.f32 %v311, %v373
      %v383 = vadd.f32 %v312, %v373
      %v384 = vadd.f32 %v313, %v373
      %v385 = vadd.f32 %v314, %v373
      %v386 = vadd.f32 %v315, %v373
      %v387 = vadd.f32 %v316, %v373
      %v388 = vadd.f32 %v317, %v373
      %v389 = vadd.f32 %v318, %v373
      %v390 = vadd.f32 %v319, %v373
      %v391 = vadd.f32 %v320, %v373
      %v392 = vadd.f32 %v321, %v373
      %v393 = vadd.f32 %v322, %v373
      %v394 = vadd.f32 %v323, %v373
      %v395 = vadd.f32 %v324, %v373
      %v396 = vadd.f32 %v325, %v373
      %v397 = vadd.f32 %v326, %v373
      %v398 = vadd.f32 %v327, %v373
      %v399 = vadd.f32 %v328, %v373
      %v400 = vadd.f32 %v329, %v373
      %v401 = vadd.f32 %v330, %v373
      %v402 = vadd.f32 %v331, %v373
      %v403 = vadd.f32 %v332, %v373
      %v404 = vadd.f32 %v333, %v373
      %v405 = vadd.f32 %v334, %v373
      %v406 = vadd.f32 %v335, %v373
      %v407 = vadd.f32 %v336, %v373
      %v408 = vadd.f32 %v337, %v373
      %v409 = vadd.f32 %v338, %v373
      %v410 = vadd.f32 %v339, %v373
      %v411 = vadd.f32 %v340, %v373
      %v412 = vadd.f32 %v341, %v373
      %v413 = vadd.f32 %v342, %v373
      %v414 = vadd.f32 %v343, %v373
      %v415 = vadd.f32 %v344, %v373
      %v416 = vadd.f32 %v345, %v373
      %v417 = vadd.f32 %v346, %v373
      %v418 = vadd.f32 %v347, %v373
      %v419 = vadd.f32 %v348, %v373
      %v420 = vadd.f32 %v349, %v373
      %v421 = vadd.f32 %v350, %v373
      %v422 = vadd.f32 %v351, %v373
      %v423 = vadd.f32 %v352, %v373
      %v424 = vadd.f32 %v353, %v373
      %v425 = vadd.f32 %v354, %v373
      %v426 = vadd.f32 %v355, %v373
      %v427 = vadd.f32 %v356, %v373
      %v428 = vadd.f32 %v357, %v373
      %v429 = vadd.f32 %v358, %v373
      %v430 = vadd.f32 %v359, %v373
      %v431 = vadd.f32 %v360, %v373
      %v432 = vadd.f32 %v361, %v373
      %v433 = vadd.f32 %v362, %v373
      %v434 = vadd.f32 %v363, %v373
      %v435 = vadd.f32 %v364, %v373
      %v436 = vadd.f32 %v365, %v373
      %v437 = vadd.f32 %v366, %v373
      %v438 = vadd.f32 %v367, %v373
      %v439 = vmax.f32 %v375, 0.0
      %v440 = vmax.f32 %v376, 0.0
      %v441 = vmax.f32 %v377, 0.0
      %v442 = vmax.f32 %v378, 0.0
      %v443 = vmax.f32 %v379, 0.0
      %v444 = vmax.f32 %v380, 0.0
      %v445 = vmax.f32 %v381, 0.0
      %v446 = vmax.f32 %v382, 0.0
      %v447 = vmax.f32 %v383, 0.0
      %v448 = vmax.f32 %v384, 0.0
      %v449 = vmax.f32 %v385, 0.0
      %v450 = vmax.f32 %v386, 0.0
      %v451 = vmax.f32 %v387, 0.0
      %v452 = vmax.f32 %v388, 0.0
      %v453 = vmax.f32 %v389, 0.0
      %v454 = vmax.f32 %v390, 0.0
      %v455 = vmax.f32 %v391, 0.0
      %v456 = vmax.f32 %v392, 0.0
      %v457 = vmax.f32 %v393, 0.0
      %v458 = vmax.f32 %v394, 0.0
      %v459 = vmax.f32 %v395, 0.0
      %v460 = vmax.f32 %v396, 0.0
      %v461 = vmax.f32 %v397, 0.0
      %v462 = vmax.f32 %v398, 0.0
      %v463 = vmax.f32 %v399, 0.0
      %v464 = vmax.f32 %v400, 0.0
      %v465 = vmax.f32 %v401, 0.0
      %v466 = vmax.f32 %v402, 0.0
      %v467 = vmax.f32 %v403, 0.0
      %v468 = vmax.f32 %v404, 0.0
      %v469 = vmax.f32 %v405, 0.0
      %v470 = vmax.f32 %v406, 0.0
      %v471 = vmax.f32 %v407, 0.0
      %v472 = vmax.f32 %v408, 0.0
      %v473 = vmax.f32 %v409, 0.0
      %v474 = vmax.f32 %v410, 0.0
      %v475 = vmax.f32 %v411, 0.0
      %v476 = vmax.f32 %v412, 0.0
      %v477 = vmax.f32 %v413, 0.0
      %v478 = vmax.f32 %v414, 0.0
      %v479 = vmax.f32 %v415, 0.0
      %v480 = vmax.f32 %v416, 0.0
      %v481 = vmax.f32 %v417, 0.0
      %v482 = vmax.f32 %v418, 0.0
      %v483 = vmax.f32 %v419, 0.0
      %v484 = vmax.f32 %v420, 0.0
      %v485 = vmax.f32 %v421, 0.0
      %v486 = vmax.f32 %v422, 0.0
      %v487 = vmax.f32 %v423, 0.0
      %v488 = vmax.f32 %v424, 0.0
      %v489 = vmax.f32 %v425, 0.0
      %v490 = vmax.f32 %v426, 0.0
      %v491 = vmax.f32 %v427, 0.0
      %v492 = vmax.f32 %v428, 0.0
      %v493 = vmax.f32 %v429, 0.0
      %v494 = vmax.f32 %v430, 0.0
      %v495 = vmax.f32 %v431, 0.0
      %v496 = vmax.f32 %v432, 0.0
      %v497 = vmax.f32 %v433, 0.0
      %v498 = vmax.f32 %v434, 0.0
      %v499 = vmax.f32 %v435, 0.0
      %v500 = vmax.f32 %v436, 0.0
      %v501 = vmax.f32 %v437, 0.0
      %v502 = vmax.f32 %v438, 0.0
      %v503 = vpack.c.bf16 %v440, %v439
      %v504 = vpack.c.bf16 %v442, %v441
      %v505 = vpack.c.bf16 %v444, %v443
      %v506 = vpack.c.bf16 %v446, %v445
      %v507 = vpack.c.bf16 %v448, %v447
      %v508 = vpack.c.bf16 %v450, %v449
      %v509 = vpack.c.bf16 %v452, %v451
      %v510 = vpack.c.bf16 %v454, %v453
      %v511 = vpack.c.bf16 %v456, %v455
      %v512 = vpack.c.bf16 %v458, %v457
      %v513 = vpack.c.bf16 %v460, %v459
      %v514 = vpack.c.bf16 %v462, %v461
      %v515 = vpack.c.bf16 %v464, %v463
      %v516 = vpack.c.bf16 %v466, %v465
      %v517 = vpack.c.bf16 %v468, %v467
      %v518 = vpack.c.bf16 %v470, %v469
      %v519 = vpack.c.bf16 %v472, %v471
      %v520 = vpack.c.bf16 %v474, %v473
      %v521 = vpack.c.bf16 %v476, %v475
      %v522 = vpack.c.bf16 %v478, %v477
      %v523 = vpack.c.bf16 %v480, %v479
      %v524 = vpack.c.bf16 %v482, %v481
      %v525 = vpack.c.bf16 %v484, %v483
      %v526 = vpack.c.bf16 %v486, %v485
      %v527 = vpack.c.bf16 %v488, %v487
      %v528 = vpack.c.bf16 %v490, %v489
      %v529 = vpack.c.bf16 %v492, %v491
      %v530 = vpack.c.bf16 %v494, %v493
      %v531 = vpack.c.bf16 %v496, %v495
      %v532 = vpack.c.bf16 %v498, %v497
      %v533 = vpack.c.bf16 %v500, %v499
      %v534 = vpack.c.bf16 %v502, %v501
      %v567 = vunpack.c.l.b16 %v503
      %v568 = vunpack.c.h.b16 %v503
      %v569 = vunpack.c.l.b16 %v504
      %v570 = vunpack.c.h.b16 %v504
      %v571 = vunpack.c.l.b16 %v505
      %v572 = vunpack.c.h.b16 %v505
      %v573 = vunpack.c.l.b16 %v506
      %v574 = vunpack.c.h.b16 %v506
      %v575 = vunpack.c.l.b16 %v507
      %v576 = vunpack.c.h.b16 %v507
      %v577 = vunpack.c.l.b16 %v508
      %v578 = vunpack.c.h.b16 %v508
      %v579 = vunpack.c.l.b16 %v509
      %v580 = vunpack.c.h.b16 %v509
      %v581 = vunpack.c.l.b16 %v510
      %v582 = vunpack.c.h.b16 %v510
      %v583 = vunpack.c.l.b16 %v511
      %v584 = vunpack.c.h.b16 %v511
      %v585 = vunpack.c.l.b16 %v512
      %v586 = vunpack.c.h.b16 %v512
      %v587 = vunpack.c.l.b16 %v513
      %v588 = vunpack.c.h.b16 %v513
      %v589 = vunpack.c.l.b16 %v514
      %v590 = vunpack.c.h.b16 %v514
      %v591 = vunpack.c.l.b16 %v515
      %v592 = vunpack.c.h.b16 %v515
      %v593 = vunpack.c.l.b16 %v516
      %v594 = vunpack.c.h.b16 %v516
      %v595 = vunpack.c.l.b16 %v517
      %v596 = vunpack.c.h.b16 %v517
      %v597 = vunpack.c.l.b16 %v518
      %v598 = vunpack.c.h.b16 %v518
      %v599 = vunpack.c.l.b16 %v519
      %v600 = vunpack.c.h.b16 %v519
      %v601 = vunpack.c.l.b16 %v520
      %v602 = vunpack.c.h.b16 %v520
      %v603 = vunpack.c.l.b16 %v521
      %v604 = vunpack.c.h.b16 %v521
      %v605 = vunpack.c.l.b16 %v522
      %v606 = vunpack.c.h.b16 %v522
      %v607 = vunpack.c.l.b16 %v523
      %v608 = vunpack.c.h.b16 %v523
      %v609 = vunpack.c.l.b16 %v524
      %v610 = vunpack.c.h.b16 %v524
      %v611 = vunpack.c.l.b16 %v525
      %v612 = vunpack.c.h.b16 %v525
      %v613 = vunpack.c.l.b16 %v526
      %v614 = vunpack.c.h.b16 %v526
      %v615 = vunpack.c.l.b16 %v527
      %v616 = vunpack.c.h.b16 %v527
      %v617 = vunpack.c.l.b16 %v528
      %v618 = vunpack.c.h.b16 %v528
      %v619 = vunpack.c.l.b16 %v529
      %v620 = vunpack.c.h.b16 %v529
      %v621 = vunpack.c.l.b16 %v530
      %v622 = vunpack.c.h.b16 %v530
      %v623 = vunpack.c.l.b16 %v531
      %v624 = vunpack.c.h.b16 %v531
      %v625 = vunpack.c.l.b16 %v532
      %v626 = vunpack.c.h.b16 %v532
      %v627 = vunpack.c.l.b16 %v533
      %v628 = vunpack.c.h.b16 %v533
      %v629 = vunpack.c.l.b16 %v534
      %v630 = vunpack.c.h.b16 %v534
      %v631 = vpack.c.b16 %v567, %v567
      %v632 = vpack.c.b16 %v568, %v568
      %v633 = vpack.c.b16 %v569, %v569
      %v634 = vpack.c.b16 %v570, %v570
      %v635 = vpack.c.b16 %v571, %v571
      %v636 = vpack.c.b16 %v572, %v572
      %v637 = vpack.c.b16 %v573, %v573
      %v638 = vpack.c.b16 %v574, %v574
      %v639 = vpack.c.b16 %v575, %v575
      %v640 = vpack.c.b16 %v576, %v576
      %v641 = vpack.c.b16 %v577, %v577
      %v642 = vpack.c.b16 %v578, %v578
      %v643 = vpack.c.b16 %v579, %v579
      %v644 = vpack.c.b16 %v580, %v580
      %v645 = vpack.c.b16 %v581, %v581
      %v646 = vpack.c.b16 %v582, %v582
      %v647 = vpack.c.b16 %v583, %v583
      %v648 = vpack.c.b16 %v584, %v584
      %v649 = vpack.c.b16 %v585, %v585
      %v650 = vpack.c.b16 %v586, %v586
      %v651 = vpack.c.b16 %v587, %v587
      %v652 = vpack.c.b16 %v588, %v588
      %v653 = vpack.c.b16 %v589, %v589
      %v654 = vpack.c.b16 %v590, %v590
      %v655 = vpack.c.b16 %v591, %v591
      %v656 = vpack.c.b16 %v592, %v592
      %v657 = vpack.c.b16 %v593, %v593
      %v658 = vpack.c.b16 %v594, %v594
      %v659 = vpack.c.b16 %v595, %v595
      %v660 = vpack.c.b16 %v596, %v596
      %v661 = vpack.c.b16 %v597, %v597
      %v662 = vpack.c.b16 %v598, %v598
      %v663 = vpack.c.b16 %v599, %v599
      %v664 = vpack.c.b16 %v600, %v600
      %v665 = vpack.c.b16 %v601, %v601
      %v666 = vpack.c.b16 %v602, %v602
      %v667 = vpack.c.b16 %v603, %v603
      %v668 = vpack.c.b16 %v604, %v604
      %v669 = vpack.c.b16 %v605, %v605
      %v670 = vpack.c.b16 %v606, %v606
      %v671 = vpack.c.b16 %v607, %v607
      %v672 = vpack.c.b16 %v608, %v608
      %v673 = vpack.c.b16 %v609, %v609
      %v674 = vpack.c.b16 %v610, %v610
      %v675 = vpack.c.b16 %v611, %v611
      %v676 = vpack.c.b16 %v612, %v612
      %v677 = vpack.c.b16 %v613, %v613
      %v678 = vpack.c.b16 %v614, %v614
      %v679 = vpack.c.b16 %v615, %v615
      %v680 = vpack.c.b16 %v616, %v616
      %v681 = vpack.c.b16 %v617, %v617
      %v682 = vpack.c.b16 %v618, %v618
      %v683 = vpack.c.b16 %v619, %v619
      %v684 = vpack.c.b16 %v620, %v620
      %v685 = vpack.c.b16 %v621, %v621
      %v686 = vpack.c.b16 %v622, %v622
      %v687 = vpack.c.b16 %v623, %v623
      %v688 = vpack.c.b16 %v624, %v624
      %v689 = vpack.c.b16 %v625, %v625
      %v690 = vpack.c.b16 %v626, %v626
      %v691 = vpack.c.b16 %v627, %v627
      %v692 = vpack.c.b16 %v628, %v628
      %v693 = vpack.c.b16 %v629, %v629
      %v694 = vpack.c.b16 %v630, %v630
      %759 = vst [vmem:[%s231] sm:$0xf] %v631
      %760 = vst [vmem:[%s231 + $0x4] sm:$0xf] %v632
      %761 = vst [vmem:[%s231 + $0x8] sm:$0xf] %v633
      %762 = vst [vmem:[%s231 + $0xc] sm:$0xf] %v634
      %763 = vst [vmem:[%s231 + $0x10] sm:$0xf] %v635
      %764 = vst [vmem:[%s231 + $0x14] sm:$0xf] %v636
      %765 = vst [vmem:[%s231 + $0x18] sm:$0xf] %v637
      %766 = vst [vmem:[%s231 + $0x1c] sm:$0xf] %v638
      %767 = vst [vmem:[%s231 + $0x20] sm:$0xf] %v639
      %768 = vst [vmem:[%s231 + $0x24] sm:$0xf] %v640
      %769 = vst [vmem:[%s231 + $0x28] sm:$0xf] %v641
      %770 = vst [vmem:[%s231 + $0x2c] sm:$0xf] %v642
      %771 = vst [vmem:[%s231 + $0x30] sm:$0xf] %v643
      %772 = vst [vmem:[%s231 + $0x34] sm:$0xf] %v644
      %773 = vst [vmem:[%s231 + $0x38] sm:$0xf] %v645
      %774 = vst [vmem:[%s231 + $0x3c] sm:$0xf] %v646
      %775 = vst [vmem:[%s231 + $0x40] sm:$0xf] %v647
      %776 = vst [vmem:[%s231 + $0x44] sm:$0xf] %v648
      %777 = vst [vmem:[%s231 + $0x48] sm:$0xf] %v649
      %778 = vst [vmem:[%s231 + $0x4c] sm:$0xf] %v650
      %779 = vst [vmem:[%s231 + $0x50] sm:$0xf] %v651
      %780 = vst [vmem:[%s231 + $0x54] sm:$0xf] %v652
      %781 = vst [vmem:[%s231 + $0x58] sm:$0xf] %v653
      %782 = vst [vmem:[%s231 + $0x5c] sm:$0xf] %v654
      %783 = vst [vmem:[%s231 + $0x60] sm:$0xf] %v655
      %784 = vst [vmem:[%s231 + $0x64] sm:$0xf] %v656
      %785 = vst [vmem:[%s231 + $0x68] sm:$0xf] %v657
      %786 = vst [vmem:[%s231 + $0x6c] sm:$0xf] %v658
      %787 = vst [vmem:[%s231 + $0x70] sm:$0xf] %v659
      %788 = vst [vmem:[%s231 + $0x74] sm:$0xf] %v660
      %789 = vst [vmem:[%s231 + $0x78] sm:$0xf] %v661
      %790 = vst [vmem:[%s231 + $0x7c] sm:$0xf] %v662
      %791 = vst [vmem:[%s231 + $0x80] sm:$0xf] %v663
      %792 = vst [vmem:[%s231 + $0x84] sm:$0xf] %v664
      %793 = vst [vmem:[%s231 + $0x88] sm:$0xf] %v665
      %794 = vst [vmem:[%s231 + $0x8c] sm:$0xf] %v666
      %795 = vst [vmem:[%s231 + $0x90] sm:$0xf] %v667
      %796 = vst [vmem:[%s231 + $0x94] sm:$0xf] %v668
      %797 = vst [vmem:[%s231 + $0x98] sm:$0xf] %v669
      %798 = vst [vmem:[%s231 + $0x9c] sm:$0xf] %v670
      %799 = vst [vmem:[%s231 + $0xa0] sm:$0xf] %v671
      %800 = vst [vmem:[%s231 + $0xa4] sm:$0xf] %v672
      %801 = vst [vmem:[%s231 + $0xa8] sm:$0xf] %v673
      %802 = vst [vmem:[%s231 + $0xac] sm:$0xf] %v674
      %803 = vst [vmem:[%s231 + $0xb0] sm:$0xf] %v675
      %804 = vst [vmem:[%s231 + $0xb4] sm:$0xf] %v676
      %805 = vst [vmem:[%s231 + $0xb8] sm:$0xf] %v677
      %806 = vst [vmem:[%s231 + $0xbc] sm:$0xf] %v678
      %807 = vst [vmem:[%s231 + $0xc0] sm:$0xf] %v679
      %808 = vst [vmem:[%s231 + $0xc4] sm:$0xf] %v680
      %809 = vst [vmem:[%s231 + $0xc8] sm:$0xf] %v681
      %810 = vst [vmem:[%s231 + $0xcc] sm:$0xf] %v682
      %811 = vst [vmem:[%s231 + $0xd0] sm:$0xf] %v683
      %812 = vst [vmem:[%s231 + $0xd4] sm:$0xf] %v684
      %813 = vst [vmem:[%s231 + $0xd8] sm:$0xf] %v685
      %814 = vst [vmem:[%s231 + $0xdc] sm:$0xf] %v686
      %815 = vst [vmem:[%s231 + $0xe0] sm:$0xf] %v687
      %816 = vst [vmem:[%s231 + $0xe4] sm:$0xf] %v688
      %817 = vst [vmem:[%s231 + $0xe8] sm:$0xf] %v689
      %818 = vst [vmem:[%s231 + $0xec] sm:$0xf] %v690
      %819 = vst [vmem:[%s231 + $0xf0] sm:$0xf] %v691
      %820 = vst [vmem:[%s231 + $0xf4] sm:$0xf] %v692
      %821 = vst [vmem:[%s231 + $0xf8] sm:$0xf] %v693
      %822 = vst [vmem:[%s231 + $0xfc] sm:$0xf] %v694
      %s823 = smul.u32 64, %s18
      %p824 = scmp.lt.s32.totalorder %s823, 127
      %s825 = scalar_select %p824, %s823, 127
      %p826 = scmp.lt.s32.totalorder %s19, 0
      %s827 = scalar_select %p826, %s19, 0
      %s828 = sadd.s32 %s827, %s825
      %s829 = smul.addr %s828, 4
      %s830 = scalar_lea.vmem %s3, %s829
      // Predicated region
      $region33: #{forward.67} parent=31 // pred_check
        %p831 = pneg %p126
      $region34: #{forward.67} parent=31 // pred_check_branch
        %833 = sbr.rel (%p831) target = $region36
      $region35: #{forward.67} parent=31 // pred_region
        %s834 = smul.u32 64, %s18
      $region36: #{forward.67} parent=31 // pred_fallthru
        _
    $region32: #{forward.67} parent=5 // pred_fallthru
      _
    %p835 = scmp.le.s32.totalorder 2, %s9
    // Predicated region
    $region37: #{forward.67} parent=5 // pred_check
      %p836 = pneg %p835
    $region38: #{forward.67} parent=5 // pred_check_branch
      %838 = sbr.rel (%p836) target = $region40
    $region39: #{forward.67} parent=5 // pred_region
      %s839 = ssub.s32 %s9, 2
      // Predicated region
      $region41: #{forward.67} parent=39 // pred_check
        %p840 = pneg %p132
      $region42: #{forward.67} parent=39 // pred_check_branch
        %842 = sbr.rel (%p840) target = $region44
      $region43: #{forward.67} parent=39 // pred_region
        %s843 = smul.u32 64, %s20
        %p844 = scmp.lt.s32.totalorder %s843, 127
        %s845 = scalar_select %p844, %s843, 127
        %p846 = scmp.lt.s32.totalorder %s21, 0
        %s847 = scalar_select %p846, %s21, 0
        %s848 = sadd.s32 %s847, %s845
        %s849 = smul.addr %s848, 4
        %s850 = scalar_lea.vmem %s3, %s849
      $region44: #{forward.67} parent=39 // pred_fallthru
        _
    $region40: #{forward.67} parent=5 // pred_fallthru
      _
  $region6: #{forward.67} parent=0 // loop_footer
    %s13 = sadd.s32 1, %s9
  $region7: #{forward.67} parent=0 // loop_footer_branch
    %8 = sbr.rel target = $region3
  $region8: #{forward.67} parent=0 // loop_exit
    _

// kernel: forward.66
$region0: #{forward.66}
  #allocation0 [shape = 'u32[]', space=smem, size = 0x4, offset = 0x4, fixed_abs, tag = 'smem constant byte address 0x4 - core index']
  #allocation1 [shape = 'u32[144,128]{1,0:T(1,128)}', space=vmem, size = 0x12000, scoped, tag = 'internal scratch']
  #allocation2 [shape = 'f32[512,128]{1,0:T(8,128)}', space=vmem, size = 0x40000, scoped, tag = 'scratch operand']
  %s0 = inlined_call_operand.vmem [shape: bf16[1024,64], index: 0, kind: input, shape index: {}]
  %s1 = inlined_call_operand.vmem [shape: bf16[64,128], index: 1, kind: input, shape index: {}]
  %s2 = inlined_call_operand.vmem [shape: f32[1024,128], index: 2, kind: output, shape index: {0}]
  %s3 = inlined_call_operand.vmem [shape: f32[1,128], index: 3, kind: output, shape index: {1}]
  %s4 = inlined_call_operand.vmem [shape: f32[1,128], index: 4, kind: output, shape index: {2}]
  %5 = xla_tuple %s2, %s3, %s4
  %s6 = sld [smem:[#allocation0]]
  $region69: #{forward.66} parent=0
    _
  %s8 = ssub.s32 1, %s6
  %s9 = scalar_select 0, %s8, %s6
  loop: start=0, step=1, limit=4
  $region2: #{forward.66} parent=0 // loop_pre_header
    _
  $region3: #{forward.66} parent=0 // loop_header
    %s11 = sphi 0, %s15
    %p12 = scmp.ge.s32.totalorder %s11, 4
    %s18 = sphi 0, %s37
    %s19 = sphi 0, %s33
    %s20 = sphi 0, %s29
    %s21 = sphi 0, %s18
    %s22 = sphi 0, %s19
    %s23 = sphi 0, %s20
    %s24 = sphi 0, %s21
    %s25 = sphi 0, %s22
    %s26 = sphi 0, %s23
    %s42 = sphi 0, %s44
    %s45 = sphi 0, %s42
    %s46 = sphi 0, %s45
    %s62 = sphi 0, %s46
    %s70 = sphi 0, %s72
    %s73 = sphi 0, %s70
    %s74 = sphi 0, %s73
    %s90 = sphi 0, %s74
    %s98 = sphi 0, %s100
    %s101 = sphi 0, %s98
    %s102 = sphi 0, %s101
    %s118 = sphi 0, %s102
    %s124 = sphi 0, %s126
    %s127 = sphi 0, %s124
    %s128 = sphi 0, %s127
    %s144 = sphi 0, %s128
    %s150 = sphi 0, %s152
    %s153 = sphi 0, %s150
    %s154 = sphi 0, %s153
    %s170 = sphi 0, %s154
  $region4: #{forward.66} parent=0 // loop_header_branch
    %14 = sbr.rel (%p12) target = $region8
  $region5: #{forward.66} parent=0 // loop_body
    %s16 = ssub.s32 %s11, 1
    %s17 = ssub.s32 %s11, 2
    %s27 = sadd.s32 1, %s20
    %p28 = scmp.ge.s32.totalorder %s27, 1
    %s29 = scalar_select %p28, 0, %s27
    %s30 = sadd.s32 1, %s19
    %s31 = scalar_select %p28, %s30, %s19
    %p32 = scmp.ge.s32.totalorder %s31, 2
    %s33 = scalar_select %p32, 0, %s31
    %s34 = sadd.s32 1, %s18
    %s35 = scalar_select %p32, %s34, %s18
    %p36 = scmp.ge.s32.totalorder %s35, 1
    %s37 = scalar_select %p36, 0, %s35
    %s38 = ssub.s32 %s19, %s33
    %s39 = ssub.s32 %s20, %s29
    %s40 = sor.u32 %s38, %s39
    %p41 = scmp.eq.s32.totalorder %s40, 0
    %s43 = sadd.s32 %s42, 1
    %s44 = scalar_select %p41, %s42, %s43
    %p47 = pneg %p41
    %p48 = scmp.eq.s32.totalorder %s11, 1
    %p49 = por %p47, %p48
    %p50 = scmp.ne.s32.totalorder %s42, %s45
    %p51 = scmp.eq.s32.totalorder %s11, 0
    %p52 = por %p50, %p51
    %p53 = scmp.ne.s32.totalorder %s42, %s45
    %p54 = scmp.eq.s32.totalorder %s16, 1
    %p55 = por %p53, %p54
    %p56 = scmp.ne.s32.totalorder %s45, %s46
    %p57 = scmp.eq.s32.totalorder %s16, 0
    %p58 = por %p56, %p57
    %p59 = scmp.ne.s32.totalorder %s45, %s46
    %p60 = scmp.eq.s32.totalorder %s17, 1
    %p61 = por %p59, %p60
    %p63 = scmp.ne.s32.totalorder %s46, %s62
    %p64 = scmp.eq.s32.totalorder %s17, 0
    %p65 = por %p63, %p64
    %s66 = ssub.s32 %s20, %s29
    %s67 = ssub.s32 %s18, %s37
    %s68 = sor.u32 %s66, %s67
    %p69 = scmp.eq.s32.totalorder %s68, 0
    %s71 = sadd.s32 %s70, 1
    %s72 = scalar_select %p69, %s70, %s71
    %p75 = pneg %p69
    %p76 = scmp.eq.s32.totalorder %s11, 1
    %p77 = por %p75, %p76
    %p78 = scmp.ne.s32.totalorder %s70, %s73
    %p79 = scmp.eq.s32.totalorder %s11, 0
    %p80 = por %p78, %p79
    %p81 = scmp.ne.s32.totalorder %s70, %s73
    %p82 = scmp.eq.s32.totalorder %s16, 1
    %p83 = por %p81, %p82
    %p84 = scmp.ne.s32.totalorder %s73, %s74
    %p85 = scmp.eq.s32.totalorder %s16, 0
    %p86 = por %p84, %p85
    %p87 = scmp.ne.s32.totalorder %s73, %s74
    %p88 = scmp.eq.s32.totalorder %s17, 1
    %p89 = por %p87, %p88
    %p91 = scmp.ne.s32.totalorder %s74, %s90
    %p92 = scmp.eq.s32.totalorder %s17, 0
    %p93 = por %p91, %p92
    %s94 = ssub.s32 %s19, %s33
    %s95 = ssub.s32 %s18, %s37
    %s96 = sor.u32 %s94, %s95
    %p97 = scmp.eq.s32.totalorder %s96, 0
    %s99 = sadd.s32 %s98, 1
    %s100 = scalar_select %p97, %s98, %s99
    %p103 = pneg %p97
    %p104 = scmp.eq.s32.totalorder %s11, 1
    %p105 = por %p103, %p104
    %p106 = scmp.ne.s32.totalorder %s98, %s101
    %p107 = scmp.eq.s32.totalorder %s11, 0
    %p108 = por %p106, %p107
    %p109 = scmp.ne.s32.totalorder %s98, %s101
    %p110 = scmp.eq.s32.totalorder %s16, 1
    %p111 = por %p109, %p110
    %p112 = scmp.ne.s32.totalorder %s101, %s102
    %p113 = scmp.eq.s32.totalorder %s16, 0
    %p114 = por %p112, %p113
    %p115 = scmp.ne.s32.totalorder %s101, %s102
    %p116 = scmp.eq.s32.totalorder %s17, 1
    %p117 = por %p115, %p116
    %p119 = scmp.ne.s32.totalorder %s102, %s118
    %p120 = scmp.eq.s32.totalorder %s17, 0
    %p121 = por %p119, %p120
    %s122 = ssub.s32 %s18, %s37
    %p123 = scmp.eq.s32.totalorder %s122, 0
    %s125 = sadd.s32 %s124, 1
    %s126 = scalar_select %p123, %s124, %s125
    %p129 = pneg %p123
    %p130 = scmp.eq.s32.totalorder %s11, 1
    %p131 = por %p129, %p130
    %p132 = scmp.ne.s32.totalorder %s124, %s127
    %p133 = scmp.eq.s32.totalorder %s11, 0
    %p134 = por %p132, %p133
    %p135 = scmp.ne.s32.totalorder %s124, %s127
    %p136 = scmp.eq.s32.totalorder %s16, 1
    %p137 = por %p135, %p136
    %p138 = scmp.ne.s32.totalorder %s127, %s128
    %p139 = scmp.eq.s32.totalorder %s16, 0
    %p140 = por %p138, %p139
    %p141 = scmp.ne.s32.totalorder %s127, %s128
    %p142 = scmp.eq.s32.totalorder %s17, 1
    %p143 = por %p141, %p142
    %p145 = scmp.ne.s32.totalorder %s128, %s144
    %p146 = scmp.eq.s32.totalorder %s17, 0
    %p147 = por %p145, %p146
    %s148 = ssub.s32 %s18, %s37
    %p149 = scmp.eq.s32.totalorder %s148, 0
    %s151 = sadd.s32 %s150, 1
    %s152 = scalar_select %p149, %s150, %s151
    %p155 = pneg %p149
    %p156 = scmp.eq.s32.totalorder %s11, 1
    %p157 = por %p155, %p156
    %p158 = scmp.ne.s32.totalorder %s150, %s153
    %p159 = scmp.eq.s32.totalorder %s11, 0
    %p160 = por %p158, %p159
    %p161 = scmp.ne.s32.totalorder %s150, %s153
    %p162 = scmp.eq.s32.totalorder %s16, 1
    %p163 = por %p161, %p162
    %p164 = scmp.ne.s32.totalorder %s153, %s154
    %p165 = scmp.eq.s32.totalorder %s16, 0
    %p166 = por %p164, %p165
    %p167 = scmp.ne.s32.totalorder %s153, %s154
    %p168 = scmp.eq.s32.totalorder %s17, 1
    %p169 = por %p167, %p168
    %p171 = scmp.ne.s32.totalorder %s154, %s170
    %p172 = scmp.eq.s32.totalorder %s17, 0
    %p173 = por %p171, %p172
    %p174 = scmp.le.s32.totalorder 1, %s11
    %p175 = scmp.lt.s32.totalorder %s11, 3
    %p176 = pnand %p174, %p175
    %p177 = pneg %p176
    // Predicated region
    $region9: #{forward.66} parent=5 // pred_check
      _
    $region10: #{forward.66} parent=5 // pred_check_branch
      %179 = sbr.rel (%p176) target = $region12
    $region11: #{forward.66} parent=5 // pred_region
      %s180 = ssub.s32 %s11, 1
      // Predicated region
      $region13: #{forward.66} parent=11 // pred_check
        %p181 = pneg %p86
      $region14: #{forward.66} parent=11 // pred_check_branch
        %183 = sbr.rel (%p181) target = $region16
      $region15: #{forward.66} parent=11 // pred_region
        %s184 = smul.u32 8, %s23
        %p185 = scmp.lt.s32.totalorder %s184, 7
        %s186 = scalar_select %p185, %s184, 7
        %p187 = scmp.lt.s32.totalorder %s21, 0
        %s188 = scalar_select %p187, %s21, 0
        %s189 = sadd.s32 %s188, %s186
        %s190 = smul.addr %s189, 4
        %s191 = scalar_lea.vmem %s1, %s190
        %s192 = smul.u32 8, %s23
      $region16: #{forward.66} parent=11 // pred_fallthru
        _
    $region12: #{forward.66} parent=5 // pred_fallthru
      _
    %p193 = scmp.lt.s32.totalorder %s11, 2
    // Predicated region
    $region17: #{forward.66} parent=5 // pred_check
      %p194 = pneg %p193
    $region18: #{forward.66} parent=5 // pred_check_branch
      %196 = sbr.rel (%p194) target = $region20
    $region19: #{forward.66} parent=5 // pred_region
      // Predicated region
      $region21: #{forward.66} parent=19 // pred_check
        %p197 = pneg %p52
      $region22: #{forward.66} parent=19 // pred_check_branch
        %199 = sbr.rel (%p197) target = $region24
      $region23: #{forward.66} parent=19 // pred_region
        %s200 = smul.u32 64, %s19
        %p201 = scmp.lt.s32.totalorder %s200, 127
        %s202 = scalar_select %p201, %s200, 127
        %p203 = scmp.lt.s32.totalorder %s20, 0
        %s204 = scalar_select %p203, %s20, 0
        %s205 = sadd.s32 %s204, %s202
        %s206 = smul.addr %s205, 4
        %s207 = scalar_lea.vmem %s0, %s206
        %s208 = smul.u32 64, %s19
      $region24: #{forward.66} parent=19 // pred_fallthru
        _
    $region20: #{forward.66} parent=5 // pred_fallthru
      _
    %p209 = scmp.le.s32.totalorder 1, %s11
    %p210 = scmp.lt.s32.totalorder %s11, 3
    %p211 = pnand %p209, %p210
    %p212 = pneg %p211
    // Predicated region
    $region25: #{forward.66} parent=5 // pred_check
      _
    $region26: #{forward.66} parent=5 // pred_check_branch
      %214 = sbr.rel (%p211) target = $region28
    $region27: #{forward.66} parent=5 // pred_region
      %s215 = ssub.s32 %s11, 1
      %s216 = smul.u32 64, %s22
      %p217 = scmp.lt.s32.totalorder %s216, 127
      %s218 = scalar_select %p217, %s216, 127
      %p219 = scmp.lt.s32.totalorder %s23, 0
      %s220 = scalar_select %p219, %s23, 0
      %s221 = sadd.s32 %s220, %s218
      %s222 = smul.addr %s221, 4
      %s223 = scalar_lea.vmem %s0, %s222
      %p224 = pneg %p58
      %p225 = pneg %p55
      %s226 = smul.u32 8, %s23
      %p227 = scmp.lt.s32.totalorder %s226, 7
      %s228 = scalar_select %p227, %s226, 7
      %p229 = scmp.lt.s32.totalorder %s21, 0
      %s230 = scalar_select %p229, %s21, 0
      %s231 = sadd.s32 %s230, %s228
      %s232 = smul.addr %s231, 4
      %s233 = scalar_lea.vmem %s1, %s232
      %p234 = pneg %p86
      %p235 = pneg %p83
      %p236 = pneg %p114
      %p237 = pneg %p111
      %s238 = smul.u32 64, %s22
      %p239 = scmp.lt.s32.totalorder %s238, 127
      %s240 = scalar_select %p239, %s238, 127
      %p241 = scmp.lt.s32.totalorder %s21, 0
      %s242 = scalar_select %p241, %s21, 0
      %s243 = sadd.s32 %s242, %s240
      %s244 = smul.addr %s243, 8
      %s245 = scalar_lea.vmem %s2, %s244
      %p246 = pneg %p140
      %p247 = pneg %p137
      %p248 = scmp.lt.s32.totalorder %s21, 0
      %s249 = scalar_select %p248, %s21, 0
      %s250 = scalar_lea.vmem %s3, %s249
      %p251 = pneg %p166
      %p252 = pneg %p163
      %p253 = scmp.lt.s32.totalorder %s21, 0
      %s254 = scalar_select %p253, %s21, 0
      %s255 = scalar_lea.vmem %s4, %s254
      %s256 = smul.u32 64, %s22
      %p257 = scmp.lt.s32.totalorder %s256, 127
      %s258 = scalar_select %p257, %s256, 127
      %p259 = scmp.lt.s32.totalorder %s23, 0
      %s260 = scalar_select %p259, %s23, 0
      %s261 = sadd.s32 %s260, %s258
      %s262 = smul.addr %s261, 4
      %s263 = scalar_lea.vmem %s0, %s262
      %s264 = smul.u32 64, %s22
      %s265 = smul.u32 8, %s23
      %p266 = scmp.lt.s32.totalorder %s265, 7
      %s267 = scalar_select %p266, %s265, 7
      %p268 = scmp.lt.s32.totalorder %s21, 0
      %s269 = scalar_select %p268, %s21, 0
      %s270 = sadd.s32 %s269, %s267
      %s271 = smul.addr %s270, 4
      %s272 = scalar_lea.vmem %s1, %s271
      %s273 = smul.u32 8, %s23
      %s274 = smul.u32 64, %s22
      %p275 = scmp.lt.s32.totalorder %s274, 127
      %s276 = scalar_select %p275, %s274, 127
      %p277 = scmp.lt.s32.totalorder %s21, 0
      %s278 = scalar_select %p277, %s21, 0
      %s279 = sadd.s32 %s278, %s276
      %s280 = smul.addr %s279, 8
      %s281 = scalar_lea.vmem %s2, %s280
      %s282 = smul.u32 64, %s22
      %p283 = scmp.lt.s32.totalorder %s21, 0
      %s284 = scalar_select %p283, %s21, 0
      %s285 = scalar_lea.vmem %s3, %s284
      %p286 = scmp.lt.s32.totalorder %s21, 0
      %s287 = scalar_select %p286, %s21, 0
      %s288 = scalar_lea.vmem %s4, %s287
      %p290 = scmp.eq.s32.totalorder %s23, 0
      // Predicated region
      $region29: #{forward.66} parent=27 // pred_check
        %p291 = pneg %p290
      $region30: #{forward.66} parent=27 // pred_check_branch
        %293 = sbr.rel (%p291) target = $region32
      $region31: #{forward.66} parent=27 // pred_region
        %294 = vst [vmem:[#allocation2] sm:$0xff] 0.0
        %295 = vst [vmem:[#allocation2 + $0x8] sm:$0xff] 0.0
        %296 = vst [vmem:[#allocation2 + $0x10] sm:$0xff] 0.0
        %297 = vst [vmem:[#allocation2 + $0x18] sm:$0xff] 0.0
        %298 = vst [vmem:[#allocation2 + $0x20] sm:$0xff] 0.0
        %299 = vst [vmem:[#allocation2 + $0x28] sm:$0xff] 0.0
        %300 = vst [vmem:[#allocation2 + $0x30] sm:$0xff] 0.0
        %301 = vst [vmem:[#allocation2 + $0x38] sm:$0xff] 0.0
        %302 = vst [vmem:[#allocation2 + $0x40] sm:$0xff] 0.0
        %303 = vst [vmem:[#allocation2 + $0x48] sm:$0xff] 0.0
        %304 = vst [vmem:[#allocation2 + $0x50] sm:$0xff] 0.0
        %305 = vst [vmem:[#allocation2 + $0x58] sm:$0xff] 0.0
        %306 = vst [vmem:[#allocation2 + $0x60] sm:$0xff] 0.0
        %307 = vst [vmem:[#allocation2 + $0x68] sm:$0xff] 0.0
        %308 = vst [vmem:[#allocation2 + $0x70] sm:$0xff] 0.0
        %309 = vst [vmem:[#allocation2 + $0x78] sm:$0xff] 0.0
        %310 = vst [vmem:[#allocation2 + $0x80] sm:$0xff] 0.0
        %311 = vst [vmem:[#allocation2 + $0x88] sm:$0xff] 0.0
        %312 = vst [vmem:[#allocation2 + $0x90] sm:$0xff] 0.0
        %313 = vst [vmem:[#allocation2 + $0x98] sm:$0xff] 0.0
        %314 = vst [vmem:[#allocation2 + $0xa0] sm:$0xff] 0.0
        %315 = vst [vmem:[#allocation2 + $0xa8] sm:$0xff] 0.0
        %316 = vst [vmem:[#allocation2 + $0xb0] sm:$0xff] 0.0
        %317 = vst [vmem:[#allocation2 + $0xb8] sm:$0xff] 0.0
        %318 = vst [vmem:[#allocation2 + $0xc0] sm:$0xff] 0.0
        %319 = vst [vmem:[#allocation2 + $0xc8] sm:$0xff] 0.0
        %320 = vst [vmem:[#allocation2 + $0xd0] sm:$0xff] 0.0
        %321 = vst [vmem:[#allocation2 + $0xd8] sm:$0xff] 0.0
        %322 = vst [vmem:[#allocation2 + $0xe0] sm:$0xff] 0.0
        %323 = vst [vmem:[#allocation2 + $0xe8] sm:$0xff] 0.0
        %324 = vst [vmem:[#allocation2 + $0xf0] sm:$0xff] 0.0
        %325 = vst [vmem:[#allocation2 + $0xf8] sm:$0xff] 0.0
        %326 = vst [vmem:[#allocation2 + $0x100] sm:$0xff] 0.0
        %327 = vst [vmem:[#allocation2 + $0x108] sm:$0xff] 0.0
        %328 = vst [vmem:[#allocation2 + $0x110] sm:$0xff] 0.0
        %329 = vst [vmem:[#allocation2 + $0x118] sm:$0xff] 0.0
        %330 = vst [vmem:[#allocation2 + $0x120] sm:$0xff] 0.0
        %331 = vst [vmem:[#allocation2 + $0x128] sm:$0xff] 0.0
        %332 = vst [vmem:[#allocation2 + $0x130] sm:$0xff] 0.0
        %333 = vst [vmem:[#allocation2 + $0x138] sm:$0xff] 0.0
        %334 = vst [vmem:[#allocation2 + $0x140] sm:$0xff] 0.0
        %335 = vst [vmem:[#allocation2 + $0x148] sm:$0xff] 0.0
        %336 = vst [vmem:[#allocation2 + $0x150] sm:$0xff] 0.0
        %337 = vst [vmem:[#allocation2 + $0x158] sm:$0xff] 0.0
        %338 = vst [vmem:[#allocation2 + $0x160] sm:$0xff] 0.0
        %339 = vst [vmem:[#allocation2 + $0x168] sm:$0xff] 0.0
        %340 = vst [vmem:[#allocation2 + $0x170] sm:$0xff] 0.0
        %341 = vst [vmem:[#allocation2 + $0x178] sm:$0xff] 0.0
        %342 = vst [vmem:[#allocation2 + $0x180] sm:$0xff] 0.0
        %343 = vst [vmem:[#allocation2 + $0x188] sm:$0xff] 0.0
        %344 = vst [vmem:[#allocation2 + $0x190] sm:$0xff] 0.0
        %345 = vst [vmem:[#allocation2 + $0x198] sm:$0xff] 0.0
        %346 = vst [vmem:[#allocation2 + $0x1a0] sm:$0xff] 0.0
        %347 = vst [vmem:[#allocation2 + $0x1a8] sm:$0xff] 0.0
        %348 = vst [vmem:[#allocation2 + $0x1b0] sm:$0xff] 0.0
        %349 = vst [vmem:[#allocation2 + $0x1b8] sm:$0xff] 0.0
        %350 = vst [vmem:[#allocation2 + $0x1c0] sm:$0xff] 0.0
        %351 = vst [vmem:[#allocation2 + $0x1c8] sm:$0xff] 0.0
        %352 = vst [vmem:[#allocation2 + $0x1d0] sm:$0xff] 0.0
        %353 = vst [vmem:[#allocation2 + $0x1d8] sm:$0xff] 0.0
        %354 = vst [vmem:[#allocation2 + $0x1e0] sm:$0xff] 0.0
        %355 = vst [vmem:[#allocation2 + $0x1e8] sm:$0xff] 0.0
        %356 = vst [vmem:[#allocation2 + $0x1f0] sm:$0xff] 0.0
        %357 = vst [vmem:[#allocation2 + $0x1f8] sm:$0xff] 0.0
      $region32: #{forward.66} parent=27 // pred_fallthru
        _
      %p358 = scmp.eq.s32.totalorder %s22, 0
      %p359 = pnand %p290, %p358
      %p360 = pneg %p359
      // Predicated region
      $region33: #{forward.66} parent=27 // pred_check
        _
      $region34: #{forward.66} parent=27 // pred_check_branch
        %362 = sbr.rel (%p359) target = $region36
      $region35: #{forward.66} parent=27 // pred_region
        %363 = vst [vmem:[%s285] sm:$0x1] 0.0
        %364 = vst [vmem:[%s288] sm:$0x1] 0.0
      $region36: #{forward.66} parent=27 // pred_fallthru
        _
      %v365 = vld [vmem:[#allocation2] sm:$0xff]
      %v366 = vld [vmem:[#allocation2 + $0x8] sm:$0xff]
      %v367 = vld [vmem:[#allocation2 + $0x10] sm:$0xff]
      %v368 = vld [vmem:[#allocation2 + $0x18] sm:$0xff]
      %v369 = vld [vmem:[#allocation2 + $0x20] sm:$0xff]
      %v370 = vld [vmem:[#allocation2 + $0x28] sm:$0xff]
      %v371 = vld [vmem:[#allocation2 + $0x30] sm:$0xff]
      %v372 = vld [vmem:[#allocation2 + $0x38] sm:$0xff]
      %v373 = vld [vmem:[#allocation2 + $0x40] sm:$0xff]
      %v374 = vld [vmem:[#allocation2 + $0x48] sm:$0xff]
      %v375 = vld [vmem:[#allocation2 + $0x50] sm:$0xff]
      %v376 = vld [vmem:[#allocation2 + $0x58] sm:$0xff]
      %v377 = vld [vmem:[#allocation2 + $0x60] sm:$0xff]
      %v378 = vld [vmem:[#allocation2 + $0x68] sm:$0xff]
      %v379 = vld [vmem:[#allocation2 + $0x70] sm:$0xff]
      %v380 = vld [vmem:[#allocation2 + $0x78] sm:$0xff]
      %v381 = vld [vmem:[#allocation2 + $0x80] sm:$0xff]
      %v382 = vld [vmem:[#allocation2 + $0x88] sm:$0xff]
      %v383 = vld [vmem:[#allocation2 + $0x90] sm:$0xff]
      %v384 = vld [vmem:[#allocation2 + $0x98] sm:$0xff]
      %v385 = vld [vmem:[#allocation2 + $0xa0] sm:$0xff]
      %v386 = vld [vmem:[#allocation2 + $0xa8] sm:$0xff]
      %v387 = vld [vmem:[#allocation2 + $0xb0] sm:$0xff]
      %v388 = vld [vmem:[#allocation2 + $0xb8] sm:$0xff]
      %v389 = vld [vmem:[#allocation2 + $0xc0] sm:$0xff]
      %v390 = vld [vmem:[#allocation2 + $0xc8] sm:$0xff]
      %v391 = vld [vmem:[#allocation2 + $0xd0] sm:$0xff]
      %v392 = vld [vmem:[#allocation2 + $0xd8] sm:$0xff]
      %v393 = vld [vmem:[#allocation2 + $0xe0] sm:$0xff]
      %v394 = vld [vmem:[#allocation2 + $0xe8] sm:$0xff]
      %v395 = vld [vmem:[#allocation2 + $0xf0] sm:$0xff]
      %v396 = vld [vmem:[#allocation2 + $0xf8] sm:$0xff]
      %v397 = vld [vmem:[#allocation2 + $0x100] sm:$0xff]
      %v398 = vld [vmem:[#allocation2 + $0x108] sm:$0xff]
      %v399 = vld [vmem:[#allocation2 + $0x110] sm:$0xff]
      %v400 = vld [vmem:[#allocation2 + $0x118] sm:$0xff]
      %v401 = vld [vmem:[#allocation2 + $0x120] sm:$0xff]
      %v402 = vld [vmem:[#allocation2 + $0x128] sm:$0xff]
      %v403 = vld [vmem:[#allocation2 + $0x130] sm:$0xff]
      %v404 = vld [vmem:[#allocation2 + $0x138] sm:$0xff]
      %v405 = vld [vmem:[#allocation2 + $0x140] sm:$0xff]
      %v406 = vld [vmem:[#allocation2 + $0x148] sm:$0xff]
      %v407 = vld [vmem:[#allocation2 + $0x150] sm:$0xff]
      %v408 = vld [vmem:[#allocation2 + $0x158] sm:$0xff]
      %v409 = vld [vmem:[#allocation2 + $0x160] sm:$0xff]
      %v410 = vld [vmem:[#allocation2 + $0x168] sm:$0xff]
      %v411 = vld [vmem:[#allocation2 + $0x170] sm:$0xff]
      %v412 = vld [vmem:[#allocation2 + $0x178] sm:$0xff]
      %v413 = vld [vmem:[#allocation2 + $0x180] sm:$0xff]
      %v414 = vld [vmem:[#allocation2 + $0x188] sm:$0xff]
      %v415 = vld [vmem:[#allocation2 + $0x190] sm:$0xff]
      %v416 = vld [vmem:[#allocation2 + $0x198] sm:$0xff]
      %v417 = vld [vmem:[#allocation2 + $0x1a0] sm:$0xff]
      %v418 = vld [vmem:[#allocation2 + $0x1a8] sm:$0xff]
      %v419 = vld [vmem:[#allocation2 + $0x1b0] sm:$0xff]
      %v420 = vld [vmem:[#allocation2 + $0x1b8] sm:$0xff]
      %v421 = vld [vmem:[#allocation2 + $0x1c0] sm:$0xff]
      %v422 = vld [vmem:[#allocation2 + $0x1c8] sm:$0xff]
      %v423 = vld [vmem:[#allocation2 + $0x1d0] sm:$0xff]
      %v424 = vld [vmem:[#allocation2 + $0x1d8] sm:$0xff]
      %v425 = vld [vmem:[#allocation2 + $0x1e0] sm:$0xff]
      %v426 = vld [vmem:[#allocation2 + $0x1e8] sm:$0xff]
      %v427 = vld [vmem:[#allocation2 + $0x1f0] sm:$0xff]
      %v428 = vld [vmem:[#allocation2 + $0x1f8] sm:$0xff]
      %v429 = vld [vmem:[%s263] sm:$0xf]
      %v430 = vld [vmem:[%s263 + $0x4] sm:$0xf]
      %v431 = vld [vmem:[%s263 + $0x8] sm:$0xf]
      %v432 = vld [vmem:[%s263 + $0xc] sm:$0xf]
      %v433 = vld [vmem:[%s263 + $0x10] sm:$0xf]
      %v434 = vld [vmem:[%s263 + $0x14] sm:$0xf]
      %v435 = vld [vmem:[%s263 + $0x18] sm:$0xf]
      %v436 = vld [vmem:[%s263 + $0x1c] sm:$0xf]
      %v437 = vld [vmem:[%s263 + $0x20] sm:$0xf]
      %v438 = vld [vmem:[%s263 + $0x24] sm:$0xf]
      %v439 = vld [vmem:[%s263 + $0x28] sm:$0xf]
      %v440 = vld [vmem:[%s263 + $0x2c] sm:$0xf]
      %v441 = vld [vmem:[%s263 + $0x30] sm:$0xf]
      %v442 = vld [vmem:[%s263 + $0x34] sm:$0xf]
      %v443 = vld [vmem:[%s263 + $0x38] sm:$0xf]
      %v444 = vld [vmem:[%s263 + $0x3c] sm:$0xf]
      %v445 = vld [vmem:[%s263 + $0x40] sm:$0xf]
      %v446 = vld [vmem:[%s263 + $0x44] sm:$0xf]
      %v447 = vld [vmem:[%s263 + $0x48] sm:$0xf]
      %v448 = vld [vmem:[%s263 + $0x4c] sm:$0xf]
      %v449 = vld [vmem:[%s263 + $0x50] sm:$0xf]
      %v450 = vld [vmem:[%s263 + $0x54] sm:$0xf]
      %v451 = vld [vmem:[%s263 + $0x58] sm:$0xf]
      %v452 = vld [vmem:[%s263 + $0x5c] sm:$0xf]
      %v453 = vld [vmem:[%s263 + $0x60] sm:$0xf]
      %v454 = vld [vmem:[%s263 + $0x64] sm:$0xf]
      %v455 = vld [vmem:[%s263 + $0x68] sm:$0xf]
      %v456 = vld [vmem:[%s263 + $0x6c] sm:$0xf]
      %v457 = vld [vmem:[%s263 + $0x70] sm:$0xf]
      %v458 = vld [vmem:[%s263 + $0x74] sm:$0xf]
      %v459 = vld [vmem:[%s263 + $0x78] sm:$0xf]
      %v460 = vld [vmem:[%s263 + $0x7c] sm:$0xf]
      %v461 = vld [vmem:[%s263 + $0x80] sm:$0xf]
      %v462 = vld [vmem:[%s263 + $0x84] sm:$0xf]
      %v463 = vld [vmem:[%s263 + $0x88] sm:$0xf]
      %v464 = vld [vmem:[%s263 + $0x8c] sm:$0xf]
      %v465 = vld [vmem:[%s263 + $0x90] sm:$0xf]
      %v466 = vld [vmem:[%s263 + $0x94] sm:$0xf]
      %v467 = vld [vmem:[%s263 + $0x98] sm:$0xf]
      %v468 = vld [vmem:[%s263 + $0x9c] sm:$0xf]
      %v469 = vld [vmem:[%s263 + $0xa0] sm:$0xf]
      %v470 = vld [vmem:[%s263 + $0xa4] sm:$0xf]
      %v471 = vld [vmem:[%s263 + $0xa8] sm:$0xf]
      %v472 = vld [vmem:[%s263 + $0xac] sm:$0xf]
      %v473 = vld [vmem:[%s263 + $0xb0] sm:$0xf]
      %v474 = vld [vmem:[%s263 + $0xb4] sm:$0xf]
      %v475 = vld [vmem:[%s263 + $0xb8] sm:$0xf]
      %v476 = vld [vmem:[%s263 + $0xbc] sm:$0xf]
      %v477 = vld [vmem:[%s263 + $0xc0] sm:$0xf]
      %v478 = vld [vmem:[%s263 + $0xc4] sm:$0xf]
      %v479 = vld [vmem:[%s263 + $0xc8] sm:$0xf]
      %v480 = vld [vmem:[%s263 + $0xcc] sm:$0xf]
      %v481 = vld [vmem:[%s263 + $0xd0] sm:$0xf]
      %v482 = vld [vmem:[%s263 + $0xd4] sm:$0xf]
      %v483 = vld [vmem:[%s263 + $0xd8] sm:$0xf]
      %v484 = vld [vmem:[%s263 + $0xdc] sm:$0xf]
      %v485 = vld [vmem:[%s263 + $0xe0] sm:$0xf]
      %v486 = vld [vmem:[%s263 + $0xe4] sm:$0xf]
      %v487 = vld [vmem:[%s263 + $0xe8] sm:$0xf]
      %v488 = vld [vmem:[%s263 + $0xec] sm:$0xf]
      %v489 = vld [vmem:[%s263 + $0xf0] sm:$0xf]
      %v490 = vld [vmem:[%s263 + $0xf4] sm:$0xf]
      %v491 = vld [vmem:[%s263 + $0xf8] sm:$0xf]
      %v492 = vld [vmem:[%s263 + $0xfc] sm:$0xf]
      %v493 = vld [vmem:[%s272] sm:$0xf]
      %v494 = vld [vmem:[%s272 + $0x4] sm:$0xf]
      %v495 = vld [vmem:[%s272 + $0x8] sm:$0xf]
      %v496 = vld [vmem:[%s272 + $0xc] sm:$0xf]
      %v497 = vld [vmem:[%s272 + $0x10] sm:$0xf]
      %v498 = vld [vmem:[%s272 + $0x14] sm:$0xf]
      %v499 = vld [vmem:[%s272 + $0x18] sm:$0xf]
      %v500 = vld [vmem:[%s272 + $0x1c] sm:$0xf]
      %v565 = vunpack.c.l.b16 %v429
      %v566 = vunpack.c.l.b16 %v430
      %v567 = vunpack.c.l.b16 %v431
      %v568 = vunpack.c.l.b16 %v432
      %v569 = vunpack.c.l.b16 %v433
      %v570 = vunpack.c.l.b16 %v434
      %v571 = vunpack.c.l.b16 %v435
      %v572 = vunpack.c.l.b16 %v436
      %v573 = vunpack.c.l.b16 %v437
      %v574 = vunpack.c.l.b16 %v438
      %v575 = vunpack.c.l.b16 %v439
      %v576 = vunpack.c.l.b16 %v440
      %v577 = vunpack.c.l.b16 %v441
      %v578 = vunpack.c.l.b16 %v442
      %v579 = vunpack.c.l.b16 %v443
      %v580 = vunpack.c.l.b16 %v444
      %v581 = vunpack.c.l.b16 %v445
      %v582 = vunpack.c.l.b16 %v446
      %v583 = vunpack.c.l.b16 %v447
      %v584 = vunpack.c.l.b16 %v448
      %v585 = vunpack.c.l.b16 %v449
      %v586 = vunpack.c.l.b16 %v450
      %v587 = vunpack.c.l.b16 %v451
      %v588 = vunpack.c.l.b16 %v452
      %v589 = vunpack.c.l.b16 %v453
      %v590 = vunpack.c.l.b16 %v454
      %v591 = vunpack.c.l.b16 %v455
      %v592 = vunpack.c.l.b16 %v456
      %v593 = vunpack.c.l.b16 %v457
      %v594 = vunpack.c.l.b16 %v458
      %v595 = vunpack.c.l.b16 %v459
      %v596 = vunpack.c.l.b16 %v460
      %v597 = vunpack.c.l.b16 %v461
      %v598 = vunpack.c.l.b16 %v462
      %v599 = vunpack.c.l.b16 %v463
      %v600 = vunpack.c.l.b16 %v464
      %v601 = vunpack.c.l.b16 %v465
      %v602 = vunpack.c.l.b16 %v466
      %v603 = vunpack.c.l.b16 %v467
      %v604 = vunpack.c.l.b16 %v468
      %v605 = vunpack.c.l.b16 %v469
      %v606 = vunpack.c.l.b16 %v470
      %v607 = vunpack.c.l.b16 %v471
      %v608 = vunpack.c.l.b16 %v472
      %v609 = vunpack.c.l.b16 %v473
      %v610 = vunpack.c.l.b16 %v474
      %v611 = vunpack.c.l.b16 %v475
      %v612 = vunpack.c.l.b16 %v476
      %v613 = vunpack.c.l.b16 %v477
      %v614 = vunpack.c.l.b16 %v478
      %v615 = vunpack.c.l.b16 %v479
      %v616 = vunpack.c.l.b16 %v480
      %v617 = vunpack.c.l.b16 %v481
      %v618 = vunpack.c.l.b16 %v482
      %v619 = vunpack.c.l.b16 %v483
      %v620 = vunpack.c.l.b16 %v484
      %v621 = vunpack.c.l.b16 %v485
      %v622 = vunpack.c.l.b16 %v486
      %v623 = vunpack.c.l.b16 %v487
      %v624 = vunpack.c.l.b16 %v488
      %v625 = vunpack.c.l.b16 %v489
      %v626 = vunpack.c.l.b16 %v490
      %v627 = vunpack.c.l.b16 %v491
      %v628 = vunpack.c.l.b16 %v492
      %v629 = vpack.c.b16 %v566, %v565
      %v630 = vpack.c.b16 %v568, %v567
      %v631 = vpack.c.b16 %v570, %v569
      %v632 = vpack.c.b16 %v572, %v571
      %v633 = vpack.c.b16 %v574, %v573
      %v634 = vpack.c.b16 %v576, %v575
      %v635 = vpack.c.b16 %v578, %v577
      %v636 = vpack.c.b16 %v580, %v579
      %v637 = vpack.c.b16 %v582, %v581
      %v638 = vpack.c.b16 %v584, %v583
      %v639 = vpack.c.b16 %v586, %v585
      %v640 = vpack.c.b16 %v588, %v587
      %v641 = vpack.c.b16 %v590, %v589
      %v642 = vpack.c.b16 %v592, %v591
      %v643 = vpack.c.b16 %v594, %v593
      %v644 = vpack.c.b16 %v596, %v595
      %v645 = vpack.c.b16 %v598, %v597
      %v646 = vpack.c.b16 %v600, %v599
      %v647 = vpack.c.b16 %v602, %v601
      %v648 = vpack.c.b16 %v604, %v603
      %v649 = vpack.c.b16 %v606, %v605
      %v650 = vpack.c.b16 %v608, %v607
      %v651 = vpack.c.b16 %v610, %v609
      %v652 = vpack.c.b16 %v612, %v611
      %v653 = vpack.c.b16 %v614, %v613
      %v654 = vpack.c.b16 %v616, %v615
      %v655 = vpack.c.b16 %v618, %v617
      %v656 = vpack.c.b16 %v620, %v619
      %v657 = vpack.c.b16 %v622, %v621
      %v658 = vpack.c.b16 %v624, %v623
      %v659 = vpack.c.b16 %v626, %v625
      %v660 = vpack.c.b16 %v628, %v627
      %v669 = vunpack.c.l.b16 %v493
      %v670 = vunpack.c.l.b16 %v494
      %v671 = vunpack.c.l.b16 %v495
      %v672 = vunpack.c.l.b16 %v496
      %v673 = vunpack.c.l.b16 %v497
      %v674 = vunpack.c.l.b16 %v498
      %v675 = vunpack.c.l.b16 %v499
      %v676 = vunpack.c.l.b16 %v500
      %v677 = vpack.c.b16 %v670, %v669
      %v678 = vpack.c.b16 %v672, %v671
      %v679 = vpack.c.b16 %v674, %v673
      %v680 = vpack.c.b16 %v676, %v675
      %vm685 = vcmask 523264
      %v687 = vsel %vm685, %v629, 0
      %v690 = vsel %vm685, %v630, 0
      %v693 = vsel %vm685, %v631, 0
      %v696 = vsel %vm685, %v632, 0
      %v699 = vsel %vm685, %v633, 0
      %v702 = vsel %vm685, %v634, 0
      %v705 = vsel %vm685, %v635, 0
      %v708 = vsel %vm685, %v636, 0
      %v711 = vsel %vm685, %v637, 0
      %v714 = vsel %vm685, %v638, 0
      %v717 = vsel %vm685, %v639, 0
      %v720 = vsel %vm685, %v640, 0
      %v723 = vsel %vm685, %v641, 0
      %v726 = vsel %vm685, %v642, 0
      %v729 = vsel %vm685, %v643, 0
      %v732 = vsel %vm685, %v644, 0
      %v735 = vsel %vm685, %v645, 0
      %v738 = vsel %vm685, %v646, 0
      %v741 = vsel %vm685, %v647, 0
      %v744 = vsel %vm685, %v648, 0
      %v747 = vsel %vm685, %v649, 0
      %v750 = vsel %vm685, %v650, 0
      %v753 = vsel %vm685, %v651, 0
      %v756 = vsel %vm685, %v652, 0
      %v759 = vsel %vm685, %v653, 0
      %v762 = vsel %vm685, %v654, 0
      %v765 = vsel %vm685, %v655, 0
      %v768 = vsel %vm685, %v656, 0
      %v771 = vsel %vm685, %v657, 0
      %v774 = vsel %vm685, %v658, 0
      %v777 = vsel %vm685, %v659, 0
      %v780 = vsel %vm685, %v660, 0
      %782 = vmatprep.subr.bf16.mxu0 0
      %783 = vmatpush1.bf16.msra.mxu0 %v677
      %784 = vmatprep.subr.bf16.mxu0 0
      %785 = vmatpush1.bf16.msra.mxu0 %v678
      %786 = vmatprep.subr.bf16.mxu0 0
      %787 = vmatpush1.bf16.msra.mxu0 %v679
      %788 = vmatprep.subr.bf16.mxu0 0
      %789 = vmatpush1.bf16.msra.mxu0 %v680
      %790 = vmatprep.subr.bf16.mxu0 0
      %791 = vmatpush1.bf16.msra.mxu0 0
      %792 = vmatprep.subr.bf16.mxu0 0
      %793 = vmatpush1.bf16.msra.mxu0 0
      %794 = vmatprep.subr.bf16.mxu0 0
      %795 = vmatpush1.bf16.msra.mxu0 0
      %796 = vmatprep.subr.bf16.mxu0 0
      %797 = vmatpush1.bf16.msra.mxu0 0
      %798 = vmatprep.subr.bf16.mxu0 0
      %799 = vmatpush1.bf16.msra.mxu0 0
      %800 = vmatprep.subr.bf16.mxu0 0
      %801 = vmatpush1.bf16.msra.mxu0 0
      %802 = vmatprep.subr.bf16.mxu0 0
      %803 = vmatpush1.bf16.msra.mxu0 0
      %804 = vmatprep.subr.bf16.mxu0 0
      %805 = vmatpush1.bf16.msra.mxu0 0
      %806 = vmatprep.subr.bf16.mxu0 0
      %807 = vmatpush1.bf16.msra.mxu0 0
      %808 = vmatprep.subr.bf16.mxu0 0
      %809 = vmatpush1.bf16.msra.mxu0 0
      %810 = vmatprep.subr.bf16.mxu0 0
      %811 = vmatpush1.bf16.msra.mxu0 0
      %812 = vmatprep.subr.bf16.mxu0 0
      %813 = vmatpush1.bf16.msra.mxu0 0
      %814 = vmatprep.mubr.bf16.mxu0 0
      %815 = vmatmul.mubr.bf16.gmra.mrb[0].mxu0 %v687
      %v816 = vpop.f32.mrb[0].mxu0
      %v817 = vadd.f32 0.0, %v816
      %v818 = vpop.f32.mrb[0].mxu0
      %v819 = vpop.f32.mrb[0].mxu0
      %v820 = vadd.f32 0.0, %v819
      %v821 = vpop.f32.mrb[0].mxu0
      %822 = vmatprep.mubr.bf16.mxu0 0
      %823 = vmatmul.mubr.bf16.gmra.mrb[0].mxu0 %v690
      %v824 = vpop.f32.mrb[0].mxu0
      %v825 = vadd.f32 0.0, %v824
      %v826 = vpop.f32.mrb[0].mxu0
      %v827 = vpop.f32.mrb[0].mxu0
      %v828 = vadd.f32 0.0, %v827
      %v829 = vpop.f32.mrb[0].mxu0
      %830 = vmatprep.mubr.bf16.mxu0 0
      %831 = vmatmul.mubr.bf16.gmra.mrb[0].mxu0 %v693
      %v832 = vpop.f32.mrb[0].mxu0
      %v833 = vadd.f32 0.0, %v832
      %v834 = vpop.f32.mrb[0].mxu0
      %v835 = vpop.f32.mrb[0].mxu0
      %v836 = vadd.f32 0.0, %v835
      %v837 = vpop.f32.mrb[0].mxu0
      %838 = vmatprep.mubr.bf16.mxu0 0
      %839 = vmatmul.mubr.bf16.gmra.mrb[0].mxu0 %v696
      %v840 = vpop.f32.mrb[0].mxu0
      %v841 = vadd.f32 0.0, %v840
      %v842 = vpop.f32.mrb[0].mxu0
      %v843 = vpop.f32.mrb[0].mxu0
      %v844 = vadd.f32 0.0, %v843
      %v845 = vpop.f32.mrb[0].mxu0
      %846 = vmatprep.mubr.bf16.mxu0 0
      %847 = vmatmul.mubr.bf16.gmra.mrb[0].mxu0 %v699
      %v848 = vpop.f32.mrb[0].mxu0
      %v849 = vadd.f32 0.0, %v848
      %v850 = vpop.f32.mrb[0].mxu0
      %v851 = vpop.f32.mrb[0].mxu0
      %v852 = vadd.f32 0.0, %v851
      %v853 = vpop.f32.mrb[0].mxu0
      %854 = vmatprep.mubr.bf16.mxu0 0
      %855 = vmatmul.mubr.bf16.gmra.mrb[0].mxu0 %v702
      %v856 = vpop.f32.mrb[0].mxu0
      %v857 = vadd.f32 0.0, %v856
      %v858 = vpop.f32.mrb[0].mxu0
      %v859 = vpop.f32.mrb[0].mxu0
      %v860 = vadd.f32 0.0, %v859
      %v861 = vpop.f32.mrb[0].mxu0
      %862 = vmatprep.mubr.bf16.mxu0 0
      %863 = vmatmul.mubr.bf16.gmra.mrb[0].mxu0 %v705
      %v864 = vpop.f32.mrb[0].mxu0
      %v865 = vadd.f32 0.0, %v864
      %v866 = vpop.f32.mrb[0].mxu0
      %v867 = vpop.f32.mrb[0].mxu0
      %v868 = vadd.f32 0.0, %v867
      %v869 = vpop.f32.mrb[0].mxu0
      %870 = vmatprep.mubr.bf16.mxu0 0
      %871 = vmatmul.mubr.bf16.gmra.mrb[0].mxu0 %v708
      %v872 = vpop.f32.mrb[0].mxu0
      %v873 = vadd.f32 0.0, %v872
      %v874 = vpop.f32.mrb[0].mxu0
      %v875 = vpop.f32.mrb[0].mxu0
      %v876 = vadd.f32 0.0, %v875
      %v877 = vpop.f32.mrb[0].mxu0
      %878 = vmatprep.mubr.bf16.mxu0 0
      %879 = vmatmul.mubr.bf16.gmra.mrb[0].mxu0 %v711
      %v880 = vpop.f32.mrb[0].mxu0
      %v881 = vadd.f32 0.0, %v880
      %v882 = vpop.f32.mrb[0].mxu0
      %v883 = vpop.f32.mrb[0].mxu0
      %v884 = vadd.f32 0.0, %v883
      %v885 = vpop.f32.mrb[0].mxu0
      %886 = vmatprep.mubr.bf16.mxu0 0
      %887 = vmatmul.mubr.bf16.gmra.mrb[0].mxu0 %v714
      %v888 = vpop.f32.mrb[0].mxu0
      %v889 = vadd.f32 0.0, %v888
      %v890 = vpop.f32.mrb[0].mxu0
      %v891 = vpop.f32.mrb[0].mxu0
      %v892 = vadd.f32 0.0, %v891
      %v893 = vpop.f32.mrb[0].mxu0
      %894 = vmatprep.mubr.bf16.mxu0 0
      %895 = vmatmul.mubr.bf16.gmra.mrb[0].mxu0 %v717
      %v896 = vpop.f32.mrb[0].mxu0
      %v897 = vadd.f32 0.0, %v896
      %v898 = vpop.f32.mrb[0].mxu0
      %v899 = vpop.f32.mrb[0].mxu0
      %v900 = vadd.f32 0.0, %v899
      %v901 = vpop.f32.mrb[0].mxu0
      %902 = vmatprep.mubr.bf16.mxu0 0
      %903 = vmatmul.mubr.bf16.gmra.mrb[0].mxu0 %v720
      %v904 = vpop.f32.mrb[0].mxu0
      %v905 = vadd.f32 0.0, %v904
      %v906 = vpop.f32.mrb[0].mxu0
      %v907 = vpop.f32.mrb[0].mxu0
      %v908 = vadd.f32 0.0, %v907
      %v909 = vpop.f32.mrb[0].mxu0
      %910 = vmatprep.mubr.bf16.mxu0 0
      %911 = vmatmul.mubr.bf16.gmra.mrb[0].mxu0 %v723
      %v912 = vpop.f32.mrb[0].mxu0
      %v913 = vadd.f32 0.0, %v912
      %v914 = vpop.f32.mrb[0].mxu0
      %v915 = vpop.f32.mrb[0].mxu0
      %v916 = vadd.f32 0.0, %v915
      %v917 = vpop.f32.mrb[0].mxu0
      %918 = vmatprep.mubr.bf16.mxu0 0
      %919 = vmatmul.mubr.bf16.gmra.mrb[0].mxu0 %v726
      %v920 = vpop.f32.mrb[0].mxu0
      %v921 = vadd.f32 0.0, %v920
      %v922 = vpop.f32.mrb[0].mxu0
      %v923 = vpop.f32.mrb[0].mxu0
      %v924 = vadd.f32 0.0, %v923
      %v925 = vpop.f32.mrb[0].mxu0
      %926 = vmatprep.mubr.bf16.mxu0 0
      %927 = vmatmul.mubr.bf16.gmra.mrb[0].mxu0 %v729
      %v928 = vpop.f32.mrb[0].mxu0
      %v929 = vadd.f32 0.0, %v928
      %v930 = vpop.f32.mrb[0].mxu0
      %v931 = vpop.f32.mrb[0].mxu0
      %v932 = vadd.f32 0.0, %v931
      %v933 = vpop.f32.mrb[0].mxu0
      %934 = vmatprep.mubr.bf16.mxu0 0
      %935 = vmatmul.mubr.bf16.gmra.mrb[0].mxu0 %v732
      %v936 = vpop.f32.mrb[0].mxu0
      %v937 = vadd.f32 0.0, %v936
      %v938 = vpop.f32.mrb[0].mxu0
      %v939 = vpop.f32.mrb[0].mxu0
      %v940 = vadd.f32 0.0, %v939
      %v941 = vpop.f32.mrb[0].mxu0
      %942 = vmatprep.mubr.bf16.mxu0 0
      %943 = vmatmul.mubr.bf16.gmra.mrb[0].mxu0 %v735
      %v944 = vpop.f32.mrb[0].mxu0
      %v945 = vadd.f32 0.0, %v944
      %v946 = vpop.f32.mrb[0].mxu0
      %v947 = vpop.f32.mrb[0].mxu0
      %v948 = vadd.f32 0.0, %v947
      %v949 = vpop.f32.mrb[0].mxu0
      %950 = vmatprep.mubr.bf16.mxu0 0
      %951 = vmatmul.mubr.bf16.gmra.mrb[0].mxu0 %v738
      %v952 = vpop.f32.mrb[0].mxu0
      %v953 = vadd.f32 0.0, %v952
      %v954 = vpop.f32.mrb[0].mxu0
      %v955 = vpop.f32.mrb[0].mxu0
      %v956 = vadd.f32 0.0, %v955
      %v957 = vpop.f32.mrb[0].mxu0
      %958 = vmatprep.mubr.bf16.mxu0 0
      %959 = vmatmul.mubr.bf16.gmra.mrb[0].mxu0 %v741
      %v960 = vpop.f32.mrb[0].mxu0
      %v961 = vadd.f32 0.0, %v960
      %v962 = vpop.f32.mrb[0].mxu0
      %v963 = vpop.f32.mrb[0].mxu0
      %v964 = vadd.f32 0.0, %v963
      %v965 = vpop.f32.mrb[0].mxu0
      %966 = vmatprep.mubr.bf16.mxu0 0
      %967 = vmatmul.mubr.bf16.gmra.mrb[0].mxu0 %v744
      %v968 = vpop.f32.mrb[0].mxu0
      %v969 = vadd.f32 0.0, %v968
      %v970 = vpop.f32.mrb[0].mxu0
      %v971 = vpop.f32.mrb[0].mxu0
      %v972 = vadd.f32 0.0, %v971
      %v973 = vpop.f32.mrb[0].mxu0
      %974 = vmatprep.mubr.bf16.mxu0 0
      %975 = vmatmul.mubr.bf16.gmra.mrb[0].mxu0 %v747
      %v976 = vpop.f32.mrb[0].mxu0
      %v977 = vadd.f32 0.0, %v976
      %v978 = vpop.f32.mrb[0].mxu0
      %v979 = vpop.f32.mrb[0].mxu0
      %v980 = vadd.f32 0.0, %v979
      %v981 = vpop.f32.mrb[0].mxu0
      %982 = vmatprep.mubr.bf16.mxu0 0
      %983 = vmatmul.mubr.bf16.gmra.mrb[0].mxu0 %v750
      %v984 = vpop.f32.mrb[0].mxu0
      %v985 = vadd.f32 0.0, %v984
      %v986 = vpop.f32.mrb[0].mxu0
      %v987 = vpop.f32.mrb[0].mxu0
      %v988 = vadd.f32 0.0, %v987
      %v989 = vpop.f32.mrb[0].mxu0
      %990 = vmatprep.mubr.bf16.mxu0 0
      %991 = vmatmul.mubr.bf16.gmra.mrb[0].mxu0 %v753
      %v992 = vpop.f32.mrb[0].mxu0
      %v993 = vadd.f32 0.0, %v992
      %v994 = vpop.f32.mrb[0].mxu0
      %v995 = vpop.f32.mrb[0].mxu0
      %v996 = vadd.f32 0.0, %v995
      %v997 = vpop.f32.mrb[0].mxu0
      %998 = vmatprep.mubr.bf16.mxu0 0
      %999 = vmatmul.mubr.bf16.gmra.mrb[0].mxu0 %v756
      %v1000 = vpop.f32.mrb[0].mxu0
      %v1001 = vadd.f32 0.0, %v1000
      %v1002 = vpop.f32.mrb[0].mxu0
      %v1003 = vpop.f32.mrb[0].mxu0
      %v1004 = vadd.f32 0.0, %v1003
      %v1005 = vpop.f32.mrb[0].mxu0
      %1006 = vmatprep.mubr.bf16.mxu0 0
      %1007 = vmatmul.mubr.bf16.gmra.mrb[0].mxu0 %v759
      %v1008 = vpop.f32.mrb[0].mxu0
      %v1009 = vadd.f32 0.0, %v1008
      %v1010 = vpop.f32.mrb[0].mxu0
      %v1011 = vpop.f32.mrb[0].mxu0
      %v1012 = vadd.f32 0.0, %v1011
      %v1013 = vpop.f32.mrb[0].mxu0
      %1014 = vmatprep.mubr.bf16.mxu0 0
      %1015 = vmatmul.mubr.bf16.gmra.mrb[0].mxu0 %v762
      %v1016 = vpop.f32.mrb[0].mxu0
      %v1017 = vadd.f32 0.0, %v1016
      %v1018 = vpop.f32.mrb[0].mxu0
      %v1019 = vpop.f32.mrb[0].mxu0
      %v1020 = vadd.f32 0.0, %v1019
      %v1021 = vpop.f32.mrb[0].mxu0
      %1022 = vmatprep.mubr.bf16.mxu0 0
      %1023 = vmatmul.mubr.bf16.gmra.mrb[0].mxu0 %v765
      %v1024 = vpop.f32.mrb[0].mxu0
      %v1025 = vadd.f32 0.0, %v1024
      %v1026 = vpop.f32.mrb[0].mxu0
      %v1027 = vpop.f32.mrb[0].mxu0
      %v1028 = vadd.f32 0.0, %v1027
      %v1029 = vpop.f32.mrb[0].mxu0
      %1030 = vmatprep.mubr.bf16.mxu0 0
      %1031 = vmatmul.mubr.bf16.gmra.mrb[0].mxu0 %v768
      %v1032 = vpop.f32.mrb[0].mxu0
      %v1033 = vadd.f32 0.0, %v1032
      %v1034 = vpop.f32.mrb[0].mxu0
      %v1035 = vpop.f32.mrb[0].mxu0
      %v1036 = vadd.f32 0.0, %v1035
      %v1037 = vpop.f32.mrb[0].mxu0
      %1038 = vmatprep.mubr.bf16.mxu0 0
      %1039 = vmatmul.mubr.bf16.gmra.mrb[0].mxu0 %v771
      %v1040 = vpop.f32.mrb[0].mxu0
      %v1041 = vadd.f32 0.0, %v1040
      %v1042 = vpop.f32.mrb[0].mxu0
      %v1043 = vpop.f32.mrb[0].mxu0
      %v1044 = vadd.f32 0.0, %v1043
      %v1045 = vpop.f32.mrb[0].mxu0
      %1046 = vmatprep.mubr.bf16.mxu0 0
      %1047 = vmatmul.mubr.bf16.gmra.mrb[0].mxu0 %v774
      %v1048 = vpop.f32.mrb[0].mxu0
      %v1049 = vadd.f32 0.0, %v1048
      %v1050 = vpop.f32.mrb[0].mxu0
      %v1051 = vpop.f32.mrb[0].mxu0
      %v1052 = vadd.f32 0.0, %v1051
      %v1053 = vpop.f32.mrb[0].mxu0
      %1054 = vmatprep.mubr.bf16.mxu0 0
      %1055 = vmatmul.mubr.bf16.gmra.mrb[0].mxu0 %v777
      %v1056 = vpop.f32.mrb[0].mxu0
      %v1057 = vadd.f32 0.0, %v1056
      %v1058 = vpop.f32.mrb[0].mxu0
      %v1059 = vpop.f32.mrb[0].mxu0
      %v1060 = vadd.f32 0.0, %v1059
      %v1061 = vpop.f32.mrb[0].mxu0
      %1062 = vmatprep.mubr.bf16.mxu0 0
      %1063 = vmatmul.mubr.bf16.gmra.mrb[0].mxu0 %v780
      %v1064 = vpop.f32.mrb[0].mxu0
      %v1065 = vadd.f32 0.0, %v1064
      %v1066 = vpop.f32.mrb[0].mxu0
      %v1067 = vpop.f32.mrb[0].mxu0
      %v1068 = vadd.f32 0.0, %v1067
      %v1069 = vpop.f32.mrb[0].mxu0
      %1070 = vdwg.mxu0
      %v1071 = vadd.f32 %v365, %v817
      %v1072 = vadd.f32 %v366, %v820
      %v1073 = vadd.f32 %v367, %v825
      %v1074 = vadd.f32 %v368, %v828
      %v1075 = vadd.f32 %v369, %v833
      %v1076 = vadd.f32 %v370, %v836
      %v1077 = vadd.f32 %v371, %v841
      %v1078 = vadd.f32 %v372, %v844
      %v1079 = vadd.f32 %v373, %v849
      %v1080 = vadd.f32 %v374, %v852
      %v1081 = vadd.f32 %v375, %v857
      %v1082 = vadd.f32 %v376, %v860
      %v1083 = vadd.f32 %v377, %v865
      %v1084 = vadd.f32 %v378, %v868
      %v1085 = vadd.f32 %v379, %v873
      %v1086 = vadd.f32 %v380, %v876
      %v1087 = vadd.f32 %v381, %v881
      %v1088 = vadd.f32 %v382, %v884
      %v1089 = vadd.f32 %v383, %v889
      %v1090 = vadd.f32 %v384, %v892
      %v1091 = vadd.f32 %v385, %v897
      %v1092 = vadd.f32 %v386, %v900
      %v1093 = vadd.f32 %v387, %v905
      %v1094 = vadd.f32 %v388, %v908
      %v1095 = vadd.f32 %v389, %v913
      %v1096 = vadd.f32 %v390, %v916
      %v1097 = vadd.f32 %v391, %v921
      %v1098 = vadd.f32 %v392, %v924
      %v1099 = vadd.f32 %v393, %v929
      %v1100 = vadd.f32 %v394, %v932
      %v1101 = vadd.f32 %v395, %v937
      %v1102 = vadd.f32 %v396, %v940
      %v1103 = vadd.f32 %v397, %v945
      %v1104 = vadd.f32 %v398, %v948
      %v1105 = vadd.f32 %v399, %v953
      %v1106 = vadd.f32 %v400, %v956
      %v1107 = vadd.f32 %v401, %v961
      %v1108 = vadd.f32 %v402, %v964
      %v1109 = vadd.f32 %v403, %v969
      %v1110 = vadd.f32 %v404, %v972
      %v1111 = vadd.f32 %v405, %v977
      %v1112 = vadd.f32 %v406, %v980
      %v1113 = vadd.f32 %v407, %v985
      %v1114 = vadd.f32 %v408, %v988
      %v1115 = vadd.f32 %v409, %v993
      %v1116 = vadd.f32 %v410, %v996
      %v1117 = vadd.f32 %v411, %v1001
      %v1118 = vadd.f32 %v412, %v1004
      %v1119 = vadd.f32 %v413, %v1009
      %v1120 = vadd.f32 %v414, %v1012
      %v1121 = vadd.f32 %v415, %v1017
      %v1122 = vadd.f32 %v416, %v1020
      %v1123 = vadd.f32 %v417, %v1025
      %v1124 = vadd.f32 %v418, %v1028
      %v1125 = vadd.f32 %v419, %v1033
      %v1126 = vadd.f32 %v420, %v1036
      %v1127 = vadd.f32 %v421, %v1041
      %v1128 = vadd.f32 %v422, %v1044
      %v1129 = vadd.f32 %v423, %v1049
      %v1130 = vadd.f32 %v424, %v1052
      %v1131 = vadd.f32 %v425, %v1057
      %v1132 = vadd.f32 %v426, %v1060
      %v1133 = vadd.f32 %v427, %v1065
      %v1134 = vadd.f32 %v428, %v1068
      %1135 = vst [vmem:[#allocation2] sm:$0xff] %v1071
      %1136 = vst [vmem:[#allocation2 + $0x8] sm:$0xff] %v1072
      %1137 = vst [vmem:[#allocation2 + $0x10] sm:$0xff] %v1073
      %1138 = vst [vmem:[#allocation2 + $0x18] sm:$0xff] %v1074
      %1139 = vst [vmem:[#allocation2 + $0x20] sm:$0xff] %v1075
      %1140 = vst [vmem:[#allocation2 + $0x28] sm:$0xff] %v1076
      %1141 = vst [vmem:[#allocation2 + $0x30] sm:$0xff] %v1077
      %1142 = vst [vmem:[#allocation2 + $0x38] sm:$0xff] %v1078
      %1143 = vst [vmem:[#allocation2 + $0x40] sm:$0xff] %v1079
      %1144 = vst [vmem:[#allocation2 + $0x48] sm:$0xff] %v1080
      %1145 = vst [vmem:[#allocation2 + $0x50] sm:$0xff] %v1081
      %1146 = vst [vmem:[#allocation2 + $0x58] sm:$0xff] %v1082
      %1147 = vst [vmem:[#allocation2 + $0x60] sm:$0xff] %v1083
      %1148 = vst [vmem:[#allocation2 + $0x68] sm:$0xff] %v1084
      %1149 = vst [vmem:[#allocation2 + $0x70] sm:$0xff] %v1085
      %1150 = vst [vmem:[#allocation2 + $0x78] sm:$0xff] %v1086
      %1151 = vst [vmem:[#allocation2 + $0x80] sm:$0xff] %v1087
      %1152 = vst [vmem:[#allocation2 + $0x88] sm:$0xff] %v1088
      %1153 = vst [vmem:[#allocation2 + $0x90] sm:$0xff] %v1089
      %1154 = vst [vmem:[#allocation2 + $0x98] sm:$0xff] %v1090
      %1155 = vst [vmem:[#allocation2 + $0xa0] sm:$0xff] %v1091
      %1156 = vst [vmem:[#allocation2 + $0xa8] sm:$0xff] %v1092
      %1157 = vst [vmem:[#allocation2 + $0xb0] sm:$0xff] %v1093
      %1158 = vst [vmem:[#allocation2 + $0xb8] sm:$0xff] %v1094
      %1159 = vst [vmem:[#allocation2 + $0xc0] sm:$0xff] %v1095
      %1160 = vst [vmem:[#allocation2 + $0xc8] sm:$0xff] %v1096
      %1161 = vst [vmem:[#allocation2 + $0xd0] sm:$0xff] %v1097
      %1162 = vst [vmem:[#allocation2 + $0xd8] sm:$0xff] %v1098
      %1163 = vst [vmem:[#allocation2 + $0xe0] sm:$0xff] %v1099
      %1164 = vst [vmem:[#allocation2 + $0xe8] sm:$0xff] %v1100
      %1165 = vst [vmem:[#allocation2 + $0xf0] sm:$0xff] %v1101
      %1166 = vst [vmem:[#allocation2 + $0xf8] sm:$0xff] %v1102
      %1167 = vst [vmem:[#allocation2 + $0x100] sm:$0xff] %v1103
      %1168 = vst [vmem:[#allocation2 + $0x108] sm:$0xff] %v1104
      %1169 = vst [vmem:[#allocation2 + $0x110] sm:$0xff] %v1105
      %1170 = vst [vmem:[#allocation2 + $0x118] sm:$0xff] %v1106
      %1171 = vst [vmem:[#allocation2 + $0x120] sm:$0xff] %v1107
      %1172 = vst [vmem:[#allocation2 + $0x128] sm:$0xff] %v1108
      %1173 = vst [vmem:[#allocation2 + $0x130] sm:$0xff] %v1109
      %1174 = vst [vmem:[#allocation2 + $0x138] sm:$0xff] %v1110
      %1175 = vst [vmem:[#allocation2 + $0x140] sm:$0xff] %v1111
      %1176 = vst [vmem:[#allocation2 + $0x148] sm:$0xff] %v1112
      %1177 = vst [vmem:[#allocation2 + $0x150] sm:$0xff] %v1113
      %1178 = vst [vmem:[#allocation2 + $0x158] sm:$0xff] %v1114
      %1179 = vst [vmem:[#allocation2 + $0x160] sm:$0xff] %v1115
      %1180 = vst [vmem:[#allocation2 + $0x168] sm:$0xff] %v1116
      %1181 = vst [vmem:[#allocation2 + $0x170] sm:$0xff] %v1117
      %1182 = vst [vmem:[#allocation2 + $0x178] sm:$0xff] %v1118
      %1183 = vst [vmem:[#allocation2 + $0x180] sm:$0xff] %v1119
      %1184 = vst [vmem:[#allocation2 + $0x188] sm:$0xff] %v1120
      %1185 = vst [vmem:[#allocation2 + $0x190] sm:$0xff] %v1121
      %1186 = vst [vmem:[#allocation2 + $0x198] sm:$0xff] %v1122
      %1187 = vst [vmem:[#allocation2 + $0x1a0] sm:$0xff] %v1123
      %1188 = vst [vmem:[#allocation2 + $0x1a8] sm:$0xff] %v1124
      %1189 = vst [vmem:[#allocation2 + $0x1b0] sm:$0xff] %v1125
      %1190 = vst [vmem:[#allocation2 + $0x1b8] sm:$0xff] %v1126
      %1191 = vst [vmem:[#allocation2 + $0x1c0] sm:$0xff] %v1127
      %1192 = vst [vmem:[#allocation2 + $0x1c8] sm:$0xff] %v1128
      %1193 = vst [vmem:[#allocation2 + $0x1d0] sm:$0xff] %v1129
      %1194 = vst [vmem:[#allocation2 + $0x1d8] sm:$0xff] %v1130
      %1195 = vst [vmem:[#allocation2 + $0x1e0] sm:$0xff] %v1131
      %1196 = vst [vmem:[#allocation2 + $0x1e8] sm:$0xff] %v1132
      %1197 = vst [vmem:[#allocation2 + $0x1f0] sm:$0xff] %v1133
      %1198 = vst [vmem:[#allocation2 + $0x1f8] sm:$0xff] %v1134
      // Predicated region
      $region37: #{forward.66} parent=27 // pred_check
        %p1199 = pneg %p290
      $region38: #{forward.66} parent=27 // pred_check_branch
        %1201 = sbr.rel (%p1199) target = $region40
      $region39: #{forward.66} parent=27 // pred_region
        %v1202 = vld [vmem:[#allocation2] sm:$0xff]
        %v1203 = vld [vmem:[#allocation2 + $0x8] sm:$0xff]
        %v1204 = vld [vmem:[#allocation2 + $0x10] sm:$0xff]
        %v1205 = vld [vmem:[#allocation2 + $0x18] sm:$0xff]
        %v1206 = vld [vmem:[#allocation2 + $0x20] sm:$0xff]
        %v1207 = vld [vmem:[#allocation2 + $0x28] sm:$0xff]
        %v1208 = vld [vmem:[#allocation2 + $0x30] sm:$0xff]
        %v1209 = vld [vmem:[#allocation2 + $0x38] sm:$0xff]
        %v1210 = vld [vmem:[#allocation2 + $0x40] sm:$0xff]
        %v1211 = vld [vmem:[#allocation2 + $0x48] sm:$0xff]
        %v1212 = vld [vmem:[#allocation2 + $0x50] sm:$0xff]
        %v1213 = vld [vmem:[#allocation2 + $0x58] sm:$0xff]
        %v1214 = vld [vmem:[#allocation2 + $0x60] sm:$0xff]
        %v1215 = vld [vmem:[#allocation2 + $0x68] sm:$0xff]
        %v1216 = vld [vmem:[#allocation2 + $0x70] sm:$0xff]
        %v1217 = vld [vmem:[#allocation2 + $0x78] sm:$0xff]
        %v1218 = vld [vmem:[#allocation2 + $0x80] sm:$0xff]
        %v1219 = vld [vmem:[#allocation2 + $0x88] sm:$0xff]
        %v1220 = vld [vmem:[#allocation2 + $0x90] sm:$0xff]
        %v1221 = vld [vmem:[#allocation2 + $0x98] sm:$0xff]
        %v1222 = vld [vmem:[#allocation2 + $0xa0] sm:$0xff]
        %v1223 = vld [vmem:[#allocation2 + $0xa8] sm:$0xff]
        %v1224 = vld [vmem:[#allocation2 + $0xb0] sm:$0xff]
        %v1225 = vld [vmem:[#allocation2 + $0xb8] sm:$0xff]
        %v1226 = vld [vmem:[#allocation2 + $0xc0] sm:$0xff]
        %v1227 = vld [vmem:[#allocation2 + $0xc8] sm:$0xff]
        %v1228 = vld [vmem:[#allocation2 + $0xd0] sm:$0xff]
        %v1229 = vld [vmem:[#allocation2 + $0xd8] sm:$0xff]
        %v1230 = vld [vmem:[#allocation2 + $0xe0] sm:$0xff]
        %v1231 = vld [vmem:[#allocation2 + $0xe8] sm:$0xff]
        %v1232 = vld [vmem:[#allocation2 + $0xf0] sm:$0xff]
        %v1233 = vld [vmem:[#allocation2 + $0xf8] sm:$0xff]
        %v1234 = vld [vmem:[#allocation2 + $0x100] sm:$0xff]
        %v1235 = vld [vmem:[#allocation2 + $0x108] sm:$0xff]
        %v1236 = vld [vmem:[#allocation2 + $0x110] sm:$0xff]
        %v1237 = vld [vmem:[#allocation2 + $0x118] sm:$0xff]
        %v1238 = vld [vmem:[#allocation2 + $0x120] sm:$0xff]
        %v1239 = vld [vmem:[#allocation2 + $0x128] sm:$0xff]
        %v1240 = vld [vmem:[#allocation2 + $0x130] sm:$0xff]
        %v1241 = vld [vmem:[#allocation2 + $0x138] sm:$0xff]
        %v1242 = vld [vmem:[#allocation2 + $0x140] sm:$0xff]
        %v1243 = vld [vmem:[#allocation2 + $0x148] sm:$0xff]
        %v1244 = vld [vmem:[#allocation2 + $0x150] sm:$0xff]
        %v1245 = vld [vmem:[#allocation2 + $0x158] sm:$0xff]
        %v1246 = vld [vmem:[#allocation2 + $0x160] sm:$0xff]
        %v1247 = vld [vmem:[#allocation2 + $0x168] sm:$0xff]
        %v1248 = vld [vmem:[#allocation2 + $0x170] sm:$0xff]
        %v1249 = vld [vmem:[#allocation2 + $0x178] sm:$0xff]
        %v1250 = vld [vmem:[#allocation2 + $0x180] sm:$0xff]
        %v1251 = vld [vmem:[#allocation2 + $0x188] sm:$0xff]
        %v1252 = vld [vmem:[#allocation2 + $0x190] sm:$0xff]
        %v1253 = vld [vmem:[#allocation2 + $0x198] sm:$0xff]
        %v1254 = vld [vmem:[#allocation2 + $0x1a0] sm:$0xff]
        %v1255 = vld [vmem:[#allocation2 + $0x1a8] sm:$0xff]
        %v1256 = vld [vmem:[#allocation2 + $0x1b0] sm:$0xff]
        %v1257 = vld [vmem:[#allocation2 + $0x1b8] sm:$0xff]
        %v1258 = vld [vmem:[#allocation2 + $0x1c0] sm:$0xff]
        %v1259 = vld [vmem:[#allocation2 + $0x1c8] sm:$0xff]
        %v1260 = vld [vmem:[#allocation2 + $0x1d0] sm:$0xff]
        %v1261 = vld [vmem:[#allocation2 + $0x1d8] sm:$0xff]
        %v1262 = vld [vmem:[#allocation2 + $0x1e0] sm:$0xff]
        %v1263 = vld [vmem:[#allocation2 + $0x1e8] sm:$0xff]
        %v1264 = vld [vmem:[#allocation2 + $0x1f0] sm:$0xff]
        %v1265 = vld [vmem:[#allocation2 + $0x1f8] sm:$0xff]
        %v1266 = vld [vmem:[%s285] sm:$0x1]
        %v1267 = vadd.f32 %v1202, %v1203
        %v1268 = vadd.f32 %v1267, %v1204
        %v1269 = vadd.f32 %v1268, %v1205
        %v1270 = vadd.f32 %v1269, %v1206
        %v1271 = vadd.f32 %v1270, %v1207
        %v1272 = vadd.f32 %v1271, %v1208
        %v1273 = vadd.f32 %v1272, %v1209
        %v1274 = vadd.f32 %v1273, %v1210
        %v1275 = vadd.f32 %v1274, %v1211
        %v1276 = vadd.f32 %v1275, %v1212
        %v1277 = vadd.f32 %v1276, %v1213
        %v1278 = vadd.f32 %v1277, %v1214
        %v1279 = vadd.f32 %v1278, %v1215
        %v1280 = vadd.f32 %v1279, %v1216
        %v1281 = vadd.f32 %v1280, %v1217
        %v1282 = vadd.f32 %v1281, %v1218
        %v1283 = vadd.f32 %v1282, %v1219
        %v1284 = vadd.f32 %v1283, %v1220
        %v1285 = vadd.f32 %v1284, %v1221
        %v1286 = vadd.f32 %v1285, %v1222
        %v1287 = vadd.f32 %v1286, %v1223
        %v1288 = vadd.f32 %v1287, %v1224
        %v1289 = vadd.f32 %v1288, %v1225
        %v1290 = vadd.f32 %v1289, %v1226
        %v1291 = vadd.f32 %v1290, %v1227
        %v1292 = vadd.f32 %v1291, %v1228
        %v1293 = vadd.f32 %v1292, %v1229
        %v1294 = vadd.f32 %v1293, %v1230
        %v1295 = vadd.f32 %v1294, %v1231
        %v1296 = vadd.f32 %v1295, %v1232
        %v1297 = vadd.f32 %v1296, %v1233
        %v1298 = vadd.f32 %v1297, %v1234
        %v1299 = vadd.f32 %v1298, %v1235
        %v1300 = vadd.f32 %v1299, %v1236
        %v1301 = vadd.f32 %v1300, %v1237
        %v1302 = vadd.f32 %v1301, %v1238
        %v1303 = vadd.f32 %v1302, %v1239
        %v1304 = vadd.f32 %v1303, %v1240
        %v1305 = vadd.f32 %v1304, %v1241
        %v1306 = vadd.f32 %v1305, %v1242
        %v1307 = vadd.f32 %v1306, %v1243
        %v1308 = vadd.f32 %v1307, %v1244
        %v1309 = vadd.f32 %v1308, %v1245
        %v1310 = vadd.f32 %v1309, %v1246
        %v1311 = vadd.f32 %v1310, %v1247
        %v1312 = vadd.f32 %v1311, %v1248
        %v1313 = vadd.f32 %v1312, %v1249
        %v1314 = vadd.f32 %v1313, %v1250
        %v1315 = vadd.f32 %v1314, %v1251
        %v1316 = vadd.f32 %v1315, %v1252
        %v1317 = vadd.f32 %v1316, %v1253
        %v1318 = vadd.f32 %v1317, %v1254
        %v1319 = vadd.f32 %v1318, %v1255
        %v1320 = vadd.f32 %v1319, %v1256
        %v1321 = vadd.f32 %v1320, %v1257
        %v1322 = vadd.f32 %v1321, %v1258
        %v1323 = vadd.f32 %v1322, %v1259
        %v1324 = vadd.f32 %v1323, %v1260
        %v1325 = vadd.f32 %v1324, %v1261
        %v1326 = vadd.f32 %v1325, %v1262
        %v1327 = vadd.f32 %v1326, %v1263
        %v1328 = vadd.f32 %v1327, %v1264
        %v1329 = vadd.f32 %v1328, %v1265
        %v1330 = vrot.slane %v1329, 4
        %v1331 = vadd.f32 %v1329, %v1330
        %v1332 = vrot.slane %v1331, 2
        %v1333 = vadd.f32 %v1331, %v1332
        %v1334 = vrot.slane %v1333, 1
        %v1335 = vadd.f32 %v1333, %v1334
        %v1336 = vadd.f32 %v1266, %v1335
        %1337 = vst [vmem:[%s285] sm:$0x1] %v1336
        %v1338 = vld [vmem:[%s288] sm:$0x1]
        %v1339 = vmul.f32 %v1202, %v1202
        %v1340 = vmul.f32 %v1203, %v1203
        %v1341 = vmul.f32 %v1204, %v1204
        %v1342 = vmul.f32 %v1205, %v1205
        %v1343 = vmul.f32 %v1206, %v1206
        %v1344 = vmul.f32 %v1207, %v1207
        %v1345 = vmul.f32 %v1208, %v1208
        %v1346 = vmul.f32 %v1209, %v1209
        %v1347 = vmul.f32 %v1210, %v1210
        %v1348 = vmul.f32 %v1211, %v1211
        %v1349 = vmul.f32 %v1212, %v1212
        %v1350 = vmul.f32 %v1213, %v1213
        %v1351 = vmul.f32 %v1214, %v1214
        %v1352 = vmul.f32 %v1215, %v1215
        %v1353 = vmul.f32 %v1216, %v1216
        %v1354 = vmul.f32 %v1217, %v1217
        %v1355 = vmul.f32 %v1218, %v1218
        %v1356 = vmul.f32 %v1219, %v1219
        %v1357 = vmul.f32 %v1220, %v1220
        %v1358 = vmul.f32 %v1221, %v1221
        %v1359 = vmul.f32 %v1222, %v1222
        %v1360 = vmul.f32 %v1223, %v1223
        %v1361 = vmul.f32 %v1224, %v1224
        %v1362 = vmul.f32 %v1225, %v1225
        %v1363 = vmul.f32 %v1226, %v1226
        %v1364 = vmul.f32 %v1227, %v1227
        %v1365 = vmul.f32 %v1228, %v1228
        %v1366 = vmul.f32 %v1229, %v1229
        %v1367 = vmul.f32 %v1230, %v1230
        %v1368 = vmul.f32 %v1231, %v1231
        %v1369 = vmul.f32 %v1232, %v1232
        %v1370 = vmul.f32 %v1233, %v1233
        %v1371 = vmul.f32 %v1234, %v1234
        %v1372 = vmul.f32 %v1235, %v1235
        %v1373 = vmul.f32 %v1236, %v1236
        %v1374 = vmul.f32 %v1237, %v1237
        %v1375 = vmul.f32 %v1238, %v1238
        %v1376 = vmul.f32 %v1239, %v1239
        %v1377 = vmul.f32 %v1240, %v1240
        %v1378 = vmul.f32 %v1241, %v1241
        %v1379 = vmul.f32 %v1242, %v1242
        %v1380 = vmul.f32 %v1243, %v1243
        %v1381 = vmul.f32 %v1244, %v1244
        %v1382 = vmul.f32 %v1245, %v1245
        %v1383 = vmul.f32 %v1246, %v1246
        %v1384 = vmul.f32 %v1247, %v1247
        %v1385 = vmul.f32 %v1248, %v1248
        %v1386 = vmul.f32 %v1249, %v1249
        %v1387 = vmul.f32 %v1250, %v1250
        %v1388 = vmul.f32 %v1251, %v1251
        %v1389 = vmul.f32 %v1252, %v1252
        %v1390 = vmul.f32 %v1253, %v1253
        %v1391 = vmul.f32 %v1254, %v1254
        %v1392 = vmul.f32 %v1255, %v1255
        %v1393 = vmul.f32 %v1256, %v1256
        %v1394 = vmul.f32 %v1257, %v1257
        %v1395 = vmul.f32 %v1258, %v1258
        %v1396 = vmul.f32 %v1259, %v1259
        %v1397 = vmul.f32 %v1260, %v1260
        %v1398 = vmul.f32 %v1261, %v1261
        %v1399 = vmul.f32 %v1262, %v1262
        %v1400 = vmul.f32 %v1263, %v1263
        %v1401 = vmul.f32 %v1264, %v1264
        %v1402 = vmul.f32 %v1265, %v1265
        %v1403 = vadd.f32 %v1339, %v1340
        %v1404 = vadd.f32 %v1403, %v1341
        %v1405 = vadd.f32 %v1404, %v1342
        %v1406 = vadd.f32 %v1405, %v1343
        %v1407 = vadd.f32 %v1406, %v1344
        %v1408 = vadd.f32 %v1407, %v1345
        %v1409 = vadd.f32 %v1408, %v1346
        %v1410 = vadd.f32 %v1409, %v1347
        %v1411 = vadd.f32 %v1410, %v1348
        %v1412 = vadd.f32 %v1411, %v1349
        %v1413 = vadd.f32 %v1412, %v1350
        %v1414 = vadd.f32 %v1413, %v1351
        %v1415 = vadd.f32 %v1414, %v1352
        %v1416 = vadd.f32 %v1415, %v1353
        %v1417 = vadd.f32 %v1416, %v1354
        %v1418 = vadd.f32 %v1417, %v1355
        %v1419 = vadd.f32 %v1418, %v1356
        %v1420 = vadd.f32 %v1419, %v1357
        %v1421 = vadd.f32 %v1420, %v1358
        %v1422 = vadd.f32 %v1421, %v1359
        %v1423 = vadd.f32 %v1422, %v1360
        %v1424 = vadd.f32 %v1423, %v1361
        %v1425 = vadd.f32 %v1424, %v1362
        %v1426 = vadd.f32 %v1425, %v1363
        %v1427 = vadd.f32 %v1426, %v1364
        %v1428 = vadd.f32 %v1427, %v1365
        %v1429 = vadd.f32 %v1428, %v1366
        %v1430 = vadd.f32 %v1429, %v1367
        %v1431 = vadd.f32 %v1430, %v1368
        %v1432 = vadd.f32 %v1431, %v1369
        %v1433 = vadd.f32 %v1432, %v1370
        %v1434 = vadd.f32 %v1433, %v1371
        %v1435 = vadd.f32 %v1434, %v1372
        %v1436 = vadd.f32 %v1435, %v1373
        %v1437 = vadd.f32 %v1436, %v1374
        %v1438 = vadd.f32 %v1437, %v1375
        %v1439 = vadd.f32 %v1438, %v1376
        %v1440 = vadd.f32 %v1439, %v1377
        %v1441 = vadd.f32 %v1440, %v1378
        %v1442 = vadd.f32 %v1441, %v1379
        %v1443 = vadd.f32 %v1442, %v1380
        %v1444 = vadd.f32 %v1443, %v1381
        %v1445 = vadd.f32 %v1444, %v1382
        %v1446 = vadd.f32 %v1445, %v1383
        %v1447 = vadd.f32 %v1446, %v1384
        %v1448 = vadd.f32 %v1447, %v1385
        %v1449 = vadd.f32 %v1448, %v1386
        %v1450 = vadd.f32 %v1449, %v1387
        %v1451 = vadd.f32 %v1450, %v1388
        %v1452 = vadd.f32 %v1451, %v1389
        %v1453 = vadd.f32 %v1452, %v1390
        %v1454 = vadd.f32 %v1453, %v1391
        %v1455 = vadd.f32 %v1454, %v1392
        %v1456 = vadd.f32 %v1455, %v1393
        %v1457 = vadd.f32 %v1456, %v1394
        %v1458 = vadd.f32 %v1457, %v1395
        %v1459 = vadd.f32 %v1458, %v1396
        %v1460 = vadd.f32 %v1459, %v1397
        %v1461 = vadd.f32 %v1460, %v1398
        %v1462 = vadd.f32 %v1461, %v1399
        %v1463 = vadd.f32 %v1462, %v1400
        %v1464 = vadd.f32 %v1463, %v1401
        %v1465 = vadd.f32 %v1464, %v1402
        %v1466 = vrot.slane %v1465, 4
        %v1467 = vadd.f32 %v1465, %v1466
        %v1468 = vrot.slane %v1467, 2
        %v1469 = vadd.f32 %v1467, %v1468
        %v1470 = vrot.slane %v1469, 1
        %v1471 = vadd.f32 %v1469, %v1470
        %v1472 = vadd.f32 %v1338, %v1471
        %1473 = vst [vmem:[%s288] sm:$0x1] %v1472
        %1474 = vst [vmem:[%s281] sm:$0xff] %v1202
        %1475 = vst [vmem:[%s281 + $0x8] sm:$0xff] %v1203
        %1476 = vst [vmem:[%s281 + $0x10] sm:$0xff] %v1204
        %1477 = vst [vmem:[%s281 + $0x18] sm:$0xff] %v1205
        %1478 = vst [vmem:[%s281 + $0x20] sm:$0xff] %v1206
        %1479 = vst [vmem:[%s281 + $0x28] sm:$0xff] %v1207
        %1480 = vst [vmem:[%s281 + $0x30] sm:$0xff] %v1208
        %1481 = vst [vmem:[%s281 + $0x38] sm:$0xff] %v1209
        %1482 = vst [vmem:[%s281 + $0x40] sm:$0xff] %v1210
        %1483 = vst [vmem:[%s281 + $0x48] sm:$0xff] %v1211
        %1484 = vst [vmem:[%s281 + $0x50] sm:$0xff] %v1212
        %1485 = vst [vmem:[%s281 + $0x58] sm:$0xff] %v1213
        %1486 = vst [vmem:[%s281 + $0x60] sm:$0xff] %v1214
        %1487 = vst [vmem:[%s281 + $0x68] sm:$0xff] %v1215
        %1488 = vst [vmem:[%s281 + $0x70] sm:$0xff] %v1216
        %1489 = vst [vmem:[%s281 + $0x78] sm:$0xff] %v1217
        %1490 = vst [vmem:[%s281 + $0x80] sm:$0xff] %v1218
        %1491 = vst [vmem:[%s281 + $0x88] sm:$0xff] %v1219
        %1492 = vst [vmem:[%s281 + $0x90] sm:$0xff] %v1220
        %1493 = vst [vmem:[%s281 + $0x98] sm:$0xff] %v1221
        %1494 = vst [vmem:[%s281 + $0xa0] sm:$0xff] %v1222
        %1495 = vst [vmem:[%s281 + $0xa8] sm:$0xff] %v1223
        %1496 = vst [vmem:[%s281 + $0xb0] sm:$0xff] %v1224
        %1497 = vst [vmem:[%s281 + $0xb8] sm:$0xff] %v1225
        %1498 = vst [vmem:[%s281 + $0xc0] sm:$0xff] %v1226
        %1499 = vst [vmem:[%s281 + $0xc8] sm:$0xff] %v1227
        %1500 = vst [vmem:[%s281 + $0xd0] sm:$0xff] %v1228
        %1501 = vst [vmem:[%s281 + $0xd8] sm:$0xff] %v1229
        %1502 = vst [vmem:[%s281 + $0xe0] sm:$0xff] %v1230
        %1503 = vst [vmem:[%s281 + $0xe8] sm:$0xff] %v1231
        %1504 = vst [vmem:[%s281 + $0xf0] sm:$0xff] %v1232
        %1505 = vst [vmem:[%s281 + $0xf8] sm:$0xff] %v1233
        %1506 = vst [vmem:[%s281 + $0x100] sm:$0xff] %v1234
        %1507 = vst [vmem:[%s281 + $0x108] sm:$0xff] %v1235
        %1508 = vst [vmem:[%s281 + $0x110] sm:$0xff] %v1236
        %1509 = vst [vmem:[%s281 + $0x118] sm:$0xff] %v1237
        %1510 = vst [vmem:[%s281 + $0x120] sm:$0xff] %v1238
        %1511 = vst [vmem:[%s281 + $0x128] sm:$0xff] %v1239
        %1512 = vst [vmem:[%s281 + $0x130] sm:$0xff] %v1240
        %1513 = vst [vmem:[%s281 + $0x138] sm:$0xff] %v1241
        %1514 = vst [vmem:[%s281 + $0x140] sm:$0xff] %v1242
        %1515 = vst [vmem:[%s281 + $0x148] sm:$0xff] %v1243
        %1516 = vst [vmem:[%s281 + $0x150] sm:$0xff] %v1244
        %1517 = vst [vmem:[%s281 + $0x158] sm:$0xff] %v1245
        %1518 = vst [vmem:[%s281 + $0x160] sm:$0xff] %v1246
        %1519 = vst [vmem:[%s281 + $0x168] sm:$0xff] %v1247
        %1520 = vst [vmem:[%s281 + $0x170] sm:$0xff] %v1248
        %1521 = vst [vmem:[%s281 + $0x178] sm:$0xff] %v1249
        %1522 = vst [vmem:[%s281 + $0x180] sm:$0xff] %v1250
        %1523 = vst [vmem:[%s281 + $0x188] sm:$0xff] %v1251
        %1524 = vst [vmem:[%s281 + $0x190] sm:$0xff] %v1252
        %1525 = vst [vmem:[%s281 + $0x198] sm:$0xff] %v1253
        %1526 = vst [vmem:[%s281 + $0x1a0] sm:$0xff] %v1254
        %1527 = vst [vmem:[%s281 + $0x1a8] sm:$0xff] %v1255
        %1528 = vst [vmem:[%s281 + $0x1b0] sm:$0xff] %v1256
        %1529 = vst [vmem:[%s281 + $0x1b8] sm:$0xff] %v1257
        %1530 = vst [vmem:[%s281 + $0x1c0] sm:$0xff] %v1258
        %1531 = vst [vmem:[%s281 + $0x1c8] sm:$0xff] %v1259
        %1532 = vst [vmem:[%s281 + $0x1d0] sm:$0xff] %v1260
        %1533 = vst [vmem:[%s281 + $0x1d8] sm:$0xff] %v1261
        %1534 = vst [vmem:[%s281 + $0x1e0] sm:$0xff] %v1262
        %1535 = vst [vmem:[%s281 + $0x1e8] sm:$0xff] %v1263
        %1536 = vst [vmem:[%s281 + $0x1f0] sm:$0xff] %v1264
        %1537 = vst [vmem:[%s281 + $0x1f8] sm:$0xff] %v1265
      $region40: #{forward.66} parent=27 // pred_fallthru
        _
      %s1538 = smul.u32 64, %s22
      %p1539 = scmp.lt.s32.totalorder %s1538, 127
      %s1540 = scalar_select %p1539, %s1538, 127
      %p1541 = scmp.lt.s32.totalorder %s21, 0
      %s1542 = scalar_select %p1541, %s21, 0
      %s1543 = sadd.s32 %s1542, %s1540
      %s1544 = smul.addr %s1543, 8
      %s1545 = scalar_lea.vmem %s2, %s1544
      %p1546 = scmp.lt.s32.totalorder %s21, 0
      %s1547 = scalar_select %p1546, %s21, 0
      %s1548 = scalar_lea.vmem %s3, %s1547
      %p1549 = scmp.lt.s32.totalorder %s21, 0
      %s1550 = scalar_select %p1549, %s21, 0
      %s1551 = scalar_lea.vmem %s4, %s1550
      // Predicated region
      $region41: #{forward.66} parent=27 // pred_check
        %p1552 = pneg %p111
      $region42: #{forward.66} parent=27 // pred_check_branch
        %1554 = sbr.rel (%p1552) target = $region44
      $region43: #{forward.66} parent=27 // pred_region
        %s1555 = smul.u32 64, %s22
      $region44: #{forward.66} parent=27 // pred_fallthru
        _
      // Predicated region
      $region45: #{forward.66} parent=27 // pred_check
        %p1556 = pneg %p137
      $region46: #{forward.66} parent=27 // pred_check_branch
        %1558 = sbr.rel (%p1556) target = $region48
      $region47: #{forward.66} parent=27 // pred_region
        _
      $region48: #{forward.66} parent=27 // pred_fallthru
        _
      // Predicated region
      $region49: #{forward.66} parent=27 // pred_check
        %p1559 = pneg %p163
      $region50: #{forward.66} parent=27 // pred_check_branch
        %1561 = sbr.rel (%p1559) target = $region52
      $region51: #{forward.66} parent=27 // pred_region
        _
      $region52: #{forward.66} parent=27 // pred_fallthru
        _
      // Predicated region
      $region53: #{forward.66} parent=27 // pred_check
        %p1562 = pneg %p137
      $region54: #{forward.66} parent=27 // pred_check_branch
        %1564 = sbr.rel (%p1562) target = $region56
      $region55: #{forward.66} parent=27 // pred_region
        %p1565 = scmp.lt.s32.totalorder %s21, 0
        %s1566 = scalar_select %p1565, %s21, 0
        %s1567 = scalar_lea.vmem %s3, %s1566
      $region56: #{forward.66} parent=27 // pred_fallthru
        _
      // Predicated region
      $region57: #{forward.66} parent=27 // pred_check
        %p1568 = pneg %p163
      $region58: #{forward.66} parent=27 // pred_check_branch
        %1570 = sbr.rel (%p1568) target = $region60
      $region59: #{forward.66} parent=27 // pred_region
        %p1571 = scmp.lt.s32.totalorder %s21, 0
        %s1572 = scalar_select %p1571, %s21, 0
        %s1573 = scalar_lea.vmem %s4, %s1572
      $region60: #{forward.66} parent=27 // pred_fallthru
        _
    $region28: #{forward.66} parent=5 // pred_fallthru
      _
    %p1574 = scmp.le.s32.totalorder 2, %s11
    // Predicated region
    $region61: #{forward.66} parent=5 // pred_check
      %p1575 = pneg %p1574
    $region62: #{forward.66} parent=5 // pred_check_branch
      %1577 = sbr.rel (%p1575) target = $region64
    $region63: #{forward.66} parent=5 // pred_region
      %s1578 = ssub.s32 %s11, 2
      // Predicated region
      $region65: #{forward.66} parent=63 // pred_check
        %p1579 = pneg %p117
      $region66: #{forward.66} parent=63 // pred_check_branch
        %1581 = sbr.rel (%p1579) target = $region68
      $region67: #{forward.66} parent=63 // pred_region
        %s1582 = smul.u32 64, %s25
        %p1583 = scmp.lt.s32.totalorder %s1582, 127
        %s1584 = scalar_select %p1583, %s1582, 127
        %p1585 = scmp.lt.s32.totalorder %s24, 0
        %s1586 = scalar_select %p1585, %s24, 0
        %s1587 = sadd.s32 %s1586, %s1584
        %s1588 = smul.addr %s1587, 8
        %s1589 = scalar_lea.vmem %s2, %s1588
      $region68: #{forward.66} parent=63 // pred_fallthru
        _
    $region64: #{forward.66} parent=5 // pred_fallthru
      _
  $region6: #{forward.66} parent=0 // loop_footer
    %s15 = sadd.s32 1, %s11
  $region7: #{forward.66} parent=0 // loop_footer_branch
    %10 = sbr.rel target = $region3
  $region8: #{forward.66} parent=0 // loop_exit
    _

// kernel: forward.69
$region0: #{forward.69}
  #allocation0 [shape = 'u32[]', space=smem, size = 0x4, offset = 0x4, fixed_abs, tag = 'smem constant byte address 0x4 - core index']
  #allocation1 [shape = 'u32[144,128]{1,0:T(1,128)}', space=vmem, size = 0x12000, scoped, tag = 'internal scratch']
  %s0 = inlined_call_operand.vmem [shape: f32[128,128], index: 0, kind: input, shape index: {}]
  %s1 = inlined_call_operand.vmem [shape: f32[1,128], index: 1, kind: input, shape index: {}]
  %s2 = inlined_call_operand.vmem [shape: f32[1,128], index: 2, kind: input, shape index: {}]
  %s3 = inlined_call_operand.vmem [shape: bf16[128,128], index: 3, kind: output, shape index: {}]
  %s4 = sld [smem:[#allocation0]]
  $region22: #{forward.69} parent=0
    _
  %s6 = ssub.s32 1, %s4
  %s7 = scalar_select 0, %s6, %s4
  // Predicated region
  $region2: #{forward.69} parent=0 // pred_check
    _
  $region3: #{forward.69} parent=0 // pred_check_branch
    %9 = sbr.rel (0) target = $region5
  $region4: #{forward.69} parent=0 // pred_region
    _
  $region5: #{forward.69} parent=0 // pred_fallthru
    _
  // Predicated region
  $region6: #{forward.69} parent=0 // pred_check
    _
  $region7: #{forward.69} parent=0 // pred_check_branch
    %11 = sbr.rel (0) target = $region9
  $region8: #{forward.69} parent=0 // pred_region
    _
  $region9: #{forward.69} parent=0 // pred_fallthru
    _
  // Predicated region
  $region10: #{forward.69} parent=0 // pred_check
    _
  $region11: #{forward.69} parent=0 // pred_check_branch
    %13 = sbr.rel (0) target = $region13
  $region12: #{forward.69} parent=0 // pred_region
    _
  $region13: #{forward.69} parent=0 // pred_fallthru
    _
  %v14 = vld [vmem:[%s0] sm:$0xff]
  %v15 = vld [vmem:[%s0 + $0x8] sm:$0xff]
  %v16 = vld [vmem:[%s0 + $0x10] sm:$0xff]
  %v17 = vld [vmem:[%s0 + $0x18] sm:$0xff]
  %v18 = vld [vmem:[%s0 + $0x20] sm:$0xff]
  %v19 = vld [vmem:[%s0 + $0x28] sm:$0xff]
  %v20 = vld [vmem:[%s0 + $0x30] sm:$0xff]
  %v21 = vld [vmem:[%s0 + $0x38] sm:$0xff]
  %v22 = vld [vmem:[%s0 + $0x40] sm:$0xff]
  %v23 = vld [vmem:[%s0 + $0x48] sm:$0xff]
  %v24 = vld [vmem:[%s0 + $0x50] sm:$0xff]
  %v25 = vld [vmem:[%s0 + $0x58] sm:$0xff]
  %v26 = vld [vmem:[%s0 + $0x60] sm:$0xff]
  %v27 = vld [vmem:[%s0 + $0x68] sm:$0xff]
  %v28 = vld [vmem:[%s0 + $0x70] sm:$0xff]
  %v29 = vld [vmem:[%s0 + $0x78] sm:$0xff]
  %v30 = vld [vmem:[%s1] sm:$0x1]
  %v32 = vlaneseq
  %v33 = vshrl.u32 %v32, 7
  %v34 = vsub.s32 0, %v33
  %v35 = vrot.slane %v30, %v34
  %v37 = vmul.f32 %v14, %v35
  %v38 = vmul.f32 %v15, %v35
  %v39 = vmul.f32 %v16, %v35
  %v40 = vmul.f32 %v17, %v35
  %v41 = vmul.f32 %v18, %v35
  %v42 = vmul.f32 %v19, %v35
  %v43 = vmul.f32 %v20, %v35
  %v44 = vmul.f32 %v21, %v35
  %v45 = vmul.f32 %v22, %v35
  %v46 = vmul.f32 %v23, %v35
  %v47 = vmul.f32 %v24, %v35
  %v48 = vmul.f32 %v25, %v35
  %v49 = vmul.f32 %v26, %v35
  %v50 = vmul.f32 %v27, %v35
  %v51 = vmul.f32 %v28, %v35
  %v52 = vmul.f32 %v29, %v35
  %v53 = vld [vmem:[%s2] sm:$0x1]
  %v55 = vlaneseq
  %v56 = vshrl.u32 %v55, 7
  %v57 = vsub.s32 0, %v56
  %v58 = vrot.slane %v53, %v57
  %v60 = vadd.f32 %v37, %v58
  %v61 = vadd.f32 %v38, %v58
  %v62 = vadd.f32 %v39, %v58
  %v63 = vadd.f32 %v40, %v58
  %v64 = vadd.f32 %v41, %v58
  %v65 = vadd.f32 %v42, %v58
  %v66 = vadd.f32 %v43, %v58
  %v67 = vadd.f32 %v44, %v58
  %v68 = vadd.f32 %v45, %v58
  %v69 = vadd.f32 %v46, %v58
  %v70 = vadd.f32 %v47, %v58
  %v71 = vadd.f32 %v48, %v58
  %v72 = vadd.f32 %v49, %v58
  %v73 = vadd.f32 %v50, %v58
  %v74 = vadd.f32 %v51, %v58
  %v75 = vadd.f32 %v52, %v58
  %v76 = vmax.f32 %v60, 0.0
  %v77 = vmax.f32 %v61, 0.0
  %v78 = vmax.f32 %v62, 0.0
  %v79 = vmax.f32 %v63, 0.0
  %v80 = vmax.f32 %v64, 0.0
  %v81 = vmax.f32 %v65, 0.0
  %v82 = vmax.f32 %v66, 0.0
  %v83 = vmax.f32 %v67, 0.0
  %v84 = vmax.f32 %v68, 0.0
  %v85 = vmax.f32 %v69, 0.0
  %v86 = vmax.f32 %v70, 0.0
  %v87 = vmax.f32 %v71, 0.0
  %v88 = vmax.f32 %v72, 0.0
  %v89 = vmax.f32 %v73, 0.0
  %v90 = vmax.f32 %v74, 0.0
  %v91 = vmax.f32 %v75, 0.0
  %v92 = vpack.c.bf16 %v77, %v76
  %v93 = vpack.c.bf16 %v79, %v78
  %v94 = vpack.c.bf16 %v81, %v80
  %v95 = vpack.c.bf16 %v83, %v82
  %v96 = vpack.c.bf16 %v85, %v84
  %v97 = vpack.c.bf16 %v87, %v86
  %v98 = vpack.c.bf16 %v89, %v88
  %v99 = vpack.c.bf16 %v91, %v90
  %v108 = vunpack.c.l.b16 %v92
  %v109 = vunpack.c.h.b16 %v92
  %v110 = vunpack.c.l.b16 %v93
  %v111 = vunpack.c.h.b16 %v93
  %v112 = vunpack.c.l.b16 %v94
  %v113 = vunpack.c.h.b16 %v94
  %v114 = vunpack.c.l.b16 %v95
  %v115 = vunpack.c.h.b16 %v95
  %v116 = vunpack.c.l.b16 %v96
  %v117 = vunpack.c.h.b16 %v96
  %v118 = vunpack.c.l.b16 %v97
  %v119 = vunpack.c.h.b16 %v97
  %v120 = vunpack.c.l.b16 %v98
  %v121 = vunpack.c.h.b16 %v98
  %v122 = vunpack.c.l.b16 %v99
  %v123 = vunpack.c.h.b16 %v99
  %v124 = vpack.c.b16 %v108, %v108
  %v125 = vpack.c.b16 %v109, %v109
  %v126 = vpack.c.b16 %v110, %v110
  %v127 = vpack.c.b16 %v111, %v111
  %v128 = vpack.c.b16 %v112, %v112
  %v129 = vpack.c.b16 %v113, %v113
  %v130 = vpack.c.b16 %v114, %v114
  %v131 = vpack.c.b16 %v115, %v115
  %v132 = vpack.c.b16 %v116, %v116
  %v133 = vpack.c.b16 %v117, %v117
  %v134 = vpack.c.b16 %v118, %v118
  %v135 = vpack.c.b16 %v119, %v119
  %v136 = vpack.c.b16 %v120, %v120
  %v137 = vpack.c.b16 %v121, %v121
  %v138 = vpack.c.b16 %v122, %v122
  %v139 = vpack.c.b16 %v123, %v123
  %156 = vst [vmem:[%s3] sm:$0xf] %v124
  %157 = vst [vmem:[%s3 + $0x4] sm:$0xf] %v125
  %158 = vst [vmem:[%s3 + $0x8] sm:$0xf] %v126
  %159 = vst [vmem:[%s3 + $0xc] sm:$0xf] %v127
  %160 = vst [vmem:[%s3 + $0x10] sm:$0xf] %v128
  %161 = vst [vmem:[%s3 + $0x14] sm:$0xf] %v129
  %162 = vst [vmem:[%s3 + $0x18] sm:$0xf] %v130
  %163 = vst [vmem:[%s3 + $0x1c] sm:$0xf] %v131
  %164 = vst [vmem:[%s3 + $0x20] sm:$0xf] %v132
  %165 = vst [vmem:[%s3 + $0x24] sm:$0xf] %v133
  %166 = vst [vmem:[%s3 + $0x28] sm:$0xf] %v134
  %167 = vst [vmem:[%s3 + $0x2c] sm:$0xf] %v135
  %168 = vst [vmem:[%s3 + $0x30] sm:$0xf] %v136
  %169 = vst [vmem:[%s3 + $0x34] sm:$0xf] %v137
  %170 = vst [vmem:[%s3 + $0x38] sm:$0xf] %v138
  %171 = vst [vmem:[%s3 + $0x3c] sm:$0xf] %v139
  // Predicated region
  $region14: #{forward.69} parent=0 // pred_check
    _
  $region15: #{forward.69} parent=0 // pred_check_branch
    %173 = sbr.rel (0) target = $region17
  $region16: #{forward.69} parent=0 // pred_region
    _
  $region17: #{forward.69} parent=0 // pred_fallthru
    _
  // Predicated region
  $region18: #{forward.69} parent=0 // pred_check
    _
  $region19: #{forward.69} parent=0 // pred_check_branch
    %175 = sbr.rel (0) target = $region21
  $region20: #{forward.69} parent=0 // pred_region
    _
  $region21: #{forward.69} parent=0 // pred_fallthru
    _

// kernel: forward.68
$region0: #{forward.68}
  #allocation0 [shape = 'u32[]', space=smem, size = 0x4, offset = 0x4, fixed_abs, tag = 'smem constant byte address 0x4 - core index']
  #allocation1 [shape = 'u32[144,128]{1,0:T(1,128)}', space=vmem, size = 0x12000, scoped, tag = 'internal scratch']
  #allocation2 [shape = 'f32[128,128]{1,0:T(8,128)}', space=vmem, size = 0x10000, scoped, tag = 'scratch operand']
  %s0 = inlined_call_operand.vmem [shape: bf16[128,512], index: 0, kind: input, shape index: {}]
  %s1 = inlined_call_operand.vmem [shape: bf16[512,128], index: 1, kind: input, shape index: {}]
  %s2 = inlined_call_operand.vmem [shape: f32[128,128], index: 2, kind: output, shape index: {0}]
  %s3 = inlined_call_operand.vmem [shape: f32[1,128], index: 3, kind: output, shape index: {1}]
  %s4 = inlined_call_operand.vmem [shape: f32[1,128], index: 4, kind: output, shape index: {2}]
  %5 = xla_tuple %s2, %s3, %s4
  %s6 = sld [smem:[#allocation0]]
  $region46: #{forward.68} parent=0
    _
  %s8 = ssub.s32 1, %s6
  %s9 = scalar_select 0, %s8, %s6
  // Predicated region
  $region2: #{forward.68} parent=0 // pred_check
    _
  $region3: #{forward.68} parent=0 // pred_check_branch
    %11 = sbr.rel (0) target = $region5
  $region4: #{forward.68} parent=0 // pred_region
    _
  $region5: #{forward.68} parent=0 // pred_fallthru
    _
  // Predicated region
  $region6: #{forward.68} parent=0 // pred_check
    _
  $region7: #{forward.68} parent=0 // pred_check_branch
    %13 = sbr.rel (0) target = $region9
  $region8: #{forward.68} parent=0 // pred_region
    _
  $region9: #{forward.68} parent=0 // pred_fallthru
    _
  %p15 = scmp.eq.s32.totalorder 0, 0
  // Predicated region
  $region10: #{forward.68} parent=0 // pred_check
    %p16 = pneg %p15
  $region11: #{forward.68} parent=0 // pred_check_branch
    %18 = sbr.rel (%p16) target = $region13
  $region12: #{forward.68} parent=0 // pred_region
    %19 = vst [vmem:[#allocation2] sm:$0xff] 0.0
    %20 = vst [vmem:[#allocation2 + $0x8] sm:$0xff] 0.0
    %21 = vst [vmem:[#allocation2 + $0x10] sm:$0xff] 0.0
    %22 = vst [vmem:[#allocation2 + $0x18] sm:$0xff] 0.0
    %23 = vst [vmem:[#allocation2 + $0x20] sm:$0xff] 0.0
    %24 = vst [vmem:[#allocation2 + $0x28] sm:$0xff] 0.0
    %25 = vst [vmem:[#allocation2 + $0x30] sm:$0xff] 0.0
    %26 = vst [vmem:[#allocation2 + $0x38] sm:$0xff] 0.0
    %27 = vst [vmem:[#allocation2 + $0x40] sm:$0xff] 0.0
    %28 = vst [vmem:[#allocation2 + $0x48] sm:$0xff] 0.0
    %29 = vst [vmem:[#allocation2 + $0x50] sm:$0xff] 0.0
    %30 = vst [vmem:[#allocation2 + $0x58] sm:$0xff] 0.0
    %31 = vst [vmem:[#allocation2 + $0x60] sm:$0xff] 0.0
    %32 = vst [vmem:[#allocation2 + $0x68] sm:$0xff] 0.0
    %33 = vst [vmem:[#allocation2 + $0x70] sm:$0xff] 0.0
    %34 = vst [vmem:[#allocation2 + $0x78] sm:$0xff] 0.0
  $region13: #{forward.68} parent=0 // pred_fallthru
    _
  %p35 = scmp.eq.s32.totalorder 0, 0
  %p36 = pnand %p15, %p35
  %p37 = pneg %p36
  // Predicated region
  $region14: #{forward.68} parent=0 // pred_check
    _
  $region15: #{forward.68} parent=0 // pred_check_branch
    %39 = sbr.rel (%p36) target = $region17
  $region16: #{forward.68} parent=0 // pred_region
    %40 = vst [vmem:[%s3] sm:$0x1] 0.0
    %41 = vst [vmem:[%s4] sm:$0x1] 0.0
  $region17: #{forward.68} parent=0 // pred_fallthru
    _
  %v42 = vld [vmem:[#allocation2] sm:$0xff]
  %v43 = vld [vmem:[#allocation2 + $0x8] sm:$0xff]
  %v44 = vld [vmem:[#allocation2 + $0x10] sm:$0xff]
  %v45 = vld [vmem:[#allocation2 + $0x18] sm:$0xff]
  %v46 = vld [vmem:[#allocation2 + $0x20] sm:$0xff]
  %v47 = vld [vmem:[#allocation2 + $0x28] sm:$0xff]
  %v48 = vld [vmem:[#allocation2 + $0x30] sm:$0xff]
  %v49 = vld [vmem:[#allocation2 + $0x38] sm:$0xff]
  %v50 = vld [vmem:[#allocation2 + $0x40] sm:$0xff]
  %v51 = vld [vmem:[#allocation2 + $0x48] sm:$0xff]
  %v52 = vld [vmem:[#allocation2 + $0x50] sm:$0xff]
  %v53 = vld [vmem:[#allocation2 + $0x58] sm:$0xff]
  %v54 = vld [vmem:[#allocation2 + $0x60] sm:$0xff]
  %v55 = vld [vmem:[#allocation2 + $0x68] sm:$0xff]
  %v56 = vld [vmem:[#allocation2 + $0x70] sm:$0xff]
  %v57 = vld [vmem:[#allocation2 + $0x78] sm:$0xff]
  %v58 = vld [vmem:[%s0] sm:$0xff]
  %v59 = vld [vmem:[%s0 + $0x8] sm:$0xff]
  %v60 = vld [vmem:[%s0 + $0x10] sm:$0xff]
  %v61 = vld [vmem:[%s0 + $0x18] sm:$0xff]
  %v62 = vld [vmem:[%s0 + $0x20] sm:$0xff]
  %v63 = vld [vmem:[%s0 + $0x28] sm:$0xff]
  %v64 = vld [vmem:[%s0 + $0x30] sm:$0xff]
  %v65 = vld [vmem:[%s0 + $0x38] sm:$0xff]
  %v66 = vld [vmem:[%s0 + $0x40] sm:$0xff]
  %v67 = vld [vmem:[%s0 + $0x48] sm:$0xff]
  %v68 = vld [vmem:[%s0 + $0x50] sm:$0xff]
  %v69 = vld [vmem:[%s0 + $0x58] sm:$0xff]
  %v70 = vld [vmem:[%s0 + $0x60] sm:$0xff]
  %v71 = vld [vmem:[%s0 + $0x68] sm:$0xff]
  %v72 = vld [vmem:[%s0 + $0x70] sm:$0xff]
  %v73 = vld [vmem:[%s0 + $0x78] sm:$0xff]
  %v74 = vld [vmem:[%s0 + $0x80] sm:$0xff]
  %v75 = vld [vmem:[%s0 + $0x88] sm:$0xff]
  %v76 = vld [vmem:[%s0 + $0x90] sm:$0xff]
  %v77 = vld [vmem:[%s0 + $0x98] sm:$0xff]
  %v78 = vld [vmem:[%s0 + $0xa0] sm:$0xff]
  %v79 = vld [vmem:[%s0 + $0xa8] sm:$0xff]
  %v80 = vld [vmem:[%s0 + $0xb0] sm:$0xff]
  %v81 = vld [vmem:[%s0 + $0xb8] sm:$0xff]
  %v82 = vld [vmem:[%s0 + $0xc0] sm:$0xff]
  %v83 = vld [vmem:[%s0 + $0xc8] sm:$0xff]
  %v84 = vld [vmem:[%s0 + $0xd0] sm:$0xff]
  %v85 = vld [vmem:[%s0 + $0xd8] sm:$0xff]
  %v86 = vld [vmem:[%s0 + $0xe0] sm:$0xff]
  %v87 = vld [vmem:[%s0 + $0xe8] sm:$0xff]
  %v88 = vld [vmem:[%s0 + $0xf0] sm:$0xff]
  %v89 = vld [vmem:[%s0 + $0xf8] sm:$0xff]
  %v90 = vld [vmem:[%s1] sm:$0xf]
  %v91 = vld [vmem:[%s1 + $0x4] sm:$0xf]
  %v92 = vld [vmem:[%s1 + $0x8] sm:$0xf]
  %v93 = vld [vmem:[%s1 + $0xc] sm:$0xf]
  %v94 = vld [vmem:[%s1 + $0x10] sm:$0xf]
  %v95 = vld [vmem:[%s1 + $0x14] sm:$0xf]
  %v96 = vld [vmem:[%s1 + $0x18] sm:$0xf]
  %v97 = vld [vmem:[%s1 + $0x1c] sm:$0xf]
  %v98 = vld [vmem:[%s1 + $0x20] sm:$0xf]
  %v99 = vld [vmem:[%s1 + $0x24] sm:$0xf]
  %v100 = vld [vmem:[%s1 + $0x28] sm:$0xf]
  %v101 = vld [vmem:[%s1 + $0x2c] sm:$0xf]
  %v102 = vld [vmem:[%s1 + $0x30] sm:$0xf]
  %v103 = vld [vmem:[%s1 + $0x34] sm:$0xf]
  %v104 = vld [vmem:[%s1 + $0x38] sm:$0xf]
  %v105 = vld [vmem:[%s1 + $0x3c] sm:$0xf]
  %v106 = vld [vmem:[%s1 + $0x40] sm:$0xf]
  %v107 = vld [vmem:[%s1 + $0x44] sm:$0xf]
  %v108 = vld [vmem:[%s1 + $0x48] sm:$0xf]
  %v109 = vld [vmem:[%s1 + $0x4c] sm:$0xf]
  %v110 = vld [vmem:[%s1 + $0x50] sm:$0xf]
  %v111 = vld [vmem:[%s1 + $0x54] sm:$0xf]
  %v112 = vld [vmem:[%s1 + $0x58] sm:$0xf]
  %v113 = vld [vmem:[%s1 + $0x5c] sm:$0xf]
  %v114 = vld [vmem:[%s1 + $0x60] sm:$0xf]
  %v115 = vld [vmem:[%s1 + $0x64] sm:$0xf]
  %v116 = vld [vmem:[%s1 + $0x68] sm:$0xf]
  %v117 = vld [vmem:[%s1 + $0x6c] sm:$0xf]
  %v118 = vld [vmem:[%s1 + $0x70] sm:$0xf]
  %v119 = vld [vmem:[%s1 + $0x74] sm:$0xf]
  %v120 = vld [vmem:[%s1 + $0x78] sm:$0xf]
  %v121 = vld [vmem:[%s1 + $0x7c] sm:$0xf]
  %v122 = vld [vmem:[%s1 + $0x80] sm:$0xf]
  %v123 = vld [vmem:[%s1 + $0x84] sm:$0xf]
  %v124 = vld [vmem:[%s1 + $0x88] sm:$0xf]
  %v125 = vld [vmem:[%s1 + $0x8c] sm:$0xf]
  %v126 = vld [vmem:[%s1 + $0x90] sm:$0xf]
  %v127 = vld [vmem:[%s1 + $0x94] sm:$0xf]
  %v128 = vld [vmem:[%s1 + $0x98] sm:$0xf]
  %v129 = vld [vmem:[%s1 + $0x9c] sm:$0xf]
  %v130 = vld [vmem:[%s1 + $0xa0] sm:$0xf]
  %v131 = vld [vmem:[%s1 + $0xa4] sm:$0xf]
  %v132 = vld [vmem:[%s1 + $0xa8] sm:$0xf]
  %v133 = vld [vmem:[%s1 + $0xac] sm:$0xf]
  %v134 = vld [vmem:[%s1 + $0xb0] sm:$0xf]
  %v135 = vld [vmem:[%s1 + $0xb4] sm:$0xf]
  %v136 = vld [vmem:[%s1 + $0xb8] sm:$0xf]
  %v137 = vld [vmem:[%s1 + $0xbc] sm:$0xf]
  %v138 = vld [vmem:[%s1 + $0xc0] sm:$0xf]
  %v139 = vld [vmem:[%s1 + $0xc4] sm:$0xf]
  %v140 = vld [vmem:[%s1 + $0xc8] sm:$0xf]
  %v141 = vld [vmem:[%s1 + $0xcc] sm:$0xf]
  %v142 = vld [vmem:[%s1 + $0xd0] sm:$0xf]
  %v143 = vld [vmem:[%s1 + $0xd4] sm:$0xf]
  %v144 = vld [vmem:[%s1 + $0xd8] sm:$0xf]
  %v145 = vld [vmem:[%s1 + $0xdc] sm:$0xf]
  %v146 = vld [vmem:[%s1 + $0xe0] sm:$0xf]
  %v147 = vld [vmem:[%s1 + $0xe4] sm:$0xf]
  %v148 = vld [vmem:[%s1 + $0xe8] sm:$0xf]
  %v149 = vld [vmem:[%s1 + $0xec] sm:$0xf]
  %v150 = vld [vmem:[%s1 + $0xf0] sm:$0xf]
  %v151 = vld [vmem:[%s1 + $0xf4] sm:$0xf]
  %v152 = vld [vmem:[%s1 + $0xf8] sm:$0xf]
  %v153 = vld [vmem:[%s1 + $0xfc] sm:$0xf]
  %v186 = vunpack.c.l.b16 %v58
  %v187 = vunpack.c.h.b16 %v58
  %v188 = vunpack.c.l.b16 %v59
  %v189 = vunpack.c.h.b16 %v59
  %v190 = vunpack.c.l.b16 %v60
  %v191 = vunpack.c.h.b16 %v60
  %v192 = vunpack.c.l.b16 %v61
  %v193 = vunpack.c.h.b16 %v61
  %v194 = vunpack.c.l.b16 %v62
  %v195 = vunpack.c.h.b16 %v62
  %v196 = vunpack.c.l.b16 %v63
  %v197 = vunpack.c.h.b16 %v63
  %v198 = vunpack.c.l.b16 %v64
  %v199 = vunpack.c.h.b16 %v64
  %v200 = vunpack.c.l.b16 %v65
  %v201 = vunpack.c.h.b16 %v65
  %v202 = vunpack.c.l.b16 %v66
  %v203 = vunpack.c.h.b16 %v66
  %v204 = vunpack.c.l.b16 %v67
  %v205 = vunpack.c.h.b16 %v67
  %v206 = vunpack.c.l.b16 %v68
  %v207 = vunpack.c.h.b16 %v68
  %v208 = vunpack.c.l.b16 %v69
  %v209 = vunpack.c.h.b16 %v69
  %v210 = vunpack.c.l.b16 %v70
  %v211 = vunpack.c.h.b16 %v70
  %v212 = vunpack.c.l.b16 %v71
  %v213 = vunpack.c.h.b16 %v71
  %v214 = vunpack.c.l.b16 %v72
  %v215 = vunpack.c.h.b16 %v72
  %v216 = vunpack.c.l.b16 %v73
  %v217 = vunpack.c.h.b16 %v73
  %v218 = vunpack.c.l.b16 %v74
  %v219 = vunpack.c.h.b16 %v74
  %v220 = vunpack.c.l.b16 %v75
  %v221 = vunpack.c.h.b16 %v75
  %v222 = vunpack.c.l.b16 %v76
  %v223 = vunpack.c.h.b16 %v76
  %v224 = vunpack.c.l.b16 %v77
  %v225 = vunpack.c.h.b16 %v77
  %v226 = vunpack.c.l.b16 %v78
  %v227 = vunpack.c.h.b16 %v78
  %v228 = vunpack.c.l.b16 %v79
  %v229 = vunpack.c.h.b16 %v79
  %v230 = vunpack.c.l.b16 %v80
  %v231 = vunpack.c.h.b16 %v80
  %v232 = vunpack.c.l.b16 %v81
  %v233 = vunpack.c.h.b16 %v81
  %v234 = vunpack.c.l.b16 %v82
  %v235 = vunpack.c.h.b16 %v82
  %v236 = vunpack.c.l.b16 %v83
  %v237 = vunpack.c.h.b16 %v83
  %v238 = vunpack.c.l.b16 %v84
  %v239 = vunpack.c.h.b16 %v84
  %v240 = vunpack.c.l.b16 %v85
  %v241 = vunpack.c.h.b16 %v85
  %v242 = vunpack.c.l.b16 %v86
  %v243 = vunpack.c.h.b16 %v86
  %v244 = vunpack.c.l.b16 %v87
  %v245 = vunpack.c.h.b16 %v87
  %v246 = vunpack.c.l.b16 %v88
  %v247 = vunpack.c.h.b16 %v88
  %v248 = vunpack.c.l.b16 %v89
  %v249 = vunpack.c.h.b16 %v89
  %v250 = vpack.c.b16 %v190, %v186
  %v251 = vpack.c.b16 %v191, %v187
  %v252 = vpack.c.b16 %v192, %v188
  %v253 = vpack.c.b16 %v193, %v189
  %v254 = vpack.c.b16 %v198, %v194
  %v255 = vpack.c.b16 %v199, %v195
  %v256 = vpack.c.b16 %v200, %v196
  %v257 = vpack.c.b16 %v201, %v197
  %v258 = vpack.c.b16 %v206, %v202
  %v259 = vpack.c.b16 %v207, %v203
  %v260 = vpack.c.b16 %v208, %v204
  %v261 = vpack.c.b16 %v209, %v205
  %v262 = vpack.c.b16 %v214, %v210
  %v263 = vpack.c.b16 %v215, %v211
  %v264 = vpack.c.b16 %v216, %v212
  %v265 = vpack.c.b16 %v217, %v213
  %v266 = vpack.c.b16 %v222, %v218
  %v267 = vpack.c.b16 %v223, %v219
  %v268 = vpack.c.b16 %v224, %v220
  %v269 = vpack.c.b16 %v225, %v221
  %v270 = vpack.c.b16 %v230, %v226
  %v271 = vpack.c.b16 %v231, %v227
  %v272 = vpack.c.b16 %v232, %v228
  %v273 = vpack.c.b16 %v233, %v229
  %v274 = vpack.c.b16 %v238, %v234
  %v275 = vpack.c.b16 %v239, %v235
  %v276 = vpack.c.b16 %v240, %v236
  %v277 = vpack.c.b16 %v241, %v237
  %v278 = vpack.c.b16 %v246, %v242
  %v279 = vpack.c.b16 %v247, %v243
  %v280 = vpack.c.b16 %v248, %v244
  %v281 = vpack.c.b16 %v249, %v245
  %v378 = vunpack.c.l.b16 %v90
  %v379 = vunpack.c.l.b16 %v91
  %v380 = vunpack.c.l.b16 %v92
  %v381 = vunpack.c.l.b16 %v93
  %v382 = vunpack.c.l.b16 %v94
  %v383 = vunpack.c.l.b16 %v95
  %v384 = vunpack.c.l.b16 %v96
  %v385 = vunpack.c.l.b16 %v97
  %v386 = vunpack.c.l.b16 %v98
  %v387 = vunpack.c.l.b16 %v99
  %v388 = vunpack.c.l.b16 %v100
  %v389 = vunpack.c.l.b16 %v101
  %v390 = vunpack.c.l.b16 %v102
  %v391 = vunpack.c.l.b16 %v103
  %v392 = vunpack.c.l.b16 %v104
  %v393 = vunpack.c.l.b16 %v105
  %v394 = vunpack.c.l.b16 %v106
  %v395 = vunpack.c.l.b16 %v107
  %v396 = vunpack.c.l.b16 %v108
  %v397 = vunpack.c.l.b16 %v109
  %v398 = vunpack.c.l.b16 %v110
  %v399 = vunpack.c.l.b16 %v111
  %v400 = vunpack.c.l.b16 %v112
  %v401 = vunpack.c.l.b16 %v113
  %v402 = vunpack.c.l.b16 %v114
  %v403 = vunpack.c.l.b16 %v115
  %v404 = vunpack.c.l.b16 %v116
  %v405 = vunpack.c.l.b16 %v117
  %v406 = vunpack.c.l.b16 %v118
  %v407 = vunpack.c.l.b16 %v119
  %v408 = vunpack.c.l.b16 %v120
  %v409 = vunpack.c.l.b16 %v121
  %v410 = vunpack.c.l.b16 %v122
  %v411 = vunpack.c.l.b16 %v123
  %v412 = vunpack.c.l.b16 %v124
  %v413 = vunpack.c.l.b16 %v125
  %v414 = vunpack.c.l.b16 %v126
  %v415 = vunpack.c.l.b16 %v127
  %v416 = vunpack.c.l.b16 %v128
  %v417 = vunpack.c.l.b16 %v129
  %v418 = vunpack.c.l.b16 %v130
  %v419 = vunpack.c.l.b16 %v131
  %v420 = vunpack.c.l.b16 %v132
  %v421 = vunpack.c.l.b16 %v133
  %v422 = vunpack.c.l.b16 %v134
  %v423 = vunpack.c.l.b16 %v135
  %v424 = vunpack.c.l.b16 %v136
  %v425 = vunpack.c.l.b16 %v137
  %v426 = vunpack.c.l.b16 %v138
  %v427 = vunpack.c.l.b16 %v139
  %v428 = vunpack.c.l.b16 %v140
  %v429 = vunpack.c.l.b16 %v141
  %v430 = vunpack.c.l.b16 %v142
  %v431 = vunpack.c.l.b16 %v143
  %v432 = vunpack.c.l.b16 %v144
  %v433 = vunpack.c.l.b16 %v145
  %v434 = vunpack.c.l.b16 %v146
  %v435 = vunpack.c.l.b16 %v147
  %v436 = vunpack.c.l.b16 %v148
  %v437 = vunpack.c.l.b16 %v149
  %v438 = vunpack.c.l.b16 %v150
  %v439 = vunpack.c.l.b16 %v151
  %v440 = vunpack.c.l.b16 %v152
  %v441 = vunpack.c.l.b16 %v153
  %v442 = vpack.c.b16 %v379, %v378
  %v443 = vpack.c.b16 %v381, %v380
  %v444 = vpack.c.b16 %v383, %v382
  %v445 = vpack.c.b16 %v385, %v384
  %v446 = vpack.c.b16 %v387, %v386
  %v447 = vpack.c.b16 %v389, %v388
  %v448 = vpack.c.b16 %v391, %v390
  %v449 = vpack.c.b16 %v393, %v392
  %v450 = vpack.c.b16 %v395, %v394
  %v451 = vpack.c.b16 %v397, %v396
  %v452 = vpack.c.b16 %v399, %v398
  %v453 = vpack.c.b16 %v401, %v400
  %v454 = vpack.c.b16 %v403, %v402
  %v455 = vpack.c.b16 %v405, %v404
  %v456 = vpack.c.b16 %v407, %v406
  %v457 = vpack.c.b16 %v409, %v408
  %v458 = vpack.c.b16 %v411, %v410
  %v459 = vpack.c.b16 %v413, %v412
  %v460 = vpack.c.b16 %v415, %v414
  %v461 = vpack.c.b16 %v417, %v416
  %v462 = vpack.c.b16 %v419, %v418
  %v463 = vpack.c.b16 %v421, %v420
  %v464 = vpack.c.b16 %v423, %v422
  %v465 = vpack.c.b16 %v425, %v424
  %v466 = vpack.c.b16 %v427, %v426
  %v467 = vpack.c.b16 %v429, %v428
  %v468 = vpack.c.b16 %v431, %v430
  %v469 = vpack.c.b16 %v433, %v432
  %v470 = vpack.c.b16 %v435, %v434
  %v471 = vpack.c.b16 %v437, %v436
  %v472 = vpack.c.b16 %v439, %v438
  %v473 = vpack.c.b16 %v441, %v440
  %506 = vmatprep.subr.bf16.mxu0 0
  %507 = vmatpush1.bf16.msra.mxu0 %v442
  %508 = vmatprep.subr.bf16.mxu0 0
  %509 = vmatpush1.bf16.msra.mxu0 %v443
  %510 = vmatprep.subr.bf16.mxu0 0
  %511 = vmatpush1.bf16.msra.mxu0 %v444
  %512 = vmatprep.subr.bf16.mxu0 0
  %513 = vmatpush1.bf16.msra.mxu0 %v445
  %514 = vmatprep.subr.bf16.mxu0 0
  %515 = vmatpush1.bf16.msra.mxu0 %v446
  %516 = vmatprep.subr.bf16.mxu0 0
  %517 = vmatpush1.bf16.msra.mxu0 %v447
  %518 = vmatprep.subr.bf16.mxu0 0
  %519 = vmatpush1.bf16.msra.mxu0 %v448
  %520 = vmatprep.subr.bf16.mxu0 0
  %521 = vmatpush1.bf16.msra.mxu0 %v449
  %522 = vmatprep.subr.bf16.mxu0 0
  %523 = vmatpush1.bf16.msra.mxu0 %v450
  %524 = vmatprep.subr.bf16.mxu0 0
  %525 = vmatpush1.bf16.msra.mxu0 %v451
  %526 = vmatprep.subr.bf16.mxu0 0
  %527 = vmatpush1.bf16.msra.mxu0 %v452
  %528 = vmatprep.subr.bf16.mxu0 0
  %529 = vmatpush1.bf16.msra.mxu0 %v453
  %530 = vmatprep.subr.bf16.mxu0 0
  %531 = vmatpush1.bf16.msra.mxu0 %v454
  %532 = vmatprep.subr.bf16.mxu0 0
  %533 = vmatpush1.bf16.msra.mxu0 %v455
  %534 = vmatprep.subr.bf16.mxu0 0
  %535 = vmatpush1.bf16.msra.mxu0 %v456
  %536 = vmatprep.subr.bf16.mxu0 0
  %537 = vmatpush1.bf16.msra.mxu0 %v457
  %538 = vmatprep.mubr.bf16.mxu0 %v251
  %539 = vmatmul.mubr.bf16.gmra.mrb[0].mxu0 %v250
  %v540 = vpop.f32.mrb[0].mxu0
  %v541 = vadd.f32 0.0, %v540
  %v542 = vpop.f32.mrb[0].mxu0
  %v543 = vpop.f32.mrb[0].mxu0
  %v544 = vadd.f32 0.0, %v543
  %v545 = vpop.f32.mrb[0].mxu0
  %546 = vmatprep.mubr.bf16.mxu0 %v255
  %547 = vmatmul.mubr.bf16.gmra.mrb[0].mxu0 %v254
  %v548 = vpop.f32.mrb[0].mxu0
  %v549 = vadd.f32 0.0, %v548
  %v550 = vpop.f32.mrb[0].mxu0
  %v551 = vpop.f32.mrb[0].mxu0
  %v552 = vadd.f32 0.0, %v551
  %v553 = vpop.f32.mrb[0].mxu0
  %554 = vmatprep.mubr.bf16.mxu0 %v259
  %555 = vmatmul.mubr.bf16.gmra.mrb[0].mxu0 %v258
  %v556 = vpop.f32.mrb[0].mxu0
  %v557 = vadd.f32 0.0, %v556
  %v558 = vpop.f32.mrb[0].mxu0
  %v559 = vpop.f32.mrb[0].mxu0
  %v560 = vadd.f32 0.0, %v559
  %v561 = vpop.f32.mrb[0].mxu0
  %562 = vmatprep.mubr.bf16.mxu0 %v263
  %563 = vmatmul.mubr.bf16.gmra.mrb[0].mxu0 %v262
  %v564 = vpop.f32.mrb[0].mxu0
  %v565 = vadd.f32 0.0, %v564
  %v566 = vpop.f32.mrb[0].mxu0
  %v567 = vpop.f32.mrb[0].mxu0
  %v568 = vadd.f32 0.0, %v567
  %v569 = vpop.f32.mrb[0].mxu0
  %570 = vmatprep.mubr.bf16.mxu0 %v267
  %571 = vmatmul.mubr.bf16.gmra.mrb[0].mxu0 %v266
  %v572 = vpop.f32.mrb[0].mxu0
  %v573 = vadd.f32 0.0, %v572
  %v574 = vpop.f32.mrb[0].mxu0
  %v575 = vpop.f32.mrb[0].mxu0
  %v576 = vadd.f32 0.0, %v575
  %v577 = vpop.f32.mrb[0].mxu0
  %578 = vmatprep.mubr.bf16.mxu0 %v271
  %579 = vmatmul.mubr.bf16.gmra.mrb[0].mxu0 %v270
  %v580 = vpop.f32.mrb[0].mxu0
  %v581 = vadd.f32 0.0, %v580
  %v582 = vpop.f32.mrb[0].mxu0
  %v583 = vpop.f32.mrb[0].mxu0
  %v584 = vadd.f32 0.0, %v583
  %v585 = vpop.f32.mrb[0].mxu0
  %586 = vmatprep.mubr.bf16.mxu0 %v275
  %587 = vmatmul.mubr.bf16.gmra.mrb[0].mxu0 %v274
  %v588 = vpop.f32.mrb[0].mxu0
  %v589 = vadd.f32 0.0, %v588
  %v590 = vpop.f32.mrb[0].mxu0
  %v591 = vpop.f32.mrb[0].mxu0
  %v592 = vadd.f32 0.0, %v591
  %v593 = vpop.f32.mrb[0].mxu0
  %594 = vmatprep.mubr.bf16.mxu0 %v279
  %595 = vmatmul.mubr.bf16.gmra.mrb[0].mxu0 %v278
  %v596 = vpop.f32.mrb[0].mxu0
  %v597 = vadd.f32 0.0, %v596
  %v598 = vpop.f32.mrb[0].mxu0
  %v599 = vpop.f32.mrb[0].mxu0
  %v600 = vadd.f32 0.0, %v599
  %v601 = vpop.f32.mrb[0].mxu0
  %602 = vdwg.mxu0
  %603 = vmatprep.subr.bf16.mxu0 0
  %604 = vmatpush1.bf16.msra.mxu0 %v458
  %605 = vmatprep.subr.bf16.mxu0 0
  %606 = vmatpush1.bf16.msra.mxu0 %v459
  %607 = vmatprep.subr.bf16.mxu0 0
  %608 = vmatpush1.bf16.msra.mxu0 %v460
  %609 = vmatprep.subr.bf16.mxu0 0
  %610 = vmatpush1.bf16.msra.mxu0 %v461
  %611 = vmatprep.subr.bf16.mxu0 0
  %612 = vmatpush1.bf16.msra.mxu0 %v462
  %613 = vmatprep.subr.bf16.mxu0 0
  %614 = vmatpush1.bf16.msra.mxu0 %v463
  %615 = vmatprep.subr.bf16.mxu0 0
  %616 = vmatpush1.bf16.msra.mxu0 %v464
  %617 = vmatprep.subr.bf16.mxu0 0
  %618 = vmatpush1.bf16.msra.mxu0 %v465
  %619 = vmatprep.subr.bf16.mxu0 0
  %620 = vmatpush1.bf16.msra.mxu0 %v466
  %621 = vmatprep.subr.bf16.mxu0 0
  %622 = vmatpush1.bf16.msra.mxu0 %v467
  %623 = vmatprep.subr.bf16.mxu0 0
  %624 = vmatpush1.bf16.msra.mxu0 %v468
  %625 = vmatprep.subr.bf16.mxu0 0
  %626 = vmatpush1.bf16.msra.mxu0 %v469
  %627 = vmatprep.subr.bf16.mxu0 0
  %628 = vmatpush1.bf16.msra.mxu0 %v470
  %629 = vmatprep.subr.bf16.mxu0 0
  %630 = vmatpush1.bf16.msra.mxu0 %v471
  %631 = vmatprep.subr.bf16.mxu0 0
  %632 = vmatpush1.bf16.msra.mxu0 %v472
  %633 = vmatprep.subr.bf16.mxu0 0
  %634 = vmatpush1.bf16.msra.mxu0 %v473
  %635 = vmatprep.mubr.bf16.mxu0 %v253
  %636 = vmatmul.mubr.bf16.gmra.mrb[0].mxu0 %v252
  %v637 = vpop.f32.mrb[0].mxu0
  %v638 = vadd.f32 %v541, %v637
  %v639 = vpop.f32.mrb[0].mxu0
  %v640 = vpop.f32.mrb[0].mxu0
  %v641 = vadd.f32 %v544, %v640
  %v642 = vpop.f32.mrb[0].mxu0
  %643 = vmatprep.mubr.bf16.mxu0 %v257
  %644 = vmatmul.mubr.bf16.gmra.mrb[0].mxu0 %v256
  %v645 = vpop.f32.mrb[0].mxu0
  %v646 = vadd.f32 %v549, %v645
  %v647 = vpop.f32.mrb[0].mxu0
  %v648 = vpop.f32.mrb[0].mxu0
  %v649 = vadd.f32 %v552, %v648
  %v650 = vpop.f32.mrb[0].mxu0
  %651 = vmatprep.mubr.bf16.mxu0 %v261
  %652 = vmatmul.mubr.bf16.gmra.mrb[0].mxu0 %v260
  %v653 = vpop.f32.mrb[0].mxu0
  %v654 = vadd.f32 %v557, %v653
  %v655 = vpop.f32.mrb[0].mxu0
  %v656 = vpop.f32.mrb[0].mxu0
  %v657 = vadd.f32 %v560, %v656
  %v658 = vpop.f32.mrb[0].mxu0
  %659 = vmatprep.mubr.bf16.mxu0 %v265
  %660 = vmatmul.mubr.bf16.gmra.mrb[0].mxu0 %v264
  %v661 = vpop.f32.mrb[0].mxu0
  %v662 = vadd.f32 %v565, %v661
  %v663 = vpop.f32.mrb[0].mxu0
  %v664 = vpop.f32.mrb[0].mxu0
  %v665 = vadd.f32 %v568, %v664
  %v666 = vpop.f32.mrb[0].mxu0
  %667 = vmatprep.mubr.bf16.mxu0 %v269
  %668 = vmatmul.mubr.bf16.gmra.mrb[0].mxu0 %v268
  %v669 = vpop.f32.mrb[0].mxu0
  %v670 = vadd.f32 %v573, %v669
  %v671 = vpop.f32.mrb[0].mxu0
  %v672 = vpop.f32.mrb[0].mxu0
  %v673 = vadd.f32 %v576, %v672
  %v674 = vpop.f32.mrb[0].mxu0
  %675 = vmatprep.mubr.bf16.mxu0 %v273
  %676 = vmatmul.mubr.bf16.gmra.mrb[0].mxu0 %v272
  %v677 = vpop.f32.mrb[0].mxu0
  %v678 = vadd.f32 %v581, %v677
  %v679 = vpop.f32.mrb[0].mxu0
  %v680 = vpop.f32.mrb[0].mxu0
  %v681 = vadd.f32 %v584, %v680
  %v682 = vpop.f32.mrb[0].mxu0
  %683 = vmatprep.mubr.bf16.mxu0 %v277
  %684 = vmatmul.mubr.bf16.gmra.mrb[0].mxu0 %v276
  %v685 = vpop.f32.mrb[0].mxu0
  %v686 = vadd.f32 %v589, %v685
  %v687 = vpop.f32.mrb[0].mxu0
  %v688 = vpop.f32.mrb[0].mxu0
  %v689 = vadd.f32 %v592, %v688
  %v690 = vpop.f32.mrb[0].mxu0
  %691 = vmatprep.mubr.bf16.mxu0 %v281
  %692 = vmatmul.mubr.bf16.gmra.mrb[0].mxu0 %v280
  %v693 = vpop.f32.mrb[0].mxu0
  %v694 = vadd.f32 %v597, %v693
  %v695 = vpop.f32.mrb[0].mxu0
  %v696 = vpop.f32.mrb[0].mxu0
  %v697 = vadd.f32 %v600, %v696
  %v698 = vpop.f32.mrb[0].mxu0
  %699 = vdwg.mxu0
  %v700 = vadd.f32 %v42, %v638
  %v701 = vadd.f32 %v43, %v641
  %v702 = vadd.f32 %v44, %v646
  %v703 = vadd.f32 %v45, %v649
  %v704 = vadd.f32 %v46, %v654
  %v705 = vadd.f32 %v47, %v657
  %v706 = vadd.f32 %v48, %v662
  %v707 = vadd.f32 %v49, %v665
  %v708 = vadd.f32 %v50, %v670
  %v709 = vadd.f32 %v51, %v673
  %v710 = vadd.f32 %v52, %v678
  %v711 = vadd.f32 %v53, %v681
  %v712 = vadd.f32 %v54, %v686
  %v713 = vadd.f32 %v55, %v689
  %v714 = vadd.f32 %v56, %v694
  %v715 = vadd.f32 %v57, %v697
  %716 = vst [vmem:[#allocation2] sm:$0xff] %v700
  %717 = vst [vmem:[#allocation2 + $0x8] sm:$0xff] %v701
  %718 = vst [vmem:[#allocation2 + $0x10] sm:$0xff] %v702
  %719 = vst [vmem:[#allocation2 + $0x18] sm:$0xff] %v703
  %720 = vst [vmem:[#allocation2 + $0x20] sm:$0xff] %v704
  %721 = vst [vmem:[#allocation2 + $0x28] sm:$0xff] %v705
  %722 = vst [vmem:[#allocation2 + $0x30] sm:$0xff] %v706
  %723 = vst [vmem:[#allocation2 + $0x38] sm:$0xff] %v707
  %724 = vst [vmem:[#allocation2 + $0x40] sm:$0xff] %v708
  %725 = vst [vmem:[#allocation2 + $0x48] sm:$0xff] %v709
  %726 = vst [vmem:[#allocation2 + $0x50] sm:$0xff] %v710
  %727 = vst [vmem:[#allocation2 + $0x58] sm:$0xff] %v711
  %728 = vst [vmem:[#allocation2 + $0x60] sm:$0xff] %v712
  %729 = vst [vmem:[#allocation2 + $0x68] sm:$0xff] %v713
  %730 = vst [vmem:[#allocation2 + $0x70] sm:$0xff] %v714
  %731 = vst [vmem:[#allocation2 + $0x78] sm:$0xff] %v715
  // Predicated region
  $region18: #{forward.68} parent=0 // pred_check
    %p732 = pneg %p15
  $region19: #{forward.68} parent=0 // pred_check_branch
    %734 = sbr.rel (%p732) target = $region21
  $region20: #{forward.68} parent=0 // pred_region
    %v735 = vld [vmem:[#allocation2] sm:$0xff]
    %v736 = vld [vmem:[#allocation2 + $0x8] sm:$0xff]
    %v737 = vld [vmem:[#allocation2 + $0x10] sm:$0xff]
    %v738 = vld [vmem:[#allocation2 + $0x18] sm:$0xff]
    %v739 = vld [vmem:[#allocation2 + $0x20] sm:$0xff]
    %v740 = vld [vmem:[#allocation2 + $0x28] sm:$0xff]
    %v741 = vld [vmem:[#allocation2 + $0x30] sm:$0xff]
    %v742 = vld [vmem:[#allocation2 + $0x38] sm:$0xff]
    %v743 = vld [vmem:[#allocation2 + $0x40] sm:$0xff]
    %v744 = vld [vmem:[#allocation2 + $0x48] sm:$0xff]
    %v745 = vld [vmem:[#allocation2 + $0x50] sm:$0xff]
    %v746 = vld [vmem:[#allocation2 + $0x58] sm:$0xff]
    %v747 = vld [vmem:[#allocation2 + $0x60] sm:$0xff]
    %v748 = vld [vmem:[#allocation2 + $0x68] sm:$0xff]
    %v749 = vld [vmem:[#allocation2 + $0x70] sm:$0xff]
    %v750 = vld [vmem:[#allocation2 + $0x78] sm:$0xff]
    %v751 = vld [vmem:[%s3] sm:$0x1]
    %v752 = vadd.f32 %v735, %v736
    %v753 = vadd.f32 %v752, %v737
    %v754 = vadd.f32 %v753, %v738
    %v755 = vadd.f32 %v754, %v739
    %v756 = vadd.f32 %v755, %v740
    %v757 = vadd.f32 %v756, %v741
    %v758 = vadd.f32 %v757, %v742
    %v759 = vadd.f32 %v758, %v743
    %v760 = vadd.f32 %v759, %v744
    %v761 = vadd.f32 %v760, %v745
    %v762 = vadd.f32 %v761, %v746
    %v763 = vadd.f32 %v762, %v747
    %v764 = vadd.f32 %v763, %v748
    %v765 = vadd.f32 %v764, %v749
    %v766 = vadd.f32 %v765, %v750
    %v767 = vrot.slane %v766, 4
    %v768 = vadd.f32 %v766, %v767
    %v769 = vrot.slane %v768, 2
    %v770 = vadd.f32 %v768, %v769
    %v771 = vrot.slane %v770, 1
    %v772 = vadd.f32 %v770, %v771
    %v773 = vadd.f32 %v751, %v772
    %774 = vst [vmem:[%s3] sm:$0x1] %v773
    %v775 = vld [vmem:[%s4] sm:$0x1]
    %v776 = vmul.f32 %v735, %v735
    %v777 = vmul.f32 %v736, %v736
    %v778 = vmul.f32 %v737, %v737
    %v779 = vmul.f32 %v738, %v738
    %v780 = vmul.f32 %v739, %v739
    %v781 = vmul.f32 %v740, %v740
    %v782 = vmul.f32 %v741, %v741
    %v783 = vmul.f32 %v742, %v742
    %v784 = vmul.f32 %v743, %v743
    %v785 = vmul.f32 %v744, %v744
    %v786 = vmul.f32 %v745, %v745
    %v787 = vmul.f32 %v746, %v746
    %v788 = vmul.f32 %v747, %v747
    %v789 = vmul.f32 %v748, %v748
    %v790 = vmul.f32 %v749, %v749
    %v791 = vmul.f32 %v750, %v750
    %v792 = vadd.f32 %v776, %v777
    %v793 = vadd.f32 %v792, %v778
    %v794 = vadd.f32 %v793, %v779
    %v795 = vadd.f32 %v794, %v780
    %v796 = vadd.f32 %v795, %v781
    %v797 = vadd.f32 %v796, %v782
    %v798 = vadd.f32 %v797, %v783
    %v799 = vadd.f32 %v798, %v784
    %v800 = vadd.f32 %v799, %v785
    %v801 = vadd.f32 %v800, %v786
    %v802 = vadd.f32 %v801, %v787
    %v803 = vadd.f32 %v802, %v788
    %v804 = vadd.f32 %v803, %v789
    %v805 = vadd.f32 %v804, %v790
    %v806 = vadd.f32 %v805, %v791
    %v807 = vrot.slane %v806, 4
    %v808 = vadd.f32 %v806, %v807
    %v809 = vrot.slane %v808, 2
    %v810 = vadd.f32 %v808, %v809
    %v811 = vrot.slane %v810, 1
    %v812 = vadd.f32 %v810, %v811
    %v813 = vadd.f32 %v775, %v812
    %814 = vst [vmem:[%s4] sm:$0x1] %v813
    %815 = vst [vmem:[%s2] sm:$0xff] %v735
    %816 = vst [vmem:[%s2 + $0x8] sm:$0xff] %v736
    %817 = vst [vmem:[%s2 + $0x10] sm:$0xff] %v737
    %818 = vst [vmem:[%s2 + $0x18] sm:$0xff] %v738
    %819 = vst [vmem:[%s2 + $0x20] sm:$0xff] %v739
    %820 = vst [vmem:[%s2 + $0x28] sm:$0xff] %v740
    %821 = vst [vmem:[%s2 + $0x30] sm:$0xff] %v741
    %822 = vst [vmem:[%s2 + $0x38] sm:$0xff] %v742
    %823 = vst [vmem:[%s2 + $0x40] sm:$0xff] %v743
    %824 = vst [vmem:[%s2 + $0x48] sm:$0xff] %v744
    %825 = vst [vmem:[%s2 + $0x50] sm:$0xff] %v745
    %826 = vst [vmem:[%s2 + $0x58] sm:$0xff] %v746
    %827 = vst [vmem:[%s2 + $0x60] sm:$0xff] %v747
    %828 = vst [vmem:[%s2 + $0x68] sm:$0xff] %v748
    %829 = vst [vmem:[%s2 + $0x70] sm:$0xff] %v749
    %830 = vst [vmem:[%s2 + $0x78] sm:$0xff] %v750
  $region21: #{forward.68} parent=0 // pred_fallthru
    _
  // Predicated region
  $region22: #{forward.68} parent=0 // pred_check
    _
  $region23: #{forward.68} parent=0 // pred_check_branch
    %832 = sbr.rel (0) target = $region25
  $region24: #{forward.68} parent=0 // pred_region
    _
  $region25: #{forward.68} parent=0 // pred_fallthru
    _
  // Predicated region
  $region26: #{forward.68} parent=0 // pred_check
    _
  $region27: #{forward.68} parent=0 // pred_check_branch
    %834 = sbr.rel (0) target = $region29
  $region28: #{forward.68} parent=0 // pred_region
    _
  $region29: #{forward.68} parent=0 // pred_fallthru
    _
  // Predicated region
  $region30: #{forward.68} parent=0 // pred_check
    _
  $region31: #{forward.68} parent=0 // pred_check_branch
    %836 = sbr.rel (0) target = $region33
  $region32: #{forward.68} parent=0 // pred_region
    _
  $region33: #{forward.68} parent=0 // pred_fallthru
    _
  // Predicated region
  $region34: #{forward.68} parent=0 // pred_check
    _
  $region35: #{forward.68} parent=0 // pred_check_branch
    %838 = sbr.rel (0) target = $region37
  $region36: #{forward.68} parent=0 // pred_region
    _
  $region37: #{forward.68} parent=0 // pred_fallthru
    _
  // Predicated region
  $region38: #{forward.68} parent=0 // pred_check
    _
  $region39: #{forward.68} parent=0 // pred_check_branch
    %840 = sbr.rel (0) target = $region41
  $region40: #{forward.68} parent=0 // pred_region
    _
  $region41: #{forward.68} parent=0 // pred_fallthru
    _
  // Predicated region
  $region42: #{forward.68} parent=0 // pred_check
    _
  $region43: #{forward.68} parent=0 // pred_check_branch
    %842 = sbr.rel (0) target = $region45
  $region44: #{forward.68} parent=0 // pred_region
    _
  $region45: #{forward.68} parent=0 // pred_fallthru
    _

// kernel: forward.71
$region0: #{forward.71}
  #allocation0 [shape = 'u32[]', space=smem, size = 0x4, offset = 0x4, fixed_abs, tag = 'smem constant byte address 0x4 - core index']
  #allocation1 [shape = 'u32[144,128]{1,0:T(1,128)}', space=vmem, size = 0x12000, scoped, tag = 'internal scratch']
  %s0 = inlined_call_operand.vmem [shape: f32[16,128], index: 0, kind: input, shape index: {}]
  %s1 = inlined_call_operand.vmem [shape: f32[1,128], index: 1, kind: input, shape index: {}]
  %s2 = inlined_call_operand.vmem [shape: f32[1,128], index: 2, kind: input, shape index: {}]
  %s3 = inlined_call_operand.vmem [shape: bf16[16,128], index: 3, kind: output, shape index: {}]
  %s4 = sld [smem:[#allocation0]]
  $region22: #{forward.71} parent=0
    _
  %s6 = ssub.s32 1, %s4
  %s7 = scalar_select 0, %s6, %s4
  // Predicated region
  $region2: #{forward.71} parent=0 // pred_check
    _
  $region3: #{forward.71} parent=0 // pred_check_branch
    %9 = sbr.rel (0) target = $region5
  $region4: #{forward.71} parent=0 // pred_region
    _
  $region5: #{forward.71} parent=0 // pred_fallthru
    _
  // Predicated region
  $region6: #{forward.71} parent=0 // pred_check
    _
  $region7: #{forward.71} parent=0 // pred_check_branch
    %11 = sbr.rel (0) target = $region9
  $region8: #{forward.71} parent=0 // pred_region
    _
  $region9: #{forward.71} parent=0 // pred_fallthru
    _
  // Predicated region
  $region10: #{forward.71} parent=0 // pred_check
    _
  $region11: #{forward.71} parent=0 // pred_check_branch
    %13 = sbr.rel (0) target = $region13
  $region12: #{forward.71} parent=0 // pred_region
    _
  $region13: #{forward.71} parent=0 // pred_fallthru
    _
  %v14 = vld [vmem:[%s0] sm:$0xff]
  %v15 = vld [vmem:[%s0 + $0x8] sm:$0xff]
  %v16 = vld [vmem:[%s1] sm:$0x1]
  %v18 = vlaneseq
  %v19 = vshrl.u32 %v18, 7
  %v20 = vsub.s32 0, %v19
  %v21 = vrot.slane %v16, %v20
  %v23 = vmul.f32 %v14, %v21
  %v24 = vmul.f32 %v15, %v21
  %v25 = vld [vmem:[%s2] sm:$0x1]
  %v27 = vlaneseq
  %v28 = vshrl.u32 %v27, 7
  %v29 = vsub.s32 0, %v28
  %v30 = vrot.slane %v25, %v29
  %v32 = vadd.f32 %v23, %v30
  %v33 = vadd.f32 %v24, %v30
  %v34 = vmax.f32 %v32, 0.0
  %v35 = vmax.f32 %v33, 0.0
  %v36 = vpack.c.bf16 %v35, %v34
  %v38 = vunpack.c.l.b16 %v36
  %v39 = vunpack.c.h.b16 %v36
  %v40 = vpack.c.b16 %v38, %v38
  %v41 = vpack.c.b16 %v39, %v39
  %44 = vst [vmem:[%s3] sm:$0xf] %v40
  %45 = vst [vmem:[%s3 + $0x4] sm:$0xf] %v41
  // Predicated region
  $region14: #{forward.71} parent=0 // pred_check
    _
  $region15: #{forward.71} parent=0 // pred_check_branch
    %47 = sbr.rel (0) target = $region17
  $region16: #{forward.71} parent=0 // pred_region
    _
  $region17: #{forward.71} parent=0 // pred_fallthru
    _
  // Predicated region
  $region18: #{forward.71} parent=0 // pred_check
    _
  $region19: #{forward.71} parent=0 // pred_check_branch
    %49 = sbr.rel (0) target = $region21
  $region20: #{forward.71} parent=0 // pred_region
    _
  $region21: #{forward.71} parent=0 // pred_fallthru
    _

// kernel: forward.74
$region0: #{forward.74}
  #allocation0 [shape = 'u32[]', space=smem, size = 0x4, offset = 0x4, fixed_abs, tag = 'smem constant byte address 0x4 - core index']
  #allocation1 [shape = 'u32[144,128]{1,0:T(1,128)}', space=vmem, size = 0x12000, scoped, tag = 'internal scratch']
  #allocation2 [shape = 'f32[8,128]{1,0:T(8,128)}', space=vmem, size = 0x1000, scoped, tag = 'scratch operand']
  %s0 = inlined_call_operand.vmem [shape: bf16[8,64], index: 0, kind: input, shape index: {}]
  %s1 = inlined_call_operand.vmem [shape: bf16[64,128], index: 1, kind: input, shape index: {}]
  %s2 = inlined_call_operand.vmem [shape: f32[1,128], index: 2, kind: input, shape index: {}]
  %s3 = inlined_call_operand.vmem [shape: f32[8,128], index: 3, kind: output, shape index: {}]
  %s4 = sld [smem:[#allocation0]]
  $region30: #{forward.74} parent=0
    _
  %s6 = ssub.s32 1, %s4
  %s7 = scalar_select 0, %s6, %s4
  // Predicated region
  $region2: #{forward.74} parent=0 // pred_check
    _
  $region3: #{forward.74} parent=0 // pred_check_branch
    %9 = sbr.rel (0) target = $region5
  $region4: #{forward.74} parent=0 // pred_region
    _
  $region5: #{forward.74} parent=0 // pred_fallthru
    _
  // Predicated region
  $region6: #{forward.74} parent=0 // pred_check
    _
  $region7: #{forward.74} parent=0 // pred_check_branch
    %11 = sbr.rel (0) target = $region9
  $region8: #{forward.74} parent=0 // pred_region
    _
  $region9: #{forward.74} parent=0 // pred_fallthru
    _
  // Predicated region
  $region10: #{forward.74} parent=0 // pred_check
    _
  $region11: #{forward.74} parent=0 // pred_check_branch
    %13 = sbr.rel (0) target = $region13
  $region12: #{forward.74} parent=0 // pred_region
    _
  $region13: #{forward.74} parent=0 // pred_fallthru
    _
  %p15 = scmp.eq.s32.totalorder 0, 0
  // Predicated region
  $region14: #{forward.74} parent=0 // pred_check
    %p16 = pneg %p15
  $region15: #{forward.74} parent=0 // pred_check_branch
    %18 = sbr.rel (%p16) target = $region17
  $region16: #{forward.74} parent=0 // pred_region
    %19 = vst [vmem:[#allocation2] sm:$0xff] 0.0
  $region17: #{forward.74} parent=0 // pred_fallthru
    _
  %v20 = vld [vmem:[#allocation2] sm:$0xff]
  %v21 = vld [vmem:[%s0] sm:$0xf]
  %v22 = vld [vmem:[%s1] sm:$0xf]
  %v23 = vld [vmem:[%s1 + $0x4] sm:$0xf]
  %v24 = vld [vmem:[%s1 + $0x8] sm:$0xf]
  %v25 = vld [vmem:[%s1 + $0xc] sm:$0xf]
  %v26 = vld [vmem:[%s1 + $0x10] sm:$0xf]
  %v27 = vld [vmem:[%s1 + $0x14] sm:$0xf]
  %v28 = vld [vmem:[%s1 + $0x18] sm:$0xf]
  %v29 = vld [vmem:[%s1 + $0x1c] sm:$0xf]
  %v38 = vunpack.c.l.b16 %v22
  %v39 = vunpack.c.l.b16 %v23
  %v40 = vunpack.c.l.b16 %v24
  %v41 = vunpack.c.l.b16 %v25
  %v42 = vunpack.c.l.b16 %v26
  %v43 = vunpack.c.l.b16 %v27
  %v44 = vunpack.c.l.b16 %v28
  %v45 = vunpack.c.l.b16 %v29
  %v46 = vpack.c.b16 %v39, %v38
  %v47 = vpack.c.b16 %v41, %v40
  %v48 = vpack.c.b16 %v43, %v42
  %v49 = vpack.c.b16 %v45, %v44
  %vm54 = vcmask 523264
  %v56 = vsel %vm54, %v21, 0
  %58 = vmatprep.subr.bf16.mxu0 0
  %59 = vmatpush1.bf16.msra.mxu0 %v46
  %60 = vmatprep.subr.bf16.mxu0 0
  %61 = vmatpush1.bf16.msra.mxu0 %v47
  %62 = vmatprep.subr.bf16.mxu0 0
  %63 = vmatpush1.bf16.msra.mxu0 %v48
  %64 = vmatprep.subr.bf16.mxu0 0
  %65 = vmatpush1.bf16.msra.mxu0 %v49
  %66 = vmatprep.subr.bf16.mxu0 0
  %67 = vmatpush1.bf16.msra.mxu0 0
  %68 = vmatprep.subr.bf16.mxu0 0
  %69 = vmatpush1.bf16.msra.mxu0 0
  %70 = vmatprep.subr.bf16.mxu0 0
  %71 = vmatpush1.bf16.msra.mxu0 0
  %72 = vmatprep.subr.bf16.mxu0 0
  %73 = vmatpush1.bf16.msra.mxu0 0
  %74 = vmatprep.subr.bf16.mxu0 0
  %75 = vmatpush1.bf16.msra.mxu0 0
  %76 = vmatprep.subr.bf16.mxu0 0
  %77 = vmatpush1.bf16.msra.mxu0 0
  %78 = vmatprep.subr.bf16.mxu0 0
  %79 = vmatpush1.bf16.msra.mxu0 0
  %80 = vmatprep.subr.bf16.mxu0 0
  %81 = vmatpush1.bf16.msra.mxu0 0
  %82 = vmatprep.subr.bf16.mxu0 0
  %83 = vmatpush1.bf16.msra.mxu0 0
  %84 = vmatprep.subr.bf16.mxu0 0
  %85 = vmatpush1.bf16.msra.mxu0 0
  %86 = vmatprep.subr.bf16.mxu0 0
  %87 = vmatpush1.bf16.msra.mxu0 0
  %88 = vmatprep.subr.bf16.mxu0 0
  %89 = vmatpush1.bf16.msra.mxu0 0
  %90 = vmatprep.mubr.bf16.mxu0 0
  %91 = vmatmul.mubr.bf16.gmra.mrb[0].mxu0 %v56
  %v92 = vpop.f32.mrb[0].mxu0
  %v93 = vadd.f32 0.0, %v92
  %v94 = vpop.f32.mrb[0].mxu0
  %v95 = vpop.f32.mrb[0].mxu0
  %v96 = vpop.f32.mrb[0].mxu0
  %97 = vdwg.mxu0
  %v98 = vadd.f32 %v20, %v93
  %99 = vst [vmem:[#allocation2] sm:$0xff] %v98
  // Predicated region
  $region18: #{forward.74} parent=0 // pred_check
    %p100 = pneg %p15
  $region19: #{forward.74} parent=0 // pred_check_branch
    %102 = sbr.rel (%p100) target = $region21
  $region20: #{forward.74} parent=0 // pred_region
    %v103 = vld [vmem:[#allocation2] sm:$0xff]
    %v104 = vld [vmem:[%s2] sm:$0x1]
    %v106 = vlaneseq
    %v107 = vshrl.u32 %v106, 7
    %v108 = vsub.s32 0, %v107
    %v109 = vrot.slane %v104, %v108
    %v111 = vadd.f32 %v103, %v109
    %v112 = vmax.f32 %v111, 0.0
    %113 = vst [vmem:[%s3] sm:$0xff] %v112
  $region21: #{forward.74} parent=0 // pred_fallthru
    _
  // Predicated region
  $region22: #{forward.74} parent=0 // pred_check
    _
  $region23: #{forward.74} parent=0 // pred_check_branch
    %115 = sbr.rel (0) target = $region25
  $region24: #{forward.74} parent=0 // pred_region
    _
  $region25: #{forward.74} parent=0 // pred_fallthru
    _
  // Predicated region
  $region26: #{forward.74} parent=0 // pred_check
    _
  $region27: #{forward.74} parent=0 // pred_check_branch
    %117 = sbr.rel (0) target = $region29
  $region28: #{forward.74} parent=0 // pred_region
    _
  $region29: #{forward.74} parent=0 // pred_fallthru
    _

// kernel: forward.73
$region0: #{forward.73}
  #allocation0 [shape = 'u32[]', space=smem, size = 0x4, offset = 0x4, fixed_abs, tag = 'smem constant byte address 0x4 - core index']
  #allocation1 [shape = 'u32[144,128]{1,0:T(1,128)}', space=vmem, size = 0x12000, scoped, tag = 'internal scratch']
  %s0 = inlined_call_operand.vmem [shape: f32[8,128], index: 0, kind: input, shape index: {}]
  %s1 = inlined_call_operand.vmem [shape: f32[1,128], index: 1, kind: input, shape index: {}]
  %s2 = inlined_call_operand.vmem [shape: f32[1,128], index: 2, kind: input, shape index: {}]
  %s3 = inlined_call_operand.vmem [shape: bf16[8,128], index: 3, kind: output, shape index: {}]
  %s4 = sld [smem:[#allocation0]]
  $region22: #{forward.73} parent=0
    _
  %s6 = ssub.s32 1, %s4
  %s7 = scalar_select 0, %s6, %s4
  // Predicated region
  $region2: #{forward.73} parent=0 // pred_check
    _
  $region3: #{forward.73} parent=0 // pred_check_branch
    %9 = sbr.rel (0) target = $region5
  $region4: #{forward.73} parent=0 // pred_region
    _
  $region5: #{forward.73} parent=0 // pred_fallthru
    _
  // Predicated region
  $region6: #{forward.73} parent=0 // pred_check
    _
  $region7: #{forward.73} parent=0 // pred_check_branch
    %11 = sbr.rel (0) target = $region9
  $region8: #{forward.73} parent=0 // pred_region
    _
  $region9: #{forward.73} parent=0 // pred_fallthru
    _
  // Predicated region
  $region10: #{forward.73} parent=0 // pred_check
    _
  $region11: #{forward.73} parent=0 // pred_check_branch
    %13 = sbr.rel (0) target = $region13
  $region12: #{forward.73} parent=0 // pred_region
    _
  $region13: #{forward.73} parent=0 // pred_fallthru
    _
  %v14 = vld [vmem:[%s0] sm:$0xff]
  %v15 = vld [vmem:[%s1] sm:$0x1]
  %v17 = vlaneseq
  %v18 = vshrl.u32 %v17, 7
  %v19 = vsub.s32 0, %v18
  %v20 = vrot.slane %v15, %v19
  %v22 = vmul.f32 %v14, %v20
  %v23 = vld [vmem:[%s2] sm:$0x1]
  %v25 = vlaneseq
  %v26 = vshrl.u32 %v25, 7
  %v27 = vsub.s32 0, %v26
  %v28 = vrot.slane %v23, %v27
  %v30 = vadd.f32 %v22, %v28
  %v31 = vmax.f32 %v30, 0.0
  %v32 = vpack.c.bf16 %v31, %v31
  %33 = vst [vmem:[%s3] sm:$0xf] %v32
  // Predicated region
  $region14: #{forward.73} parent=0 // pred_check
    _
  $region15: #{forward.73} parent=0 // pred_check_branch
    %35 = sbr.rel (0) target = $region17
  $region16: #{forward.73} parent=0 // pred_region
    _
  $region17: #{forward.73} parent=0 // pred_fallthru
    _
  // Predicated region
  $region18: #{forward.73} parent=0 // pred_check
    _
  $region19: #{forward.73} parent=0 // pred_check_branch
    %37 = sbr.rel (0) target = $region21
  $region20: #{forward.73} parent=0 // pred_region
    _
  $region21: #{forward.73} parent=0 // pred_fallthru
    _

// kernel: forward.70
$region0: #{forward.70}
  #allocation0 [shape = 'u32[]', space=smem, size = 0x4, offset = 0x4, fixed_abs, tag = 'smem constant byte address 0x4 - core index']
  #allocation1 [shape = 'u32[144,128]{1,0:T(1,128)}', space=vmem, size = 0x12000, scoped, tag = 'internal scratch']
  #allocation2 [shape = 'f32[16,128]{1,0:T(8,128)}', space=vmem, size = 0x2000, scoped, tag = 'scratch operand']
  %s0 = inlined_call_operand.vmem [shape: bf16[16,1024], index: 0, kind: input, shape index: {}]
  %s1 = inlined_call_operand.vmem [shape: bf16[1024,128], index: 1, kind: input, shape index: {}]
  %s2 = inlined_call_operand.vmem [shape: f32[16,128], index: 2, kind: output, shape index: {0}]
  %s3 = inlined_call_operand.vmem [shape: f32[1,128], index: 3, kind: output, shape index: {1}]
  %s4 = inlined_call_operand.vmem [shape: f32[1,128], index: 4, kind: output, shape index: {2}]
  %5 = xla_tuple %s2, %s3, %s4
  %s6 = sld [smem:[#allocation0]]
  $region92: #{forward.70} parent=0
    _
  %s8 = ssub.s32 1, %s6
  %s9 = scalar_select 0, %s8, %s6
  $region1: #{forward.70} parent=0
    #allocation3 [shape = 'u8[32768]{0}', space=vmem, size = 0x8000, scoped, tag = 'input window, operand 0']
    loop: start=0, step=1, limit=4
    $region2: #{forward.70} parent=1 // loop_pre_header
      _
    $region3: #{forward.70} parent=1 // loop_header
      %s11 = sphi 0, %s15
      %p12 = scmp.ge.s32.totalorder %s11, 4
      %s18 = sphi 0, %s37
      %s19 = sphi 0, %s33
      %s20 = sphi 0, %s29
      %s21 = sphi 0, %s18
      %s22 = sphi 0, %s19
      %s23 = sphi 0, %s20
      %s24 = sphi 0, %s21
      %s25 = sphi 0, %s22
      %s26 = sphi 0, %s23
      %s42 = sphi 0, %s44
      %s45 = sphi 0, %s42
      %s46 = sphi 0, %s45
      %s62 = sphi 0, %s46
      %s70 = sphi 0, %s72
      %s73 = sphi 0, %s70
      %s74 = sphi 0, %s73
      %s90 = sphi 0, %s74
      %s98 = sphi 0, %s100
      %s101 = sphi 0, %s98
      %s102 = sphi 0, %s101
      %s118 = sphi 0, %s102
      %s124 = sphi 0, %s126
      %s127 = sphi 0, %s124
      %s128 = sphi 0, %s127
      %s144 = sphi 0, %s128
      %s150 = sphi 0, %s152
      %s153 = sphi 0, %s150
      %s154 = sphi 0, %s153
      %s170 = sphi 0, %s154
    $region4: #{forward.70} parent=1 // loop_header_branch
      %14 = sbr.rel (%p12) target = $region8
    $region5: #{forward.70} parent=1 // loop_body
      %s16 = ssub.s32 %s11, 1
      %s17 = ssub.s32 %s11, 2
      %s27 = sadd.s32 1, %s20
      %p28 = scmp.ge.s32.totalorder %s27, 2
      %s29 = scalar_select %p28, 0, %s27
      %s30 = sadd.s32 1, %s19
      %s31 = scalar_select %p28, %s30, %s19
      %p32 = scmp.ge.s32.totalorder %s31, 1
      %s33 = scalar_select %p32, 0, %s31
      %s34 = sadd.s32 1, %s18
      %s35 = scalar_select %p32, %s34, %s18
      %p36 = scmp.ge.s32.totalorder %s35, 1
      %s37 = scalar_select %p36, 0, %s35
      %s38 = ssub.s32 %s19, %s33
      %s39 = ssub.s32 %s20, %s29
      %s40 = sor.u32 %s38, %s39
      %p41 = scmp.eq.s32.totalorder %s40, 0
      %s43 = sadd.s32 %s42, 1
      %s44 = scalar_select %p41, %s42, %s43
      %p47 = pneg %p41
      %p48 = scmp.eq.s32.totalorder %s11, 1
      %p49 = por %p47, %p48
      %p50 = scmp.ne.s32.totalorder %s42, %s45
      %p51 = scmp.eq.s32.totalorder %s11, 0
      %p52 = por %p50, %p51
      %p53 = scmp.ne.s32.totalorder %s42, %s45
      %p54 = scmp.eq.s32.totalorder %s16, 1
      %p55 = por %p53, %p54
      %p56 = scmp.ne.s32.totalorder %s45, %s46
      %p57 = scmp.eq.s32.totalorder %s16, 0
      %p58 = por %p56, %p57
      %p59 = scmp.ne.s32.totalorder %s45, %s46
      %p60 = scmp.eq.s32.totalorder %s17, 1
      %p61 = por %p59, %p60
      %p63 = scmp.ne.s32.totalorder %s46, %s62
      %p64 = scmp.eq.s32.totalorder %s17, 0
      %p65 = por %p63, %p64
      %s66 = ssub.s32 %s20, %s29
      %s67 = ssub.s32 %s18, %s37
      %s68 = sor.u32 %s66, %s67
      %p69 = scmp.eq.s32.totalorder %s68, 0
      %s71 = sadd.s32 %s70, 1
      %s72 = scalar_select %p69, %s70, %s71
      %p75 = pneg %p69
      %p76 = scmp.eq.s32.totalorder %s11, 1
      %p77 = por %p75, %p76
      %p78 = scmp.ne.s32.totalorder %s70, %s73
      %p79 = scmp.eq.s32.totalorder %s11, 0
      %p80 = por %p78, %p79
      %p81 = scmp.ne.s32.totalorder %s70, %s73
      %p82 = scmp.eq.s32.totalorder %s16, 1
      %p83 = por %p81, %p82
      %p84 = scmp.ne.s32.totalorder %s73, %s74
      %p85 = scmp.eq.s32.totalorder %s16, 0
      %p86 = por %p84, %p85
      %p87 = scmp.ne.s32.totalorder %s73, %s74
      %p88 = scmp.eq.s32.totalorder %s17, 1
      %p89 = por %p87, %p88
      %p91 = scmp.ne.s32.totalorder %s74, %s90
      %p92 = scmp.eq.s32.totalorder %s17, 0
      %p93 = por %p91, %p92
      %s94 = ssub.s32 %s19, %s33
      %s95 = ssub.s32 %s18, %s37
      %s96 = sor.u32 %s94, %s95
      %p97 = scmp.eq.s32.totalorder %s96, 0
      %s99 = sadd.s32 %s98, 1
      %s100 = scalar_select %p97, %s98, %s99
      %p103 = pneg %p97
      %p104 = scmp.eq.s32.totalorder %s11, 1
      %p105 = por %p103, %p104
      %p106 = scmp.ne.s32.totalorder %s98, %s101
      %p107 = scmp.eq.s32.totalorder %s11, 0
      %p108 = por %p106, %p107
      %p109 = scmp.ne.s32.totalorder %s98, %s101
      %p110 = scmp.eq.s32.totalorder %s16, 1
      %p111 = por %p109, %p110
      %p112 = scmp.ne.s32.totalorder %s101, %s102
      %p113 = scmp.eq.s32.totalorder %s16, 0
      %p114 = por %p112, %p113
      %p115 = scmp.ne.s32.totalorder %s101, %s102
      %p116 = scmp.eq.s32.totalorder %s17, 1
      %p117 = por %p115, %p116
      %p119 = scmp.ne.s32.totalorder %s102, %s118
      %p120 = scmp.eq.s32.totalorder %s17, 0
      %p121 = por %p119, %p120
      %s122 = ssub.s32 %s18, %s37
      %p123 = scmp.eq.s32.totalorder %s122, 0
      %s125 = sadd.s32 %s124, 1
      %s126 = scalar_select %p123, %s124, %s125
      %p129 = pneg %p123
      %p130 = scmp.eq.s32.totalorder %s11, 1
      %p131 = por %p129, %p130
      %p132 = scmp.ne.s32.totalorder %s124, %s127
      %p133 = scmp.eq.s32.totalorder %s11, 0
      %p134 = por %p132, %p133
      %p135 = scmp.ne.s32.totalorder %s124, %s127
      %p136 = scmp.eq.s32.totalorder %s16, 1
      %p137 = por %p135, %p136
      %p138 = scmp.ne.s32.totalorder %s127, %s128
      %p139 = scmp.eq.s32.totalorder %s16, 0
      %p140 = por %p138, %p139
      %p141 = scmp.ne.s32.totalorder %s127, %s128
      %p142 = scmp.eq.s32.totalorder %s17, 1
      %p143 = por %p141, %p142
      %p145 = scmp.ne.s32.totalorder %s128, %s144
      %p146 = scmp.eq.s32.totalorder %s17, 0
      %p147 = por %p145, %p146
      %s148 = ssub.s32 %s18, %s37
      %p149 = scmp.eq.s32.totalorder %s148, 0
      %s151 = sadd.s32 %s150, 1
      %s152 = scalar_select %p149, %s150, %s151
      %p155 = pneg %p149
      %p156 = scmp.eq.s32.totalorder %s11, 1
      %p157 = por %p155, %p156
      %p158 = scmp.ne.s32.totalorder %s150, %s153
      %p159 = scmp.eq.s32.totalorder %s11, 0
      %p160 = por %p158, %p159
      %p161 = scmp.ne.s32.totalorder %s150, %s153
      %p162 = scmp.eq.s32.totalorder %s16, 1
      %p163 = por %p161, %p162
      %p164 = scmp.ne.s32.totalorder %s153, %s154
      %p165 = scmp.eq.s32.totalorder %s16, 0
      %p166 = por %p164, %p165
      %p167 = scmp.ne.s32.totalorder %s153, %s154
      %p168 = scmp.eq.s32.totalorder %s17, 1
      %p169 = por %p167, %p168
      %p171 = scmp.ne.s32.totalorder %s154, %s170
      %p172 = scmp.eq.s32.totalorder %s17, 0
      %p173 = por %p171, %p172
      %p174 = scmp.le.s32.totalorder 1, %s11
      %p175 = scmp.lt.s32.totalorder %s11, 3
      %p176 = pnand %p174, %p175
      %p177 = pneg %p176
      // Predicated region
      $region9: #{forward.70} parent=5 // pred_check
        _
      $region10: #{forward.70} parent=5 // pred_check_branch
        %179 = sbr.rel (%p176) target = $region12
      $region11: #{forward.70} parent=5 // pred_region
        %s180 = ssub.s32 %s11, 1
      $region12: #{forward.70} parent=5 // pred_fallthru
        _
      %p181 = scmp.lt.s32.totalorder %s11, 2
      // Predicated region
      $region13: #{forward.70} parent=5 // pred_check
        %p182 = pneg %p181
      $region14: #{forward.70} parent=5 // pred_check_branch
        %184 = sbr.rel (%p182) target = $region16
      $region15: #{forward.70} parent=5 // pred_region
        // Predicated region
        $region17: #{forward.70} parent=15 // pred_check
          %p185 = pneg %p52
        $region18: #{forward.70} parent=15 // pred_check_branch
          %187 = sbr.rel (%p185) target = $region20
        $region19: #{forward.70} parent=15 // pred_region
          %s188 = sand.u32 %s42, 1
          %s189 = sand.u32 %s42, 1
          %s190 = smul.addr %s189, 32
          %s191 = scalar_lea.vmem [#allocation3], %s190
          %s192 = smul.u32 2, %s19
          %s193 = smul.u32 4, %s20
          %s194 = smul.addr %s192, 8
          %s195 = sadd.s32 %s193, %s194
          %s196 = smul.addr %s195, 4
          %s197 = scalar_lea.vmem %s0, %s196
          // Predicated region
          $region21: #{forward.70} parent=19 // pred_check
            _
          $region22: #{forward.70} parent=19 // pred_check_branch
            %199 = sbr.rel (0) target = $region24
          $region23: #{forward.70} parent=19 // pred_region
            // Predicated region
            $region25: #{forward.70} parent=23 // pred_check
              _
            $region26: #{forward.70} parent=23 // pred_check_branch
              %201 = sbr.rel (0) target = $region28
            $region27: #{forward.70} parent=23 // pred_region
              loop: start=0, step=1, limit=1
              $region29: #{forward.70} parent=27 // loop_pre_header
                _
              $region30: #{forward.70} parent=27 // loop_header
                %s203 = sphi 0, %s207
                %p204 = scmp.ge.s32.totalorder %s203, 1
                %s208 = sphi %s197, %s197
                %s209 = sphi %s191, %s191
              $region31: #{forward.70} parent=27 // loop_header_branch
                %206 = sbr.rel (%p204) target = $region35
              $region32: #{forward.70} parent=27 // loop_body
                %v210 = vld [vmem:[%s208] sm:$0xff]
                %211 = vst [vmem:[%s209] sm:$0xff] %v210
                %v212 = vld [vmem:[%s208 + $0x8] sm:$0xff]
                %213 = vst [vmem:[%s209 + $0x8] sm:$0xff] %v212
                %v214 = vld [vmem:[%s208 + $0x20] sm:$0xff]
                %215 = vst [vmem:[%s209 + $0x10] sm:$0xff] %v214
                %v216 = vld [vmem:[%s208 + $0x28] sm:$0xff]
                %217 = vst [vmem:[%s209 + $0x18] sm:$0xff] %v216
              $region33: #{forward.70} parent=27 // loop_footer
                %s207 = sadd.s32 1, %s203
              $region34: #{forward.70} parent=27 // loop_footer_branch
                %202 = sbr.rel target = $region30
              $region35: #{forward.70} parent=27 // loop_exit
                _
            $region28: #{forward.70} parent=23 // pred_fallthru
              _
            // Predicated region
            $region36: #{forward.70} parent=23 // pred_check
              _
            $region37: #{forward.70} parent=23 // pred_check_branch
              %219 = sbr.rel target = $region39
            $region38: #{forward.70} parent=23 // pred_region
              _
            $region39: #{forward.70} parent=23 // pred_fallthru
              _
          $region24: #{forward.70} parent=19 // pred_fallthru
            _
          %220 = vnop
        $region20: #{forward.70} parent=15 // pred_fallthru
          _
        // Predicated region
        $region40: #{forward.70} parent=15 // pred_check
          %p221 = pneg %p80
        $region41: #{forward.70} parent=15 // pred_check_branch
          %223 = sbr.rel (%p221) target = $region43
        $region42: #{forward.70} parent=15 // pred_region
          %s224 = smul.u32 64, %s20
          %p225 = scmp.lt.s32.totalorder %s224, 127
          %s226 = scalar_select %p225, %s224, 127
          %p227 = scmp.lt.s32.totalorder %s18, 0
          %s228 = scalar_select %p227, %s18, 0
          %s229 = sadd.s32 %s228, %s226
          %s230 = smul.addr %s229, 4
          %s231 = scalar_lea.vmem %s1, %s230
          %s232 = smul.u32 64, %s20
        $region43: #{forward.70} parent=15 // pred_fallthru
          _
      $region16: #{forward.70} parent=5 // pred_fallthru
        _
      %p233 = scmp.le.s32.totalorder 1, %s11
      %p234 = scmp.lt.s32.totalorder %s11, 3
      %p235 = pnand %p233, %p234
      %p236 = pneg %p235
      // Predicated region
      $region44: #{forward.70} parent=5 // pred_check
        _
      $region45: #{forward.70} parent=5 // pred_check_branch
        %238 = sbr.rel (%p235) target = $region47
      $region46: #{forward.70} parent=5 // pred_region
        %s239 = ssub.s32 %s11, 1
        %s240 = sand.u32 %s45, 1
        %s241 = sand.u32 %s45, 1
        %s242 = smul.addr %s241, 32
        %s243 = scalar_lea.vmem [#allocation3], %s242
        // Predicated region
        $region48: #{forward.70} parent=46 // pred_check
          %p244 = pneg %p58
        $region49: #{forward.70} parent=46 // pred_check_branch
          %246 = sbr.rel (%p244) target = $region51
        $region50: #{forward.70} parent=46 // pred_region
          _
        $region51: #{forward.70} parent=46 // pred_fallthru
          _
        %s247 = sand.u32 %s45, 1
        %s248 = sand.u32 %s45, 1
        %s249 = smul.addr %s248, 32
        %s250 = scalar_lea.vmem [#allocation3], %s249
        %p251 = pneg %p58
        %p252 = pneg %p55
        %s253 = smul.u32 64, %s23
        %p254 = scmp.lt.s32.totalorder %s253, 127
        %s255 = scalar_select %p254, %s253, 127
        %p256 = scmp.lt.s32.totalorder %s21, 0
        %s257 = scalar_select %p256, %s21, 0
        %s258 = sadd.s32 %s257, %s255
        %s259 = smul.addr %s258, 4
        %s260 = scalar_lea.vmem %s1, %s259
        %p261 = pneg %p86
        %p262 = pneg %p83
        %p263 = pneg %p114
        %p264 = pneg %p111
        %s265 = smul.u32 2, %s22
        %p266 = scmp.lt.s32.totalorder %s265, 1
        %s267 = scalar_select %p266, %s265, 1
        %p268 = scmp.lt.s32.totalorder %s21, 0
        %s269 = scalar_select %p268, %s21, 0
        %s270 = sadd.s32 %s269, %s267
        %s271 = smul.addr %s270, 8
        %s272 = scalar_lea.vmem %s2, %s271
        %p273 = pneg %p140
        %p274 = pneg %p137
        %p275 = scmp.lt.s32.totalorder %s21, 0
        %s276 = scalar_select %p275, %s21, 0
        %s277 = scalar_lea.vmem %s3, %s276
        %p278 = pneg %p166
        %p279 = pneg %p163
        %p280 = scmp.lt.s32.totalorder %s21, 0
        %s281 = scalar_select %p280, %s21, 0
        %s282 = scalar_lea.vmem %s4, %s281
        %s283 = smul.u32 2, %s22
        %s284 = smul.u32 4, %s23
        %s285 = smul.u32 64, %s23
        %p286 = scmp.lt.s32.totalorder %s285, 127
        %s287 = scalar_select %p286, %s285, 127
        %p288 = scmp.lt.s32.totalorder %s21, 0
        %s289 = scalar_select %p288, %s21, 0
        %s290 = sadd.s32 %s289, %s287
        %s291 = smul.addr %s290, 4
        %s292 = scalar_lea.vmem %s1, %s291
        %s293 = smul.u32 64, %s23
        %s294 = smul.u32 2, %s22
        %p295 = scmp.lt.s32.totalorder %s294, 1
        %s296 = scalar_select %p295, %s294, 1
        %p297 = scmp.lt.s32.totalorder %s21, 0
        %s298 = scalar_select %p297, %s21, 0
        %s299 = sadd.s32 %s298, %s296
        %s300 = smul.addr %s299, 8
        %s301 = scalar_lea.vmem %s2, %s300
        %s302 = smul.u32 2, %s22
        %p303 = scmp.lt.s32.totalorder %s21, 0
        %s304 = scalar_select %p303, %s21, 0
        %s305 = scalar_lea.vmem %s3, %s304
        %p306 = scmp.lt.s32.totalorder %s21, 0
        %s307 = scalar_select %p306, %s21, 0
        %s308 = scalar_lea.vmem %s4, %s307
        %p310 = scmp.eq.s32.totalorder %s23, 0
        // Predicated region
        $region52: #{forward.70} parent=46 // pred_check
          %p311 = pneg %p310
        $region53: #{forward.70} parent=46 // pred_check_branch
          %313 = sbr.rel (%p311) target = $region55
        $region54: #{forward.70} parent=46 // pred_region
          %314 = vst [vmem:[#allocation2] sm:$0xff] 0.0
          %315 = vst [vmem:[#allocation2 + $0x8] sm:$0xff] 0.0
        $region55: #{forward.70} parent=46 // pred_fallthru
          _
        %p316 = scmp.eq.s32.totalorder %s22, 0
        %p317 = pnand %p310, %p316
        %p318 = pneg %p317
        // Predicated region
        $region56: #{forward.70} parent=46 // pred_check
          _
        $region57: #{forward.70} parent=46 // pred_check_branch
          %320 = sbr.rel (%p317) target = $region59
        $region58: #{forward.70} parent=46 // pred_region
          %321 = vst [vmem:[%s305] sm:$0x1] 0.0
          %322 = vst [vmem:[%s308] sm:$0x1] 0.0
        $region59: #{forward.70} parent=46 // pred_fallthru
          _
        %v323 = vld [vmem:[#allocation2] sm:$0xff]
        %v324 = vld [vmem:[#allocation2 + $0x8] sm:$0xff]
        %v325 = vld [vmem:[%s243] sm:$0xff]
        %v326 = vld [vmem:[%s243 + $0x8] sm:$0xff]
        %v327 = vld [vmem:[%s243 + $0x10] sm:$0xff]
        %v328 = vld [vmem:[%s243 + $0x18] sm:$0xff]
        %v329 = vld [vmem:[%s292] sm:$0xf]
        %v330 = vld [vmem:[%s292 + $0x4] sm:$0xf]
        %v331 = vld [vmem:[%s292 + $0x8] sm:$0xf]
        %v332 = vld [vmem:[%s292 + $0xc] sm:$0xf]
        %v333 = vld [vmem:[%s292 + $0x10] sm:$0xf]
        %v334 = vld [vmem:[%s292 + $0x14] sm:$0xf]
        %v335 = vld [vmem:[%s292 + $0x18] sm:$0xf]
        %v336 = vld [vmem:[%s292 + $0x1c] sm:$0xf]
        %v337 = vld [vmem:[%s292 + $0x20] sm:$0xf]
        %v338 = vld [vmem:[%s292 + $0x24] sm:$0xf]
        %v339 = vld [vmem:[%s292 + $0x28] sm:$0xf]
        %v340 = vld [vmem:[%s292 + $0x2c] sm:$0xf]
        %v341 = vld [vmem:[%s292 + $0x30] sm:$0xf]
        %v342 = vld [vmem:[%s292 + $0x34] sm:$0xf]
        %v343 = vld [vmem:[%s292 + $0x38] sm:$0xf]
        %v344 = vld [vmem:[%s292 + $0x3c] sm:$0xf]
        %v345 = vld [vmem:[%s292 + $0x40] sm:$0xf]
        %v346 = vld [vmem:[%s292 + $0x44] sm:$0xf]
        %v347 = vld [vmem:[%s292 + $0x48] sm:$0xf]
        %v348 = vld [vmem:[%s292 + $0x4c] sm:$0xf]
        %v349 = vld [vmem:[%s292 + $0x50] sm:$0xf]
        %v350 = vld [vmem:[%s292 + $0x54] sm:$0xf]
        %v351 = vld [vmem:[%s292 + $0x58] sm:$0xf]
        %v352 = vld [vmem:[%s292 + $0x5c] sm:$0xf]
        %v353 = vld [vmem:[%s292 + $0x60] sm:$0xf]
        %v354 = vld [vmem:[%s292 + $0x64] sm:$0xf]
        %v355 = vld [vmem:[%s292 + $0x68] sm:$0xf]
        %v356 = vld [vmem:[%s292 + $0x6c] sm:$0xf]
        %v357 = vld [vmem:[%s292 + $0x70] sm:$0xf]
        %v358 = vld [vmem:[%s292 + $0x74] sm:$0xf]
        %v359 = vld [vmem:[%s292 + $0x78] sm:$0xf]
        %v360 = vld [vmem:[%s292 + $0x7c] sm:$0xf]
        %v361 = vld [vmem:[%s292 + $0x80] sm:$0xf]
        %v362 = vld [vmem:[%s292 + $0x84] sm:$0xf]
        %v363 = vld [vmem:[%s292 + $0x88] sm:$0xf]
        %v364 = vld [vmem:[%s292 + $0x8c] sm:$0xf]
        %v365 = vld [vmem:[%s292 + $0x90] sm:$0xf]
        %v366 = vld [vmem:[%s292 + $0x94] sm:$0xf]
        %v367 = vld [vmem:[%s292 + $0x98] sm:$0xf]
        %v368 = vld [vmem:[%s292 + $0x9c] sm:$0xf]
        %v369 = vld [vmem:[%s292 + $0xa0] sm:$0xf]
        %v370 = vld [vmem:[%s292 + $0xa4] sm:$0xf]
        %v371 = vld [vmem:[%s292 + $0xa8] sm:$0xf]
        %v372 = vld [vmem:[%s292 + $0xac] sm:$0xf]
        %v373 = vld [vmem:[%s292 + $0xb0] sm:$0xf]
        %v374 = vld [vmem:[%s292 + $0xb4] sm:$0xf]
        %v375 = vld [vmem:[%s292 + $0xb8] sm:$0xf]
        %v376 = vld [vmem:[%s292 + $0xbc] sm:$0xf]
        %v377 = vld [vmem:[%s292 + $0xc0] sm:$0xf]
        %v378 = vld [vmem:[%s292 + $0xc4] sm:$0xf]
        %v379 = vld [vmem:[%s292 + $0xc8] sm:$0xf]
        %v380 = vld [vmem:[%s292 + $0xcc] sm:$0xf]
        %v381 = vld [vmem:[%s292 + $0xd0] sm:$0xf]
        %v382 = vld [vmem:[%s292 + $0xd4] sm:$0xf]
        %v383 = vld [vmem:[%s292 + $0xd8] sm:$0xf]
        %v384 = vld [vmem:[%s292 + $0xdc] sm:$0xf]
        %v385 = vld [vmem:[%s292 + $0xe0] sm:$0xf]
        %v386 = vld [vmem:[%s292 + $0xe4] sm:$0xf]
        %v387 = vld [vmem:[%s292 + $0xe8] sm:$0xf]
        %v388 = vld [vmem:[%s292 + $0xec] sm:$0xf]
        %v389 = vld [vmem:[%s292 + $0xf0] sm:$0xf]
        %v390 = vld [vmem:[%s292 + $0xf4] sm:$0xf]
        %v391 = vld [vmem:[%s292 + $0xf8] sm:$0xf]
        %v392 = vld [vmem:[%s292 + $0xfc] sm:$0xf]
        %v397 = vunpack.c.l.b16 %v325
        %v398 = vunpack.c.h.b16 %v325
        %v399 = vunpack.c.l.b16 %v326
        %v400 = vunpack.c.h.b16 %v326
        %v401 = vunpack.c.l.b16 %v327
        %v402 = vunpack.c.h.b16 %v327
        %v403 = vunpack.c.l.b16 %v328
        %v404 = vunpack.c.h.b16 %v328
        %v405 = vpack.c.b16 %v401, %v397
        %v406 = vpack.c.b16 %v402, %v398
        %v407 = vpack.c.b16 %v403, %v399
        %v408 = vpack.c.b16 %v404, %v400
        %v477 = vunpack.c.l.b16 %v329
        %v478 = vunpack.c.l.b16 %v330
        %v479 = vunpack.c.l.b16 %v331
        %v480 = vunpack.c.l.b16 %v332
        %v481 = vunpack.c.l.b16 %v333
        %v482 = vunpack.c.l.b16 %v334
        %v483 = vunpack.c.l.b16 %v335
        %v484 = vunpack.c.l.b16 %v336
        %v485 = vunpack.c.l.b16 %v337
        %v486 = vunpack.c.l.b16 %v338
        %v487 = vunpack.c.l.b16 %v339
        %v488 = vunpack.c.l.b16 %v340
        %v489 = vunpack.c.l.b16 %v341
        %v490 = vunpack.c.l.b16 %v342
        %v491 = vunpack.c.l.b16 %v343
        %v492 = vunpack.c.l.b16 %v344
        %v493 = vunpack.c.l.b16 %v345
        %v494 = vunpack.c.l.b16 %v346
        %v495 = vunpack.c.l.b16 %v347
        %v496 = vunpack.c.l.b16 %v348
        %v497 = vunpack.c.l.b16 %v349
        %v498 = vunpack.c.l.b16 %v350
        %v499 = vunpack.c.l.b16 %v351
        %v500 = vunpack.c.l.b16 %v352
        %v501 = vunpack.c.l.b16 %v353
        %v502 = vunpack.c.l.b16 %v354
        %v503 = vunpack.c.l.b16 %v355
        %v504 = vunpack.c.l.b16 %v356
        %v505 = vunpack.c.l.b16 %v357
        %v506 = vunpack.c.l.b16 %v358
        %v507 = vunpack.c.l.b16 %v359
        %v508 = vunpack.c.l.b16 %v360
        %v509 = vunpack.c.l.b16 %v361
        %v510 = vunpack.c.l.b16 %v362
        %v511 = vunpack.c.l.b16 %v363
        %v512 = vunpack.c.l.b16 %v364
        %v513 = vunpack.c.l.b16 %v365
        %v514 = vunpack.c.l.b16 %v366
        %v515 = vunpack.c.l.b16 %v367
        %v516 = vunpack.c.l.b16 %v368
        %v517 = vunpack.c.l.b16 %v369
        %v518 = vunpack.c.l.b16 %v370
        %v519 = vunpack.c.l.b16 %v371
        %v520 = vunpack.c.l.b16 %v372
        %v521 = vunpack.c.l.b16 %v373
        %v522 = vunpack.c.l.b16 %v374
        %v523 = vunpack.c.l.b16 %v375
        %v524 = vunpack.c.l.b16 %v376
        %v525 = vunpack.c.l.b16 %v377
        %v526 = vunpack.c.l.b16 %v378
        %v527 = vunpack.c.l.b16 %v379
        %v528 = vunpack.c.l.b16 %v380
        %v529 = vunpack.c.l.b16 %v381
        %v530 = vunpack.c.l.b16 %v382
        %v531 = vunpack.c.l.b16 %v383
        %v532 = vunpack.c.l.b16 %v384
        %v533 = vunpack.c.l.b16 %v385
        %v534 = vunpack.c.l.b16 %v386
        %v535 = vunpack.c.l.b16 %v387
        %v536 = vunpack.c.l.b16 %v388
        %v537 = vunpack.c.l.b16 %v389
        %v538 = vunpack.c.l.b16 %v390
        %v539 = vunpack.c.l.b16 %v391
        %v540 = vunpack.c.l.b16 %v392
        %v541 = vpack.c.b16 %v478, %v477
        %v542 = vpack.c.b16 %v480, %v479
        %v543 = vpack.c.b16 %v482, %v481
        %v544 = vpack.c.b16 %v484, %v483
        %v545 = vpack.c.b16 %v486, %v485
        %v546 = vpack.c.b16 %v488, %v487
        %v547 = vpack.c.b16 %v490, %v489
        %v548 = vpack.c.b16 %v492, %v491
        %v549 = vpack.c.b16 %v494, %v493
        %v550 = vpack.c.b16 %v496, %v495
        %v551 = vpack.c.b16 %v498, %v497
        %v552 = vpack.c.b16 %v500, %v499
        %v553 = vpack.c.b16 %v502, %v501
        %v554 = vpack.c.b16 %v504, %v503
        %v555 = vpack.c.b16 %v506, %v505
        %v556 = vpack.c.b16 %v508, %v507
        %v557 = vpack.c.b16 %v510, %v509
        %v558 = vpack.c.b16 %v512, %v511
        %v559 = vpack.c.b16 %v514, %v513
        %v560 = vpack.c.b16 %v516, %v515
        %v561 = vpack.c.b16 %v518, %v517
        %v562 = vpack.c.b16 %v520, %v519
        %v563 = vpack.c.b16 %v522, %v521
        %v564 = vpack.c.b16 %v524, %v523
        %v565 = vpack.c.b16 %v526, %v525
        %v566 = vpack.c.b16 %v528, %v527
        %v567 = vpack.c.b16 %v530, %v529
        %v568 = vpack.c.b16 %v532, %v531
        %v569 = vpack.c.b16 %v534, %v533
        %v570 = vpack.c.b16 %v536, %v535
        %v571 = vpack.c.b16 %v538, %v537
        %v572 = vpack.c.b16 %v540, %v539
        %605 = vmatprep.subr.bf16.mxu0 0
        %606 = vmatpush1.bf16.msra.mxu0 %v541
        %607 = vmatprep.subr.bf16.mxu0 0
        %608 = vmatpush1.bf16.msra.mxu0 %v542
        %609 = vmatprep.subr.bf16.mxu0 0
        %610 = vmatpush1.bf16.msra.mxu0 %v543
        %611 = vmatprep.subr.bf16.mxu0 0
        %612 = vmatpush1.bf16.msra.mxu0 %v544
        %613 = vmatprep.subr.bf16.mxu0 0
        %614 = vmatpush1.bf16.msra.mxu0 %v545
        %615 = vmatprep.subr.bf16.mxu0 0
        %616 = vmatpush1.bf16.msra.mxu0 %v546
        %617 = vmatprep.subr.bf16.mxu0 0
        %618 = vmatpush1.bf16.msra.mxu0 %v547
        %619 = vmatprep.subr.bf16.mxu0 0
        %620 = vmatpush1.bf16.msra.mxu0 %v548
        %621 = vmatprep.subr.bf16.mxu0 0
        %622 = vmatpush1.bf16.msra.mxu0 %v549
        %623 = vmatprep.subr.bf16.mxu0 0
        %624 = vmatpush1.bf16.msra.mxu0 %v550
        %625 = vmatprep.subr.bf16.mxu0 0
        %626 = vmatpush1.bf16.msra.mxu0 %v551
        %627 = vmatprep.subr.bf16.mxu0 0
        %628 = vmatpush1.bf16.msra.mxu0 %v552
        %629 = vmatprep.subr.bf16.mxu0 0
        %630 = vmatpush1.bf16.msra.mxu0 %v553
        %631 = vmatprep.subr.bf16.mxu0 0
        %632 = vmatpush1.bf16.msra.mxu0 %v554
        %633 = vmatprep.subr.bf16.mxu0 0
        %634 = vmatpush1.bf16.msra.mxu0 %v555
        %635 = vmatprep.subr.bf16.mxu0 0
        %636 = vmatpush1.bf16.msra.mxu0 %v556
        %637 = vmatprep.mubr.bf16.mxu0 %v406
        %638 = vmatmul.mubr.bf16.gmra.mrb[0].mxu0 %v405
        %v639 = vpop.f32.mrb[0].mxu0
        %v640 = vadd.f32 0.0, %v639
        %v641 = vpop.f32.mrb[0].mxu0
        %v642 = vpop.f32.mrb[0].mxu0
        %v643 = vadd.f32 0.0, %v642
        %v644 = vpop.f32.mrb[0].mxu0
        %645 = vdwg.mxu0
        %646 = vmatprep.subr.bf16.mxu0 0
        %647 = vmatpush1.bf16.msra.mxu0 %v557
        %648 = vmatprep.subr.bf16.mxu0 0
        %649 = vmatpush1.bf16.msra.mxu0 %v558
        %650 = vmatprep.subr.bf16.mxu0 0
        %651 = vmatpush1.bf16.msra.mxu0 %v559
        %652 = vmatprep.subr.bf16.mxu0 0
        %653 = vmatpush1.bf16.msra.mxu0 %v560
        %654 = vmatprep.subr.bf16.mxu0 0
        %655 = vmatpush1.bf16.msra.mxu0 %v561
        %656 = vmatprep.subr.bf16.mxu0 0
        %657 = vmatpush1.bf16.msra.mxu0 %v562
        %658 = vmatprep.subr.bf16.mxu0 0
        %659 = vmatpush1.bf16.msra.mxu0 %v563
        %660 = vmatprep.subr.bf16.mxu0 0
        %661 = vmatpush1.bf16.msra.mxu0 %v564
        %662 = vmatprep.subr.bf16.mxu0 0
        %663 = vmatpush1.bf16.msra.mxu0 %v565
        %664 = vmatprep.subr.bf16.mxu0 0
        %665 = vmatpush1.bf16.msra.mxu0 %v566
        %666 = vmatprep.subr.bf16.mxu0 0
        %667 = vmatpush1.bf16.msra.mxu0 %v567
        %668 = vmatprep.subr.bf16.mxu0 0
        %669 = vmatpush1.bf16.msra.mxu0 %v568
        %670 = vmatprep.subr.bf16.mxu0 0
        %671 = vmatpush1.bf16.msra.mxu0 %v569
        %672 = vmatprep.subr.bf16.mxu0 0
        %673 = vmatpush1.bf16.msra.mxu0 %v570
        %674 = vmatprep.subr.bf16.mxu0 0
        %675 = vmatpush1.bf16.msra.mxu0 %v571
        %676 = vmatprep.subr.bf16.mxu0 0
        %677 = vmatpush1.bf16.msra.mxu0 %v572
        %678 = vmatprep.mubr.bf16.mxu0 %v408
        %679 = vmatmul.mubr.bf16.gmra.mrb[0].mxu0 %v407
        %v680 = vpop.f32.mrb[0].mxu0
        %v681 = vadd.f32 %v640, %v680
        %v682 = vpop.f32.mrb[0].mxu0
        %v683 = vpop.f32.mrb[0].mxu0
        %v684 = vadd.f32 %v643, %v683
        %v685 = vpop.f32.mrb[0].mxu0
        %686 = vdwg.mxu0
        %v687 = vadd.f32 %v323, %v681
        %v688 = vadd.f32 %v324, %v684
        %689 = vst [vmem:[#allocation2] sm:$0xff] %v687
        %690 = vst [vmem:[#allocation2 + $0x8] sm:$0xff] %v688
        %p691 = scmp.eq.s32.totalorder %s23, 1
        // Predicated region
        $region60: #{forward.70} parent=46 // pred_check
          %p692 = pneg %p691
        $region61: #{forward.70} parent=46 // pred_check_branch
          %694 = sbr.rel (%p692) target = $region63
        $region62: #{forward.70} parent=46 // pred_region
          %v695 = vld [vmem:[#allocation2] sm:$0xff]
          %v696 = vld [vmem:[#allocation2 + $0x8] sm:$0xff]
          %v697 = vld [vmem:[%s305] sm:$0x1]
          %v698 = vadd.f32 %v695, %v696
          %v699 = vrot.slane %v698, 4
          %v700 = vadd.f32 %v698, %v699
          %v701 = vrot.slane %v700, 2
          %v702 = vadd.f32 %v700, %v701
          %v703 = vrot.slane %v702, 1
          %v704 = vadd.f32 %v702, %v703
          %v705 = vadd.f32 %v697, %v704
          %706 = vst [vmem:[%s305] sm:$0x1] %v705
          %v707 = vld [vmem:[%s308] sm:$0x1]
          %v708 = vmul.f32 %v695, %v695
          %v709 = vmul.f32 %v696, %v696
          %v710 = vadd.f32 %v708, %v709
          %v711 = vrot.slane %v710, 4
          %v712 = vadd.f32 %v710, %v711
          %v713 = vrot.slane %v712, 2
          %v714 = vadd.f32 %v712, %v713
          %v715 = vrot.slane %v714, 1
          %v716 = vadd.f32 %v714, %v715
          %v717 = vadd.f32 %v707, %v716
          %718 = vst [vmem:[%s308] sm:$0x1] %v717
          %719 = vst [vmem:[%s301] sm:$0xff] %v695
          %720 = vst [vmem:[%s301 + $0x8] sm:$0xff] %v696
        $region63: #{forward.70} parent=46 // pred_fallthru
          _
        %s721 = smul.u32 2, %s22
        %p722 = scmp.lt.s32.totalorder %s721, 1
        %s723 = scalar_select %p722, %s721, 1
        %p724 = scmp.lt.s32.totalorder %s21, 0
        %s725 = scalar_select %p724, %s21, 0
        %s726 = sadd.s32 %s725, %s723
        %s727 = smul.addr %s726, 8
        %s728 = scalar_lea.vmem %s2, %s727
        %p729 = scmp.lt.s32.totalorder %s21, 0
        %s730 = scalar_select %p729, %s21, 0
        %s731 = scalar_lea.vmem %s3, %s730
        %p732 = scmp.lt.s32.totalorder %s21, 0
        %s733 = scalar_select %p732, %s21, 0
        %s734 = scalar_lea.vmem %s4, %s733
        // Predicated region
        $region64: #{forward.70} parent=46 // pred_check
          %p735 = pneg %p111
        $region65: #{forward.70} parent=46 // pred_check_branch
          %737 = sbr.rel (%p735) target = $region67
        $region66: #{forward.70} parent=46 // pred_region
          %s738 = smul.u32 2, %s22
        $region67: #{forward.70} parent=46 // pred_fallthru
          _
        // Predicated region
        $region68: #{forward.70} parent=46 // pred_check
          %p739 = pneg %p137
        $region69: #{forward.70} parent=46 // pred_check_branch
          %741 = sbr.rel (%p739) target = $region71
        $region70: #{forward.70} parent=46 // pred_region
          _
        $region71: #{forward.70} parent=46 // pred_fallthru
          _
        // Predicated region
        $region72: #{forward.70} parent=46 // pred_check
          %p742 = pneg %p163
        $region73: #{forward.70} parent=46 // pred_check_branch
          %744 = sbr.rel (%p742) target = $region75
        $region74: #{forward.70} parent=46 // pred_region
          _
        $region75: #{forward.70} parent=46 // pred_fallthru
          _
        // Predicated region
        $region76: #{forward.70} parent=46 // pred_check
          %p745 = pneg %p111
        $region77: #{forward.70} parent=46 // pred_check_branch
          %747 = sbr.rel (%p745) target = $region79
        $region78: #{forward.70} parent=46 // pred_region
          %s748 = smul.u32 2, %s22
          %p749 = scmp.lt.s32.totalorder %s748, 1
          %s750 = scalar_select %p749, %s748, 1
          %p751 = scmp.lt.s32.totalorder %s21, 0
          %s752 = scalar_select %p751, %s21, 0
          %s753 = sadd.s32 %s752, %s750
          %s754 = smul.addr %s753, 8
          %s755 = scalar_lea.vmem %s2, %s754
        $region79: #{forward.70} parent=46 // pred_fallthru
          _
        // Predicated region
        $region80: #{forward.70} parent=46 // pred_check
          %p756 = pneg %p137
        $region81: #{forward.70} parent=46 // pred_check_branch
          %758 = sbr.rel (%p756) target = $region83
        $region82: #{forward.70} parent=46 // pred_region
          %p759 = scmp.lt.s32.totalorder %s21, 0
          %s760 = scalar_select %p759, %s21, 0
          %s761 = scalar_lea.vmem %s3, %s760
        $region83: #{forward.70} parent=46 // pred_fallthru
          _
        // Predicated region
        $region84: #{forward.70} parent=46 // pred_check
          %p762 = pneg %p163
        $region85: #{forward.70} parent=46 // pred_check_branch
          %764 = sbr.rel (%p762) target = $region87
        $region86: #{forward.70} parent=46 // pred_region
          %p765 = scmp.lt.s32.totalorder %s21, 0
          %s766 = scalar_select %p765, %s21, 0
          %s767 = scalar_lea.vmem %s4, %s766
        $region87: #{forward.70} parent=46 // pred_fallthru
          _
      $region47: #{forward.70} parent=5 // pred_fallthru
        _
      %p768 = scmp.le.s32.totalorder 2, %s11
      // Predicated region
      $region88: #{forward.70} parent=5 // pred_check
        %p769 = pneg %p768
      $region89: #{forward.70} parent=5 // pred_check_branch
        %771 = sbr.rel (%p769) target = $region91
      $region90: #{forward.70} parent=5 // pred_region
        %s772 = ssub.s32 %s11, 2
      $region91: #{forward.70} parent=5 // pred_fallthru
        _
    $region6: #{forward.70} parent=1 // loop_footer
      %s15 = sadd.s32 1, %s11
    $region7: #{forward.70} parent=1 // loop_footer_branch
      %10 = sbr.rel target = $region3
    $region8: #{forward.70} parent=1 // loop_exit
      _

// kernel: forward.72
$region0: #{forward.72}
  #allocation0 [shape = 'u32[]', space=smem, size = 0x4, offset = 0x4, fixed_abs, tag = 'smem constant byte address 0x4 - core index']
  #allocation1 [shape = 'u32[144,128]{1,0:T(1,128)}', space=vmem, size = 0x12000, scoped, tag = 'internal scratch']
  #allocation2 [shape = 'f32[8,128]{1,0:T(8,128)}', space=vmem, size = 0x1000, scoped, tag = 'scratch operand']
  %s0 = inlined_call_operand.vmem [shape: bf16[8,2048], index: 0, kind: input, shape index: {}]
  %s1 = inlined_call_operand.vmem [shape: bf16[2048,128], index: 1, kind: input, shape index: {}]
  %s2 = inlined_call_operand.vmem [shape: f32[8,128], index: 2, kind: output, shape index: {0}]
  %s3 = inlined_call_operand.vmem [shape: f32[1,128], index: 3, kind: output, shape index: {1}]
  %s4 = inlined_call_operand.vmem [shape: f32[1,128], index: 4, kind: output, shape index: {2}]
  %5 = xla_tuple %s2, %s3, %s4
  %s6 = sld [smem:[#allocation0]]
  $region69: #{forward.72} parent=0
    _
  %s8 = ssub.s32 1, %s6
  %s9 = scalar_select 0, %s8, %s6
  loop: start=0, step=1, limit=6
  $region2: #{forward.72} parent=0 // loop_pre_header
    _
  $region3: #{forward.72} parent=0 // loop_header
    %s11 = sphi 0, %s15
    %p12 = scmp.ge.s32.totalorder %s11, 6
    %s18 = sphi 0, %s37
    %s19 = sphi 0, %s33
    %s20 = sphi 0, %s29
    %s21 = sphi 0, %s18
    %s22 = sphi 0, %s19
    %s23 = sphi 0, %s20
    %s24 = sphi 0, %s21
    %s25 = sphi 0, %s22
    %s26 = sphi 0, %s23
    %s42 = sphi 0, %s44
    %s45 = sphi 0, %s42
    %s46 = sphi 0, %s45
    %s62 = sphi 0, %s46
    %s70 = sphi 0, %s72
    %s73 = sphi 0, %s70
    %s74 = sphi 0, %s73
    %s90 = sphi 0, %s74
    %s98 = sphi 0, %s100
    %s101 = sphi 0, %s98
    %s102 = sphi 0, %s101
    %s118 = sphi 0, %s102
    %s124 = sphi 0, %s126
    %s127 = sphi 0, %s124
    %s128 = sphi 0, %s127
    %s144 = sphi 0, %s128
    %s150 = sphi 0, %s152
    %s153 = sphi 0, %s150
    %s154 = sphi 0, %s153
    %s170 = sphi 0, %s154
  $region4: #{forward.72} parent=0 // loop_header_branch
    %14 = sbr.rel (%p12) target = $region8
  $region5: #{forward.72} parent=0 // loop_body
    %s16 = ssub.s32 %s11, 1
    %s17 = ssub.s32 %s11, 2
    %s27 = sadd.s32 1, %s20
    %p28 = scmp.ge.s32.totalorder %s27, 4
    %s29 = scalar_select %p28, 0, %s27
    %s30 = sadd.s32 1, %s19
    %s31 = scalar_select %p28, %s30, %s19
    %p32 = scmp.ge.s32.totalorder %s31, 1
    %s33 = scalar_select %p32, 0, %s31
    %s34 = sadd.s32 1, %s18
    %s35 = scalar_select %p32, %s34, %s18
    %p36 = scmp.ge.s32.totalorder %s35, 1
    %s37 = scalar_select %p36, 0, %s35
    %s38 = ssub.s32 %s19, %s33
    %s39 = ssub.s32 %s20, %s29
    %s40 = sor.u32 %s38, %s39
    %p41 = scmp.eq.s32.totalorder %s40, 0
    %s43 = sadd.s32 %s42, 1
    %s44 = scalar_select %p41, %s42, %s43
    %p47 = pneg %p41
    %p48 = scmp.eq.s32.totalorder %s11, 3
    %p49 = por %p47, %p48
    %p50 = scmp.ne.s32.totalorder %s42, %s45
    %p51 = scmp.eq.s32.totalorder %s11, 0
    %p52 = por %p50, %p51
    %p53 = scmp.ne.s32.totalorder %s42, %s45
    %p54 = scmp.eq.s32.totalorder %s16, 3
    %p55 = por %p53, %p54
    %p56 = scmp.ne.s32.totalorder %s45, %s46
    %p57 = scmp.eq.s32.totalorder %s16, 0
    %p58 = por %p56, %p57
    %p59 = scmp.ne.s32.totalorder %s45, %s46
    %p60 = scmp.eq.s32.totalorder %s17, 3
    %p61 = por %p59, %p60
    %p63 = scmp.ne.s32.totalorder %s46, %s62
    %p64 = scmp.eq.s32.totalorder %s17, 0
    %p65 = por %p63, %p64
    %s66 = ssub.s32 %s20, %s29
    %s67 = ssub.s32 %s18, %s37
    %s68 = sor.u32 %s66, %s67
    %p69 = scmp.eq.s32.totalorder %s68, 0
    %s71 = sadd.s32 %s70, 1
    %s72 = scalar_select %p69, %s70, %s71
    %p75 = pneg %p69
    %p76 = scmp.eq.s32.totalorder %s11, 3
    %p77 = por %p75, %p76
    %p78 = scmp.ne.s32.totalorder %s70, %s73
    %p79 = scmp.eq.s32.totalorder %s11, 0
    %p80 = por %p78, %p79
    %p81 = scmp.ne.s32.totalorder %s70, %s73
    %p82 = scmp.eq.s32.totalorder %s16, 3
    %p83 = por %p81, %p82
    %p84 = scmp.ne.s32.totalorder %s73, %s74
    %p85 = scmp.eq.s32.totalorder %s16, 0
    %p86 = por %p84, %p85
    %p87 = scmp.ne.s32.totalorder %s73, %s74
    %p88 = scmp.eq.s32.totalorder %s17, 3
    %p89 = por %p87, %p88
    %p91 = scmp.ne.s32.totalorder %s74, %s90
    %p92 = scmp.eq.s32.totalorder %s17, 0
    %p93 = por %p91, %p92
    %s94 = ssub.s32 %s19, %s33
    %s95 = ssub.s32 %s18, %s37
    %s96 = sor.u32 %s94, %s95
    %p97 = scmp.eq.s32.totalorder %s96, 0
    %s99 = sadd.s32 %s98, 1
    %s100 = scalar_select %p97, %s98, %s99
    %p103 = pneg %p97
    %p104 = scmp.eq.s32.totalorder %s11, 3
    %p105 = por %p103, %p104
    %p106 = scmp.ne.s32.totalorder %s98, %s101
    %p107 = scmp.eq.s32.totalorder %s11, 0
    %p108 = por %p106, %p107
    %p109 = scmp.ne.s32.totalorder %s98, %s101
    %p110 = scmp.eq.s32.totalorder %s16, 3
    %p111 = por %p109, %p110
    %p112 = scmp.ne.s32.totalorder %s101, %s102
    %p113 = scmp.eq.s32.totalorder %s16, 0
    %p114 = por %p112, %p113
    %p115 = scmp.ne.s32.totalorder %s101, %s102
    %p116 = scmp.eq.s32.totalorder %s17, 3
    %p117 = por %p115, %p116
    %p119 = scmp.ne.s32.totalorder %s102, %s118
    %p120 = scmp.eq.s32.totalorder %s17, 0
    %p121 = por %p119, %p120
    %s122 = ssub.s32 %s18, %s37
    %p123 = scmp.eq.s32.totalorder %s122, 0
    %s125 = sadd.s32 %s124, 1
    %s126 = scalar_select %p123, %s124, %s125
    %p129 = pneg %p123
    %p130 = scmp.eq.s32.totalorder %s11, 3
    %p131 = por %p129, %p130
    %p132 = scmp.ne.s32.totalorder %s124, %s127
    %p133 = scmp.eq.s32.totalorder %s11, 0
    %p134 = por %p132, %p133
    %p135 = scmp.ne.s32.totalorder %s124, %s127
    %p136 = scmp.eq.s32.totalorder %s16, 3
    %p137 = por %p135, %p136
    %p138 = scmp.ne.s32.totalorder %s127, %s128
    %p139 = scmp.eq.s32.totalorder %s16, 0
    %p140 = por %p138, %p139
    %p141 = scmp.ne.s32.totalorder %s127, %s128
    %p142 = scmp.eq.s32.totalorder %s17, 3
    %p143 = por %p141, %p142
    %p145 = scmp.ne.s32.totalorder %s128, %s144
    %p146 = scmp.eq.s32.totalorder %s17, 0
    %p147 = por %p145, %p146
    %s148 = ssub.s32 %s18, %s37
    %p149 = scmp.eq.s32.totalorder %s148, 0
    %s151 = sadd.s32 %s150, 1
    %s152 = scalar_select %p149, %s150, %s151
    %p155 = pneg %p149
    %p156 = scmp.eq.s32.totalorder %s11, 3
    %p157 = por %p155, %p156
    %p158 = scmp.ne.s32.totalorder %s150, %s153
    %p159 = scmp.eq.s32.totalorder %s11, 0
    %p160 = por %p158, %p159
    %p161 = scmp.ne.s32.totalorder %s150, %s153
    %p162 = scmp.eq.s32.totalorder %s16, 3
    %p163 = por %p161, %p162
    %p164 = scmp.ne.s32.totalorder %s153, %s154
    %p165 = scmp.eq.s32.totalorder %s16, 0
    %p166 = por %p164, %p165
    %p167 = scmp.ne.s32.totalorder %s153, %s154
    %p168 = scmp.eq.s32.totalorder %s17, 3
    %p169 = por %p167, %p168
    %p171 = scmp.ne.s32.totalorder %s154, %s170
    %p172 = scmp.eq.s32.totalorder %s17, 0
    %p173 = por %p171, %p172
    %p174 = scmp.le.s32.totalorder 1, %s11
    %p175 = scmp.lt.s32.totalorder %s11, 5
    %p176 = pnand %p174, %p175
    %p177 = pneg %p176
    // Predicated region
    $region9: #{forward.72} parent=5 // pred_check
      _
    $region10: #{forward.72} parent=5 // pred_check_branch
      %179 = sbr.rel (%p176) target = $region12
    $region11: #{forward.72} parent=5 // pred_region
      %s180 = ssub.s32 %s11, 1
    $region12: #{forward.72} parent=5 // pred_fallthru
      _
    %p181 = scmp.lt.s32.totalorder %s11, 4
    // Predicated region
    $region13: #{forward.72} parent=5 // pred_check
      %p182 = pneg %p181
    $region14: #{forward.72} parent=5 // pred_check_branch
      %184 = sbr.rel (%p182) target = $region16
    $region15: #{forward.72} parent=5 // pred_region
      // Predicated region
      $region17: #{forward.72} parent=15 // pred_check
        %p185 = pneg %p52
      $region18: #{forward.72} parent=15 // pred_check_branch
        %187 = sbr.rel (%p185) target = $region20
      $region19: #{forward.72} parent=15 // pred_region
        %s188 = smul.u32 4, %s20
        %p189 = scmp.lt.s32.totalorder %s19, 0
        %s190 = scalar_select %p189, %s19, 0
        %p191 = scmp.lt.s32.totalorder %s188, 15
        %s192 = scalar_select %p191, %s188, 15
        %s193 = smul.addr %s190, 16
        %s194 = sadd.s32 %s192, %s193
        %s195 = smul.addr %s194, 4
        %s196 = scalar_lea.vmem %s0, %s195
        %s197 = smul.u32 4, %s20
      $region20: #{forward.72} parent=15 // pred_fallthru
        _
      // Predicated region
      $region21: #{forward.72} parent=15 // pred_check
        %p198 = pneg %p80
      $region22: #{forward.72} parent=15 // pred_check_branch
        %200 = sbr.rel (%p198) target = $region24
      $region23: #{forward.72} parent=15 // pred_region
        %s201 = smul.u32 64, %s20
        %p202 = scmp.lt.s32.totalorder %s201, 255
        %s203 = scalar_select %p202, %s201, 255
        %p204 = scmp.lt.s32.totalorder %s18, 0
        %s205 = scalar_select %p204, %s18, 0
        %s206 = sadd.s32 %s205, %s203
        %s207 = smul.addr %s206, 4
        %s208 = scalar_lea.vmem %s1, %s207
        %s209 = smul.u32 64, %s20
      $region24: #{forward.72} parent=15 // pred_fallthru
        _
    $region16: #{forward.72} parent=5 // pred_fallthru
      _
    %p210 = scmp.le.s32.totalorder 1, %s11
    %p211 = scmp.lt.s32.totalorder %s11, 5
    %p212 = pnand %p210, %p211
    %p213 = pneg %p212
    // Predicated region
    $region25: #{forward.72} parent=5 // pred_check
      _
    $region26: #{forward.72} parent=5 // pred_check_branch
      %215 = sbr.rel (%p212) target = $region28
    $region27: #{forward.72} parent=5 // pred_region
      %s216 = ssub.s32 %s11, 1
      %s217 = smul.u32 4, %s23
      %p218 = scmp.lt.s32.totalorder %s22, 0
      %s219 = scalar_select %p218, %s22, 0
      %p220 = scmp.lt.s32.totalorder %s217, 15
      %s221 = scalar_select %p220, %s217, 15
      %s222 = smul.addr %s219, 16
      %s223 = sadd.s32 %s221, %s222
      %s224 = smul.addr %s223, 4
      %s225 = scalar_lea.vmem %s0, %s224
      %p226 = pneg %p58
      %p227 = pneg %p55
      %s228 = smul.u32 64, %s23
      %p229 = scmp.lt.s32.totalorder %s228, 255
      %s230 = scalar_select %p229, %s228, 255
      %p231 = scmp.lt.s32.totalorder %s21, 0
      %s232 = scalar_select %p231, %s21, 0
      %s233 = sadd.s32 %s232, %s230
      %s234 = smul.addr %s233, 4
      %s235 = scalar_lea.vmem %s1, %s234
      %p236 = pneg %p86
      %p237 = pneg %p83
      %p238 = pneg %p114
      %p239 = pneg %p111
      %p240 = scmp.lt.s32.totalorder %s22, 0
      %s241 = scalar_select %p240, %s22, 0
      %p242 = scmp.lt.s32.totalorder %s21, 0
      %s243 = scalar_select %p242, %s21, 0
      %s244 = sadd.s32 %s243, %s241
      %s245 = smul.addr %s244, 8
      %s246 = scalar_lea.vmem %s2, %s245
      %p247 = pneg %p140
      %p248 = pneg %p137
      %p249 = scmp.lt.s32.totalorder %s21, 0
      %s250 = scalar_select %p249, %s21, 0
      %s251 = scalar_lea.vmem %s3, %s250
      %p252 = pneg %p166
      %p253 = pneg %p163
      %p254 = scmp.lt.s32.totalorder %s21, 0
      %s255 = scalar_select %p254, %s21, 0
      %s256 = scalar_lea.vmem %s4, %s255
      %s257 = smul.u32 4, %s23
      %p258 = scmp.lt.s32.totalorder %s22, 0
      %s259 = scalar_select %p258, %s22, 0
      %p260 = scmp.lt.s32.totalorder %s257, 15
      %s261 = scalar_select %p260, %s257, 15
      %s262 = smul.addr %s259, 16
      %s263 = sadd.s32 %s261, %s262
      %s264 = smul.addr %s263, 4
      %s265 = scalar_lea.vmem %s0, %s264
      %s266 = smul.u32 4, %s23
      %s267 = smul.u32 64, %s23
      %p268 = scmp.lt.s32.totalorder %s267, 255
      %s269 = scalar_select %p268, %s267, 255
      %p270 = scmp.lt.s32.totalorder %s21, 0
      %s271 = scalar_select %p270, %s21, 0
      %s272 = sadd.s32 %s271, %s269
      %s273 = smul.addr %s272, 4
      %s274 = scalar_lea.vmem %s1, %s273
      %s275 = smul.u32 64, %s23
      %p276 = scmp.lt.s32.totalorder %s22, 0
      %s277 = scalar_select %p276, %s22, 0
      %p278 = scmp.lt.s32.totalorder %s21, 0
      %s279 = scalar_select %p278, %s21, 0
      %s280 = sadd.s32 %s279, %s277
      %s281 = smul.addr %s280, 8
      %s282 = scalar_lea.vmem %s2, %s281
      %p283 = scmp.lt.s32.totalorder %s21, 0
      %s284 = scalar_select %p283, %s21, 0
      %s285 = scalar_lea.vmem %s3, %s284
      %p286 = scmp.lt.s32.totalorder %s21, 0
      %s287 = scalar_select %p286, %s21, 0
      %s288 = scalar_lea.vmem %s4, %s287
      %p290 = scmp.eq.s32.totalorder %s23, 0
      // Predicated region
      $region29: #{forward.72} parent=27 // pred_check
        %p291 = pneg %p290
      $region30: #{forward.72} parent=27 // pred_check_branch
        %293 = sbr.rel (%p291) target = $region32
      $region31: #{forward.72} parent=27 // pred_region
        %294 = vst [vmem:[#allocation2] sm:$0xff] 0.0
      $region32: #{forward.72} parent=27 // pred_fallthru
        _
      %p295 = scmp.eq.s32.totalorder %s22, 0
      %p296 = pnand %p290, %p295
      %p297 = pneg %p296
      // Predicated region
      $region33: #{forward.72} parent=27 // pred_check
        _
      $region34: #{forward.72} parent=27 // pred_check_branch
        %299 = sbr.rel (%p296) target = $region36
      $region35: #{forward.72} parent=27 // pred_region
        %300 = vst [vmem:[%s285] sm:$0x1] 0.0
        %301 = vst [vmem:[%s288] sm:$0x1] 0.0
      $region36: #{forward.72} parent=27 // pred_fallthru
        _
      %v302 = vld [vmem:[#allocation2] sm:$0xff]
      %v303 = vld [vmem:[%s265] sm:$0xff]
      %v304 = vld [vmem:[%s265 + $0x8] sm:$0xff]
      %v305 = vld [vmem:[%s274] sm:$0xf]
      %v306 = vld [vmem:[%s274 + $0x4] sm:$0xf]
      %v307 = vld [vmem:[%s274 + $0x8] sm:$0xf]
      %v308 = vld [vmem:[%s274 + $0xc] sm:$0xf]
      %v309 = vld [vmem:[%s274 + $0x10] sm:$0xf]
      %v310 = vld [vmem:[%s274 + $0x14] sm:$0xf]
      %v311 = vld [vmem:[%s274 + $0x18] sm:$0xf]
      %v312 = vld [vmem:[%s274 + $0x1c] sm:$0xf]
      %v313 = vld [vmem:[%s274 + $0x20] sm:$0xf]
      %v314 = vld [vmem:[%s274 + $0x24] sm:$0xf]
      %v315 = vld [vmem:[%s274 + $0x28] sm:$0xf]
      %v316 = vld [vmem:[%s274 + $0x2c] sm:$0xf]
      %v317 = vld [vmem:[%s274 + $0x30] sm:$0xf]
      %v318 = vld [vmem:[%s274 + $0x34] sm:$0xf]
      %v319 = vld [vmem:[%s274 + $0x38] sm:$0xf]
      %v320 = vld [vmem:[%s274 + $0x3c] sm:$0xf]
      %v321 = vld [vmem:[%s274 + $0x40] sm:$0xf]
      %v322 = vld [vmem:[%s274 + $0x44] sm:$0xf]
      %v323 = vld [vmem:[%s274 + $0x48] sm:$0xf]
      %v324 = vld [vmem:[%s274 + $0x4c] sm:$0xf]
      %v325 = vld [vmem:[%s274 + $0x50] sm:$0xf]
      %v326 = vld [vmem:[%s274 + $0x54] sm:$0xf]
      %v327 = vld [vmem:[%s274 + $0x58] sm:$0xf]
      %v328 = vld [vmem:[%s274 + $0x5c] sm:$0xf]
      %v329 = vld [vmem:[%s274 + $0x60] sm:$0xf]
      %v330 = vld [vmem:[%s274 + $0x64] sm:$0xf]
      %v331 = vld [vmem:[%s274 + $0x68] sm:$0xf]
      %v332 = vld [vmem:[%s274 + $0x6c] sm:$0xf]
      %v333 = vld [vmem:[%s274 + $0x70] sm:$0xf]
      %v334 = vld [vmem:[%s274 + $0x74] sm:$0xf]
      %v335 = vld [vmem:[%s274 + $0x78] sm:$0xf]
      %v336 = vld [vmem:[%s274 + $0x7c] sm:$0xf]
      %v337 = vld [vmem:[%s274 + $0x80] sm:$0xf]
      %v338 = vld [vmem:[%s274 + $0x84] sm:$0xf]
      %v339 = vld [vmem:[%s274 + $0x88] sm:$0xf]
      %v340 = vld [vmem:[%s274 + $0x8c] sm:$0xf]
      %v341 = vld [vmem:[%s274 + $0x90] sm:$0xf]
      %v342 = vld [vmem:[%s274 + $0x94] sm:$0xf]
      %v343 = vld [vmem:[%s274 + $0x98] sm:$0xf]
      %v344 = vld [vmem:[%s274 + $0x9c] sm:$0xf]
      %v345 = vld [vmem:[%s274 + $0xa0] sm:$0xf]
      %v346 = vld [vmem:[%s274 + $0xa4] sm:$0xf]
      %v347 = vld [vmem:[%s274 + $0xa8] sm:$0xf]
      %v348 = vld [vmem:[%s274 + $0xac] sm:$0xf]
      %v349 = vld [vmem:[%s274 + $0xb0] sm:$0xf]
      %v350 = vld [vmem:[%s274 + $0xb4] sm:$0xf]
      %v351 = vld [vmem:[%s274 + $0xb8] sm:$0xf]
      %v352 = vld [vmem:[%s274 + $0xbc] sm:$0xf]
      %v353 = vld [vmem:[%s274 + $0xc0] sm:$0xf]
      %v354 = vld [vmem:[%s274 + $0xc4] sm:$0xf]
      %v355 = vld [vmem:[%s274 + $0xc8] sm:$0xf]
      %v356 = vld [vmem:[%s274 + $0xcc] sm:$0xf]
      %v357 = vld [vmem:[%s274 + $0xd0] sm:$0xf]
      %v358 = vld [vmem:[%s274 + $0xd4] sm:$0xf]
      %v359 = vld [vmem:[%s274 + $0xd8] sm:$0xf]
      %v360 = vld [vmem:[%s274 + $0xdc] sm:$0xf]
      %v361 = vld [vmem:[%s274 + $0xe0] sm:$0xf]
      %v362 = vld [vmem:[%s274 + $0xe4] sm:$0xf]
      %v363 = vld [vmem:[%s274 + $0xe8] sm:$0xf]
      %v364 = vld [vmem:[%s274 + $0xec] sm:$0xf]
      %v365 = vld [vmem:[%s274 + $0xf0] sm:$0xf]
      %v366 = vld [vmem:[%s274 + $0xf4] sm:$0xf]
      %v367 = vld [vmem:[%s274 + $0xf8] sm:$0xf]
      %v368 = vld [vmem:[%s274 + $0xfc] sm:$0xf]
      %v371 = vunpack.c.l.b16 %v303
      %v372 = vunpack.c.h.b16 %v303
      %v373 = vunpack.c.l.b16 %v304
      %v374 = vunpack.c.h.b16 %v304
      %v375 = vpack.c.b16 %v371, %v371
      %v376 = vpack.c.b16 %v372, %v372
      %v377 = vpack.c.b16 %v373, %v373
      %v378 = vpack.c.b16 %v374, %v374
      %v447 = vunpack.c.l.b16 %v305
      %v448 = vunpack.c.l.b16 %v306
      %v449 = vunpack.c.l.b16 %v307
      %v450 = vunpack.c.l.b16 %v308
      %v451 = vunpack.c.l.b16 %v309
      %v452 = vunpack.c.l.b16 %v310
      %v453 = vunpack.c.l.b16 %v311
      %v454 = vunpack.c.l.b16 %v312
      %v455 = vunpack.c.l.b16 %v313
      %v456 = vunpack.c.l.b16 %v314
      %v457 = vunpack.c.l.b16 %v315
      %v458 = vunpack.c.l.b16 %v316
      %v459 = vunpack.c.l.b16 %v317
      %v460 = vunpack.c.l.b16 %v318
      %v461 = vunpack.c.l.b16 %v319
      %v462 = vunpack.c.l.b16 %v320
      %v463 = vunpack.c.l.b16 %v321
      %v464 = vunpack.c.l.b16 %v322
      %v465 = vunpack.c.l.b16 %v323
      %v466 = vunpack.c.l.b16 %v324
      %v467 = vunpack.c.l.b16 %v325
      %v468 = vunpack.c.l.b16 %v326
      %v469 = vunpack.c.l.b16 %v327
      %v470 = vunpack.c.l.b16 %v328
      %v471 = vunpack.c.l.b16 %v329
      %v472 = vunpack.c.l.b16 %v330
      %v473 = vunpack.c.l.b16 %v331
      %v474 = vunpack.c.l.b16 %v332
      %v475 = vunpack.c.l.b16 %v333
      %v476 = vunpack.c.l.b16 %v334
      %v477 = vunpack.c.l.b16 %v335
      %v478 = vunpack.c.l.b16 %v336
      %v479 = vunpack.c.l.b16 %v337
      %v480 = vunpack.c.l.b16 %v338
      %v481 = vunpack.c.l.b16 %v339
      %v482 = vunpack.c.l.b16 %v340
      %v483 = vunpack.c.l.b16 %v341
      %v484 = vunpack.c.l.b16 %v342
      %v485 = vunpack.c.l.b16 %v343
      %v486 = vunpack.c.l.b16 %v344
      %v487 = vunpack.c.l.b16 %v345
      %v488 = vunpack.c.l.b16 %v346
      %v489 = vunpack.c.l.b16 %v347
      %v490 = vunpack.c.l.b16 %v348
      %v491 = vunpack.c.l.b16 %v349
      %v492 = vunpack.c.l.b16 %v350
      %v493 = vunpack.c.l.b16 %v351
      %v494 = vunpack.c.l.b16 %v352
      %v495 = vunpack.c.l.b16 %v353
      %v496 = vunpack.c.l.b16 %v354
      %v497 = vunpack.c.l.b16 %v355
      %v498 = vunpack.c.l.b16 %v356
      %v499 = vunpack.c.l.b16 %v357
      %v500 = vunpack.c.l.b16 %v358
      %v501 = vunpack.c.l.b16 %v359
      %v502 = vunpack.c.l.b16 %v360
      %v503 = vunpack.c.l.b16 %v361
      %v504 = vunpack.c.l.b16 %v362
      %v505 = vunpack.c.l.b16 %v363
      %v506 = vunpack.c.l.b16 %v364
      %v507 = vunpack.c.l.b16 %v365
      %v508 = vunpack.c.l.b16 %v366
      %v509 = vunpack.c.l.b16 %v367
      %v510 = vunpack.c.l.b16 %v368
      %v511 = vpack.c.b16 %v448, %v447
      %v512 = vpack.c.b16 %v450, %v449
      %v513 = vpack.c.b16 %v452, %v451
      %v514 = vpack.c.b16 %v454, %v453
      %v515 = vpack.c.b16 %v456, %v455
      %v516 = vpack.c.b16 %v458, %v457
      %v517 = vpack.c.b16 %v460, %v459
      %v518 = vpack.c.b16 %v462, %v461
      %v519 = vpack.c.b16 %v464, %v463
      %v520 = vpack.c.b16 %v466, %v465
      %v521 = vpack.c.b16 %v468, %v467
      %v522 = vpack.c.b16 %v470, %v469
      %v523 = vpack.c.b16 %v472, %v471
      %v524 = vpack.c.b16 %v474, %v473
      %v525 = vpack.c.b16 %v476, %v475
      %v526 = vpack.c.b16 %v478, %v477
      %v527 = vpack.c.b16 %v480, %v479
      %v528 = vpack.c.b16 %v482, %v481
      %v529 = vpack.c.b16 %v484, %v483
      %v530 = vpack.c.b16 %v486, %v485
      %v531 = vpack.c.b16 %v488, %v487
      %v532 = vpack.c.b16 %v490, %v489
      %v533 = vpack.c.b16 %v492, %v491
      %v534 = vpack.c.b16 %v494, %v493
      %v535 = vpack.c.b16 %v496, %v495
      %v536 = vpack.c.b16 %v498, %v497
      %v537 = vpack.c.b16 %v500, %v499
      %v538 = vpack.c.b16 %v502, %v501
      %v539 = vpack.c.b16 %v504, %v503
      %v540 = vpack.c.b16 %v506, %v505
      %v541 = vpack.c.b16 %v508, %v507
      %v542 = vpack.c.b16 %v510, %v509
      %575 = vmatprep.subr.bf16.mxu0 0
      %576 = vmatpush1.bf16.msra.mxu0 %v511
      %577 = vmatprep.subr.bf16.mxu0 0
      %578 = vmatpush1.bf16.msra.mxu0 %v512
      %579 = vmatprep.subr.bf16.mxu0 0
      %580 = vmatpush1.bf16.msra.mxu0 %v513
      %581 = vmatprep.subr.bf16.mxu0 0
      %582 = vmatpush1.bf16.msra.mxu0 %v514
      %583 = vmatprep.subr.bf16.mxu0 0
      %584 = vmatpush1.bf16.msra.mxu0 %v515
      %585 = vmatprep.subr.bf16.mxu0 0
      %586 = vmatpush1.bf16.msra.mxu0 %v516
      %587 = vmatprep.subr.bf16.mxu0 0
      %588 = vmatpush1.bf16.msra.mxu0 %v517
      %589 = vmatprep.subr.bf16.mxu0 0
      %590 = vmatpush1.bf16.msra.mxu0 %v518
      %591 = vmatprep.subr.bf16.mxu0 0
      %592 = vmatpush1.bf16.msra.mxu0 %v519
      %593 = vmatprep.subr.bf16.mxu0 0
      %594 = vmatpush1.bf16.msra.mxu0 %v520
      %595 = vmatprep.subr.bf16.mxu0 0
      %596 = vmatpush1.bf16.msra.mxu0 %v521
      %597 = vmatprep.subr.bf16.mxu0 0
      %598 = vmatpush1.bf16.msra.mxu0 %v522
      %599 = vmatprep.subr.bf16.mxu0 0
      %600 = vmatpush1.bf16.msra.mxu0 %v523
      %601 = vmatprep.subr.bf16.mxu0 0
      %602 = vmatpush1.bf16.msra.mxu0 %v524
      %603 = vmatprep.subr.bf16.mxu0 0
      %604 = vmatpush1.bf16.msra.mxu0 %v525
      %605 = vmatprep.subr.bf16.mxu0 0
      %606 = vmatpush1.bf16.msra.mxu0 %v526
      %607 = vmatprep.mubr.bf16.mxu0 %v376
      %608 = vmatmul.mubr.bf16.gmra.mrb[0].mxu0 %v375
      %v609 = vpop.f32.mrb[0].mxu0
      %v610 = vadd.f32 0.0, %v609
      %v611 = vpop.f32.mrb[0].mxu0
      %v612 = vpop.f32.mrb[0].mxu0
      %v613 = vpop.f32.mrb[0].mxu0
      %614 = vdwg.mxu0
      %615 = vmatprep.subr.bf16.mxu0 0
      %616 = vmatpush1.bf16.msra.mxu0 %v527
      %617 = vmatprep.subr.bf16.mxu0 0
      %618 = vmatpush1.bf16.msra.mxu0 %v528
      %619 = vmatprep.subr.bf16.mxu0 0
      %620 = vmatpush1.bf16.msra.mxu0 %v529
      %621 = vmatprep.subr.bf16.mxu0 0
      %622 = vmatpush1.bf16.msra.mxu0 %v530
      %623 = vmatprep.subr.bf16.mxu0 0
      %624 = vmatpush1.bf16.msra.mxu0 %v531
      %625 = vmatprep.subr.bf16.mxu0 0
      %626 = vmatpush1.bf16.msra.mxu0 %v532
      %627 = vmatprep.subr.bf16.mxu0 0
      %628 = vmatpush1.bf16.msra.mxu0 %v533
      %629 = vmatprep.subr.bf16.mxu0 0
      %630 = vmatpush1.bf16.msra.mxu0 %v534
      %631 = vmatprep.subr.bf16.mxu0 0
      %632 = vmatpush1.bf16.msra.mxu0 %v535
      %633 = vmatprep.subr.bf16.mxu0 0
      %634 = vmatpush1.bf16.msra.mxu0 %v536
      %635 = vmatprep.subr.bf16.mxu0 0
      %636 = vmatpush1.bf16.msra.mxu0 %v537
      %637 = vmatprep.subr.bf16.mxu0 0
      %638 = vmatpush1.bf16.msra.mxu0 %v538
      %639 = vmatprep.subr.bf16.mxu0 0
      %640 = vmatpush1.bf16.msra.mxu0 %v539
      %641 = vmatprep.subr.bf16.mxu0 0
      %642 = vmatpush1.bf16.msra.mxu0 %v540
      %643 = vmatprep.subr.bf16.mxu0 0
      %644 = vmatpush1.bf16.msra.mxu0 %v541
      %645 = vmatprep.subr.bf16.mxu0 0
      %646 = vmatpush1.bf16.msra.mxu0 %v542
      %647 = vmatprep.mubr.bf16.mxu0 %v378
      %648 = vmatmul.mubr.bf16.gmra.mrb[0].mxu0 %v377
      %v649 = vpop.f32.mrb[0].mxu0
      %v650 = vadd.f32 %v610, %v649
      %v651 = vpop.f32.mrb[0].mxu0
      %v652 = vpop.f32.mrb[0].mxu0
      %v653 = vpop.f32.mrb[0].mxu0
      %654 = vdwg.mxu0
      %v655 = vadd.f32 %v302, %v650
      %656 = vst [vmem:[#allocation2] sm:$0xff] %v655
      %p657 = scmp.eq.s32.totalorder %s23, 3
      // Predicated region
      $region37: #{forward.72} parent=27 // pred_check
        %p658 = pneg %p657
      $region38: #{forward.72} parent=27 // pred_check_branch
        %660 = sbr.rel (%p658) target = $region40
      $region39: #{forward.72} parent=27 // pred_region
        %v661 = vld [vmem:[#allocation2] sm:$0xff]
        %v662 = vld [vmem:[%s285] sm:$0x1]
        %v663 = vrot.slane %v661, 4
        %v664 = vadd.f32 %v661, %v663
        %v665 = vrot.slane %v664, 2
        %v666 = vadd.f32 %v664, %v665
        %v667 = vrot.slane %v666, 1
        %v668 = vadd.f32 %v666, %v667
        %v669 = vadd.f32 %v662, %v668
        %670 = vst [vmem:[%s285] sm:$0x1] %v669
        %v671 = vld [vmem:[%s288] sm:$0x1]
        %v672 = vmul.f32 %v661, %v661
        %v673 = vrot.slane %v672, 4
        %v674 = vadd.f32 %v672, %v673
        %v675 = vrot.slane %v674, 2
        %v676 = vadd.f32 %v674, %v675
        %v677 = vrot.slane %v676, 1
        %v678 = vadd.f32 %v676, %v677
        %v679 = vadd.f32 %v671, %v678
        %680 = vst [vmem:[%s288] sm:$0x1] %v679
        %681 = vst [vmem:[%s282] sm:$0xff] %v661
      $region40: #{forward.72} parent=27 // pred_fallthru
        _
      %p682 = scmp.lt.s32.totalorder %s22, 0
      %s683 = scalar_select %p682, %s22, 0
      %p684 = scmp.lt.s32.totalorder %s21, 0
      %s685 = scalar_select %p684, %s21, 0
      %s686 = sadd.s32 %s685, %s683
      %s687 = smul.addr %s686, 8
      %s688 = scalar_lea.vmem %s2, %s687
      %p689 = scmp.lt.s32.totalorder %s21, 0
      %s690 = scalar_select %p689, %s21, 0
      %s691 = scalar_lea.vmem %s3, %s690
      %p692 = scmp.lt.s32.totalorder %s21, 0
      %s693 = scalar_select %p692, %s21, 0
      %s694 = scalar_lea.vmem %s4, %s693
      // Predicated region
      $region41: #{forward.72} parent=27 // pred_check
        %p695 = pneg %p111
      $region42: #{forward.72} parent=27 // pred_check_branch
        %697 = sbr.rel (%p695) target = $region44
      $region43: #{forward.72} parent=27 // pred_region
        _
      $region44: #{forward.72} parent=27 // pred_fallthru
        _
      // Predicated region
      $region45: #{forward.72} parent=27 // pred_check
        %p698 = pneg %p137
      $region46: #{forward.72} parent=27 // pred_check_branch
        %700 = sbr.rel (%p698) target = $region48
      $region47: #{forward.72} parent=27 // pred_region
        _
      $region48: #{forward.72} parent=27 // pred_fallthru
        _
      // Predicated region
      $region49: #{forward.72} parent=27 // pred_check
        %p701 = pneg %p163
      $region50: #{forward.72} parent=27 // pred_check_branch
        %703 = sbr.rel (%p701) target = $region52
      $region51: #{forward.72} parent=27 // pred_region
        _
      $region52: #{forward.72} parent=27 // pred_fallthru
        _
      // Predicated region
      $region53: #{forward.72} parent=27 // pred_check
        %p704 = pneg %p111
      $region54: #{forward.72} parent=27 // pred_check_branch
        %706 = sbr.rel (%p704) target = $region56
      $region55: #{forward.72} parent=27 // pred_region
        %p707 = scmp.lt.s32.totalorder %s22, 0
        %s708 = scalar_select %p707, %s22, 0
        %p709 = scmp.lt.s32.totalorder %s21, 0
        %s710 = scalar_select %p709, %s21, 0
        %s711 = sadd.s32 %s710, %s708
        %s712 = smul.addr %s711, 8
        %s713 = scalar_lea.vmem %s2, %s712
      $region56: #{forward.72} parent=27 // pred_fallthru
        _
      // Predicated region
      $region57: #{forward.72} parent=27 // pred_check
        %p714 = pneg %p137
      $region58: #{forward.72} parent=27 // pred_check_branch
        %716 = sbr.rel (%p714) target = $region60
      $region59: #{forward.72} parent=27 // pred_region
        %p717 = scmp.lt.s32.totalorder %s21, 0
        %s718 = scalar_select %p717, %s21, 0
        %s719 = scalar_lea.vmem %s3, %s718
      $region60: #{forward.72} parent=27 // pred_fallthru
        _
      // Predicated region
      $region61: #{forward.72} parent=27 // pred_check
        %p720 = pneg %p163
      $region62: #{forward.72} parent=27 // pred_check_branch
        %722 = sbr.rel (%p720) target = $region64
      $region63: #{forward.72} parent=27 // pred_region
        %p723 = scmp.lt.s32.totalorder %s21, 0
        %s724 = scalar_select %p723, %s21, 0
        %s725 = scalar_lea.vmem %s4, %s724
      $region64: #{forward.72} parent=27 // pred_fallthru
        _
    $region28: #{forward.72} parent=5 // pred_fallthru
      _
    %p726 = scmp.le.s32.totalorder 2, %s11
    // Predicated region
    $region65: #{forward.72} parent=5 // pred_check
      %p727 = pneg %p726
    $region66: #{forward.72} parent=5 // pred_check_branch
      %729 = sbr.rel (%p727) target = $region68
    $region67: #{forward.72} parent=5 // pred_region
      %s730 = ssub.s32 %s11, 2
    $region68: #{forward.72} parent=5 // pred_fallthru
      _
  $region6: #{forward.72} parent=0 // loop_footer
    %s15 = sadd.s32 1, %s11
  $region7: #{forward.72} parent=0 // loop_footer_branch
    %10 = sbr.rel target = $region3
  $region8: #{forward.72} parent=0 // loop_exit
    _

// kernel: forward.75
$region0: #{forward.75}
  #allocation0 [shape = 'u32[]', space=smem, size = 0x4, offset = 0x4, fixed_abs, tag = 'smem constant byte address 0x4 - core index']
  #allocation1 [shape = 'u32[144,128]{1,0:T(1,128)}', space=vmem, size = 0x12000, scoped, tag = 'internal scratch']
  #allocation2 [shape = 'f32[8,128]{1,0:T(8,128)}', space=vmem, size = 0x1000, scoped, tag = 'scratch operand']
  %s0 = inlined_call_operand.vmem [shape: bf16[8,32], index: 0, kind: input, shape index: {}]
  %s1 = inlined_call_operand.vmem [shape: bf16[32,128], index: 1, kind: input, shape index: {}]
  %s2 = inlined_call_operand.vmem [shape: f32[1,128], index: 2, kind: input, shape index: {}]
  %s3 = inlined_call_operand.vmem [shape: bf16[8,128], index: 3, kind: output, shape index: {}]
  %s4 = sld [smem:[#allocation0]]
  $region30: #{forward.75} parent=0
    _
  %s6 = ssub.s32 1, %s4
  %s7 = scalar_select 0, %s6, %s4
  // Predicated region
  $region2: #{forward.75} parent=0 // pred_check
    _
  $region3: #{forward.75} parent=0 // pred_check_branch
    %9 = sbr.rel (0) target = $region5
  $region4: #{forward.75} parent=0 // pred_region
    _
  $region5: #{forward.75} parent=0 // pred_fallthru
    _
  // Predicated region
  $region6: #{forward.75} parent=0 // pred_check
    _
  $region7: #{forward.75} parent=0 // pred_check_branch
    %11 = sbr.rel (0) target = $region9
  $region8: #{forward.75} parent=0 // pred_region
    _
  $region9: #{forward.75} parent=0 // pred_fallthru
    _
  // Predicated region
  $region10: #{forward.75} parent=0 // pred_check
    _
  $region11: #{forward.75} parent=0 // pred_check_branch
    %13 = sbr.rel (0) target = $region13
  $region12: #{forward.75} parent=0 // pred_region
    _
  $region13: #{forward.75} parent=0 // pred_fallthru
    _
  %p15 = scmp.eq.s32.totalorder 0, 0
  // Predicated region
  $region14: #{forward.75} parent=0 // pred_check
    %p16 = pneg %p15
  $region15: #{forward.75} parent=0 // pred_check_branch
    %18 = sbr.rel (%p16) target = $region17
  $region16: #{forward.75} parent=0 // pred_region
    %19 = vst [vmem:[#allocation2] sm:$0xff] 0.0
  $region17: #{forward.75} parent=0 // pred_fallthru
    _
  %v20 = vld [vmem:[#allocation2] sm:$0xff]
  %v21 = vld [vmem:[%s0] sm:$0xf]
  %v22 = vld [vmem:[%s1] sm:$0xf]
  %v23 = vld [vmem:[%s1 + $0x4] sm:$0xf]
  %v24 = vld [vmem:[%s1 + $0x8] sm:$0xf]
  %v25 = vld [vmem:[%s1 + $0xc] sm:$0xf]
  %v30 = vunpack.c.l.b16 %v22
  %v31 = vunpack.c.l.b16 %v23
  %v32 = vunpack.c.l.b16 %v24
  %v33 = vunpack.c.l.b16 %v25
  %v34 = vpack.c.b16 %v31, %v30
  %v35 = vpack.c.b16 %v33, %v32
  %vm38 = vcmask 261120
  %v40 = vsel %vm38, %v21, 0
  %42 = vmatprep.subr.bf16.mxu0 0
  %43 = vmatpush1.bf16.msra.mxu0 %v34
  %44 = vmatprep.subr.bf16.mxu0 0
  %45 = vmatpush1.bf16.msra.mxu0 %v35
  %46 = vmatprep.subr.bf16.mxu0 0
  %47 = vmatpush1.bf16.msra.mxu0 0
  %48 = vmatprep.subr.bf16.mxu0 0
  %49 = vmatpush1.bf16.msra.mxu0 0
  %50 = vmatprep.subr.bf16.mxu0 0
  %51 = vmatpush1.bf16.msra.mxu0 0
  %52 = vmatprep.subr.bf16.mxu0 0
  %53 = vmatpush1.bf16.msra.mxu0 0
  %54 = vmatprep.subr.bf16.mxu0 0
  %55 = vmatpush1.bf16.msra.mxu0 0
  %56 = vmatprep.subr.bf16.mxu0 0
  %57 = vmatpush1.bf16.msra.mxu0 0
  %58 = vmatprep.subr.bf16.mxu0 0
  %59 = vmatpush1.bf16.msra.mxu0 0
  %60 = vmatprep.subr.bf16.mxu0 0
  %61 = vmatpush1.bf16.msra.mxu0 0
  %62 = vmatprep.subr.bf16.mxu0 0
  %63 = vmatpush1.bf16.msra.mxu0 0
  %64 = vmatprep.subr.bf16.mxu0 0
  %65 = vmatpush1.bf16.msra.mxu0 0
  %66 = vmatprep.subr.bf16.mxu0 0
  %67 = vmatpush1.bf16.msra.mxu0 0
  %68 = vmatprep.subr.bf16.mxu0 0
  %69 = vmatpush1.bf16.msra.mxu0 0
  %70 = vmatprep.subr.bf16.mxu0 0
  %71 = vmatpush1.bf16.msra.mxu0 0
  %72 = vmatprep.subr.bf16.mxu0 0
  %73 = vmatpush1.bf16.msra.mxu0 0
  %74 = vmatprep.mubr.bf16.mxu0 0
  %75 = vmatmul.mubr.bf16.gmra.mrb[0].mxu0 %v40
  %v76 = vpop.f32.mrb[0].mxu0
  %v77 = vadd.f32 0.0, %v76
  %v78 = vpop.f32.mrb[0].mxu0
  %v79 = vpop.f32.mrb[0].mxu0
  %v80 = vpop.f32.mrb[0].mxu0
  %81 = vdwg.mxu0
  %v82 = vadd.f32 %v20, %v77
  %83 = vst [vmem:[#allocation2] sm:$0xff] %v82
  // Predicated region
  $region18: #{forward.75} parent=0 // pred_check
    %p84 = pneg %p15
  $region19: #{forward.75} parent=0 // pred_check_branch
    %86 = sbr.rel (%p84) target = $region21
  $region20: #{forward.75} parent=0 // pred_region
    %v87 = vld [vmem:[#allocation2] sm:$0xff]
    %v88 = vld [vmem:[%s2] sm:$0x1]
    %v90 = vlaneseq
    %v91 = vshrl.u32 %v90, 7
    %v92 = vsub.s32 0, %v91
    %v93 = vrot.slane %v88, %v92
    %v95 = vadd.f32 %v87, %v93
    %v96 = vmax.f32 %v95, 0.0
    %v97 = vpack.c.bf16 %v96, %v96
    %98 = vst [vmem:[%s3] sm:$0xf] %v97
  $region21: #{forward.75} parent=0 // pred_fallthru
    _
  // Predicated region
  $region22: #{forward.75} parent=0 // pred_check
    _
  $region23: #{forward.75} parent=0 // pred_check_branch
    %100 = sbr.rel (0) target = $region25
  $region24: #{forward.75} parent=0 // pred_region
    _
  $region25: #{forward.75} parent=0 // pred_fallthru
    _
  // Predicated region
  $region26: #{forward.75} parent=0 // pred_check
    _
  $region27: #{forward.75} parent=0 // pred_check_branch
    %102 = sbr.rel (0) target = $region29
  $region28: #{forward.75} parent=0 // pred_region
    _
  $region29: #{forward.75} parent=0 // pred_fallthru
    _

// kernel: forward.77
$region0: #{forward.77}
  #allocation0 [shape = 'u32[]', space=smem, size = 0x4, offset = 0x4, fixed_abs, tag = 'smem constant byte address 0x4 - core index']
  #allocation1 [shape = 'u32[144,128]{1,0:T(1,128)}', space=vmem, size = 0x12000, scoped, tag = 'internal scratch']
  #allocation2 [shape = 'f32[8,128]{1,0:T(8,128)}', space=vmem, size = 0x1000, scoped, tag = 'scratch operand']
  %s0 = inlined_call_operand.vmem [shape: bf16[8,512], index: 0, kind: input, shape index: {}]
  %s1 = inlined_call_operand.vmem [shape: bf16[512,128], index: 1, kind: input, shape index: {}]
  %s2 = inlined_call_operand.vmem [shape: f32[8,128], index: 2, kind: output, shape index: {0}]
  %s3 = inlined_call_operand.vmem [shape: f32[1,128], index: 3, kind: output, shape index: {1}]
  %s4 = inlined_call_operand.vmem [shape: f32[1,128], index: 4, kind: output, shape index: {2}]
  %5 = xla_tuple %s2, %s3, %s4
  %s6 = sld [smem:[#allocation0]]
  $region46: #{forward.77} parent=0
    _
  %s8 = ssub.s32 1, %s6
  %s9 = scalar_select 0, %s8, %s6
  // Predicated region
  $region2: #{forward.77} parent=0 // pred_check
    _
  $region3: #{forward.77} parent=0 // pred_check_branch
    %11 = sbr.rel (0) target = $region5
  $region4: #{forward.77} parent=0 // pred_region
    _
  $region5: #{forward.77} parent=0 // pred_fallthru
    _
  // Predicated region
  $region6: #{forward.77} parent=0 // pred_check
    _
  $region7: #{forward.77} parent=0 // pred_check_branch
    %13 = sbr.rel (0) target = $region9
  $region8: #{forward.77} parent=0 // pred_region
    _
  $region9: #{forward.77} parent=0 // pred_fallthru
    _
  %p15 = scmp.eq.s32.totalorder 0, 0
  // Predicated region
  $region10: #{forward.77} parent=0 // pred_check
    %p16 = pneg %p15
  $region11: #{forward.77} parent=0 // pred_check_branch
    %18 = sbr.rel (%p16) target = $region13
  $region12: #{forward.77} parent=0 // pred_region
    %19 = vst [vmem:[#allocation2] sm:$0xff] 0.0
  $region13: #{forward.77} parent=0 // pred_fallthru
    _
  %p20 = scmp.eq.s32.totalorder 0, 0
  %p21 = pnand %p15, %p20
  %p22 = pneg %p21
  // Predicated region
  $region14: #{forward.77} parent=0 // pred_check
    _
  $region15: #{forward.77} parent=0 // pred_check_branch
    %24 = sbr.rel (%p21) target = $region17
  $region16: #{forward.77} parent=0 // pred_region
    %25 = vst [vmem:[%s3] sm:$0x1] 0.0
    %26 = vst [vmem:[%s4] sm:$0x1] 0.0
  $region17: #{forward.77} parent=0 // pred_fallthru
    _
  %v27 = vld [vmem:[#allocation2] sm:$0xff]
  %v28 = vld [vmem:[%s0] sm:$0xff]
  %v29 = vld [vmem:[%s0 + $0x8] sm:$0xff]
  %v30 = vld [vmem:[%s1] sm:$0xf]
  %v31 = vld [vmem:[%s1 + $0x4] sm:$0xf]
  %v32 = vld [vmem:[%s1 + $0x8] sm:$0xf]
  %v33 = vld [vmem:[%s1 + $0xc] sm:$0xf]
  %v34 = vld [vmem:[%s1 + $0x10] sm:$0xf]
  %v35 = vld [vmem:[%s1 + $0x14] sm:$0xf]
  %v36 = vld [vmem:[%s1 + $0x18] sm:$0xf]
  %v37 = vld [vmem:[%s1 + $0x1c] sm:$0xf]
  %v38 = vld [vmem:[%s1 + $0x20] sm:$0xf]
  %v39 = vld [vmem:[%s1 + $0x24] sm:$0xf]
  %v40 = vld [vmem:[%s1 + $0x28] sm:$0xf]
  %v41 = vld [vmem:[%s1 + $0x2c] sm:$0xf]
  %v42 = vld [vmem:[%s1 + $0x30] sm:$0xf]
  %v43 = vld [vmem:[%s1 + $0x34] sm:$0xf]
  %v44 = vld [vmem:[%s1 + $0x38] sm:$0xf]
  %v45 = vld [vmem:[%s1 + $0x3c] sm:$0xf]
  %v46 = vld [vmem:[%s1 + $0x40] sm:$0xf]
  %v47 = vld [vmem:[%s1 + $0x44] sm:$0xf]
  %v48 = vld [vmem:[%s1 + $0x48] sm:$0xf]
  %v49 = vld [vmem:[%s1 + $0x4c] sm:$0xf]
  %v50 = vld [vmem:[%s1 + $0x50] sm:$0xf]
  %v51 = vld [vmem:[%s1 + $0x54] sm:$0xf]
  %v52 = vld [vmem:[%s1 + $0x58] sm:$0xf]
  %v53 = vld [vmem:[%s1 + $0x5c] sm:$0xf]
  %v54 = vld [vmem:[%s1 + $0x60] sm:$0xf]
  %v55 = vld [vmem:[%s1 + $0x64] sm:$0xf]
  %v56 = vld [vmem:[%s1 + $0x68] sm:$0xf]
  %v57 = vld [vmem:[%s1 + $0x6c] sm:$0xf]
  %v58 = vld [vmem:[%s1 + $0x70] sm:$0xf]
  %v59 = vld [vmem:[%s1 + $0x74] sm:$0xf]
  %v60 = vld [vmem:[%s1 + $0x78] sm:$0xf]
  %v61 = vld [vmem:[%s1 + $0x7c] sm:$0xf]
  %v62 = vld [vmem:[%s1 + $0x80] sm:$0xf]
  %v63 = vld [vmem:[%s1 + $0x84] sm:$0xf]
  %v64 = vld [vmem:[%s1 + $0x88] sm:$0xf]
  %v65 = vld [vmem:[%s1 + $0x8c] sm:$0xf]
  %v66 = vld [vmem:[%s1 + $0x90] sm:$0xf]
  %v67 = vld [vmem:[%s1 + $0x94] sm:$0xf]
  %v68 = vld [vmem:[%s1 + $0x98] sm:$0xf]
  %v69 = vld [vmem:[%s1 + $0x9c] sm:$0xf]
  %v70 = vld [vmem:[%s1 + $0xa0] sm:$0xf]
  %v71 = vld [vmem:[%s1 + $0xa4] sm:$0xf]
  %v72 = vld [vmem:[%s1 + $0xa8] sm:$0xf]
  %v73 = vld [vmem:[%s1 + $0xac] sm:$0xf]
  %v74 = vld [vmem:[%s1 + $0xb0] sm:$0xf]
  %v75 = vld [vmem:[%s1 + $0xb4] sm:$0xf]
  %v76 = vld [vmem:[%s1 + $0xb8] sm:$0xf]
  %v77 = vld [vmem:[%s1 + $0xbc] sm:$0xf]
  %v78 = vld [vmem:[%s1 + $0xc0] sm:$0xf]
  %v79 = vld [vmem:[%s1 + $0xc4] sm:$0xf]
  %v80 = vld [vmem:[%s1 + $0xc8] sm:$0xf]
  %v81 = vld [vmem:[%s1 + $0xcc] sm:$0xf]
  %v82 = vld [vmem:[%s1 + $0xd0] sm:$0xf]
  %v83 = vld [vmem:[%s1 + $0xd4] sm:$0xf]
  %v84 = vld [vmem:[%s1 + $0xd8] sm:$0xf]
  %v85 = vld [vmem:[%s1 + $0xdc] sm:$0xf]
  %v86 = vld [vmem:[%s1 + $0xe0] sm:$0xf]
  %v87 = vld [vmem:[%s1 + $0xe4] sm:$0xf]
  %v88 = vld [vmem:[%s1 + $0xe8] sm:$0xf]
  %v89 = vld [vmem:[%s1 + $0xec] sm:$0xf]
  %v90 = vld [vmem:[%s1 + $0xf0] sm:$0xf]
  %v91 = vld [vmem:[%s1 + $0xf4] sm:$0xf]
  %v92 = vld [vmem:[%s1 + $0xf8] sm:$0xf]
  %v93 = vld [vmem:[%s1 + $0xfc] sm:$0xf]
  %v96 = vunpack.c.l.b16 %v28
  %v97 = vunpack.c.h.b16 %v28
  %v98 = vunpack.c.l.b16 %v29
  %v99 = vunpack.c.h.b16 %v29
  %v100 = vpack.c.b16 %v96, %v96
  %v101 = vpack.c.b16 %v97, %v97
  %v102 = vpack.c.b16 %v98, %v98
  %v103 = vpack.c.b16 %v99, %v99
  %v172 = vunpack.c.l.b16 %v30
  %v173 = vunpack.c.l.b16 %v31
  %v174 = vunpack.c.l.b16 %v32
  %v175 = vunpack.c.l.b16 %v33
  %v176 = vunpack.c.l.b16 %v34
  %v177 = vunpack.c.l.b16 %v35
  %v178 = vunpack.c.l.b16 %v36
  %v179 = vunpack.c.l.b16 %v37
  %v180 = vunpack.c.l.b16 %v38
  %v181 = vunpack.c.l.b16 %v39
  %v182 = vunpack.c.l.b16 %v40
  %v183 = vunpack.c.l.b16 %v41
  %v184 = vunpack.c.l.b16 %v42
  %v185 = vunpack.c.l.b16 %v43
  %v186 = vunpack.c.l.b16 %v44
  %v187 = vunpack.c.l.b16 %v45
  %v188 = vunpack.c.l.b16 %v46
  %v189 = vunpack.c.l.b16 %v47
  %v190 = vunpack.c.l.b16 %v48
  %v191 = vunpack.c.l.b16 %v49
  %v192 = vunpack.c.l.b16 %v50
  %v193 = vunpack.c.l.b16 %v51
  %v194 = vunpack.c.l.b16 %v52
  %v195 = vunpack.c.l.b16 %v53
  %v196 = vunpack.c.l.b16 %v54
  %v197 = vunpack.c.l.b16 %v55
  %v198 = vunpack.c.l.b16 %v56
  %v199 = vunpack.c.l.b16 %v57
  %v200 = vunpack.c.l.b16 %v58
  %v201 = vunpack.c.l.b16 %v59
  %v202 = vunpack.c.l.b16 %v60
  %v203 = vunpack.c.l.b16 %v61
  %v204 = vunpack.c.l.b16 %v62
  %v205 = vunpack.c.l.b16 %v63
  %v206 = vunpack.c.l.b16 %v64
  %v207 = vunpack.c.l.b16 %v65
  %v208 = vunpack.c.l.b16 %v66
  %v209 = vunpack.c.l.b16 %v67
  %v210 = vunpack.c.l.b16 %v68
  %v211 = vunpack.c.l.b16 %v69
  %v212 = vunpack.c.l.b16 %v70
  %v213 = vunpack.c.l.b16 %v71
  %v214 = vunpack.c.l.b16 %v72
  %v215 = vunpack.c.l.b16 %v73
  %v216 = vunpack.c.l.b16 %v74
  %v217 = vunpack.c.l.b16 %v75
  %v218 = vunpack.c.l.b16 %v76
  %v219 = vunpack.c.l.b16 %v77
  %v220 = vunpack.c.l.b16 %v78
  %v221 = vunpack.c.l.b16 %v79
  %v222 = vunpack.c.l.b16 %v80
  %v223 = vunpack.c.l.b16 %v81
  %v224 = vunpack.c.l.b16 %v82
  %v225 = vunpack.c.l.b16 %v83
  %v226 = vunpack.c.l.b16 %v84
  %v227 = vunpack.c.l.b16 %v85
  %v228 = vunpack.c.l.b16 %v86
  %v229 = vunpack.c.l.b16 %v87
  %v230 = vunpack.c.l.b16 %v88
  %v231 = vunpack.c.l.b16 %v89
  %v232 = vunpack.c.l.b16 %v90
  %v233 = vunpack.c.l.b16 %v91
  %v234 = vunpack.c.l.b16 %v92
  %v235 = vunpack.c.l.b16 %v93
  %v236 = vpack.c.b16 %v173, %v172
  %v237 = vpack.c.b16 %v175, %v174
  %v238 = vpack.c.b16 %v177, %v176
  %v239 = vpack.c.b16 %v179, %v178
  %v240 = vpack.c.b16 %v181, %v180
  %v241 = vpack.c.b16 %v183, %v182
  %v242 = vpack.c.b16 %v185, %v184
  %v243 = vpack.c.b16 %v187, %v186
  %v244 = vpack.c.b16 %v189, %v188
  %v245 = vpack.c.b16 %v191, %v190
  %v246 = vpack.c.b16 %v193, %v192
  %v247 = vpack.c.b16 %v195, %v194
  %v248 = vpack.c.b16 %v197, %v196
  %v249 = vpack.c.b16 %v199, %v198
  %v250 = vpack.c.b16 %v201, %v200
  %v251 = vpack.c.b16 %v203, %v202
  %v252 = vpack.c.b16 %v205, %v204
  %v253 = vpack.c.b16 %v207, %v206
  %v254 = vpack.c.b16 %v209, %v208
  %v255 = vpack.c.b16 %v211, %v210
  %v256 = vpack.c.b16 %v213, %v212
  %v257 = vpack.c.b16 %v215, %v214
  %v258 = vpack.c.b16 %v217, %v216
  %v259 = vpack.c.b16 %v219, %v218
  %v260 = vpack.c.b16 %v221, %v220
  %v261 = vpack.c.b16 %v223, %v222
  %v262 = vpack.c.b16 %v225, %v224
  %v263 = vpack.c.b16 %v227, %v226
  %v264 = vpack.c.b16 %v229, %v228
  %v265 = vpack.c.b16 %v231, %v230
  %v266 = vpack.c.b16 %v233, %v232
  %v267 = vpack.c.b16 %v235, %v234
  %300 = vmatprep.subr.bf16.mxu0 0
  %301 = vmatpush1.bf16.msra.mxu0 %v236
  %302 = vmatprep.subr.bf16.mxu0 0
  %303 = vmatpush1.bf16.msra.mxu0 %v237
  %304 = vmatprep.subr.bf16.mxu0 0
  %305 = vmatpush1.bf16.msra.mxu0 %v238
  %306 = vmatprep.subr.bf16.mxu0 0
  %307 = vmatpush1.bf16.msra.mxu0 %v239
  %308 = vmatprep.subr.bf16.mxu0 0
  %309 = vmatpush1.bf16.msra.mxu0 %v240
  %310 = vmatprep.subr.bf16.mxu0 0
  %311 = vmatpush1.bf16.msra.mxu0 %v241
  %312 = vmatprep.subr.bf16.mxu0 0
  %313 = vmatpush1.bf16.msra.mxu0 %v242
  %314 = vmatprep.subr.bf16.mxu0 0
  %315 = vmatpush1.bf16.msra.mxu0 %v243
  %316 = vmatprep.subr.bf16.mxu0 0
  %317 = vmatpush1.bf16.msra.mxu0 %v244
  %318 = vmatprep.subr.bf16.mxu0 0
  %319 = vmatpush1.bf16.msra.mxu0 %v245
  %320 = vmatprep.subr.bf16.mxu0 0
  %321 = vmatpush1.bf16.msra.mxu0 %v246
  %322 = vmatprep.subr.bf16.mxu0 0
  %323 = vmatpush1.bf16.msra.mxu0 %v247
  %324 = vmatprep.subr.bf16.mxu0 0
  %325 = vmatpush1.bf16.msra.mxu0 %v248
  %326 = vmatprep.subr.bf16.mxu0 0
  %327 = vmatpush1.bf16.msra.mxu0 %v249
  %328 = vmatprep.subr.bf16.mxu0 0
  %329 = vmatpush1.bf16.msra.mxu0 %v250
  %330 = vmatprep.subr.bf16.mxu0 0
  %331 = vmatpush1.bf16.msra.mxu0 %v251
  %332 = vmatprep.mubr.bf16.mxu0 %v101
  %333 = vmatmul.mubr.bf16.gmra.mrb[0].mxu0 %v100
  %v334 = vpop.f32.mrb[0].mxu0
  %v335 = vadd.f32 0.0, %v334
  %v336 = vpop.f32.mrb[0].mxu0
  %v337 = vpop.f32.mrb[0].mxu0
  %v338 = vpop.f32.mrb[0].mxu0
  %339 = vdwg.mxu0
  %340 = vmatprep.subr.bf16.mxu0 0
  %341 = vmatpush1.bf16.msra.mxu0 %v252
  %342 = vmatprep.subr.bf16.mxu0 0
  %343 = vmatpush1.bf16.msra.mxu0 %v253
  %344 = vmatprep.subr.bf16.mxu0 0
  %345 = vmatpush1.bf16.msra.mxu0 %v254
  %346 = vmatprep.subr.bf16.mxu0 0
  %347 = vmatpush1.bf16.msra.mxu0 %v255
  %348 = vmatprep.subr.bf16.mxu0 0
  %349 = vmatpush1.bf16.msra.mxu0 %v256
  %350 = vmatprep.subr.bf16.mxu0 0
  %351 = vmatpush1.bf16.msra.mxu0 %v257
  %352 = vmatprep.subr.bf16.mxu0 0
  %353 = vmatpush1.bf16.msra.mxu0 %v258
  %354 = vmatprep.subr.bf16.mxu0 0
  %355 = vmatpush1.bf16.msra.mxu0 %v259
  %356 = vmatprep.subr.bf16.mxu0 0
  %357 = vmatpush1.bf16.msra.mxu0 %v260
  %358 = vmatprep.subr.bf16.mxu0 0
  %359 = vmatpush1.bf16.msra.mxu0 %v261
  %360 = vmatprep.subr.bf16.mxu0 0
  %361 = vmatpush1.bf16.msra.mxu0 %v262
  %362 = vmatprep.subr.bf16.mxu0 0
  %363 = vmatpush1.bf16.msra.mxu0 %v263
  %364 = vmatprep.subr.bf16.mxu0 0
  %365 = vmatpush1.bf16.msra.mxu0 %v264
  %366 = vmatprep.subr.bf16.mxu0 0
  %367 = vmatpush1.bf16.msra.mxu0 %v265
  %368 = vmatprep.subr.bf16.mxu0 0
  %369 = vmatpush1.bf16.msra.mxu0 %v266
  %370 = vmatprep.subr.bf16.mxu0 0
  %371 = vmatpush1.bf16.msra.mxu0 %v267
  %372 = vmatprep.mubr.bf16.mxu0 %v103
  %373 = vmatmul.mubr.bf16.gmra.mrb[0].mxu0 %v102
  %v374 = vpop.f32.mrb[0].mxu0
  %v375 = vadd.f32 %v335, %v374
  %v376 = vpop.f32.mrb[0].mxu0
  %v377 = vpop.f32.mrb[0].mxu0
  %v378 = vpop.f32.mrb[0].mxu0
  %379 = vdwg.mxu0
  %v380 = vadd.f32 %v27, %v375
  %381 = vst [vmem:[#allocation2] sm:$0xff] %v380
  // Predicated region
  $region18: #{forward.77} parent=0 // pred_check
    %p382 = pneg %p15
  $region19: #{forward.77} parent=0 // pred_check_branch
    %384 = sbr.rel (%p382) target = $region21
  $region20: #{forward.77} parent=0 // pred_region
    %v385 = vld [vmem:[#allocation2] sm:$0xff]
    %v386 = vld [vmem:[%s3] sm:$0x1]
    %v387 = vrot.slane %v385, 4
    %v388 = vadd.f32 %v385, %v387
    %v389 = vrot.slane %v388, 2
    %v390 = vadd.f32 %v388, %v389
    %v391 = vrot.slane %v390, 1
    %v392 = vadd.f32 %v390, %v391
    %v393 = vadd.f32 %v386, %v392
    %394 = vst [vmem:[%s3] sm:$0x1] %v393
    %v395 = vld [vmem:[%s4] sm:$0x1]
    %v396 = vmul.f32 %v385, %v385
    %v397 = vrot.slane %v396, 4
    %v398 = vadd.f32 %v396, %v397
    %v399 = vrot.slane %v398, 2
    %v400 = vadd.f32 %v398, %v399
    %v401 = vrot.slane %v400, 1
    %v402 = vadd.f32 %v400, %v401
    %v403 = vadd.f32 %v395, %v402
    %404 = vst [vmem:[%s4] sm:$0x1] %v403
    %405 = vst [vmem:[%s2] sm:$0xff] %v385
  $region21: #{forward.77} parent=0 // pred_fallthru
    _
  // Predicated region
  $region22: #{forward.77} parent=0 // pred_check
    _
  $region23: #{forward.77} parent=0 // pred_check_branch
    %407 = sbr.rel (0) target = $region25
  $region24: #{forward.77} parent=0 // pred_region
    _
  $region25: #{forward.77} parent=0 // pred_fallthru
    _
  // Predicated region
  $region26: #{forward.77} parent=0 // pred_check
    _
  $region27: #{forward.77} parent=0 // pred_check_branch
    %409 = sbr.rel (0) target = $region29
  $region28: #{forward.77} parent=0 // pred_region
    _
  $region29: #{forward.77} parent=0 // pred_fallthru
    _
  // Predicated region
  $region30: #{forward.77} parent=0 // pred_check
    _
  $region31: #{forward.77} parent=0 // pred_check_branch
    %411 = sbr.rel (0) target = $region33
  $region32: #{forward.77} parent=0 // pred_region
    _
  $region33: #{forward.77} parent=0 // pred_fallthru
    _
  // Predicated region
  $region34: #{forward.77} parent=0 // pred_check
    _
  $region35: #{forward.77} parent=0 // pred_check_branch
    %413 = sbr.rel (0) target = $region37
  $region36: #{forward.77} parent=0 // pred_region
    _
  $region37: #{forward.77} parent=0 // pred_fallthru
    _
  // Predicated region
  $region38: #{forward.77} parent=0 // pred_check
    _
  $region39: #{forward.77} parent=0 // pred_check_branch
    %415 = sbr.rel (0) target = $region41
  $region40: #{forward.77} parent=0 // pred_region
    _
  $region41: #{forward.77} parent=0 // pred_fallthru
    _
  // Predicated region
  $region42: #{forward.77} parent=0 // pred_check
    _
  $region43: #{forward.77} parent=0 // pred_check_branch
    %417 = sbr.rel (0) target = $region45
  $region44: #{forward.77} parent=0 // pred_region
    _
  $region45: #{forward.77} parent=0 // pred_fallthru
    _

// kernel: forward.93
$region0: #{forward.93}
  #allocation0 [shape = 'u32[]', space=smem, size = 0x4, offset = 0x4, fixed_abs, tag = 'smem constant byte address 0x4 - core index']
  #allocation1 [shape = 'u32[144,128]{1,0:T(1,128)}', space=vmem, size = 0x12000, scoped, tag = 'internal scratch']
  #allocation2 [shape = 'f32[16,128]{1,0:T(8,128)}', space=vmem, size = 0x2000, scoped, tag = 'scratch operand']
  %s0 = inlined_call_operand.vmem [shape: bf16[16,256], index: 0, kind: input, shape index: {}]
  %s1 = inlined_call_operand.vmem [shape: bf16[256,128], index: 1, kind: input, shape index: {}]
  %s2 = inlined_call_operand.vmem [shape: f32[16,128], index: 2, kind: output, shape index: {0}]
  %s3 = inlined_call_operand.vmem [shape: f32[1,128], index: 3, kind: output, shape index: {1}]
  %s4 = inlined_call_operand.vmem [shape: f32[1,128], index: 4, kind: output, shape index: {2}]
  %5 = xla_tuple %s2, %s3, %s4
  %s6 = sld [smem:[#allocation0]]
  $region46: #{forward.93} parent=0
    _
  %s8 = ssub.s32 1, %s6
  %s9 = scalar_select 0, %s8, %s6
  // Predicated region
  $region2: #{forward.93} parent=0 // pred_check
    _
  $region3: #{forward.93} parent=0 // pred_check_branch
    %11 = sbr.rel (0) target = $region5
  $region4: #{forward.93} parent=0 // pred_region
    _
  $region5: #{forward.93} parent=0 // pred_fallthru
    _
  // Predicated region
  $region6: #{forward.93} parent=0 // pred_check
    _
  $region7: #{forward.93} parent=0 // pred_check_branch
    %13 = sbr.rel (0) target = $region9
  $region8: #{forward.93} parent=0 // pred_region
    _
  $region9: #{forward.93} parent=0 // pred_fallthru
    _
  %p15 = scmp.eq.s32.totalorder 0, 0
  // Predicated region
  $region10: #{forward.93} parent=0 // pred_check
    %p16 = pneg %p15
  $region11: #{forward.93} parent=0 // pred_check_branch
    %18 = sbr.rel (%p16) target = $region13
  $region12: #{forward.93} parent=0 // pred_region
    %19 = vst [vmem:[#allocation2] sm:$0xff] 0.0
    %20 = vst [vmem:[#allocation2 + $0x8] sm:$0xff] 0.0
  $region13: #{forward.93} parent=0 // pred_fallthru
    _
  %p21 = scmp.eq.s32.totalorder 0, 0
  %p22 = pnand %p15, %p21
  %p23 = pneg %p22
  // Predicated region
  $region14: #{forward.93} parent=0 // pred_check
    _
  $region15: #{forward.93} parent=0 // pred_check_branch
    %25 = sbr.rel (%p22) target = $region17
  $region16: #{forward.93} parent=0 // pred_region
    %26 = vst [vmem:[%s3] sm:$0x1] 0.0
    %27 = vst [vmem:[%s4] sm:$0x1] 0.0
  $region17: #{forward.93} parent=0 // pred_fallthru
    _
  %v28 = vld [vmem:[#allocation2] sm:$0xff]
  %v29 = vld [vmem:[#allocation2 + $0x8] sm:$0xff]
  %v30 = vld [vmem:[%s0] sm:$0xff]
  %v31 = vld [vmem:[%s0 + $0x8] sm:$0xff]
  %v32 = vld [vmem:[%s1] sm:$0xf]
  %v33 = vld [vmem:[%s1 + $0x4] sm:$0xf]
  %v34 = vld [vmem:[%s1 + $0x8] sm:$0xf]
  %v35 = vld [vmem:[%s1 + $0xc] sm:$0xf]
  %v36 = vld [vmem:[%s1 + $0x10] sm:$0xf]
  %v37 = vld [vmem:[%s1 + $0x14] sm:$0xf]
  %v38 = vld [vmem:[%s1 + $0x18] sm:$0xf]
  %v39 = vld [vmem:[%s1 + $0x1c] sm:$0xf]
  %v40 = vld [vmem:[%s1 + $0x20] sm:$0xf]
  %v41 = vld [vmem:[%s1 + $0x24] sm:$0xf]
  %v42 = vld [vmem:[%s1 + $0x28] sm:$0xf]
  %v43 = vld [vmem:[%s1 + $0x2c] sm:$0xf]
  %v44 = vld [vmem:[%s1 + $0x30] sm:$0xf]
  %v45 = vld [vmem:[%s1 + $0x34] sm:$0xf]
  %v46 = vld [vmem:[%s1 + $0x38] sm:$0xf]
  %v47 = vld [vmem:[%s1 + $0x3c] sm:$0xf]
  %v48 = vld [vmem:[%s1 + $0x40] sm:$0xf]
  %v49 = vld [vmem:[%s1 + $0x44] sm:$0xf]
  %v50 = vld [vmem:[%s1 + $0x48] sm:$0xf]
  %v51 = vld [vmem:[%s1 + $0x4c] sm:$0xf]
  %v52 = vld [vmem:[%s1 + $0x50] sm:$0xf]
  %v53 = vld [vmem:[%s1 + $0x54] sm:$0xf]
  %v54 = vld [vmem:[%s1 + $0x58] sm:$0xf]
  %v55 = vld [vmem:[%s1 + $0x5c] sm:$0xf]
  %v56 = vld [vmem:[%s1 + $0x60] sm:$0xf]
  %v57 = vld [vmem:[%s1 + $0x64] sm:$0xf]
  %v58 = vld [vmem:[%s1 + $0x68] sm:$0xf]
  %v59 = vld [vmem:[%s1 + $0x6c] sm:$0xf]
  %v60 = vld [vmem:[%s1 + $0x70] sm:$0xf]
  %v61 = vld [vmem:[%s1 + $0x74] sm:$0xf]
  %v62 = vld [vmem:[%s1 + $0x78] sm:$0xf]
  %v63 = vld [vmem:[%s1 + $0x7c] sm:$0xf]
  %v66 = vunpack.c.l.b16 %v30
  %v67 = vunpack.c.h.b16 %v30
  %v68 = vunpack.c.l.b16 %v31
  %v69 = vunpack.c.h.b16 %v31
  %v70 = vpack.c.b16 %v68, %v66
  %v71 = vpack.c.b16 %v69, %v67
  %v106 = vunpack.c.l.b16 %v32
  %v107 = vunpack.c.l.b16 %v33
  %v108 = vunpack.c.l.b16 %v34
  %v109 = vunpack.c.l.b16 %v35
  %v110 = vunpack.c.l.b16 %v36
  %v111 = vunpack.c.l.b16 %v37
  %v112 = vunpack.c.l.b16 %v38
  %v113 = vunpack.c.l.b16 %v39
  %v114 = vunpack.c.l.b16 %v40
  %v115 = vunpack.c.l.b16 %v41
  %v116 = vunpack.c.l.b16 %v42
  %v117 = vunpack.c.l.b16 %v43
  %v118 = vunpack.c.l.b16 %v44
  %v119 = vunpack.c.l.b16 %v45
  %v120 = vunpack.c.l.b16 %v46
  %v121 = vunpack.c.l.b16 %v47
  %v122 = vunpack.c.l.b16 %v48
  %v123 = vunpack.c.l.b16 %v49
  %v124 = vunpack.c.l.b16 %v50
  %v125 = vunpack.c.l.b16 %v51
  %v126 = vunpack.c.l.b16 %v52
  %v127 = vunpack.c.l.b16 %v53
  %v128 = vunpack.c.l.b16 %v54
  %v129 = vunpack.c.l.b16 %v55
  %v130 = vunpack.c.l.b16 %v56
  %v131 = vunpack.c.l.b16 %v57
  %v132 = vunpack.c.l.b16 %v58
  %v133 = vunpack.c.l.b16 %v59
  %v134 = vunpack.c.l.b16 %v60
  %v135 = vunpack.c.l.b16 %v61
  %v136 = vunpack.c.l.b16 %v62
  %v137 = vunpack.c.l.b16 %v63
  %v138 = vpack.c.b16 %v107, %v106
  %v139 = vpack.c.b16 %v109, %v108
  %v140 = vpack.c.b16 %v111, %v110
  %v141 = vpack.c.b16 %v113, %v112
  %v142 = vpack.c.b16 %v115, %v114
  %v143 = vpack.c.b16 %v117, %v116
  %v144 = vpack.c.b16 %v119, %v118
  %v145 = vpack.c.b16 %v121, %v120
  %v146 = vpack.c.b16 %v123, %v122
  %v147 = vpack.c.b16 %v125, %v124
  %v148 = vpack.c.b16 %v127, %v126
  %v149 = vpack.c.b16 %v129, %v128
  %v150 = vpack.c.b16 %v131, %v130
  %v151 = vpack.c.b16 %v133, %v132
  %v152 = vpack.c.b16 %v135, %v134
  %v153 = vpack.c.b16 %v137, %v136
  %170 = vmatprep.subr.bf16.mxu0 0
  %171 = vmatpush1.bf16.msra.mxu0 %v138
  %172 = vmatprep.subr.bf16.mxu0 0
  %173 = vmatpush1.bf16.msra.mxu0 %v139
  %174 = vmatprep.subr.bf16.mxu0 0
  %175 = vmatpush1.bf16.msra.mxu0 %v140
  %176 = vmatprep.subr.bf16.mxu0 0
  %177 = vmatpush1.bf16.msra.mxu0 %v141
  %178 = vmatprep.subr.bf16.mxu0 0
  %179 = vmatpush1.bf16.msra.mxu0 %v142
  %180 = vmatprep.subr.bf16.mxu0 0
  %181 = vmatpush1.bf16.msra.mxu0 %v143
  %182 = vmatprep.subr.bf16.mxu0 0
  %183 = vmatpush1.bf16.msra.mxu0 %v144
  %184 = vmatprep.subr.bf16.mxu0 0
  %185 = vmatpush1.bf16.msra.mxu0 %v145
  %186 = vmatprep.subr.bf16.mxu0 0
  %187 = vmatpush1.bf16.msra.mxu0 %v146
  %188 = vmatprep.subr.bf16.mxu0 0
  %189 = vmatpush1.bf16.msra.mxu0 %v147
  %190 = vmatprep.subr.bf16.mxu0 0
  %191 = vmatpush1.bf16.msra.mxu0 %v148
  %192 = vmatprep.subr.bf16.mxu0 0
  %193 = vmatpush1.bf16.msra.mxu0 %v149
  %194 = vmatprep.subr.bf16.mxu0 0
  %195 = vmatpush1.bf16.msra.mxu0 %v150
  %196 = vmatprep.subr.bf16.mxu0 0
  %197 = vmatpush1.bf16.msra.mxu0 %v151
  %198 = vmatprep.subr.bf16.mxu0 0
  %199 = vmatpush1.bf16.msra.mxu0 %v152
  %200 = vmatprep.subr.bf16.mxu0 0
  %201 = vmatpush1.bf16.msra.mxu0 %v153
  %202 = vmatprep.mubr.bf16.mxu0 %v71
  %203 = vmatmul.mubr.bf16.gmra.mrb[0].mxu0 %v70
  %v204 = vpop.f32.mrb[0].mxu0
  %v205 = vadd.f32 0.0, %v204
  %v206 = vpop.f32.mrb[0].mxu0
  %v207 = vpop.f32.mrb[0].mxu0
  %v208 = vadd.f32 0.0, %v207
  %v209 = vpop.f32.mrb[0].mxu0
  %210 = vdwg.mxu0
  %v211 = vadd.f32 %v28, %v205
  %v212 = vadd.f32 %v29, %v208
  %213 = vst [vmem:[#allocation2] sm:$0xff] %v211
  %214 = vst [vmem:[#allocation2 + $0x8] sm:$0xff] %v212
  // Predicated region
  $region18: #{forward.93} parent=0 // pred_check
    %p215 = pneg %p15
  $region19: #{forward.93} parent=0 // pred_check_branch
    %217 = sbr.rel (%p215) target = $region21
  $region20: #{forward.93} parent=0 // pred_region
    %v218 = vld [vmem:[#allocation2] sm:$0xff]
    %v219 = vld [vmem:[#allocation2 + $0x8] sm:$0xff]
    %v220 = vld [vmem:[%s3] sm:$0x1]
    %v221 = vadd.f32 %v218, %v219
    %v222 = vrot.slane %v221, 4
    %v223 = vadd.f32 %v221, %v222
    %v224 = vrot.slane %v223, 2
    %v225 = vadd.f32 %v223, %v224
    %v226 = vrot.slane %v225, 1
    %v227 = vadd.f32 %v225, %v226
    %v228 = vadd.f32 %v220, %v227
    %229 = vst [vmem:[%s3] sm:$0x1] %v228
    %v230 = vld [vmem:[%s4] sm:$0x1]
    %v231 = vmul.f32 %v218, %v218
    %v232 = vmul.f32 %v219, %v219
    %v233 = vadd.f32 %v231, %v232
    %v234 = vrot.slane %v233, 4
    %v235 = vadd.f32 %v233, %v234
    %v236 = vrot.slane %v235, 2
    %v237 = vadd.f32 %v235, %v236
    %v238 = vrot.slane %v237, 1
    %v239 = vadd.f32 %v237, %v238
    %v240 = vadd.f32 %v230, %v239
    %241 = vst [vmem:[%s4] sm:$0x1] %v240
    %242 = vst [vmem:[%s2] sm:$0xff] %v218
    %243 = vst [vmem:[%s2 + $0x8] sm:$0xff] %v219
  $region21: #{forward.93} parent=0 // pred_fallthru
    _
  // Predicated region
  $region22: #{forward.93} parent=0 // pred_check
    _
  $region23: #{forward.93} parent=0 // pred_check_branch
    %245 = sbr.rel (0) target = $region25
  $region24: #{forward.93} parent=0 // pred_region
    _
  $region25: #{forward.93} parent=0 // pred_fallthru
    _
  // Predicated region
  $region26: #{forward.93} parent=0 // pred_check
    _
  $region27: #{forward.93} parent=0 // pred_check_branch
    %247 = sbr.rel (0) target = $region29
  $region28: #{forward.93} parent=0 // pred_region
    _
  $region29: #{forward.93} parent=0 // pred_fallthru
    _
  // Predicated region
  $region30: #{forward.93} parent=0 // pred_check
    _
  $region31: #{forward.93} parent=0 // pred_check_branch
    %249 = sbr.rel (0) target = $region33
  $region32: #{forward.93} parent=0 // pred_region
    _
  $region33: #{forward.93} parent=0 // pred_fallthru
    _
  // Predicated region
  $region34: #{forward.93} parent=0 // pred_check
    _
  $region35: #{forward.93} parent=0 // pred_check_branch
    %251 = sbr.rel (0) target = $region37
  $region36: #{forward.93} parent=0 // pred_region
    _
  $region37: #{forward.93} parent=0 // pred_fallthru
    _
  // Predicated region
  $region38: #{forward.93} parent=0 // pred_check
    _
  $region39: #{forward.93} parent=0 // pred_check_branch
    %253 = sbr.rel (0) target = $region41
  $region40: #{forward.93} parent=0 // pred_region
    _
  $region41: #{forward.93} parent=0 // pred_fallthru
    _
  // Predicated region
  $region42: #{forward.93} parent=0 // pred_check
    _
  $region43: #{forward.93} parent=0 // pred_check_branch
    %255 = sbr.rel (0) target = $region45
  $region44: #{forward.93} parent=0 // pred_region
    _
  $region45: #{forward.93} parent=0 // pred_fallthru
    _

// kernel: forward.109
$region0: #{forward.109}
  #allocation0 [shape = 'u32[]', space=smem, size = 0x4, offset = 0x4, fixed_abs, tag = 'smem constant byte address 0x4 - core index']
  #allocation1 [shape = 'u32[144,128]{1,0:T(1,128)}', space=vmem, size = 0x12000, scoped, tag = 'internal scratch']
  #allocation2 [shape = 'f32[128,128]{1,0:T(8,128)}', space=vmem, size = 0x10000, scoped, tag = 'scratch operand']
  %s0 = inlined_call_operand.vmem [shape: bf16[128,128], index: 0, kind: input, shape index: {}]
  %s1 = inlined_call_operand.vmem [shape: bf16[128,128], index: 1, kind: input, shape index: {}]
  %s2 = inlined_call_operand.vmem [shape: f32[128,128], index: 2, kind: output, shape index: {0}]
  %s3 = inlined_call_operand.vmem [shape: f32[1,128], index: 3, kind: output, shape index: {1}]
  %s4 = inlined_call_operand.vmem [shape: f32[1,128], index: 4, kind: output, shape index: {2}]
  %5 = xla_tuple %s2, %s3, %s4
  %s6 = sld [smem:[#allocation0]]
  $region46: #{forward.109} parent=0
    _
  %s8 = ssub.s32 1, %s6
  %s9 = scalar_select 0, %s8, %s6
  // Predicated region
  $region2: #{forward.109} parent=0 // pred_check
    _
  $region3: #{forward.109} parent=0 // pred_check_branch
    %11 = sbr.rel (0) target = $region5
  $region4: #{forward.109} parent=0 // pred_region
    _
  $region5: #{forward.109} parent=0 // pred_fallthru
    _
  // Predicated region
  $region6: #{forward.109} parent=0 // pred_check
    _
  $region7: #{forward.109} parent=0 // pred_check_branch
    %13 = sbr.rel (0) target = $region9
  $region8: #{forward.109} parent=0 // pred_region
    _
  $region9: #{forward.109} parent=0 // pred_fallthru
    _
  %p15 = scmp.eq.s32.totalorder 0, 0
  // Predicated region
  $region10: #{forward.109} parent=0 // pred_check
    %p16 = pneg %p15
  $region11: #{forward.109} parent=0 // pred_check_branch
    %18 = sbr.rel (%p16) target = $region13
  $region12: #{forward.109} parent=0 // pred_region
    %19 = vst [vmem:[#allocation2] sm:$0xff] 0.0
    %20 = vst [vmem:[#allocation2 + $0x8] sm:$0xff] 0.0
    %21 = vst [vmem:[#allocation2 + $0x10] sm:$0xff] 0.0
    %22 = vst [vmem:[#allocation2 + $0x18] sm:$0xff] 0.0
    %23 = vst [vmem:[#allocation2 + $0x20] sm:$0xff] 0.0
    %24 = vst [vmem:[#allocation2 + $0x28] sm:$0xff] 0.0
    %25 = vst [vmem:[#allocation2 + $0x30] sm:$0xff] 0.0
    %26 = vst [vmem:[#allocation2 + $0x38] sm:$0xff] 0.0
    %27 = vst [vmem:[#allocation2 + $0x40] sm:$0xff] 0.0
    %28 = vst [vmem:[#allocation2 + $0x48] sm:$0xff] 0.0
    %29 = vst [vmem:[#allocation2 + $0x50] sm:$0xff] 0.0
    %30 = vst [vmem:[#allocation2 + $0x58] sm:$0xff] 0.0
    %31 = vst [vmem:[#allocation2 + $0x60] sm:$0xff] 0.0
    %32 = vst [vmem:[#allocation2 + $0x68] sm:$0xff] 0.0
    %33 = vst [vmem:[#allocation2 + $0x70] sm:$0xff] 0.0
    %34 = vst [vmem:[#allocation2 + $0x78] sm:$0xff] 0.0
  $region13: #{forward.109} parent=0 // pred_fallthru
    _
  %p35 = scmp.eq.s32.totalorder 0, 0
  %p36 = pnand %p15, %p35
  %p37 = pneg %p36
  // Predicated region
  $region14: #{forward.109} parent=0 // pred_check
    _
  $region15: #{forward.109} parent=0 // pred_check_branch
    %39 = sbr.rel (%p36) target = $region17
  $region16: #{forward.109} parent=0 // pred_region
    %40 = vst [vmem:[%s3] sm:$0x1] 0.0
    %41 = vst [vmem:[%s4] sm:$0x1] 0.0
  $region17: #{forward.109} parent=0 // pred_fallthru
    _
  %v42 = vld [vmem:[#allocation2] sm:$0xff]
  %v43 = vld [vmem:[#allocation2 + $0x8] sm:$0xff]
  %v44 = vld [vmem:[#allocation2 + $0x10] sm:$0xff]
  %v45 = vld [vmem:[#allocation2 + $0x18] sm:$0xff]
  %v46 = vld [vmem:[#allocation2 + $0x20] sm:$0xff]
  %v47 = vld [vmem:[#allocation2 + $0x28] sm:$0xff]
  %v48 = vld [vmem:[#allocation2 + $0x30] sm:$0xff]
  %v49 = vld [vmem:[#allocation2 + $0x38] sm:$0xff]
  %v50 = vld [vmem:[#allocation2 + $0x40] sm:$0xff]
  %v51 = vld [vmem:[#allocation2 + $0x48] sm:$0xff]
  %v52 = vld [vmem:[#allocation2 + $0x50] sm:$0xff]
  %v53 = vld [vmem:[#allocation2 + $0x58] sm:$0xff]
  %v54 = vld [vmem:[#allocation2 + $0x60] sm:$0xff]
  %v55 = vld [vmem:[#allocation2 + $0x68] sm:$0xff]
  %v56 = vld [vmem:[#allocation2 + $0x70] sm:$0xff]
  %v57 = vld [vmem:[#allocation2 + $0x78] sm:$0xff]
  %v58 = vld [vmem:[%s0] sm:$0xf]
  %v59 = vld [vmem:[%s0 + $0x4] sm:$0xf]
  %v60 = vld [vmem:[%s0 + $0x8] sm:$0xf]
  %v61 = vld [vmem:[%s0 + $0xc] sm:$0xf]
  %v62 = vld [vmem:[%s0 + $0x10] sm:$0xf]
  %v63 = vld [vmem:[%s0 + $0x14] sm:$0xf]
  %v64 = vld [vmem:[%s0 + $0x18] sm:$0xf]
  %v65 = vld [vmem:[%s0 + $0x1c] sm:$0xf]
  %v66 = vld [vmem:[%s0 + $0x20] sm:$0xf]
  %v67 = vld [vmem:[%s0 + $0x24] sm:$0xf]
  %v68 = vld [vmem:[%s0 + $0x28] sm:$0xf]
  %v69 = vld [vmem:[%s0 + $0x2c] sm:$0xf]
  %v70 = vld [vmem:[%s0 + $0x30] sm:$0xf]
  %v71 = vld [vmem:[%s0 + $0x34] sm:$0xf]
  %v72 = vld [vmem:[%s0 + $0x38] sm:$0xf]
  %v73 = vld [vmem:[%s0 + $0x3c] sm:$0xf]
  %v74 = vld [vmem:[%s1] sm:$0xf]
  %v75 = vld [vmem:[%s1 + $0x4] sm:$0xf]
  %v76 = vld [vmem:[%s1 + $0x8] sm:$0xf]
  %v77 = vld [vmem:[%s1 + $0xc] sm:$0xf]
  %v78 = vld [vmem:[%s1 + $0x10] sm:$0xf]
  %v79 = vld [vmem:[%s1 + $0x14] sm:$0xf]
  %v80 = vld [vmem:[%s1 + $0x18] sm:$0xf]
  %v81 = vld [vmem:[%s1 + $0x1c] sm:$0xf]
  %v82 = vld [vmem:[%s1 + $0x20] sm:$0xf]
  %v83 = vld [vmem:[%s1 + $0x24] sm:$0xf]
  %v84 = vld [vmem:[%s1 + $0x28] sm:$0xf]
  %v85 = vld [vmem:[%s1 + $0x2c] sm:$0xf]
  %v86 = vld [vmem:[%s1 + $0x30] sm:$0xf]
  %v87 = vld [vmem:[%s1 + $0x34] sm:$0xf]
  %v88 = vld [vmem:[%s1 + $0x38] sm:$0xf]
  %v89 = vld [vmem:[%s1 + $0x3c] sm:$0xf]
  %v106 = vunpack.c.l.b16 %v58
  %v107 = vunpack.c.l.b16 %v59
  %v108 = vunpack.c.l.b16 %v60
  %v109 = vunpack.c.l.b16 %v61
  %v110 = vunpack.c.l.b16 %v62
  %v111 = vunpack.c.l.b16 %v63
  %v112 = vunpack.c.l.b16 %v64
  %v113 = vunpack.c.l.b16 %v65
  %v114 = vunpack.c.l.b16 %v66
  %v115 = vunpack.c.l.b16 %v67
  %v116 = vunpack.c.l.b16 %v68
  %v117 = vunpack.c.l.b16 %v69
  %v118 = vunpack.c.l.b16 %v70
  %v119 = vunpack.c.l.b16 %v71
  %v120 = vunpack.c.l.b16 %v72
  %v121 = vunpack.c.l.b16 %v73
  %v122 = vpack.c.b16 %v107, %v106
  %v123 = vpack.c.b16 %v109, %v108
  %v124 = vpack.c.b16 %v111, %v110
  %v125 = vpack.c.b16 %v113, %v112
  %v126 = vpack.c.b16 %v115, %v114
  %v127 = vpack.c.b16 %v117, %v116
  %v128 = vpack.c.b16 %v119, %v118
  %v129 = vpack.c.b16 %v121, %v120
  %v154 = vunpack.c.l.b16 %v74
  %v155 = vunpack.c.l.b16 %v75
  %v156 = vunpack.c.l.b16 %v76
  %v157 = vunpack.c.l.b16 %v77
  %v158 = vunpack.c.l.b16 %v78
  %v159 = vunpack.c.l.b16 %v79
  %v160 = vunpack.c.l.b16 %v80
  %v161 = vunpack.c.l.b16 %v81
  %v162 = vunpack.c.l.b16 %v82
  %v163 = vunpack.c.l.b16 %v83
  %v164 = vunpack.c.l.b16 %v84
  %v165 = vunpack.c.l.b16 %v85
  %v166 = vunpack.c.l.b16 %v86
  %v167 = vunpack.c.l.b16 %v87
  %v168 = vunpack.c.l.b16 %v88
  %v169 = vunpack.c.l.b16 %v89
  %v170 = vpack.c.b16 %v155, %v154
  %v171 = vpack.c.b16 %v157, %v156
  %v172 = vpack.c.b16 %v159, %v158
  %v173 = vpack.c.b16 %v161, %v160
  %v174 = vpack.c.b16 %v163, %v162
  %v175 = vpack.c.b16 %v165, %v164
  %v176 = vpack.c.b16 %v167, %v166
  %v177 = vpack.c.b16 %v169, %v168
  %186 = vmatprep.subr.bf16.mxu0 0
  %187 = vmatpush1.bf16.msra.mxu0 %v170
  %188 = vmatprep.subr.bf16.mxu0 0
  %189 = vmatpush1.bf16.msra.mxu0 %v171
  %190 = vmatprep.subr.bf16.mxu0 0
  %191 = vmatpush1.bf16.msra.mxu0 %v172
  %192 = vmatprep.subr.bf16.mxu0 0
  %193 = vmatpush1.bf16.msra.mxu0 %v173
  %194 = vmatprep.subr.bf16.mxu0 0
  %195 = vmatpush1.bf16.msra.mxu0 %v174
  %196 = vmatprep.subr.bf16.mxu0 0
  %197 = vmatpush1.bf16.msra.mxu0 %v175
  %198 = vmatprep.subr.bf16.mxu0 0
  %199 = vmatpush1.bf16.msra.mxu0 %v176
  %200 = vmatprep.subr.bf16.mxu0 0
  %201 = vmatpush1.bf16.msra.mxu0 %v177
  %202 = vmatprep.subr.bf16.mxu0 0
  %203 = vmatpush1.bf16.msra.mxu0 0
  %204 = vmatprep.subr.bf16.mxu0 0
  %205 = vmatpush1.bf16.msra.mxu0 0
  %206 = vmatprep.subr.bf16.mxu0 0
  %207 = vmatpush1.bf16.msra.mxu0 0
  %208 = vmatprep.subr.bf16.mxu0 0
  %209 = vmatpush1.bf16.msra.mxu0 0
  %210 = vmatprep.subr.bf16.mxu0 0
  %211 = vmatpush1.bf16.msra.mxu0 0
  %212 = vmatprep.subr.bf16.mxu0 0
  %213 = vmatpush1.bf16.msra.mxu0 0
  %214 = vmatprep.subr.bf16.mxu0 0
  %215 = vmatpush1.bf16.msra.mxu0 0
  %216 = vmatprep.subr.bf16.mxu0 0
  %217 = vmatpush1.bf16.msra.mxu0 0
  %218 = vmatprep.mubr.bf16.mxu0 0
  %219 = vmatmul.mubr.bf16.gmra.mrb[0].mxu0 %v122
  %v220 = vpop.f32.mrb[0].mxu0
  %v221 = vadd.f32 0.0, %v220
  %v222 = vpop.f32.mrb[0].mxu0
  %v223 = vpop.f32.mrb[0].mxu0
  %v224 = vadd.f32 0.0, %v223
  %v225 = vpop.f32.mrb[0].mxu0
  %226 = vmatprep.mubr.bf16.mxu0 0
  %227 = vmatmul.mubr.bf16.gmra.mrb[0].mxu0 %v123
  %v228 = vpop.f32.mrb[0].mxu0
  %v229 = vadd.f32 0.0, %v228
  %v230 = vpop.f32.mrb[0].mxu0
  %v231 = vpop.f32.mrb[0].mxu0
  %v232 = vadd.f32 0.0, %v231
  %v233 = vpop.f32.mrb[0].mxu0
  %234 = vmatprep.mubr.bf16.mxu0 0
  %235 = vmatmul.mubr.bf16.gmra.mrb[0].mxu0 %v124
  %v236 = vpop.f32.mrb[0].mxu0
  %v237 = vadd.f32 0.0, %v236
  %v238 = vpop.f32.mrb[0].mxu0
  %v239 = vpop.f32.mrb[0].mxu0
  %v240 = vadd.f32 0.0, %v239
  %v241 = vpop.f32.mrb[0].mxu0
  %242 = vmatprep.mubr.bf16.mxu0 0
  %243 = vmatmul.mubr.bf16.gmra.mrb[0].mxu0 %v125
  %v244 = vpop.f32.mrb[0].mxu0
  %v245 = vadd.f32 0.0, %v244
  %v246 = vpop.f32.mrb[0].mxu0
  %v247 = vpop.f32.mrb[0].mxu0
  %v248 = vadd.f32 0.0, %v247
  %v249 = vpop.f32.mrb[0].mxu0
  %250 = vmatprep.mubr.bf16.mxu0 0
  %251 = vmatmul.mubr.bf16.gmra.mrb[0].mxu0 %v126
  %v252 = vpop.f32.mrb[0].mxu0
  %v253 = vadd.f32 0.0, %v252
  %v254 = vpop.f32.mrb[0].mxu0
  %v255 = vpop.f32.mrb[0].mxu0
  %v256 = vadd.f32 0.0, %v255
  %v257 = vpop.f32.mrb[0].mxu0
  %258 = vmatprep.mubr.bf16.mxu0 0
  %259 = vmatmul.mubr.bf16.gmra.mrb[0].mxu0 %v127
  %v260 = vpop.f32.mrb[0].mxu0
  %v261 = vadd.f32 0.0, %v260
  %v262 = vpop.f32.mrb[0].mxu0
  %v263 = vpop.f32.mrb[0].mxu0
  %v264 = vadd.f32 0.0, %v263
  %v265 = vpop.f32.mrb[0].mxu0
  %266 = vmatprep.mubr.bf16.mxu0 0
  %267 = vmatmul.mubr.bf16.gmra.mrb[0].mxu0 %v128
  %v268 = vpop.f32.mrb[0].mxu0
  %v269 = vadd.f32 0.0, %v268
  %v270 = vpop.f32.mrb[0].mxu0
  %v271 = vpop.f32.mrb[0].mxu0
  %v272 = vadd.f32 0.0, %v271
  %v273 = vpop.f32.mrb[0].mxu0
  %274 = vmatprep.mubr.bf16.mxu0 0
  %275 = vmatmul.mubr.bf16.gmra.mrb[0].mxu0 %v129
  %v276 = vpop.f32.mrb[0].mxu0
  %v277 = vadd.f32 0.0, %v276
  %v278 = vpop.f32.mrb[0].mxu0
  %v279 = vpop.f32.mrb[0].mxu0
  %v280 = vadd.f32 0.0, %v279
  %v281 = vpop.f32.mrb[0].mxu0
  %282 = vdwg.mxu0
  %v283 = vadd.f32 %v42, %v221
  %v284 = vadd.f32 %v43, %v224
  %v285 = vadd.f32 %v44, %v229
  %v286 = vadd.f32 %v45, %v232
  %v287 = vadd.f32 %v46, %v237
  %v288 = vadd.f32 %v47, %v240
  %v289 = vadd.f32 %v48, %v245
  %v290 = vadd.f32 %v49, %v248
  %v291 = vadd.f32 %v50, %v253
  %v292 = vadd.f32 %v51, %v256
  %v293 = vadd.f32 %v52, %v261
  %v294 = vadd.f32 %v53, %v264
  %v295 = vadd.f32 %v54, %v269
  %v296 = vadd.f32 %v55, %v272
  %v297 = vadd.f32 %v56, %v277
  %v298 = vadd.f32 %v57, %v280
  %299 = vst [vmem:[#allocation2] sm:$0xff] %v283
  %300 = vst [vmem:[#allocation2 + $0x8] sm:$0xff] %v284
  %301 = vst [vmem:[#allocation2 + $0x10] sm:$0xff] %v285
  %302 = vst [vmem:[#allocation2 + $0x18] sm:$0xff] %v286
  %303 = vst [vmem:[#allocation2 + $0x20] sm:$0xff] %v287
  %304 = vst [vmem:[#allocation2 + $0x28] sm:$0xff] %v288
  %305 = vst [vmem:[#allocation2 + $0x30] sm:$0xff] %v289
  %306 = vst [vmem:[#allocation2 + $0x38] sm:$0xff] %v290
  %307 = vst [vmem:[#allocation2 + $0x40] sm:$0xff] %v291
  %308 = vst [vmem:[#allocation2 + $0x48] sm:$0xff] %v292
  %309 = vst [vmem:[#allocation2 + $0x50] sm:$0xff] %v293
  %310 = vst [vmem:[#allocation2 + $0x58] sm:$0xff] %v294
  %311 = vst [vmem:[#allocation2 + $0x60] sm:$0xff] %v295
  %312 = vst [vmem:[#allocation2 + $0x68] sm:$0xff] %v296
  %313 = vst [vmem:[#allocation2 + $0x70] sm:$0xff] %v297
  %314 = vst [vmem:[#allocation2 + $0x78] sm:$0xff] %v298
  // Predicated region
  $region18: #{forward.109} parent=0 // pred_check
    %p315 = pneg %p15
  $region19: #{forward.109} parent=0 // pred_check_branch
    %317 = sbr.rel (%p315) target = $region21
  $region20: #{forward.109} parent=0 // pred_region
    %v318 = vld [vmem:[#allocation2] sm:$0xff]
    %v319 = vld [vmem:[#allocation2 + $0x8] sm:$0xff]
    %v320 = vld [vmem:[#allocation2 + $0x10] sm:$0xff]
    %v321 = vld [vmem:[#allocation2 + $0x18] sm:$0xff]
    %v322 = vld [vmem:[#allocation2 + $0x20] sm:$0xff]
    %v323 = vld [vmem:[#allocation2 + $0x28] sm:$0xff]
    %v324 = vld [vmem:[#allocation2 + $0x30] sm:$0xff]
    %v325 = vld [vmem:[#allocation2 + $0x38] sm:$0xff]
    %v326 = vld [vmem:[#allocation2 + $0x40] sm:$0xff]
    %v327 = vld [vmem:[#allocation2 + $0x48] sm:$0xff]
    %v328 = vld [vmem:[#allocation2 + $0x50] sm:$0xff]
    %v329 = vld [vmem:[#allocation2 + $0x58] sm:$0xff]
    %v330 = vld [vmem:[#allocation2 + $0x60] sm:$0xff]
    %v331 = vld [vmem:[#allocation2 + $0x68] sm:$0xff]
    %v332 = vld [vmem:[#allocation2 + $0x70] sm:$0xff]
    %v333 = vld [vmem:[#allocation2 + $0x78] sm:$0xff]
    %v334 = vld [vmem:[%s3] sm:$0x1]
    %v335 = vadd.f32 %v318, %v319
    %v336 = vadd.f32 %v335, %v320
    %v337 = vadd.f32 %v336, %v321
    %v338 = vadd.f32 %v337, %v322
    %v339 = vadd.f32 %v338, %v323
    %v340 = vadd.f32 %v339, %v324
    %v341 = vadd.f32 %v340, %v325
    %v342 = vadd.f32 %v341, %v326
    %v343 = vadd.f32 %v342, %v327
    %v344 = vadd.f32 %v343, %v328
    %v345 = vadd.f32 %v344, %v329
    %v346 = vadd.f32 %v345, %v330
    %v347 = vadd.f32 %v346, %v331
    %v348 = vadd.f32 %v347, %v332
    %v349 = vadd.f32 %v348, %v333
    %v350 = vrot.slane %v349, 4
    %v351 = vadd.f32 %v349, %v350
    %v352 = vrot.slane %v351, 2
    %v353 = vadd.f32 %v351, %v352
    %v354 = vrot.slane %v353, 1
    %v355 = vadd.f32 %v353, %v354
    %v356 = vadd.f32 %v334, %v355
    %357 = vst [vmem:[%s3] sm:$0x1] %v356
    %v358 = vld [vmem:[%s4] sm:$0x1]
    %v359 = vmul.f32 %v318, %v318
    %v360 = vmul.f32 %v319, %v319
    %v361 = vmul.f32 %v320, %v320
    %v362 = vmul.f32 %v321, %v321
    %v363 = vmul.f32 %v322, %v322
    %v364 = vmul.f32 %v323, %v323
    %v365 = vmul.f32 %v324, %v324
    %v366 = vmul.f32 %v325, %v325
    %v367 = vmul.f32 %v326, %v326
    %v368 = vmul.f32 %v327, %v327
    %v369 = vmul.f32 %v328, %v328
    %v370 = vmul.f32 %v329, %v329
    %v371 = vmul.f32 %v330, %v330
    %v372 = vmul.f32 %v331, %v331
    %v373 = vmul.f32 %v332, %v332
    %v374 = vmul.f32 %v333, %v333
    %v375 = vadd.f32 %v359, %v360
    %v376 = vadd.f32 %v375, %v361
    %v377 = vadd.f32 %v376, %v362
    %v378 = vadd.f32 %v377, %v363
    %v379 = vadd.f32 %v378, %v364
    %v380 = vadd.f32 %v379, %v365
    %v381 = vadd.f32 %v380, %v366
    %v382 = vadd.f32 %v381, %v367
    %v383 = vadd.f32 %v382, %v368
    %v384 = vadd.f32 %v383, %v369
    %v385 = vadd.f32 %v384, %v370
    %v386 = vadd.f32 %v385, %v371
    %v387 = vadd.f32 %v386, %v372
    %v388 = vadd.f32 %v387, %v373
    %v389 = vadd.f32 %v388, %v374
    %v390 = vrot.slane %v389, 4
    %v391 = vadd.f32 %v389, %v390
    %v392 = vrot.slane %v391, 2
    %v393 = vadd.f32 %v391, %v392
    %v394 = vrot.slane %v393, 1
    %v395 = vadd.f32 %v393, %v394
    %v396 = vadd.f32 %v358, %v395
    %397 = vst [vmem:[%s4] sm:$0x1] %v396
    %398 = vst [vmem:[%s2] sm:$0xff] %v318
    %399 = vst [vmem:[%s2 + $0x8] sm:$0xff] %v319
    %400 = vst [vmem:[%s2 + $0x10] sm:$0xff] %v320
    %401 = vst [vmem:[%s2 + $0x18] sm:$0xff] %v321
    %402 = vst [vmem:[%s2 + $0x20] sm:$0xff] %v322
    %403 = vst [vmem:[%s2 + $0x28] sm:$0xff] %v323
    %404 = vst [vmem:[%s2 + $0x30] sm:$0xff] %v324
    %405 = vst [vmem:[%s2 + $0x38] sm:$0xff] %v325
    %406 = vst [vmem:[%s2 + $0x40] sm:$0xff] %v326
    %407 = vst [vmem:[%s2 + $0x48] sm:$0xff] %v327
    %408 = vst [vmem:[%s2 + $0x50] sm:$0xff] %v328
    %409 = vst [vmem:[%s2 + $0x58] sm:$0xff] %v329
    %410 = vst [vmem:[%s2 + $0x60] sm:$0xff] %v330
    %411 = vst [vmem:[%s2 + $0x68] sm:$0xff] %v331
    %412 = vst [vmem:[%s2 + $0x70] sm:$0xff] %v332
    %413 = vst [vmem:[%s2 + $0x78] sm:$0xff] %v333
  $region21: #{forward.109} parent=0 // pred_fallthru
    _
  // Predicated region
  $region22: #{forward.109} parent=0 // pred_check
    _
  $region23: #{forward.109} parent=0 // pred_check_branch
    %415 = sbr.rel (0) target = $region25
  $region24: #{forward.109} parent=0 // pred_region
    _
  $region25: #{forward.109} parent=0 // pred_fallthru
    _
  // Predicated region
  $region26: #{forward.109} parent=0 // pred_check
    _
  $region27: #{forward.109} parent=0 // pred_check_branch
    %417 = sbr.rel (0) target = $region29
  $region28: #{forward.109} parent=0 // pred_region
    _
  $region29: #{forward.109} parent=0 // pred_fallthru
    _
  // Predicated region
  $region30: #{forward.109} parent=0 // pred_check
    _
  $region31: #{forward.109} parent=0 // pred_check_branch
    %419 = sbr.rel (0) target = $region33
  $region32: #{forward.109} parent=0 // pred_region
    _
  $region33: #{forward.109} parent=0 // pred_fallthru
    _
  // Predicated region
  $region34: #{forward.109} parent=0 // pred_check
    _
  $region35: #{forward.109} parent=0 // pred_check_branch
    %421 = sbr.rel (0) target = $region37
  $region36: #{forward.109} parent=0 // pred_region
    _
  $region37: #{forward.109} parent=0 // pred_fallthru
    _
  // Predicated region
  $region38: #{forward.109} parent=0 // pred_check
    _
  $region39: #{forward.109} parent=0 // pred_check_branch
    %423 = sbr.rel (0) target = $region41
  $region40: #{forward.109} parent=0 // pred_region
    _
  $region41: #{forward.109} parent=0 // pred_fallthru
    _
  // Predicated region
  $region42: #{forward.109} parent=0 // pred_check
    _
  $region43: #{forward.109} parent=0 // pred_check_branch
    %425 = sbr.rel (0) target = $region45
  $region44: #{forward.109} parent=0 // pred_region
    _
  $region45: #{forward.109} parent=0 // pred_fallthru
    _

// kernel: forward.131
$region0: #{forward.131}
  #allocation0 [shape = 'u32[]', space=smem, size = 0x4, offset = 0x4, fixed_abs, tag = 'smem constant byte address 0x4 - core index']
  #allocation1 [shape = 'u32[144,128]{1,0:T(1,128)}', space=vmem, size = 0x12000, scoped, tag = 'internal scratch']
  #allocation2 [shape = 'f32[512,128]{1,0:T(8,128)}', space=vmem, size = 0x40000, scoped, tag = 'scratch operand']
  %s0 = inlined_call_operand.vmem [shape: bf16[1024,64], index: 0, kind: input, shape index: {}]
  %s1 = inlined_call_operand.vmem [shape: bf16[64,128], index: 1, kind: input, shape index: {}]
  %s2 = inlined_call_operand.vmem [shape: f32[1024,128], index: 2, kind: output, shape index: {}]
  %s3 = sld [smem:[#allocation0]]
  $region49: #{forward.131} parent=0
    _
  %s5 = ssub.s32 1, %s3
  %s6 = scalar_select 0, %s5, %s3
  loop: start=0, step=1, limit=4
  $region2: #{forward.131} parent=0 // loop_pre_header
    _
  $region3: #{forward.131} parent=0 // loop_header
    %s8 = sphi 0, %s12
    %p9 = scmp.ge.s32.totalorder %s8, 4
    %s15 = sphi 0, %s34
    %s16 = sphi 0, %s30
    %s17 = sphi 0, %s26
    %s18 = sphi 0, %s15
    %s19 = sphi 0, %s16
    %s20 = sphi 0, %s17
    %s21 = sphi 0, %s18
    %s22 = sphi 0, %s19
    %s23 = sphi 0, %s20
    %s39 = sphi 0, %s41
    %s42 = sphi 0, %s39
    %s43 = sphi 0, %s42
    %s59 = sphi 0, %s43
    %s67 = sphi 0, %s69
    %s70 = sphi 0, %s67
    %s71 = sphi 0, %s70
    %s87 = sphi 0, %s71
    %s95 = sphi 0, %s97
    %s98 = sphi 0, %s95
    %s99 = sphi 0, %s98
    %s115 = sphi 0, %s99
  $region4: #{forward.131} parent=0 // loop_header_branch
    %11 = sbr.rel (%p9) target = $region8
  $region5: #{forward.131} parent=0 // loop_body
    %s13 = ssub.s32 %s8, 1
    %s14 = ssub.s32 %s8, 2
    %s24 = sadd.s32 1, %s17
    %p25 = scmp.ge.s32.totalorder %s24, 1
    %s26 = scalar_select %p25, 0, %s24
    %s27 = sadd.s32 1, %s16
    %s28 = scalar_select %p25, %s27, %s16
    %p29 = scmp.ge.s32.totalorder %s28, 2
    %s30 = scalar_select %p29, 0, %s28
    %s31 = sadd.s32 1, %s15
    %s32 = scalar_select %p29, %s31, %s15
    %p33 = scmp.ge.s32.totalorder %s32, 1
    %s34 = scalar_select %p33, 0, %s32
    %s35 = ssub.s32 %s16, %s30
    %s36 = ssub.s32 %s17, %s26
    %s37 = sor.u32 %s35, %s36
    %p38 = scmp.eq.s32.totalorder %s37, 0
    %s40 = sadd.s32 %s39, 1
    %s41 = scalar_select %p38, %s39, %s40
    %p44 = pneg %p38
    %p45 = scmp.eq.s32.totalorder %s8, 1
    %p46 = por %p44, %p45
    %p47 = scmp.ne.s32.totalorder %s39, %s42
    %p48 = scmp.eq.s32.totalorder %s8, 0
    %p49 = por %p47, %p48
    %p50 = scmp.ne.s32.totalorder %s39, %s42
    %p51 = scmp.eq.s32.totalorder %s13, 1
    %p52 = por %p50, %p51
    %p53 = scmp.ne.s32.totalorder %s42, %s43
    %p54 = scmp.eq.s32.totalorder %s13, 0
    %p55 = por %p53, %p54
    %p56 = scmp.ne.s32.totalorder %s42, %s43
    %p57 = scmp.eq.s32.totalorder %s14, 1
    %p58 = por %p56, %p57
    %p60 = scmp.ne.s32.totalorder %s43, %s59
    %p61 = scmp.eq.s32.totalorder %s14, 0
    %p62 = por %p60, %p61
    %s63 = ssub.s32 %s17, %s26
    %s64 = ssub.s32 %s15, %s34
    %s65 = sor.u32 %s63, %s64
    %p66 = scmp.eq.s32.totalorder %s65, 0
    %s68 = sadd.s32 %s67, 1
    %s69 = scalar_select %p66, %s67, %s68
    %p72 = pneg %p66
    %p73 = scmp.eq.s32.totalorder %s8, 1
    %p74 = por %p72, %p73
    %p75 = scmp.ne.s32.totalorder %s67, %s70
    %p76 = scmp.eq.s32.totalorder %s8, 0
    %p77 = por %p75, %p76
    %p78 = scmp.ne.s32.totalorder %s67, %s70
    %p79 = scmp.eq.s32.totalorder %s13, 1
    %p80 = por %p78, %p79
    %p81 = scmp.ne.s32.totalorder %s70, %s71
    %p82 = scmp.eq.s32.totalorder %s13, 0
    %p83 = por %p81, %p82
    %p84 = scmp.ne.s32.totalorder %s70, %s71
    %p85 = scmp.eq.s32.totalorder %s14, 1
    %p86 = por %p84, %p85
    %p88 = scmp.ne.s32.totalorder %s71, %s87
    %p89 = scmp.eq.s32.totalorder %s14, 0
    %p90 = por %p88, %p89
    %s91 = ssub.s32 %s16, %s30
    %s92 = ssub.s32 %s15, %s34
    %s93 = sor.u32 %s91, %s92
    %p94 = scmp.eq.s32.totalorder %s93, 0
    %s96 = sadd.s32 %s95, 1
    %s97 = scalar_select %p94, %s95, %s96
    %p100 = pneg %p94
    %p101 = scmp.eq.s32.totalorder %s8, 1
    %p102 = por %p100, %p101
    %p103 = scmp.ne.s32.totalorder %s95, %s98
    %p104 = scmp.eq.s32.totalorder %s8, 0
    %p105 = por %p103, %p104
    %p106 = scmp.ne.s32.totalorder %s95, %s98
    %p107 = scmp.eq.s32.totalorder %s13, 1
    %p108 = por %p106, %p107
    %p109 = scmp.ne.s32.totalorder %s98, %s99
    %p110 = scmp.eq.s32.totalorder %s13, 0
    %p111 = por %p109, %p110
    %p112 = scmp.ne.s32.totalorder %s98, %s99
    %p113 = scmp.eq.s32.totalorder %s14, 1
    %p114 = por %p112, %p113
    %p116 = scmp.ne.s32.totalorder %s99, %s115
    %p117 = scmp.eq.s32.totalorder %s14, 0
    %p118 = por %p116, %p117
    %p119 = scmp.le.s32.totalorder 1, %s8
    %p120 = scmp.lt.s32.totalorder %s8, 3
    %p121 = pnand %p119, %p120
    %p122 = pneg %p121
    // Predicated region
    $region9: #{forward.131} parent=5 // pred_check
      _
    $region10: #{forward.131} parent=5 // pred_check_branch
      %124 = sbr.rel (%p121) target = $region12
    $region11: #{forward.131} parent=5 // pred_region
      %s125 = ssub.s32 %s8, 1
      // Predicated region
      $region13: #{forward.131} parent=11 // pred_check
        %p126 = pneg %p83
      $region14: #{forward.131} parent=11 // pred_check_branch
        %128 = sbr.rel (%p126) target = $region16
      $region15: #{forward.131} parent=11 // pred_region
        %s129 = smul.u32 8, %s20
        %p130 = scmp.lt.s32.totalorder %s129, 7
        %s131 = scalar_select %p130, %s129, 7
        %p132 = scmp.lt.s32.totalorder %s18, 0
        %s133 = scalar_select %p132, %s18, 0
        %s134 = sadd.s32 %s133, %s131
        %s135 = smul.addr %s134, 4
        %s136 = scalar_lea.vmem %s1, %s135
        %s137 = smul.u32 8, %s20
      $region16: #{forward.131} parent=11 // pred_fallthru
        _
    $region12: #{forward.131} parent=5 // pred_fallthru
      _
    %p138 = scmp.lt.s32.totalorder %s8, 2
    // Predicated region
    $region17: #{forward.131} parent=5 // pred_check
      %p139 = pneg %p138
    $region18: #{forward.131} parent=5 // pred_check_branch
      %141 = sbr.rel (%p139) target = $region20
    $region19: #{forward.131} parent=5 // pred_region
      // Predicated region
      $region21: #{forward.131} parent=19 // pred_check
        %p142 = pneg %p49
      $region22: #{forward.131} parent=19 // pred_check_branch
        %144 = sbr.rel (%p142) target = $region24
      $region23: #{forward.131} parent=19 // pred_region
        %s145 = smul.u32 64, %s16
        %p146 = scmp.lt.s32.totalorder %s145, 127
        %s147 = scalar_select %p146, %s145, 127
        %p148 = scmp.lt.s32.totalorder %s17, 0
        %s149 = scalar_select %p148, %s17, 0
        %s150 = sadd.s32 %s149, %s147
        %s151 = smul.addr %s150, 4
        %s152 = scalar_lea.vmem %s0, %s151
        %s153 = smul.u32 64, %s16
      $region24: #{forward.131} parent=19 // pred_fallthru
        _
    $region20: #{forward.131} parent=5 // pred_fallthru
      _
    %p154 = scmp.le.s32.totalorder 1, %s8
    %p155 = scmp.lt.s32.totalorder %s8, 3
    %p156 = pnand %p154, %p155
    %p157 = pneg %p156
    // Predicated region
    $region25: #{forward.131} parent=5 // pred_check
      _
    $region26: #{forward.131} parent=5 // pred_check_branch
      %159 = sbr.rel (%p156) target = $region28
    $region27: #{forward.131} parent=5 // pred_region
      %s160 = ssub.s32 %s8, 1
      %s161 = smul.u32 64, %s19
      %p162 = scmp.lt.s32.totalorder %s161, 127
      %s163 = scalar_select %p162, %s161, 127
      %p164 = scmp.lt.s32.totalorder %s20, 0
      %s165 = scalar_select %p164, %s20, 0
      %s166 = sadd.s32 %s165, %s163
      %s167 = smul.addr %s166, 4
      %s168 = scalar_lea.vmem %s0, %s167
      %p169 = pneg %p55
      %p170 = pneg %p52
      %s171 = smul.u32 8, %s20
      %p172 = scmp.lt.s32.totalorder %s171, 7
      %s173 = scalar_select %p172, %s171, 7
      %p174 = scmp.lt.s32.totalorder %s18, 0
      %s175 = scalar_select %p174, %s18, 0
      %s176 = sadd.s32 %s175, %s173
      %s177 = smul.addr %s176, 4
      %s178 = scalar_lea.vmem %s1, %s177
      %p179 = pneg %p83
      %p180 = pneg %p80
      %p181 = pneg %p111
      %p182 = pneg %p108
      %s183 = smul.u32 64, %s19
      %p184 = scmp.lt.s32.totalorder %s183, 127
      %s185 = scalar_select %p184, %s183, 127
      %p186 = scmp.lt.s32.totalorder %s18, 0
      %s187 = scalar_select %p186, %s18, 0
      %s188 = sadd.s32 %s187, %s185
      %s189 = smul.addr %s188, 8
      %s190 = scalar_lea.vmem %s2, %s189
      %s191 = smul.u32 64, %s19
      %p192 = scmp.lt.s32.totalorder %s191, 127
      %s193 = scalar_select %p192, %s191, 127
      %p194 = scmp.lt.s32.totalorder %s20, 0
      %s195 = scalar_select %p194, %s20, 0
      %s196 = sadd.s32 %s195, %s193
      %s197 = smul.addr %s196, 4
      %s198 = scalar_lea.vmem %s0, %s197
      %s199 = smul.u32 64, %s19
      %s200 = smul.u32 8, %s20
      %p201 = scmp.lt.s32.totalorder %s200, 7
      %s202 = scalar_select %p201, %s200, 7
      %p203 = scmp.lt.s32.totalorder %s18, 0
      %s204 = scalar_select %p203, %s18, 0
      %s205 = sadd.s32 %s204, %s202
      %s206 = smul.addr %s205, 4
      %s207 = scalar_lea.vmem %s1, %s206
      %s208 = smul.u32 8, %s20
      %s209 = smul.u32 64, %s19
      %p210 = scmp.lt.s32.totalorder %s209, 127
      %s211 = scalar_select %p210, %s209, 127
      %p212 = scmp.lt.s32.totalorder %s18, 0
      %s213 = scalar_select %p212, %s18, 0
      %s214 = sadd.s32 %s213, %s211
      %s215 = smul.addr %s214, 8
      %s216 = scalar_lea.vmem %s2, %s215
      %s217 = smul.u32 64, %s19
      %p219 = scmp.eq.s32.totalorder %s20, 0
      // Predicated region
      $region29: #{forward.131} parent=27 // pred_check
        %p220 = pneg %p219
      $region30: #{forward.131} parent=27 // pred_check_branch
        %222 = sbr.rel (%p220) target = $region32
      $region31: #{forward.131} parent=27 // pred_region
        %223 = vst [vmem:[#allocation2] sm:$0xff] 0.0
        %224 = vst [vmem:[#allocation2 + $0x8] sm:$0xff] 0.0
        %225 = vst [vmem:[#allocation2 + $0x10] sm:$0xff] 0.0
        %226 = vst [vmem:[#allocation2 + $0x18] sm:$0xff] 0.0
        %227 = vst [vmem:[#allocation2 + $0x20] sm:$0xff] 0.0
        %228 = vst [vmem:[#allocation2 + $0x28] sm:$0xff] 0.0
        %229 = vst [vmem:[#allocation2 + $0x30] sm:$0xff] 0.0
        %230 = vst [vmem:[#allocation2 + $0x38] sm:$0xff] 0.0
        %231 = vst [vmem:[#allocation2 + $0x40] sm:$0xff] 0.0
        %232 = vst [vmem:[#allocation2 + $0x48] sm:$0xff] 0.0
        %233 = vst [vmem:[#allocation2 + $0x50] sm:$0xff] 0.0
        %234 = vst [vmem:[#allocation2 + $0x58] sm:$0xff] 0.0
        %235 = vst [vmem:[#allocation2 + $0x60] sm:$0xff] 0.0
        %236 = vst [vmem:[#allocation2 + $0x68] sm:$0xff] 0.0
        %237 = vst [vmem:[#allocation2 + $0x70] sm:$0xff] 0.0
        %238 = vst [vmem:[#allocation2 + $0x78] sm:$0xff] 0.0
        %239 = vst [vmem:[#allocation2 + $0x80] sm:$0xff] 0.0
        %240 = vst [vmem:[#allocation2 + $0x88] sm:$0xff] 0.0
        %241 = vst [vmem:[#allocation2 + $0x90] sm:$0xff] 0.0
        %242 = vst [vmem:[#allocation2 + $0x98] sm:$0xff] 0.0
        %243 = vst [vmem:[#allocation2 + $0xa0] sm:$0xff] 0.0
        %244 = vst [vmem:[#allocation2 + $0xa8] sm:$0xff] 0.0
        %245 = vst [vmem:[#allocation2 + $0xb0] sm:$0xff] 0.0
        %246 = vst [vmem:[#allocation2 + $0xb8] sm:$0xff] 0.0
        %247 = vst [vmem:[#allocation2 + $0xc0] sm:$0xff] 0.0
        %248 = vst [vmem:[#allocation2 + $0xc8] sm:$0xff] 0.0
        %249 = vst [vmem:[#allocation2 + $0xd0] sm:$0xff] 0.0
        %250 = vst [vmem:[#allocation2 + $0xd8] sm:$0xff] 0.0
        %251 = vst [vmem:[#allocation2 + $0xe0] sm:$0xff] 0.0
        %252 = vst [vmem:[#allocation2 + $0xe8] sm:$0xff] 0.0
        %253 = vst [vmem:[#allocation2 + $0xf0] sm:$0xff] 0.0
        %254 = vst [vmem:[#allocation2 + $0xf8] sm:$0xff] 0.0
        %255 = vst [vmem:[#allocation2 + $0x100] sm:$0xff] 0.0
        %256 = vst [vmem:[#allocation2 + $0x108] sm:$0xff] 0.0
        %257 = vst [vmem:[#allocation2 + $0x110] sm:$0xff] 0.0
        %258 = vst [vmem:[#allocation2 + $0x118] sm:$0xff] 0.0
        %259 = vst [vmem:[#allocation2 + $0x120] sm:$0xff] 0.0
        %260 = vst [vmem:[#allocation2 + $0x128] sm:$0xff] 0.0
        %261 = vst [vmem:[#allocation2 + $0x130] sm:$0xff] 0.0
        %262 = vst [vmem:[#allocation2 + $0x138] sm:$0xff] 0.0
        %263 = vst [vmem:[#allocation2 + $0x140] sm:$0xff] 0.0
        %264 = vst [vmem:[#allocation2 + $0x148] sm:$0xff] 0.0
        %265 = vst [vmem:[#allocation2 + $0x150] sm:$0xff] 0.0
        %266 = vst [vmem:[#allocation2 + $0x158] sm:$0xff] 0.0
        %267 = vst [vmem:[#allocation2 + $0x160] sm:$0xff] 0.0
        %268 = vst [vmem:[#allocation2 + $0x168] sm:$0xff] 0.0
        %269 = vst [vmem:[#allocation2 + $0x170] sm:$0xff] 0.0
        %270 = vst [vmem:[#allocation2 + $0x178] sm:$0xff] 0.0
        %271 = vst [vmem:[#allocation2 + $0x180] sm:$0xff] 0.0
        %272 = vst [vmem:[#allocation2 + $0x188] sm:$0xff] 0.0
        %273 = vst [vmem:[#allocation2 + $0x190] sm:$0xff] 0.0
        %274 = vst [vmem:[#allocation2 + $0x198] sm:$0xff] 0.0
        %275 = vst [vmem:[#allocation2 + $0x1a0] sm:$0xff] 0.0
        %276 = vst [vmem:[#allocation2 + $0x1a8] sm:$0xff] 0.0
        %277 = vst [vmem:[#allocation2 + $0x1b0] sm:$0xff] 0.0
        %278 = vst [vmem:[#allocation2 + $0x1b8] sm:$0xff] 0.0
        %279 = vst [vmem:[#allocation2 + $0x1c0] sm:$0xff] 0.0
        %280 = vst [vmem:[#allocation2 + $0x1c8] sm:$0xff] 0.0
        %281 = vst [vmem:[#allocation2 + $0x1d0] sm:$0xff] 0.0
        %282 = vst [vmem:[#allocation2 + $0x1d8] sm:$0xff] 0.0
        %283 = vst [vmem:[#allocation2 + $0x1e0] sm:$0xff] 0.0
        %284 = vst [vmem:[#allocation2 + $0x1e8] sm:$0xff] 0.0
        %285 = vst [vmem:[#allocation2 + $0x1f0] sm:$0xff] 0.0
        %286 = vst [vmem:[#allocation2 + $0x1f8] sm:$0xff] 0.0
      $region32: #{forward.131} parent=27 // pred_fallthru
        _
      %v287 = vld [vmem:[#allocation2] sm:$0xff]
      %v288 = vld [vmem:[#allocation2 + $0x8] sm:$0xff]
      %v289 = vld [vmem:[#allocation2 + $0x10] sm:$0xff]
      %v290 = vld [vmem:[#allocation2 + $0x18] sm:$0xff]
      %v291 = vld [vmem:[#allocation2 + $0x20] sm:$0xff]
      %v292 = vld [vmem:[#allocation2 + $0x28] sm:$0xff]
      %v293 = vld [vmem:[#allocation2 + $0x30] sm:$0xff]
      %v294 = vld [vmem:[#allocation2 + $0x38] sm:$0xff]
      %v295 = vld [vmem:[#allocation2 + $0x40] sm:$0xff]
      %v296 = vld [vmem:[#allocation2 + $0x48] sm:$0xff]
      %v297 = vld [vmem:[#allocation2 + $0x50] sm:$0xff]
      %v298 = vld [vmem:[#allocation2 + $0x58] sm:$0xff]
      %v299 = vld [vmem:[#allocation2 + $0x60] sm:$0xff]
      %v300 = vld [vmem:[#allocation2 + $0x68] sm:$0xff]
      %v301 = vld [vmem:[#allocation2 + $0x70] sm:$0xff]
      %v302 = vld [vmem:[#allocation2 + $0x78] sm:$0xff]
      %v303 = vld [vmem:[#allocation2 + $0x80] sm:$0xff]
      %v304 = vld [vmem:[#allocation2 + $0x88] sm:$0xff]
      %v305 = vld [vmem:[#allocation2 + $0x90] sm:$0xff]
      %v306 = vld [vmem:[#allocation2 + $0x98] sm:$0xff]
      %v307 = vld [vmem:[#allocation2 + $0xa0] sm:$0xff]
      %v308 = vld [vmem:[#allocation2 + $0xa8] sm:$0xff]
      %v309 = vld [vmem:[#allocation2 + $0xb0] sm:$0xff]
      %v310 = vld [vmem:[#allocation2 + $0xb8] sm:$0xff]
      %v311 = vld [vmem:[#allocation2 + $0xc0] sm:$0xff]
      %v312 = vld [vmem:[#allocation2 + $0xc8] sm:$0xff]
      %v313 = vld [vmem:[#allocation2 + $0xd0] sm:$0xff]
      %v314 = vld [vmem:[#allocation2 + $0xd8] sm:$0xff]
      %v315 = vld [vmem:[#allocation2 + $0xe0] sm:$0xff]
      %v316 = vld [vmem:[#allocation2 + $0xe8] sm:$0xff]
      %v317 = vld [vmem:[#allocation2 + $0xf0] sm:$0xff]
      %v318 = vld [vmem:[#allocation2 + $0xf8] sm:$0xff]
      %v319 = vld [vmem:[#allocation2 + $0x100] sm:$0xff]
      %v320 = vld [vmem:[#allocation2 + $0x108] sm:$0xff]
      %v321 = vld [vmem:[#allocation2 + $0x110] sm:$0xff]
      %v322 = vld [vmem:[#allocation2 + $0x118] sm:$0xff]
      %v323 = vld [vmem:[#allocation2 + $0x120] sm:$0xff]
      %v324 = vld [vmem:[#allocation2 + $0x128] sm:$0xff]
      %v325 = vld [vmem:[#allocation2 + $0x130] sm:$0xff]
      %v326 = vld [vmem:[#allocation2 + $0x138] sm:$0xff]
      %v327 = vld [vmem:[#allocation2 + $0x140] sm:$0xff]
      %v328 = vld [vmem:[#allocation2 + $0x148] sm:$0xff]
      %v329 = vld [vmem:[#allocation2 + $0x150] sm:$0xff]
      %v330 = vld [vmem:[#allocation2 + $0x158] sm:$0xff]
      %v331 = vld [vmem:[#allocation2 + $0x160] sm:$0xff]
      %v332 = vld [vmem:[#allocation2 + $0x168] sm:$0xff]
      %v333 = vld [vmem:[#allocation2 + $0x170] sm:$0xff]
      %v334 = vld [vmem:[#allocation2 + $0x178] sm:$0xff]
      %v335 = vld [vmem:[#allocation2 + $0x180] sm:$0xff]
      %v336 = vld [vmem:[#allocation2 + $0x188] sm:$0xff]
      %v337 = vld [vmem:[#allocation2 + $0x190] sm:$0xff]
      %v338 = vld [vmem:[#allocation2 + $0x198] sm:$0xff]
      %v339 = vld [vmem:[#allocation2 + $0x1a0] sm:$0xff]
      %v340 = vld [vmem:[#allocation2 + $0x1a8] sm:$0xff]
      %v341 = vld [vmem:[#allocation2 + $0x1b0] sm:$0xff]
      %v342 = vld [vmem:[#allocation2 + $0x1b8] sm:$0xff]
      %v343 = vld [vmem:[#allocation2 + $0x1c0] sm:$0xff]
      %v344 = vld [vmem:[#allocation2 + $0x1c8] sm:$0xff]
      %v345 = vld [vmem:[#allocation2 + $0x1d0] sm:$0xff]
      %v346 = vld [vmem:[#allocation2 + $0x1d8] sm:$0xff]
      %v347 = vld [vmem:[#allocation2 + $0x1e0] sm:$0xff]
      %v348 = vld [vmem:[#allocation2 + $0x1e8] sm:$0xff]
      %v349 = vld [vmem:[#allocation2 + $0x1f0] sm:$0xff]
      %v350 = vld [vmem:[#allocation2 + $0x1f8] sm:$0xff]
      %v351 = vld [vmem:[%s198] sm:$0xf]
      %v352 = vld [vmem:[%s198 + $0x4] sm:$0xf]
      %v353 = vld [vmem:[%s198 + $0x8] sm:$0xf]
      %v354 = vld [vmem:[%s198 + $0xc] sm:$0xf]
      %v355 = vld [vmem:[%s198 + $0x10] sm:$0xf]
      %v356 = vld [vmem:[%s198 + $0x14] sm:$0xf]
      %v357 = vld [vmem:[%s198 + $0x18] sm:$0xf]
      %v358 = vld [vmem:[%s198 + $0x1c] sm:$0xf]
      %v359 = vld [vmem:[%s198 + $0x20] sm:$0xf]
      %v360 = vld [vmem:[%s198 + $0x24] sm:$0xf]
      %v361 = vld [vmem:[%s198 + $0x28] sm:$0xf]
      %v362 = vld [vmem:[%s198 + $0x2c] sm:$0xf]
      %v363 = vld [vmem:[%s198 + $0x30] sm:$0xf]
      %v364 = vld [vmem:[%s198 + $0x34] sm:$0xf]
      %v365 = vld [vmem:[%s198 + $0x38] sm:$0xf]
      %v366 = vld [vmem:[%s198 + $0x3c] sm:$0xf]
      %v367 = vld [vmem:[%s198 + $0x40] sm:$0xf]
      %v368 = vld [vmem:[%s198 + $0x44] sm:$0xf]
      %v369 = vld [vmem:[%s198 + $0x48] sm:$0xf]
      %v370 = vld [vmem:[%s198 + $0x4c] sm:$0xf]
      %v371 = vld [vmem:[%s198 + $0x50] sm:$0xf]
      %v372 = vld [vmem:[%s198 + $0x54] sm:$0xf]
      %v373 = vld [vmem:[%s198 + $0x58] sm:$0xf]
      %v374 = vld [vmem:[%s198 + $0x5c] sm:$0xf]
      %v375 = vld [vmem:[%s198 + $0x60] sm:$0xf]
      %v376 = vld [vmem:[%s198 + $0x64] sm:$0xf]
      %v377 = vld [vmem:[%s198 + $0x68] sm:$0xf]
      %v378 = vld [vmem:[%s198 + $0x6c] sm:$0xf]
      %v379 = vld [vmem:[%s198 + $0x70] sm:$0xf]
      %v380 = vld [vmem:[%s198 + $0x74] sm:$0xf]
      %v381 = vld [vmem:[%s198 + $0x78] sm:$0xf]
      %v382 = vld [vmem:[%s198 + $0x7c] sm:$0xf]
      %v383 = vld [vmem:[%s198 + $0x80] sm:$0xf]
      %v384 = vld [vmem:[%s198 + $0x84] sm:$0xf]
      %v385 = vld [vmem:[%s198 + $0x88] sm:$0xf]
      %v386 = vld [vmem:[%s198 + $0x8c] sm:$0xf]
      %v387 = vld [vmem:[%s198 + $0x90] sm:$0xf]
      %v388 = vld [vmem:[%s198 + $0x94] sm:$0xf]
      %v389 = vld [vmem:[%s198 + $0x98] sm:$0xf]
      %v390 = vld [vmem:[%s198 + $0x9c] sm:$0xf]
      %v391 = vld [vmem:[%s198 + $0xa0] sm:$0xf]
      %v392 = vld [vmem:[%s198 + $0xa4] sm:$0xf]
      %v393 = vld [vmem:[%s198 + $0xa8] sm:$0xf]
      %v394 = vld [vmem:[%s198 + $0xac] sm:$0xf]
      %v395 = vld [vmem:[%s198 + $0xb0] sm:$0xf]
      %v396 = vld [vmem:[%s198 + $0xb4] sm:$0xf]
      %v397 = vld [vmem:[%s198 + $0xb8] sm:$0xf]
      %v398 = vld [vmem:[%s198 + $0xbc] sm:$0xf]
      %v399 = vld [vmem:[%s198 + $0xc0] sm:$0xf]
      %v400 = vld [vmem:[%s198 + $0xc4] sm:$0xf]
      %v401 = vld [vmem:[%s198 + $0xc8] sm:$0xf]
      %v402 = vld [vmem:[%s198 + $0xcc] sm:$0xf]
      %v403 = vld [vmem:[%s198 + $0xd0] sm:$0xf]
      %v404 = vld [vmem:[%s198 + $0xd4] sm:$0xf]
      %v405 = vld [vmem:[%s198 + $0xd8] sm:$0xf]
      %v406 = vld [vmem:[%s198 + $0xdc] sm:$0xf]
      %v407 = vld [vmem:[%s198 + $0xe0] sm:$0xf]
      %v408 = vld [vmem:[%s198 + $0xe4] sm:$0xf]
      %v409 = vld [vmem:[%s198 + $0xe8] sm:$0xf]
      %v410 = vld [vmem:[%s198 + $0xec] sm:$0xf]
      %v411 = vld [vmem:[%s198 + $0xf0] sm:$0xf]
      %v412 = vld [vmem:[%s198 + $0xf4] sm:$0xf]
      %v413 = vld [vmem:[%s198 + $0xf8] sm:$0xf]
      %v414 = vld [vmem:[%s198 + $0xfc] sm:$0xf]
      %v415 = vld [vmem:[%s207] sm:$0xf]
      %v416 = vld [vmem:[%s207 + $0x4] sm:$0xf]
      %v417 = vld [vmem:[%s207 + $0x8] sm:$0xf]
      %v418 = vld [vmem:[%s207 + $0xc] sm:$0xf]
      %v419 = vld [vmem:[%s207 + $0x10] sm:$0xf]
      %v420 = vld [vmem:[%s207 + $0x14] sm:$0xf]
      %v421 = vld [vmem:[%s207 + $0x18] sm:$0xf]
      %v422 = vld [vmem:[%s207 + $0x1c] sm:$0xf]
      %v487 = vunpack.c.l.b16 %v351
      %v488 = vunpack.c.l.b16 %v352
      %v489 = vunpack.c.l.b16 %v353
      %v490 = vunpack.c.l.b16 %v354
      %v491 = vunpack.c.l.b16 %v355
      %v492 = vunpack.c.l.b16 %v356
      %v493 = vunpack.c.l.b16 %v357
      %v494 = vunpack.c.l.b16 %v358
      %v495 = vunpack.c.l.b16 %v359
      %v496 = vunpack.c.l.b16 %v360
      %v497 = vunpack.c.l.b16 %v361
      %v498 = vunpack.c.l.b16 %v362
      %v499 = vunpack.c.l.b16 %v363
      %v500 = vunpack.c.l.b16 %v364
      %v501 = vunpack.c.l.b16 %v365
      %v502 = vunpack.c.l.b16 %v366
      %v503 = vunpack.c.l.b16 %v367
      %v504 = vunpack.c.l.b16 %v368
      %v505 = vunpack.c.l.b16 %v369
      %v506 = vunpack.c.l.b16 %v370
      %v507 = vunpack.c.l.b16 %v371
      %v508 = vunpack.c.l.b16 %v372
      %v509 = vunpack.c.l.b16 %v373
      %v510 = vunpack.c.l.b16 %v374
      %v511 = vunpack.c.l.b16 %v375
      %v512 = vunpack.c.l.b16 %v376
      %v513 = vunpack.c.l.b16 %v377
      %v514 = vunpack.c.l.b16 %v378
      %v515 = vunpack.c.l.b16 %v379
      %v516 = vunpack.c.l.b16 %v380
      %v517 = vunpack.c.l.b16 %v381
      %v518 = vunpack.c.l.b16 %v382
      %v519 = vunpack.c.l.b16 %v383
      %v520 = vunpack.c.l.b16 %v384
      %v521 = vunpack.c.l.b16 %v385
      %v522 = vunpack.c.l.b16 %v386
      %v523 = vunpack.c.l.b16 %v387
      %v524 = vunpack.c.l.b16 %v388
      %v525 = vunpack.c.l.b16 %v389
      %v526 = vunpack.c.l.b16 %v390
      %v527 = vunpack.c.l.b16 %v391
      %v528 = vunpack.c.l.b16 %v392
      %v529 = vunpack.c.l.b16 %v393
      %v530 = vunpack.c.l.b16 %v394
      %v531 = vunpack.c.l.b16 %v395
      %v532 = vunpack.c.l.b16 %v396
      %v533 = vunpack.c.l.b16 %v397
      %v534 = vunpack.c.l.b16 %v398
      %v535 = vunpack.c.l.b16 %v399
      %v536 = vunpack.c.l.b16 %v400
      %v537 = vunpack.c.l.b16 %v401
      %v538 = vunpack.c.l.b16 %v402
      %v539 = vunpack.c.l.b16 %v403
      %v540 = vunpack.c.l.b16 %v404
      %v541 = vunpack.c.l.b16 %v405
      %v542 = vunpack.c.l.b16 %v406
      %v543 = vunpack.c.l.b16 %v407
      %v544 = vunpack.c.l.b16 %v408
      %v545 = vunpack.c.l.b16 %v409
      %v546 = vunpack.c.l.b16 %v410
      %v547 = vunpack.c.l.b16 %v411
      %v548 = vunpack.c.l.b16 %v412
      %v549 = vunpack.c.l.b16 %v413
      %v550 = vunpack.c.l.b16 %v414
      %v551 = vpack.c.b16 %v488, %v487
      %v552 = vpack.c.b16 %v490, %v489
      %v553 = vpack.c.b16 %v492, %v491
      %v554 = vpack.c.b16 %v494, %v493
      %v555 = vpack.c.b16 %v496, %v495
      %v556 = vpack.c.b16 %v498, %v497
      %v557 = vpack.c.b16 %v500, %v499
      %v558 = vpack.c.b16 %v502, %v501
      %v559 = vpack.c.b16 %v504, %v503
      %v560 = vpack.c.b16 %v506, %v505
      %v561 = vpack.c.b16 %v508, %v507
      %v562 = vpack.c.b16 %v510, %v509
      %v563 = vpack.c.b16 %v512, %v511
      %v564 = vpack.c.b16 %v514, %v513
      %v565 = vpack.c.b16 %v516, %v515
      %v566 = vpack.c.b16 %v518, %v517
      %v567 = vpack.c.b16 %v520, %v519
      %v568 = vpack.c.b16 %v522, %v521
      %v569 = vpack.c.b16 %v524, %v523
      %v570 = vpack.c.b16 %v526, %v525
      %v571 = vpack.c.b16 %v528, %v527
      %v572 = vpack.c.b16 %v530, %v529
      %v573 = vpack.c.b16 %v532, %v531
      %v574 = vpack.c.b16 %v534, %v533
      %v575 = vpack.c.b16 %v536, %v535
      %v576 = vpack.c.b16 %v538, %v537
      %v577 = vpack.c.b16 %v540, %v539
      %v578 = vpack.c.b16 %v542, %v541
      %v579 = vpack.c.b16 %v544, %v543
      %v580 = vpack.c.b16 %v546, %v545
      %v581 = vpack.c.b16 %v548, %v547
      %v582 = vpack.c.b16 %v550, %v549
      %v591 = vunpack.c.l.b16 %v415
      %v592 = vunpack.c.l.b16 %v416
      %v593 = vunpack.c.l.b16 %v417
      %v594 = vunpack.c.l.b16 %v418
      %v595 = vunpack.c.l.b16 %v419
      %v596 = vunpack.c.l.b16 %v420
      %v597 = vunpack.c.l.b16 %v421
      %v598 = vunpack.c.l.b16 %v422
      %v599 = vpack.c.b16 %v592, %v591
      %v600 = vpack.c.b16 %v594, %v593
      %v601 = vpack.c.b16 %v596, %v595
      %v602 = vpack.c.b16 %v598, %v597
      %vm607 = vcmask 523264
      %v609 = vsel %vm607, %v551, 0
      %v612 = vsel %vm607, %v552, 0
      %v615 = vsel %vm607, %v553, 0
      %v618 = vsel %vm607, %v554, 0
      %v621 = vsel %vm607, %v555, 0
      %v624 = vsel %vm607, %v556, 0
      %v627 = vsel %vm607, %v557, 0
      %v630 = vsel %vm607, %v558, 0
      %v633 = vsel %vm607, %v559, 0
      %v636 = vsel %vm607, %v560, 0
      %v639 = vsel %vm607, %v561, 0
      %v642 = vsel %vm607, %v562, 0
      %v645 = vsel %vm607, %v563, 0
      %v648 = vsel %vm607, %v564, 0
      %v651 = vsel %vm607, %v565, 0
      %v654 = vsel %vm607, %v566, 0
      %v657 = vsel %vm607, %v567, 0
      %v660 = vsel %vm607, %v568, 0
      %v663 = vsel %vm607, %v569, 0
      %v666 = vsel %vm607, %v570, 0
      %v669 = vsel %vm607, %v571, 0
      %v672 = vsel %vm607, %v572, 0
      %v675 = vsel %vm607, %v573, 0
      %v678 = vsel %vm607, %v574, 0
      %v681 = vsel %vm607, %v575, 0
      %v684 = vsel %vm607, %v576, 0
      %v687 = vsel %vm607, %v577, 0
      %v690 = vsel %vm607, %v578, 0
      %v693 = vsel %vm607, %v579, 0
      %v696 = vsel %vm607, %v580, 0
      %v699 = vsel %vm607, %v581, 0
      %v702 = vsel %vm607, %v582, 0
      %704 = vmatprep.subr.bf16.mxu0 0
      %705 = vmatpush1.bf16.msra.mxu0 %v599
      %706 = vmatprep.subr.bf16.mxu0 0
      %707 = vmatpush1.bf16.msra.mxu0 %v600
      %708 = vmatprep.subr.bf16.mxu0 0
      %709 = vmatpush1.bf16.msra.mxu0 %v601
      %710 = vmatprep.subr.bf16.mxu0 0
      %711 = vmatpush1.bf16.msra.mxu0 %v602
      %712 = vmatprep.subr.bf16.mxu0 0
      %713 = vmatpush1.bf16.msra.mxu0 0
      %714 = vmatprep.subr.bf16.mxu0 0
      %715 = vmatpush1.bf16.msra.mxu0 0
      %716 = vmatprep.subr.bf16.mxu0 0
      %717 = vmatpush1.bf16.msra.mxu0 0
      %718 = vmatprep.subr.bf16.mxu0 0
      %719 = vmatpush1.bf16.msra.mxu0 0
      %720 = vmatprep.subr.bf16.mxu0 0
      %721 = vmatpush1.bf16.msra.mxu0 0
      %722 = vmatprep.subr.bf16.mxu0 0
      %723 = vmatpush1.bf16.msra.mxu0 0
      %724 = vmatprep.subr.bf16.mxu0 0
      %725 = vmatpush1.bf16.msra.mxu0 0
      %726 = vmatprep.subr.bf16.mxu0 0
      %727 = vmatpush1.bf16.msra.mxu0 0
      %728 = vmatprep.subr.bf16.mxu0 0
      %729 = vmatpush1.bf16.msra.mxu0 0
      %730 = vmatprep.subr.bf16.mxu0 0
      %731 = vmatpush1.bf16.msra.mxu0 0
      %732 = vmatprep.subr.bf16.mxu0 0
      %733 = vmatpush1.bf16.msra.mxu0 0
      %734 = vmatprep.subr.bf16.mxu0 0
      %735 = vmatpush1.bf16.msra.mxu0 0
      %736 = vmatprep.mubr.bf16.mxu0 0
      %737 = vmatmul.mubr.bf16.gmra.mrb[0].mxu0 %v609
      %v738 = vpop.f32.mrb[0].mxu0
      %v739 = vadd.f32 0.0, %v738
      %v740 = vpop.f32.mrb[0].mxu0
      %v741 = vpop.f32.mrb[0].mxu0
      %v742 = vadd.f32 0.0, %v741
      %v743 = vpop.f32.mrb[0].mxu0
      %744 = vmatprep.mubr.bf16.mxu0 0
      %745 = vmatmul.mubr.bf16.gmra.mrb[0].mxu0 %v612
      %v746 = vpop.f32.mrb[0].mxu0
      %v747 = vadd.f32 0.0, %v746
      %v748 = vpop.f32.mrb[0].mxu0
      %v749 = vpop.f32.mrb[0].mxu0
      %v750 = vadd.f32 0.0, %v749
      %v751 = vpop.f32.mrb[0].mxu0
      %752 = vmatprep.mubr.bf16.mxu0 0
      %753 = vmatmul.mubr.bf16.gmra.mrb[0].mxu0 %v615
      %v754 = vpop.f32.mrb[0].mxu0
      %v755 = vadd.f32 0.0, %v754
      %v756 = vpop.f32.mrb[0].mxu0
      %v757 = vpop.f32.mrb[0].mxu0
      %v758 = vadd.f32 0.0, %v757
      %v759 = vpop.f32.mrb[0].mxu0
      %760 = vmatprep.mubr.bf16.mxu0 0
      %761 = vmatmul.mubr.bf16.gmra.mrb[0].mxu0 %v618
      %v762 = vpop.f32.mrb[0].mxu0
      %v763 = vadd.f32 0.0, %v762
      %v764 = vpop.f32.mrb[0].mxu0
      %v765 = vpop.f32.mrb[0].mxu0
      %v766 = vadd.f32 0.0, %v765
      %v767 = vpop.f32.mrb[0].mxu0
      %768 = vmatprep.mubr.bf16.mxu0 0
      %769 = vmatmul.mubr.bf16.gmra.mrb[0].mxu0 %v621
      %v770 = vpop.f32.mrb[0].mxu0
      %v771 = vadd.f32 0.0, %v770
      %v772 = vpop.f32.mrb[0].mxu0
      %v773 = vpop.f32.mrb[0].mxu0
      %v774 = vadd.f32 0.0, %v773
      %v775 = vpop.f32.mrb[0].mxu0
      %776 = vmatprep.mubr.bf16.mxu0 0
      %777 = vmatmul.mubr.bf16.gmra.mrb[0].mxu0 %v624
      %v778 = vpop.f32.mrb[0].mxu0
      %v779 = vadd.f32 0.0, %v778
      %v780 = vpop.f32.mrb[0].mxu0
      %v781 = vpop.f32.mrb[0].mxu0
      %v782 = vadd.f32 0.0, %v781
      %v783 = vpop.f32.mrb[0].mxu0
      %784 = vmatprep.mubr.bf16.mxu0 0
      %785 = vmatmul.mubr.bf16.gmra.mrb[0].mxu0 %v627
      %v786 = vpop.f32.mrb[0].mxu0
      %v787 = vadd.f32 0.0, %v786
      %v788 = vpop.f32.mrb[0].mxu0
      %v789 = vpop.f32.mrb[0].mxu0
      %v790 = vadd.f32 0.0, %v789
      %v791 = vpop.f32.mrb[0].mxu0
      %792 = vmatprep.mubr.bf16.mxu0 0
      %793 = vmatmul.mubr.bf16.gmra.mrb[0].mxu0 %v630
      %v794 = vpop.f32.mrb[0].mxu0
      %v795 = vadd.f32 0.0, %v794
      %v796 = vpop.f32.mrb[0].mxu0
      %v797 = vpop.f32.mrb[0].mxu0
      %v798 = vadd.f32 0.0, %v797
      %v799 = vpop.f32.mrb[0].mxu0
      %800 = vmatprep.mubr.bf16.mxu0 0
      %801 = vmatmul.mubr.bf16.gmra.mrb[0].mxu0 %v633
      %v802 = vpop.f32.mrb[0].mxu0
      %v803 = vadd.f32 0.0, %v802
      %v804 = vpop.f32.mrb[0].mxu0
      %v805 = vpop.f32.mrb[0].mxu0
      %v806 = vadd.f32 0.0, %v805
      %v807 = vpop.f32.mrb[0].mxu0
      %808 = vmatprep.mubr.bf16.mxu0 0
      %809 = vmatmul.mubr.bf16.gmra.mrb[0].mxu0 %v636
      %v810 = vpop.f32.mrb[0].mxu0
      %v811 = vadd.f32 0.0, %v810
      %v812 = vpop.f32.mrb[0].mxu0
      %v813 = vpop.f32.mrb[0].mxu0
      %v814 = vadd.f32 0.0, %v813
      %v815 = vpop.f32.mrb[0].mxu0
      %816 = vmatprep.mubr.bf16.mxu0 0
      %817 = vmatmul.mubr.bf16.gmra.mrb[0].mxu0 %v639
      %v818 = vpop.f32.mrb[0].mxu0
      %v819 = vadd.f32 0.0, %v818
      %v820 = vpop.f32.mrb[0].mxu0
      %v821 = vpop.f32.mrb[0].mxu0
      %v822 = vadd.f32 0.0, %v821
      %v823 = vpop.f32.mrb[0].mxu0
      %824 = vmatprep.mubr.bf16.mxu0 0
      %825 = vmatmul.mubr.bf16.gmra.mrb[0].mxu0 %v642
      %v826 = vpop.f32.mrb[0].mxu0
      %v827 = vadd.f32 0.0, %v826
      %v828 = vpop.f32.mrb[0].mxu0
      %v829 = vpop.f32.mrb[0].mxu0
      %v830 = vadd.f32 0.0, %v829
      %v831 = vpop.f32.mrb[0].mxu0
      %832 = vmatprep.mubr.bf16.mxu0 0
      %833 = vmatmul.mubr.bf16.gmra.mrb[0].mxu0 %v645
      %v834 = vpop.f32.mrb[0].mxu0
      %v835 = vadd.f32 0.0, %v834
      %v836 = vpop.f32.mrb[0].mxu0
      %v837 = vpop.f32.mrb[0].mxu0
      %v838 = vadd.f32 0.0, %v837
      %v839 = vpop.f32.mrb[0].mxu0
      %840 = vmatprep.mubr.bf16.mxu0 0
      %841 = vmatmul.mubr.bf16.gmra.mrb[0].mxu0 %v648
      %v842 = vpop.f32.mrb[0].mxu0
      %v843 = vadd.f32 0.0, %v842
      %v844 = vpop.f32.mrb[0].mxu0
      %v845 = vpop.f32.mrb[0].mxu0
      %v846 = vadd.f32 0.0, %v845
      %v847 = vpop.f32.mrb[0].mxu0
      %848 = vmatprep.mubr.bf16.mxu0 0
      %849 = vmatmul.mubr.bf16.gmra.mrb[0].mxu0 %v651
      %v850 = vpop.f32.mrb[0].mxu0
      %v851 = vadd.f32 0.0, %v850
      %v852 = vpop.f32.mrb[0].mxu0
      %v853 = vpop.f32.mrb[0].mxu0
      %v854 = vadd.f32 0.0, %v853
      %v855 = vpop.f32.mrb[0].mxu0
      %856 = vmatprep.mubr.bf16.mxu0 0
      %857 = vmatmul.mubr.bf16.gmra.mrb[0].mxu0 %v654
      %v858 = vpop.f32.mrb[0].mxu0
      %v859 = vadd.f32 0.0, %v858
      %v860 = vpop.f32.mrb[0].mxu0
      %v861 = vpop.f32.mrb[0].mxu0
      %v862 = vadd.f32 0.0, %v861
      %v863 = vpop.f32.mrb[0].mxu0
      %864 = vmatprep.mubr.bf16.mxu0 0
      %865 = vmatmul.mubr.bf16.gmra.mrb[0].mxu0 %v657
      %v866 = vpop.f32.mrb[0].mxu0
      %v867 = vadd.f32 0.0, %v866
      %v868 = vpop.f32.mrb[0].mxu0
      %v869 = vpop.f32.mrb[0].mxu0
      %v870 = vadd.f32 0.0, %v869
      %v871 = vpop.f32.mrb[0].mxu0
      %872 = vmatprep.mubr.bf16.mxu0 0
      %873 = vmatmul.mubr.bf16.gmra.mrb[0].mxu0 %v660
      %v874 = vpop.f32.mrb[0].mxu0
      %v875 = vadd.f32 0.0, %v874
      %v876 = vpop.f32.mrb[0].mxu0
      %v877 = vpop.f32.mrb[0].mxu0
      %v878 = vadd.f32 0.0, %v877
      %v879 = vpop.f32.mrb[0].mxu0
      %880 = vmatprep.mubr.bf16.mxu0 0
      %881 = vmatmul.mubr.bf16.gmra.mrb[0].mxu0 %v663
      %v882 = vpop.f32.mrb[0].mxu0
      %v883 = vadd.f32 0.0, %v882
      %v884 = vpop.f32.mrb[0].mxu0
      %v885 = vpop.f32.mrb[0].mxu0
      %v886 = vadd.f32 0.0, %v885
      %v887 = vpop.f32.mrb[0].mxu0
      %888 = vmatprep.mubr.bf16.mxu0 0
      %889 = vmatmul.mubr.bf16.gmra.mrb[0].mxu0 %v666
      %v890 = vpop.f32.mrb[0].mxu0
      %v891 = vadd.f32 0.0, %v890
      %v892 = vpop.f32.mrb[0].mxu0
      %v893 = vpop.f32.mrb[0].mxu0
      %v894 = vadd.f32 0.0, %v893
      %v895 = vpop.f32.mrb[0].mxu0
      %896 = vmatprep.mubr.bf16.mxu0 0
      %897 = vmatmul.mubr.bf16.gmra.mrb[0].mxu0 %v669
      %v898 = vpop.f32.mrb[0].mxu0
      %v899 = vadd.f32 0.0, %v898
      %v900 = vpop.f32.mrb[0].mxu0
      %v901 = vpop.f32.mrb[0].mxu0
      %v902 = vadd.f32 0.0, %v901
      %v903 = vpop.f32.mrb[0].mxu0
      %904 = vmatprep.mubr.bf16.mxu0 0
      %905 = vmatmul.mubr.bf16.gmra.mrb[0].mxu0 %v672
      %v906 = vpop.f32.mrb[0].mxu0
      %v907 = vadd.f32 0.0, %v906
      %v908 = vpop.f32.mrb[0].mxu0
      %v909 = vpop.f32.mrb[0].mxu0
      %v910 = vadd.f32 0.0, %v909
      %v911 = vpop.f32.mrb[0].mxu0
      %912 = vmatprep.mubr.bf16.mxu0 0
      %913 = vmatmul.mubr.bf16.gmra.mrb[0].mxu0 %v675
      %v914 = vpop.f32.mrb[0].mxu0
      %v915 = vadd.f32 0.0, %v914
      %v916 = vpop.f32.mrb[0].mxu0
      %v917 = vpop.f32.mrb[0].mxu0
      %v918 = vadd.f32 0.0, %v917
      %v919 = vpop.f32.mrb[0].mxu0
      %920 = vmatprep.mubr.bf16.mxu0 0
      %921 = vmatmul.mubr.bf16.gmra.mrb[0].mxu0 %v678
      %v922 = vpop.f32.mrb[0].mxu0
      %v923 = vadd.f32 0.0, %v922
      %v924 = vpop.f32.mrb[0].mxu0
      %v925 = vpop.f32.mrb[0].mxu0
      %v926 = vadd.f32 0.0, %v925
      %v927 = vpop.f32.mrb[0].mxu0
      %928 = vmatprep.mubr.bf16.mxu0 0
      %929 = vmatmul.mubr.bf16.gmra.mrb[0].mxu0 %v681
      %v930 = vpop.f32.mrb[0].mxu0
      %v931 = vadd.f32 0.0, %v930
      %v932 = vpop.f32.mrb[0].mxu0
      %v933 = vpop.f32.mrb[0].mxu0
      %v934 = vadd.f32 0.0, %v933
      %v935 = vpop.f32.mrb[0].mxu0
      %936 = vmatprep.mubr.bf16.mxu0 0
      %937 = vmatmul.mubr.bf16.gmra.mrb[0].mxu0 %v684
      %v938 = vpop.f32.mrb[0].mxu0
      %v939 = vadd.f32 0.0, %v938
      %v940 = vpop.f32.mrb[0].mxu0
      %v941 = vpop.f32.mrb[0].mxu0
      %v942 = vadd.f32 0.0, %v941
      %v943 = vpop.f32.mrb[0].mxu0
      %944 = vmatprep.mubr.bf16.mxu0 0
      %945 = vmatmul.mubr.bf16.gmra.mrb[0].mxu0 %v687
      %v946 = vpop.f32.mrb[0].mxu0
      %v947 = vadd.f32 0.0, %v946
      %v948 = vpop.f32.mrb[0].mxu0
      %v949 = vpop.f32.mrb[0].mxu0
      %v950 = vadd.f32 0.0, %v949
      %v951 = vpop.f32.mrb[0].mxu0
      %952 = vmatprep.mubr.bf16.mxu0 0
      %953 = vmatmul.mubr.bf16.gmra.mrb[0].mxu0 %v690
      %v954 = vpop.f32.mrb[0].mxu0
      %v955 = vadd.f32 0.0, %v954
      %v956 = vpop.f32.mrb[0].mxu0
      %v957 = vpop.f32.mrb[0].mxu0
      %v958 = vadd.f32 0.0, %v957
      %v959 = vpop.f32.mrb[0].mxu0
      %960 = vmatprep.mubr.bf16.mxu0 0
      %961 = vmatmul.mubr.bf16.gmra.mrb[0].mxu0 %v693
      %v962 = vpop.f32.mrb[0].mxu0
      %v963 = vadd.f32 0.0, %v962
      %v964 = vpop.f32.mrb[0].mxu0
      %v965 = vpop.f32.mrb[0].mxu0
      %v966 = vadd.f32 0.0, %v965
      %v967 = vpop.f32.mrb[0].mxu0
      %968 = vmatprep.mubr.bf16.mxu0 0
      %969 = vmatmul.mubr.bf16.gmra.mrb[0].mxu0 %v696
      %v970 = vpop.f32.mrb[0].mxu0
      %v971 = vadd.f32 0.0, %v970
      %v972 = vpop.f32.mrb[0].mxu0
      %v973 = vpop.f32.mrb[0].mxu0
      %v974 = vadd.f32 0.0, %v973
      %v975 = vpop.f32.mrb[0].mxu0
      %976 = vmatprep.mubr.bf16.mxu0 0
      %977 = vmatmul.mubr.bf16.gmra.mrb[0].mxu0 %v699
      %v978 = vpop.f32.mrb[0].mxu0
      %v979 = vadd.f32 0.0, %v978
      %v980 = vpop.f32.mrb[0].mxu0
      %v981 = vpop.f32.mrb[0].mxu0
      %v982 = vadd.f32 0.0, %v981
      %v983 = vpop.f32.mrb[0].mxu0
      %984 = vmatprep.mubr.bf16.mxu0 0
      %985 = vmatmul.mubr.bf16.gmra.mrb[0].mxu0 %v702
      %v986 = vpop.f32.mrb[0].mxu0
      %v987 = vadd.f32 0.0, %v986
      %v988 = vpop.f32.mrb[0].mxu0
      %v989 = vpop.f32.mrb[0].mxu0
      %v990 = vadd.f32 0.0, %v989
      %v991 = vpop.f32.mrb[0].mxu0
      %992 = vdwg.mxu0
      %v993 = vadd.f32 %v287, %v739
      %v994 = vadd.f32 %v288, %v742
      %v995 = vadd.f32 %v289, %v747
      %v996 = vadd.f32 %v290, %v750
      %v997 = vadd.f32 %v291, %v755
      %v998 = vadd.f32 %v292, %v758
      %v999 = vadd.f32 %v293, %v763
      %v1000 = vadd.f32 %v294, %v766
      %v1001 = vadd.f32 %v295, %v771
      %v1002 = vadd.f32 %v296, %v774
      %v1003 = vadd.f32 %v297, %v779
      %v1004 = vadd.f32 %v298, %v782
      %v1005 = vadd.f32 %v299, %v787
      %v1006 = vadd.f32 %v300, %v790
      %v1007 = vadd.f32 %v301, %v795
      %v1008 = vadd.f32 %v302, %v798
      %v1009 = vadd.f32 %v303, %v803
      %v1010 = vadd.f32 %v304, %v806
      %v1011 = vadd.f32 %v305, %v811
      %v1012 = vadd.f32 %v306, %v814
      %v1013 = vadd.f32 %v307, %v819
      %v1014 = vadd.f32 %v308, %v822
      %v1015 = vadd.f32 %v309, %v827
      %v1016 = vadd.f32 %v310, %v830
      %v1017 = vadd.f32 %v311, %v835
      %v1018 = vadd.f32 %v312, %v838
      %v1019 = vadd.f32 %v313, %v843
      %v1020 = vadd.f32 %v314, %v846
      %v1021 = vadd.f32 %v315, %v851
      %v1022 = vadd.f32 %v316, %v854
      %v1023 = vadd.f32 %v317, %v859
      %v1024 = vadd.f32 %v318, %v862
      %v1025 = vadd.f32 %v319, %v867
      %v1026 = vadd.f32 %v320, %v870
      %v1027 = vadd.f32 %v321, %v875
      %v1028 = vadd.f32 %v322, %v878
      %v1029 = vadd.f32 %v323, %v883
      %v1030 = vadd.f32 %v324, %v886
      %v1031 = vadd.f32 %v325, %v891
      %v1032 = vadd.f32 %v326, %v894
      %v1033 = vadd.f32 %v327, %v899
      %v1034 = vadd.f32 %v328, %v902
      %v1035 = vadd.f32 %v329, %v907
      %v1036 = vadd.f32 %v330, %v910
      %v1037 = vadd.f32 %v331, %v915
      %v1038 = vadd.f32 %v332, %v918
      %v1039 = vadd.f32 %v333, %v923
      %v1040 = vadd.f32 %v334, %v926
      %v1041 = vadd.f32 %v335, %v931
      %v1042 = vadd.f32 %v336, %v934
      %v1043 = vadd.f32 %v337, %v939
      %v1044 = vadd.f32 %v338, %v942
      %v1045 = vadd.f32 %v339, %v947
      %v1046 = vadd.f32 %v340, %v950
      %v1047 = vadd.f32 %v341, %v955
      %v1048 = vadd.f32 %v342, %v958
      %v1049 = vadd.f32 %v343, %v963
      %v1050 = vadd.f32 %v344, %v966
      %v1051 = vadd.f32 %v345, %v971
      %v1052 = vadd.f32 %v346, %v974
      %v1053 = vadd.f32 %v347, %v979
      %v1054 = vadd.f32 %v348, %v982
      %v1055 = vadd.f32 %v349, %v987
      %v1056 = vadd.f32 %v350, %v990
      %1057 = vst [vmem:[#allocation2] sm:$0xff] %v993
      %1058 = vst [vmem:[#allocation2 + $0x8] sm:$0xff] %v994
      %1059 = vst [vmem:[#allocation2 + $0x10] sm:$0xff] %v995
      %1060 = vst [vmem:[#allocation2 + $0x18] sm:$0xff] %v996
      %1061 = vst [vmem:[#allocation2 + $0x20] sm:$0xff] %v997
      %1062 = vst [vmem:[#allocation2 + $0x28] sm:$0xff] %v998
      %1063 = vst [vmem:[#allocation2 + $0x30] sm:$0xff] %v999
      %1064 = vst [vmem:[#allocation2 + $0x38] sm:$0xff] %v1000
      %1065 = vst [vmem:[#allocation2 + $0x40] sm:$0xff] %v1001
      %1066 = vst [vmem:[#allocation2 + $0x48] sm:$0xff] %v1002
      %1067 = vst [vmem:[#allocation2 + $0x50] sm:$0xff] %v1003
      %1068 = vst [vmem:[#allocation2 + $0x58] sm:$0xff] %v1004
      %1069 = vst [vmem:[#allocation2 + $0x60] sm:$0xff] %v1005
      %1070 = vst [vmem:[#allocation2 + $0x68] sm:$0xff] %v1006
      %1071 = vst [vmem:[#allocation2 + $0x70] sm:$0xff] %v1007
      %1072 = vst [vmem:[#allocation2 + $0x78] sm:$0xff] %v1008
      %1073 = vst [vmem:[#allocation2 + $0x80] sm:$0xff] %v1009
      %1074 = vst [vmem:[#allocation2 + $0x88] sm:$0xff] %v1010
      %1075 = vst [vmem:[#allocation2 + $0x90] sm:$0xff] %v1011
      %1076 = vst [vmem:[#allocation2 + $0x98] sm:$0xff] %v1012
      %1077 = vst [vmem:[#allocation2 + $0xa0] sm:$0xff] %v1013
      %1078 = vst [vmem:[#allocation2 + $0xa8] sm:$0xff] %v1014
      %1079 = vst [vmem:[#allocation2 + $0xb0] sm:$0xff] %v1015
      %1080 = vst [vmem:[#allocation2 + $0xb8] sm:$0xff] %v1016
      %1081 = vst [vmem:[#allocation2 + $0xc0] sm:$0xff] %v1017
      %1082 = vst [vmem:[#allocation2 + $0xc8] sm:$0xff] %v1018
      %1083 = vst [vmem:[#allocation2 + $0xd0] sm:$0xff] %v1019
      %1084 = vst [vmem:[#allocation2 + $0xd8] sm:$0xff] %v1020
      %1085 = vst [vmem:[#allocation2 + $0xe0] sm:$0xff] %v1021
      %1086 = vst [vmem:[#allocation2 + $0xe8] sm:$0xff] %v1022
      %1087 = vst [vmem:[#allocation2 + $0xf0] sm:$0xff] %v1023
      %1088 = vst [vmem:[#allocation2 + $0xf8] sm:$0xff] %v1024
      %1089 = vst [vmem:[#allocation2 + $0x100] sm:$0xff] %v1025
      %1090 = vst [vmem:[#allocation2 + $0x108] sm:$0xff] %v1026
      %1091 = vst [vmem:[#allocation2 + $0x110] sm:$0xff] %v1027
      %1092 = vst [vmem:[#allocation2 + $0x118] sm:$0xff] %v1028
      %1093 = vst [vmem:[#allocation2 + $0x120] sm:$0xff] %v1029
      %1094 = vst [vmem:[#allocation2 + $0x128] sm:$0xff] %v1030
      %1095 = vst [vmem:[#allocation2 + $0x130] sm:$0xff] %v1031
      %1096 = vst [vmem:[#allocation2 + $0x138] sm:$0xff] %v1032
      %1097 = vst [vmem:[#allocation2 + $0x140] sm:$0xff] %v1033
      %1098 = vst [vmem:[#allocation2 + $0x148] sm:$0xff] %v1034
      %1099 = vst [vmem:[#allocation2 + $0x150] sm:$0xff] %v1035
      %1100 = vst [vmem:[#allocation2 + $0x158] sm:$0xff] %v1036
      %1101 = vst [vmem:[#allocation2 + $0x160] sm:$0xff] %v1037
      %1102 = vst [vmem:[#allocation2 + $0x168] sm:$0xff] %v1038
      %1103 = vst [vmem:[#allocation2 + $0x170] sm:$0xff] %v1039
      %1104 = vst [vmem:[#allocation2 + $0x178] sm:$0xff] %v1040
      %1105 = vst [vmem:[#allocation2 + $0x180] sm:$0xff] %v1041
      %1106 = vst [vmem:[#allocation2 + $0x188] sm:$0xff] %v1042
      %1107 = vst [vmem:[#allocation2 + $0x190] sm:$0xff] %v1043
      %1108 = vst [vmem:[#allocation2 + $0x198] sm:$0xff] %v1044
      %1109 = vst [vmem:[#allocation2 + $0x1a0] sm:$0xff] %v1045
      %1110 = vst [vmem:[#allocation2 + $0x1a8] sm:$0xff] %v1046
      %1111 = vst [vmem:[#allocation2 + $0x1b0] sm:$0xff] %v1047
      %1112 = vst [vmem:[#allocation2 + $0x1b8] sm:$0xff] %v1048
      %1113 = vst [vmem:[#allocation2 + $0x1c0] sm:$0xff] %v1049
      %1114 = vst [vmem:[#allocation2 + $0x1c8] sm:$0xff] %v1050
      %1115 = vst [vmem:[#allocation2 + $0x1d0] sm:$0xff] %v1051
      %1116 = vst [vmem:[#allocation2 + $0x1d8] sm:$0xff] %v1052
      %1117 = vst [vmem:[#allocation2 + $0x1e0] sm:$0xff] %v1053
      %1118 = vst [vmem:[#allocation2 + $0x1e8] sm:$0xff] %v1054
      %1119 = vst [vmem:[#allocation2 + $0x1f0] sm:$0xff] %v1055
      %1120 = vst [vmem:[#allocation2 + $0x1f8] sm:$0xff] %v1056
      // Predicated region
      $region33: #{forward.131} parent=27 // pred_check
        %p1121 = pneg %p219
      $region34: #{forward.131} parent=27 // pred_check_branch
        %1123 = sbr.rel (%p1121) target = $region36
      $region35: #{forward.131} parent=27 // pred_region
        %v1124 = vld [vmem:[#allocation2] sm:$0xff]
        %v1125 = vld [vmem:[#allocation2 + $0x8] sm:$0xff]
        %v1126 = vld [vmem:[#allocation2 + $0x10] sm:$0xff]
        %v1127 = vld [vmem:[#allocation2 + $0x18] sm:$0xff]
        %v1128 = vld [vmem:[#allocation2 + $0x20] sm:$0xff]
        %v1129 = vld [vmem:[#allocation2 + $0x28] sm:$0xff]
        %v1130 = vld [vmem:[#allocation2 + $0x30] sm:$0xff]
        %v1131 = vld [vmem:[#allocation2 + $0x38] sm:$0xff]
        %v1132 = vld [vmem:[#allocation2 + $0x40] sm:$0xff]
        %v1133 = vld [vmem:[#allocation2 + $0x48] sm:$0xff]
        %v1134 = vld [vmem:[#allocation2 + $0x50] sm:$0xff]
        %v1135 = vld [vmem:[#allocation2 + $0x58] sm:$0xff]
        %v1136 = vld [vmem:[#allocation2 + $0x60] sm:$0xff]
        %v1137 = vld [vmem:[#allocation2 + $0x68] sm:$0xff]
        %v1138 = vld [vmem:[#allocation2 + $0x70] sm:$0xff]
        %v1139 = vld [vmem:[#allocation2 + $0x78] sm:$0xff]
        %v1140 = vld [vmem:[#allocation2 + $0x80] sm:$0xff]
        %v1141 = vld [vmem:[#allocation2 + $0x88] sm:$0xff]
        %v1142 = vld [vmem:[#allocation2 + $0x90] sm:$0xff]
        %v1143 = vld [vmem:[#allocation2 + $0x98] sm:$0xff]
        %v1144 = vld [vmem:[#allocation2 + $0xa0] sm:$0xff]
        %v1145 = vld [vmem:[#allocation2 + $0xa8] sm:$0xff]
        %v1146 = vld [vmem:[#allocation2 + $0xb0] sm:$0xff]
        %v1147 = vld [vmem:[#allocation2 + $0xb8] sm:$0xff]
        %v1148 = vld [vmem:[#allocation2 + $0xc0] sm:$0xff]
        %v1149 = vld [vmem:[#allocation2 + $0xc8] sm:$0xff]
        %v1150 = vld [vmem:[#allocation2 + $0xd0] sm:$0xff]
        %v1151 = vld [vmem:[#allocation2 + $0xd8] sm:$0xff]
        %v1152 = vld [vmem:[#allocation2 + $0xe0] sm:$0xff]
        %v1153 = vld [vmem:[#allocation2 + $0xe8] sm:$0xff]
        %v1154 = vld [vmem:[#allocation2 + $0xf0] sm:$0xff]
        %v1155 = vld [vmem:[#allocation2 + $0xf8] sm:$0xff]
        %v1156 = vld [vmem:[#allocation2 + $0x100] sm:$0xff]
        %v1157 = vld [vmem:[#allocation2 + $0x108] sm:$0xff]
        %v1158 = vld [vmem:[#allocation2 + $0x110] sm:$0xff]
        %v1159 = vld [vmem:[#allocation2 + $0x118] sm:$0xff]
        %v1160 = vld [vmem:[#allocation2 + $0x120] sm:$0xff]
        %v1161 = vld [vmem:[#allocation2 + $0x128] sm:$0xff]
        %v1162 = vld [vmem:[#allocation2 + $0x130] sm:$0xff]
        %v1163 = vld [vmem:[#allocation2 + $0x138] sm:$0xff]
        %v1164 = vld [vmem:[#allocation2 + $0x140] sm:$0xff]
        %v1165 = vld [vmem:[#allocation2 + $0x148] sm:$0xff]
        %v1166 = vld [vmem:[#allocation2 + $0x150] sm:$0xff]
        %v1167 = vld [vmem:[#allocation2 + $0x158] sm:$0xff]
        %v1168 = vld [vmem:[#allocation2 + $0x160] sm:$0xff]
        %v1169 = vld [vmem:[#allocation2 + $0x168] sm:$0xff]
        %v1170 = vld [vmem:[#allocation2 + $0x170] sm:$0xff]
        %v1171 = vld [vmem:[#allocation2 + $0x178] sm:$0xff]
        %v1172 = vld [vmem:[#allocation2 + $0x180] sm:$0xff]
        %v1173 = vld [vmem:[#allocation2 + $0x188] sm:$0xff]
        %v1174 = vld [vmem:[#allocation2 + $0x190] sm:$0xff]
        %v1175 = vld [vmem:[#allocation2 + $0x198] sm:$0xff]
        %v1176 = vld [vmem:[#allocation2 + $0x1a0] sm:$0xff]
        %v1177 = vld [vmem:[#allocation2 + $0x1a8] sm:$0xff]
        %v1178 = vld [vmem:[#allocation2 + $0x1b0] sm:$0xff]
        %v1179 = vld [vmem:[#allocation2 + $0x1b8] sm:$0xff]
        %v1180 = vld [vmem:[#allocation2 + $0x1c0] sm:$0xff]
        %v1181 = vld [vmem:[#allocation2 + $0x1c8] sm:$0xff]
        %v1182 = vld [vmem:[#allocation2 + $0x1d0] sm:$0xff]
        %v1183 = vld [vmem:[#allocation2 + $0x1d8] sm:$0xff]
        %v1184 = vld [vmem:[#allocation2 + $0x1e0] sm:$0xff]
        %v1185 = vld [vmem:[#allocation2 + $0x1e8] sm:$0xff]
        %v1186 = vld [vmem:[#allocation2 + $0x1f0] sm:$0xff]
        %v1187 = vld [vmem:[#allocation2 + $0x1f8] sm:$0xff]
        %v1188 = vtanh.pop %v1124
        %v1189 = vtanh.pop %v1125
        %v1190 = vtanh.pop %v1126
        %v1191 = vtanh.pop %v1127
        %v1192 = vtanh.pop %v1128
        %v1193 = vtanh.pop %v1129
        %v1194 = vtanh.pop %v1130
        %v1195 = vtanh.pop %v1131
        %v1196 = vtanh.pop %v1132
        %v1197 = vtanh.pop %v1133
        %v1198 = vtanh.pop %v1134
        %v1199 = vtanh.pop %v1135
        %v1200 = vtanh.pop %v1136
        %v1201 = vtanh.pop %v1137
        %v1202 = vtanh.pop %v1138
        %v1203 = vtanh.pop %v1139
        %v1204 = vtanh.pop %v1140
        %v1205 = vtanh.pop %v1141
        %v1206 = vtanh.pop %v1142
        %v1207 = vtanh.pop %v1143
        %v1208 = vtanh.pop %v1144
        %v1209 = vtanh.pop %v1145
        %v1210 = vtanh.pop %v1146
        %v1211 = vtanh.pop %v1147
        %v1212 = vtanh.pop %v1148
        %v1213 = vtanh.pop %v1149
        %v1214 = vtanh.pop %v1150
        %v1215 = vtanh.pop %v1151
        %v1216 = vtanh.pop %v1152
        %v1217 = vtanh.pop %v1153
        %v1218 = vtanh.pop %v1154
        %v1219 = vtanh.pop %v1155
        %v1220 = vtanh.pop %v1156
        %v1221 = vtanh.pop %v1157
        %v1222 = vtanh.pop %v1158
        %v1223 = vtanh.pop %v1159
        %v1224 = vtanh.pop %v1160
        %v1225 = vtanh.pop %v1161
        %v1226 = vtanh.pop %v1162
        %v1227 = vtanh.pop %v1163
        %v1228 = vtanh.pop %v1164
        %v1229 = vtanh.pop %v1165
        %v1230 = vtanh.pop %v1166
        %v1231 = vtanh.pop %v1167
        %v1232 = vtanh.pop %v1168
        %v1233 = vtanh.pop %v1169
        %v1234 = vtanh.pop %v1170
        %v1235 = vtanh.pop %v1171
        %v1236 = vtanh.pop %v1172
        %v1237 = vtanh.pop %v1173
        %v1238 = vtanh.pop %v1174
        %v1239 = vtanh.pop %v1175
        %v1240 = vtanh.pop %v1176
        %v1241 = vtanh.pop %v1177
        %v1242 = vtanh.pop %v1178
        %v1243 = vtanh.pop %v1179
        %v1244 = vtanh.pop %v1180
        %v1245 = vtanh.pop %v1181
        %v1246 = vtanh.pop %v1182
        %v1247 = vtanh.pop %v1183
        %v1248 = vtanh.pop %v1184
        %v1249 = vtanh.pop %v1185
        %v1250 = vtanh.pop %v1186
        %v1251 = vtanh.pop %v1187
        %1252 = vst [vmem:[%s216] sm:$0xff] %v1188
        %1253 = vst [vmem:[%s216 + $0x8] sm:$0xff] %v1189
        %1254 = vst [vmem:[%s216 + $0x10] sm:$0xff] %v1190
        %1255 = vst [vmem:[%s216 + $0x18] sm:$0xff] %v1191
        %1256 = vst [vmem:[%s216 + $0x20] sm:$0xff] %v1192
        %1257 = vst [vmem:[%s216 + $0x28] sm:$0xff] %v1193
        %1258 = vst [vmem:[%s216 + $0x30] sm:$0xff] %v1194
        %1259 = vst [vmem:[%s216 + $0x38] sm:$0xff] %v1195
        %1260 = vst [vmem:[%s216 + $0x40] sm:$0xff] %v1196
        %1261 = vst [vmem:[%s216 + $0x48] sm:$0xff] %v1197
        %1262 = vst [vmem:[%s216 + $0x50] sm:$0xff] %v1198
        %1263 = vst [vmem:[%s216 + $0x58] sm:$0xff] %v1199
        %1264 = vst [vmem:[%s216 + $0x60] sm:$0xff] %v1200
        %1265 = vst [vmem:[%s216 + $0x68] sm:$0xff] %v1201
        %1266 = vst [vmem:[%s216 + $0x70] sm:$0xff] %v1202
        %1267 = vst [vmem:[%s216 + $0x78] sm:$0xff] %v1203
        %1268 = vst [vmem:[%s216 + $0x80] sm:$0xff] %v1204
        %1269 = vst [vmem:[%s216 + $0x88] sm:$0xff] %v1205
        %1270 = vst [vmem:[%s216 + $0x90] sm:$0xff] %v1206
        %1271 = vst [vmem:[%s216 + $0x98] sm:$0xff] %v1207
        %1272 = vst [vmem:[%s216 + $0xa0] sm:$0xff] %v1208
        %1273 = vst [vmem:[%s216 + $0xa8] sm:$0xff] %v1209
        %1274 = vst [vmem:[%s216 + $0xb0] sm:$0xff] %v1210
        %1275 = vst [vmem:[%s216 + $0xb8] sm:$0xff] %v1211
        %1276 = vst [vmem:[%s216 + $0xc0] sm:$0xff] %v1212
        %1277 = vst [vmem:[%s216 + $0xc8] sm:$0xff] %v1213
        %1278 = vst [vmem:[%s216 + $0xd0] sm:$0xff] %v1214
        %1279 = vst [vmem:[%s216 + $0xd8] sm:$0xff] %v1215
        %1280 = vst [vmem:[%s216 + $0xe0] sm:$0xff] %v1216
        %1281 = vst [vmem:[%s216 + $0xe8] sm:$0xff] %v1217
        %1282 = vst [vmem:[%s216 + $0xf0] sm:$0xff] %v1218
        %1283 = vst [vmem:[%s216 + $0xf8] sm:$0xff] %v1219
        %1284 = vst [vmem:[%s216 + $0x100] sm:$0xff] %v1220
        %1285 = vst [vmem:[%s216 + $0x108] sm:$0xff] %v1221
        %1286 = vst [vmem:[%s216 + $0x110] sm:$0xff] %v1222
        %1287 = vst [vmem:[%s216 + $0x118] sm:$0xff] %v1223
        %1288 = vst [vmem:[%s216 + $0x120] sm:$0xff] %v1224
        %1289 = vst [vmem:[%s216 + $0x128] sm:$0xff] %v1225
        %1290 = vst [vmem:[%s216 + $0x130] sm:$0xff] %v1226
        %1291 = vst [vmem:[%s216 + $0x138] sm:$0xff] %v1227
        %1292 = vst [vmem:[%s216 + $0x140] sm:$0xff] %v1228
        %1293 = vst [vmem:[%s216 + $0x148] sm:$0xff] %v1229
        %1294 = vst [vmem:[%s216 + $0x150] sm:$0xff] %v1230
        %1295 = vst [vmem:[%s216 + $0x158] sm:$0xff] %v1231
        %1296 = vst [vmem:[%s216 + $0x160] sm:$0xff] %v1232
        %1297 = vst [vmem:[%s216 + $0x168] sm:$0xff] %v1233
        %1298 = vst [vmem:[%s216 + $0x170] sm:$0xff] %v1234
        %1299 = vst [vmem:[%s216 + $0x178] sm:$0xff] %v1235
        %1300 = vst [vmem:[%s216 + $0x180] sm:$0xff] %v1236
        %1301 = vst [vmem:[%s216 + $0x188] sm:$0xff] %v1237
        %1302 = vst [vmem:[%s216 + $0x190] sm:$0xff] %v1238
        %1303 = vst [vmem:[%s216 + $0x198] sm:$0xff] %v1239
        %1304 = vst [vmem:[%s216 + $0x1a0] sm:$0xff] %v1240
        %1305 = vst [vmem:[%s216 + $0x1a8] sm:$0xff] %v1241
        %1306 = vst [vmem:[%s216 + $0x1b0] sm:$0xff] %v1242
        %1307 = vst [vmem:[%s216 + $0x1b8] sm:$0xff] %v1243
        %1308 = vst [vmem:[%s216 + $0x1c0] sm:$0xff] %v1244
        %1309 = vst [vmem:[%s216 + $0x1c8] sm:$0xff] %v1245
        %1310 = vst [vmem:[%s216 + $0x1d0] sm:$0xff] %v1246
        %1311 = vst [vmem:[%s216 + $0x1d8] sm:$0xff] %v1247
        %1312 = vst [vmem:[%s216 + $0x1e0] sm:$0xff] %v1248
        %1313 = vst [vmem:[%s216 + $0x1e8] sm:$0xff] %v1249
        %1314 = vst [vmem:[%s216 + $0x1f0] sm:$0xff] %v1250
        %1315 = vst [vmem:[%s216 + $0x1f8] sm:$0xff] %v1251
      $region36: #{forward.131} parent=27 // pred_fallthru
        _
      %s1316 = smul.u32 64, %s19
      %p1317 = scmp.lt.s32.totalorder %s1316, 127
      %s1318 = scalar_select %p1317, %s1316, 127
      %p1319 = scmp.lt.s32.totalorder %s18, 0
      %s1320 = scalar_select %p1319, %s18, 0
      %s1321 = sadd.s32 %s1320, %s1318
      %s1322 = smul.addr %s1321, 8
      %s1323 = scalar_lea.vmem %s2, %s1322
      // Predicated region
      $region37: #{forward.131} parent=27 // pred_check
        %p1324 = pneg %p108
      $region38: #{forward.131} parent=27 // pred_check_branch
        %1326 = sbr.rel (%p1324) target = $region40
      $region39: #{forward.131} parent=27 // pred_region
        %s1327 = smul.u32 64, %s19
      $region40: #{forward.131} parent=27 // pred_fallthru
        _
    $region28: #{forward.131} parent=5 // pred_fallthru
      _
    %p1328 = scmp.le.s32.totalorder 2, %s8
    // Predicated region
    $region41: #{forward.131} parent=5 // pred_check
      %p1329 = pneg %p1328
    $region42: #{forward.131} parent=5 // pred_check_branch
      %1331 = sbr.rel (%p1329) target = $region44
    $region43: #{forward.131} parent=5 // pred_region
      %s1332 = ssub.s32 %s8, 2
      // Predicated region
      $region45: #{forward.131} parent=43 // pred_check
        %p1333 = pneg %p114
      $region46: #{forward.131} parent=43 // pred_check_branch
        %1335 = sbr.rel (%p1333) target = $region48
      $region47: #{forward.131} parent=43 // pred_region
        %s1336 = smul.u32 64, %s22
        %p1337 = scmp.lt.s32.totalorder %s1336, 127
        %s1338 = scalar_select %p1337, %s1336, 127
        %p1339 = scmp.lt.s32.totalorder %s21, 0
        %s1340 = scalar_select %p1339, %s21, 0
        %s1341 = sadd.s32 %s1340, %s1338
        %s1342 = smul.addr %s1341, 8
        %s1343 = scalar_lea.vmem %s2, %s1342
      $region48: #{forward.131} parent=43 // pred_fallthru
        _
    $region44: #{forward.131} parent=5 // pred_fallthru
      _
  $region6: #{forward.131} parent=0 // loop_footer
    %s12 = sadd.s32 1, %s8
  $region7: #{forward.131} parent=0 // loop_footer_branch
    %7 = sbr.rel target = $region3
  $region8: #{forward.131} parent=0 // loop_exit
    _

</llo_original>
